<compile_context>
chip_gen: v7x
topology: tpu7x:2x2x1
jax: 0.10.0
libtpu: 0.0.40
codegen_flags: <defaults>
</compile_context>

<pallas_src>
import functools

import jax
import jax.numpy as jnp
from jax.experimental import pallas as pl
from jax.experimental.pallas import tpu as pltpu

FEATURE_DIM = [1280, 1280, 1408, 1536, 1792, 2048, 2304, 2560]

LANE = 128      # TPU lane width; small channel dims are zero-padded to it.
C_IN = 3
C_STEM = 16     # logical stem channels
C_EXP = 64      # logical MBConv expanded channels
C_SE = 4        # logical squeeze-excite bottleneck channels
C_PROJ = 24     # logical MBConv projected channels
K_PATCH = 32    # 3*3*3 = 27 stem im2col features, padded to 32 lanes
B_TILE = 4      # images per grid step  (M = B_TILE * 64 = 256 matmul rows)
HEAD_CHUNK = 128  # N-chunk of the folded proj+head matmul (c_head % 128 == 0)


# ----------------------------------------------------------------------------
# Fused Pallas kernel: whole forward pass for B_TILE images per grid step
# ----------------------------------------------------------------------------
def _fused_kernel(patch_ref, stem_w, stem_b, exp_w, exp_b, dw_w, dw_b,
                  se1_w, se1_b, se2_w, se2_b, ph_w, ph_b, fc_w, fc_b,
                  o_ref, pad_ref, *, B, H, W):
    f32 = jnp.float32
    bf16 = jnp.bfloat16
    P = H * W

    def mm(x, w_ref, b_ref):
        # bf16 MXU matmul, f32 accumulation; BN scale is pre-folded into w.
        return jnp.dot(x.astype(bf16), w_ref[...],
                       preferred_element_type=f32) + b_ref[...]

    def swish(v):
        return v * jax.nn.sigmoid(v)

    # --- stem: 3x3 stride-2 conv (im2col matmul, K=32) + BN + swish ----------
    x = swish(mm(patch_ref[...].reshape(B * P, K_PATCH), stem_w, stem_b))

    # --- MBConv expand 1x1 + BN + swish ---------------------------------------
    x = swish(mm(x, exp_w, exp_b))                               # (B*P, LANE)

    # --- depthwise 3x3 (stride 1, pad 1) + BN + swish -------------------------
    # Halo scratch (W-dim padded to sublane multiple): the interior is fully
    # overwritten each step; only the 1-px border the taps read is re-zeroed.
    wp = pad_ref.shape[2]
    zrow = jnp.zeros((B, 1, wp, LANE), f32)
    zcol = jnp.zeros((B, H + 2, 1, LANE), f32)
    pad_ref[:, 0:1, :, :] = zrow
    pad_ref[:, H + 1:H + 2, :, :] = zrow
    pad_ref[:, :, 0:1, :] = zcol
    pad_ref[:, :, W + 1:W + 2, :] = zcol
    pad_ref[:, 1:H + 1, 1:W + 1, :] = x.reshape(B, H, W, LANE)
    acc = jnp.zeros((B, H, W, LANE), f32)
    for di in range(3):
        for dj in range(3):
            acc = acc + (pad_ref[:, di:di + H, dj:dj + W, :] *
                         dw_w[di:di + 1, dj:dj + 1, :])
    xd = swish(acc + dw_b[...]).reshape(B, P, LANE)              # (B, P, LANE)

    # --- squeeze-excite (pool + two (B,128) matmuls + channel gate) ------------
    sq = jnp.sum(xd, axis=1) * (1.0 / P)                         # (B, LANE)
    g = swish(mm(sq, se1_w, se1_b))
    g = jax.nn.sigmoid(mm(g, se2_w, se2_b))                      # (B, LANE)
    xs = (xd * g[:, None, :]).reshape(B * P, LANE).astype(bf16)

    # --- folded project+head 1x1 + BN + swish, chunked over c_head; fused with
    #     global average pool and the fc row-block matmul (feat never built) ---
    c_head = ph_w.shape[1]
    logits = jnp.zeros((B, LANE), f32)
    for c in range(c_head // HEAD_CHUNK):
        c0 = c * HEAD_CHUNK
        c1 = c0 + HEAD_CHUNK
        y = jnp.dot(xs, ph_w[:, c0:c1],
                    preferred_element_type=f32) + ph_b[:, c0:c1]
        y = swish(y)                                             # (B*P, CH)
        pooled = jnp.sum(y.reshape(B, P, HEAD_CHUNK), axis=1) * (1.0 / P)
        logits = logits + jnp.dot(pooled.astype(bf16), fc_w[c0:c1, :],
                                  preferred_element_type=f32)

    # flatten is a no-op (already flat); dropout is eval-mode identity.
    o_ref[0] = (logits + fc_b[...]).astype(o_ref.dtype)


# ----------------------------------------------------------------------------
# Glue (pure JAX): im2col for the strided stem conv, parameter init, forward
# ----------------------------------------------------------------------------
def _im2col(x_nhwc, kh, kw, stride, pad):
    n, h, w, c = x_nhwc.shape
    xp = jnp.pad(x_nhwc, ((0, 0), (pad, pad), (pad, pad), (0, 0)))
    ho = (h + 2 * pad - kh) // stride + 1
    wo = (w + 2 * pad - kw) // stride + 1
    cols = []
    for i in range(kh):
        for j in range(kw):
            cols.append(xp[:, i:i + stride * ho:stride, j:j + stride * wo:stride, :])
    patches = jnp.concatenate(cols, axis=-1)           # (N, Ho, Wo, kh*kw*C)
    return patches.reshape(n, ho * wo, kh * kw * c), (n, ho, wo)


def _bn_fold(key, c, eps=1e-3):
    k1, k2, k3, k4 = jax.random.split(key, 4)
    gamma = 1.0 + 0.1 * jax.random.normal(k1, (c,), jnp.float32)
    beta = 0.1 * jax.random.normal(k2, (c,), jnp.float32)
    mean = 0.1 * jax.random.normal(k3, (c,), jnp.float32)
    var = 1.0 + 0.1 * jax.random.uniform(k4, (c,), jnp.float32)
    s = gamma * jax.lax.rsqrt(var + eps)
    t = beta - mean * s
    return s, t


def _pad_mat(w, rows, cols):
    return jnp.zeros((rows, cols), jnp.float32).at[:w.shape[0], :w.shape[1]].set(w)


def _pad_vec(b, n):
    return jnp.zeros((n,), jnp.float32).at[:b.shape[0]].set(b)


def init_params(key, num_class, name="efficientnet-b0"):
    assert num_class <= LANE, "num_class padded to a single 128-lane tile"
    c_head = FEATURE_DIM[int(name[-1])]                # 1280 for b0
    assert c_head % HEAD_CHUNK == 0
    ks = jax.random.split(key, 16)

    def w(k, shape):
        return 0.1 * jax.random.normal(k, shape, jnp.float32)

    stem_w = w(ks[0], (3 * 3 * C_IN, C_STEM))
    stem_s, stem_t = _bn_fold(ks[1], C_STEM)
    exp_w = w(ks[2], (C_STEM, C_EXP))
    exp_s, exp_t = _bn_fold(ks[3], C_EXP)
    dw_w = w(ks[4], (3, 3, C_EXP))
    dw_s, dw_t = _bn_fold(ks[5], C_EXP)
    se1_w = w(ks[6], (C_EXP, C_SE))
    se1_b = w(ks[7], (C_SE,))
    se2_w = w(ks[8], (C_SE, C_EXP))
    se2_b = w(ks[9], (C_EXP,))
    proj_w = w(ks[10], (C_EXP, C_PROJ))
    proj_s, proj_t = _bn_fold(ks[11], C_PROJ)
    head_w = w(ks[12], (C_PROJ, c_head))
    head_s, head_t = _bn_fold(ks[13], c_head)
    fc_w = w(ks[14], (c_head, num_class))
    fc_b = w(ks[15], (num_class,))

    bf16 = jnp.bfloat16
    p = {}
    # BN scale folded into weight columns; bias = folded shift.  Padded rows /
    # columns are zero, so padded channels stay exactly 0 through the network
    # (load-bearing for the SE gate and the folded proj+head matmul).
    p["stem_w"] = _pad_mat(stem_w * stem_s[None, :], K_PATCH, LANE).astype(bf16)
    p["stem_b"] = _pad_vec(stem_t, LANE).reshape(1, LANE)
    p["exp_w"] = _pad_mat(exp_w * exp_s[None, :], LANE, LANE).astype(bf16)
    p["exp_b"] = _pad_vec(exp_t, LANE).reshape(1, LANE)
    p["dw_w"] = jnp.zeros((3, 3, LANE), jnp.float32).at[:, :, :C_EXP].set(
        dw_w * dw_s[None, None, :])
    p["dw_b"] = _pad_vec(dw_t, LANE).reshape(1, LANE)
    p["se1_w"] = _pad_mat(se1_w, LANE, LANE).astype(bf16)
    p["se1_b"] = _pad_vec(se1_b, LANE).reshape(1, LANE)
    p["se2_w"] = _pad_mat(se2_w, LANE, LANE).astype(bf16)
    p["se2_b"] = _pad_vec(se2_b, LANE).reshape(1, LANE)
    # Fold project 1x1 (linear) into head 1x1 (linear-then-swish): exact, since
    # there is no residual/skip path and no activation between them.
    wp_eff = proj_w * proj_s[None, :]                  # (C_EXP, C_PROJ)
    wh_eff = head_w * head_s[None, :]                  # (C_PROJ, c_head)
    p["ph_w"] = _pad_mat(wp_eff @ wh_eff, LANE, c_head).astype(bf16)
    p["ph_b"] = (proj_t @ wh_eff + head_t).reshape(1, c_head)
    p["fc_w"] = _pad_mat(fc_w, c_head, LANE).astype(bf16)
    p["fc_b"] = _pad_vec(fc_b, LANE).reshape(1, LANE)
    return p


@functools.partial(jax.jit, static_argnums=(2,))
def efficientnet_forward(params, x_nchw, num_class):
    # NCHW (PyTorch) -> NHWC (kernel layout), im2col for the stride-2 stem.
    x = jnp.transpose(x_nchw, (0, 2, 3, 1)).astype(jnp.float32)
    patches, (n, ho, wo) = _im2col(x, 3, 3, 2, 1)                # (N, P, 27)
    k = patches.shape[-1]
    patches = jnp.pad(patches,
                      ((0, 0), (0, 0), (0, K_PATCH - k))).astype(jnp.bfloat16)
    # Pad the batch to a multiple of B_TILE (padded images produce garbage
    # logits that are sliced off below; they never touch real rows).
    n_pad = ((n + B_TILE - 1) // B_TILE) * B_TILE
    if n_pad != n:
        patches = jnp.pad(patches, ((0, n_pad - n), (0, 0), (0, 0)))
    n_steps = n_pad // B_TILE
    p_pix = ho * wo
    w_halo = ((wo + 2 + 7) // 8) * 8                   # sublane-aligned halo W

    def w2(a):
        return pl.BlockSpec(a.shape, lambda i: (0, 0))

    def w3(a):
        return pl.BlockSpec(a.shape, lambda i: (0, 0, 0))

    out = pl.pallas_call(
        functools.partial(_fused_kernel, B=B_TILE, H=ho, W=wo),
        out_shape=jax.ShapeDtypeStruct((n_steps, B_TILE, LANE), jnp.float32),
        grid=(n_steps,),
        in_specs=[
            pl.BlockSpec((B_TILE, p_pix, K_PATCH), lambda i: (i, 0, 0)),
            w2(params["stem_w"]), w2(params["stem_b"]),
            w2(params["exp_w"]), w2(params["exp_b"]),
            w3(params["dw_w"]), w2(params["dw_b"]),
            w2(params["se1_w"]), w2(params["se1_b"]),
            w2(params["se2_w"]), w2(params["se2_b"]),
            w2(params["ph_w"]), w2(params["ph_b"]),
            w2(params["fc_w"]), w2(params["fc_b"]),
        ],
        out_specs=pl.BlockSpec((1, B_TILE, LANE), lambda i: (i, 0, 0)),
        scratch_shapes=[pltpu.VMEM((B_TILE, ho + 2, w_halo, LANE), jnp.float32)],
        compiler_params=pltpu.CompilerParams(
            dimension_semantics=("parallel",)),
    )(patches,
      params["stem_w"], params["stem_b"],
      params["exp_w"], params["exp_b"],
      params["dw_w"], params["dw_b"],
      params["se1_w"], params["se1_b"],
      params["se2_w"], params["se2_b"],
      params["ph_w"], params["ph_b"],
      params["fc_w"], params["fc_b"])
    return out.reshape(n_pad, LANE)[:n, :num_class]


if __name__ == "__main__":
    key = jax.random.PRNGKey(0)
    kp, kx = jax.random.split(key)
    num_class = 10
    params = init_params(kp, num_class, name="efficientnet-b0")
    # small NCHW input, consistent with the PyTorch module's image input;
    # batch 8 -> grid of 2 steps with 4 images each.
    x = jax.random.normal(kx, (8, 3, 16, 16), jnp.float32)
    out = efficientnet_forward(params, x, num_class)
    jax.block_until_ready(out)
    assert out.shape == (8, num_class), out.shape
    assert jnp.all(jnp.isfinite(out))
    print("KERNEL_OK")
</pallas_src>

<mosaic_0001>
module attributes {stable_mosaic.version = 11 : i64} {
  func.func @_fused_kernel(%arg0: i32, %arg1: memref<4x64x32xbf16, #tpu.memory_space<vmem>>, %arg2: memref<32x128xbf16, #tpu.memory_space<vmem>>, %arg3: memref<1x128xf32, #tpu.memory_space<vmem>>, %arg4: memref<128x128xbf16, #tpu.memory_space<vmem>>, %arg5: memref<1x128xf32, #tpu.memory_space<vmem>>, %arg6: memref<3x3x128xf32, #tpu.memory_space<vmem>>, %arg7: memref<1x128xf32, #tpu.memory_space<vmem>>, %arg8: memref<128x128xbf16, #tpu.memory_space<vmem>>, %arg9: memref<1x128xf32, #tpu.memory_space<vmem>>, %arg10: memref<128x128xbf16, #tpu.memory_space<vmem>>, %arg11: memref<1x128xf32, #tpu.memory_space<vmem>>, %arg12: memref<128x1280xbf16, #tpu.memory_space<vmem>>, %arg13: memref<1x1280xf32, #tpu.memory_space<vmem>>, %arg14: memref<1280x128xbf16, #tpu.memory_space<vmem>>, %arg15: memref<1x128xf32, #tpu.memory_space<vmem>>, %arg16: memref<1x4x128xf32, #tpu.memory_space<vmem>>, %arg17: memref<4x10x16x128xf32, #tpu.memory_space<vmem>>) attributes {dimension_semantics = [#tpu.dimension_semantics<parallel>], iteration_bounds = array<i64: 2>, scalar_prefetch = 0 : i64, scratch_operands = 1 : i64, tpu.core_type = #tpu.core_type<tc>, window_params = [{transform_indices = @transform_0, window_bounds = array<i64: 4, 64, 32>}, {pipeline_mode = #tpu.pipeline_mode<synchronous>, transform_indices = @transform_1, window_bounds = array<i64: 32, 128>}, {pipeline_mode = #tpu.pipeline_mode<synchronous>, transform_indices = @transform_2, window_bounds = array<i64: 1, 128>}, {pipeline_mode = #tpu.pipeline_mode<synchronous>, transform_indices = @transform_3, window_bounds = array<i64: 128, 128>}, {pipeline_mode = #tpu.pipeline_mode<synchronous>, transform_indices = @transform_4, window_bounds = array<i64: 1, 128>}, {pipeline_mode = #tpu.pipeline_mode<synchronous>, transform_indices = @transform_5, window_bounds = array<i64: 3, 3, 128>}, {pipeline_mode = #tpu.pipeline_mode<synchronous>, transform_indices = @transform_6, window_bounds = array<i64: 1, 128>}, {pipeline_mode = #tpu.pipeline_mode<synchronous>, transform_indices = @transform_7, window_bounds = array<i64: 128, 128>}, {pipeline_mode = #tpu.pipeline_mode<synchronous>, transform_indices = @transform_8, window_bounds = array<i64: 1, 128>}, {pipeline_mode = #tpu.pipeline_mode<synchronous>, transform_indices = @transform_9, window_bounds = array<i64: 128, 128>}, {pipeline_mode = #tpu.pipeline_mode<synchronous>, transform_indices = @transform_10, window_bounds = array<i64: 1, 128>}, {pipeline_mode = #tpu.pipeline_mode<synchronous>, transform_indices = @transform_11, window_bounds = array<i64: 128, 1280>}, {pipeline_mode = #tpu.pipeline_mode<synchronous>, transform_indices = @transform_12, window_bounds = array<i64: 1, 1280>}, {pipeline_mode = #tpu.pipeline_mode<synchronous>, transform_indices = @transform_13, window_bounds = array<i64: 1280, 128>}, {pipeline_mode = #tpu.pipeline_mode<synchronous>, transform_indices = @transform_14, window_bounds = array<i64: 1, 128>}, {transform_indices = @transform_15, window_bounds = array<i64: 1, 4, 128>}]} {
    %c0 = arith.constant 0 : index
    %c0_0 = arith.constant 0 : index
    %c0_1 = arith.constant 0 : index
    %0 = vector.load %arg1[%c0, %c0_0, %c0_1] : memref<4x64x32xbf16, #tpu.memory_space<vmem>>, vector<4x64x32xbf16>
    %1 = vector.shape_cast %0 : vector<4x64x32xbf16> to vector<256x32xbf16>
    %c0_2 = arith.constant 0 : index
    %c0_3 = arith.constant 0 : index
    %2 = vector.load %arg2[%c0_2, %c0_3] : memref<32x128xbf16, #tpu.memory_space<vmem>>, vector<32x128xbf16>
    %cst = arith.constant dense<0.000000e+00> : vector<256x128xf32>
    %3 = tpu.matmul %1, %2, %cst {dimension_numbers = #tpu.dot_dimension_numbers<[1], [0], [0], [1], [0, 0, 1, 1], [], []>} : vector<256x32xbf16>, vector<32x128xbf16>, vector<256x128xf32> -> vector<256x128xf32>
    %c0_4 = arith.constant 0 : index
    %c0_5 = arith.constant 0 : index
    %4 = vector.load %arg3[%c0_4, %c0_5] : memref<1x128xf32, #tpu.memory_space<vmem>>, vector<1x128xf32>
    %5 = vector.broadcast %4 : vector<1x128xf32> to vector<256x128xf32>
    %6 = arith.addf %3, %5 : vector<256x128xf32>
    %7 = arith.negf %6 : vector<256x128xf32>
    %8 = math.exp %7 : vector<256x128xf32>
    %cst_6 = arith.constant 1.000000e+00 : f32
    %9 = vector.broadcast %cst_6 : f32 to vector<256x128xf32>
    %10 = arith.addf %9, %8 : vector<256x128xf32>
    %11 = arith.divf %9, %10 : vector<256x128xf32>
    %12 = arith.mulf %6, %11 : vector<256x128xf32>
    %13 = arith.truncf %12 : vector<256x128xf32> to vector<256x128xbf16>
    %c0_7 = arith.constant 0 : index
    %c0_8 = arith.constant 0 : index
    %14 = vector.load %arg4[%c0_7, %c0_8] : memref<128x128xbf16, #tpu.memory_space<vmem>>, vector<128x128xbf16>
    %cst_9 = arith.constant dense<0.000000e+00> : vector<256x128xf32>
    %15 = tpu.matmul %13, %14, %cst_9 {dimension_numbers = #tpu.dot_dimension_numbers<[1], [0], [0], [1], [0, 0, 1, 1], [], []>} : vector<256x128xbf16>, vector<128x128xbf16>, vector<256x128xf32> -> vector<256x128xf32>
    %c0_10 = arith.constant 0 : index
    %c0_11 = arith.constant 0 : index
    %16 = vector.load %arg5[%c0_10, %c0_11] : memref<1x128xf32, #tpu.memory_space<vmem>>, vector<1x128xf32>
    %17 = vector.broadcast %16 : vector<1x128xf32> to vector<256x128xf32>
    %18 = arith.addf %15, %17 : vector<256x128xf32>
    %19 = arith.negf %18 : vector<256x128xf32>
    %20 = math.exp %19 : vector<256x128xf32>
    %cst_12 = arith.constant 1.000000e+00 : f32
    %21 = vector.broadcast %cst_12 : f32 to vector<256x128xf32>
    %22 = arith.addf %21, %20 : vector<256x128xf32>
    %23 = arith.divf %21, %22 : vector<256x128xf32>
    %24 = arith.mulf %18, %23 : vector<256x128xf32>
    %cst_13 = arith.constant 0.000000e+00 : f32
    %25 = vector.broadcast %cst_13 : f32 to vector<4x1x16x128xf32>
    %cst_14 = arith.constant 0.000000e+00 : f32
    %26 = vector.broadcast %cst_14 : f32 to vector<4x10x1x128xf32>
    %c0_15 = arith.constant 0 : index
    %c0_16 = arith.constant 0 : index
    %c0_17 = arith.constant 0 : index
    %c0_18 = arith.constant 0 : index
    %27 = vector.load %arg17[%c0_15, %c0_16, %c0_17, %c0_18] : memref<4x10x16x128xf32, #tpu.memory_space<vmem>>, vector<4x1x16x128xf32>
    tpu.vector_store %arg17[%c0_15, %c0_16, %c0_17, %c0_18], %25 {strides = array<i32>} : memref<4x10x16x128xf32, #tpu.memory_space<vmem>>, vector<4x1x16x128xf32>,
    %c0_19 = arith.constant 0 : index
    %c9 = arith.constant 9 : index
    %c0_20 = arith.constant 0 : index
    %c0_21 = arith.constant 0 : index
    %28 = vector.load %arg17[%c0_19, %c9, %c0_20, %c0_21] : memref<4x10x16x128xf32, #tpu.memory_space<vmem>>, vector<4x1x16x128xf32>
    tpu.vector_store %arg17[%c0_19, %c9, %c0_20, %c0_21], %25 {strides = array<i32>} : memref<4x10x16x128xf32, #tpu.memory_space<vmem>>, vector<4x1x16x128xf32>,
    %c0_22 = arith.constant 0 : index
    %c0_23 = arith.constant 0 : index
    %c0_24 = arith.constant 0 : index
    %c0_25 = arith.constant 0 : index
    %29 = vector.load %arg17[%c0_22, %c0_23, %c0_24, %c0_25] : memref<4x10x16x128xf32, #tpu.memory_space<vmem>>, vector<4x10x1x128xf32>
    tpu.vector_store %arg17[%c0_22, %c0_23, %c0_24, %c0_25], %26 {strides = array<i32>} : memref<4x10x16x128xf32, #tpu.memory_space<vmem>>, vector<4x10x1x128xf32>,
    %c0_26 = arith.constant 0 : index
    %c0_27 = arith.constant 0 : index
    %c9_28 = arith.constant 9 : index
    %c0_29 = arith.constant 0 : index
    %30 = vector.load %arg17[%c0_26, %c0_27, %c9_28, %c0_29] : memref<4x10x16x128xf32, #tpu.memory_space<vmem>>, vector<4x10x1x128xf32>
    tpu.vector_store %arg17[%c0_26, %c0_27, %c9_28, %c0_29], %26 {strides = array<i32>} : memref<4x10x16x128xf32, #tpu.memory_space<vmem>>, vector<4x10x1x128xf32>,
    %31 = vector.shape_cast %24 : vector<256x128xf32> to vector<4x8x8x128xf32>
    %c0_30 = arith.constant 0 : index
    %c1 = arith.constant 1 : index
    %c1_31 = arith.constant 1 : index
    %c0_32 = arith.constant 0 : index
    %32 = vector.load %arg17[%c0_30, %c1, %c1_31, %c0_32] : memref<4x10x16x128xf32, #tpu.memory_space<vmem>>, vector<4x8x8x128xf32>
    tpu.vector_store %arg17[%c0_30, %c1, %c1_31, %c0_32], %31 {strides = array<i32>} : memref<4x10x16x128xf32, #tpu.memory_space<vmem>>, vector<4x8x8x128xf32>,
    %cst_33 = arith.constant 0.000000e+00 : f32
    %33 = vector.broadcast %cst_33 : f32 to vector<4x8x8x128xf32>
    %c0_34 = arith.constant 0 : index
    %c0_35 = arith.constant 0 : index
    %c0_36 = arith.constant 0 : index
    %c0_37 = arith.constant 0 : index
    %34 = vector.load %arg17[%c0_34, %c0_35, %c0_36, %c0_37] : memref<4x10x16x128xf32, #tpu.memory_space<vmem>>, vector<4x8x8x128xf32>
    %c0_38 = arith.constant 0 : index
    %c0_39 = arith.constant 0 : index
    %c0_40 = arith.constant 0 : index
    %35 = vector.load %arg6[%c0_38, %c0_39, %c0_40] : memref<3x3x128xf32, #tpu.memory_space<vmem>>, vector<1x1x128xf32>
    %36 = vector.shape_cast %35 : vector<1x1x128xf32> to vector<1x1x1x128xf32>
    %37 = vector.broadcast %36 : vector<1x1x1x128xf32> to vector<4x8x8x128xf32>
    %38 = arith.mulf %34, %37 : vector<4x8x8x128xf32>
    %39 = arith.addf %33, %38 : vector<4x8x8x128xf32>
    %c0_41 = arith.constant 0 : index
    %c0_42 = arith.constant 0 : index
    %c1_43 = arith.constant 1 : index
    %c0_44 = arith.constant 0 : index
    %40 = vector.load %arg17[%c0_41, %c0_42, %c1_43, %c0_44] : memref<4x10x16x128xf32, #tpu.memory_space<vmem>>, vector<4x8x8x128xf32>
    %c0_45 = arith.constant 0 : index
    %c1_46 = arith.constant 1 : index
    %c0_47 = arith.constant 0 : index
    %41 = vector.load %arg6[%c0_45, %c1_46, %c0_47] : memref<3x3x128xf32, #tpu.memory_space<vmem>>, vector<1x1x128xf32>
    %42 = vector.shape_cast %41 : vector<1x1x128xf32> to vector<1x1x1x128xf32>
    %43 = vector.broadcast %42 : vector<1x1x1x128xf32> to vector<4x8x8x128xf32>
    %44 = arith.mulf %40, %43 : vector<4x8x8x128xf32>
    %45 = arith.addf %39, %44 : vector<4x8x8x128xf32>
    %c0_48 = arith.constant 0 : index
    %c0_49 = arith.constant 0 : index
    %c2 = arith.constant 2 : index
    %c0_50 = arith.constant 0 : index
    %46 = vector.load %arg17[%c0_48, %c0_49, %c2, %c0_50] : memref<4x10x16x128xf32, #tpu.memory_space<vmem>>, vector<4x8x8x128xf32>
    %c0_51 = arith.constant 0 : index
    %c2_52 = arith.constant 2 : index
    %c0_53 = arith.constant 0 : index
    %47 = vector.load %arg6[%c0_51, %c2_52, %c0_53] : memref<3x3x128xf32, #tpu.memory_space<vmem>>, vector<1x1x128xf32>
    %48 = vector.shape_cast %47 : vector<1x1x128xf32> to vector<1x1x1x128xf32>
    %49 = vector.broadcast %48 : vector<1x1x1x128xf32> to vector<4x8x8x128xf32>
    %50 = arith.mulf %46, %49 : vector<4x8x8x128xf32>
    %51 = arith.addf %45, %50 : vector<4x8x8x128xf32>
    %c0_54 = arith.constant 0 : index
    %c1_55 = arith.constant 1 : index
    %c0_56 = arith.constant 0 : index
    %c0_57 = arith.constant 0 : index
    %52 = vector.load %arg17[%c0_54, %c1_55, %c0_56, %c0_57] : memref<4x10x16x128xf32, #tpu.memory_space<vmem>>, vector<4x8x8x128xf32>
    %c1_58 = arith.constant 1 : index
    %c0_59 = arith.constant 0 : index
    %c0_60 = arith.constant 0 : index
    %53 = vector.load %arg6[%c1_58, %c0_59, %c0_60] : memref<3x3x128xf32, #tpu.memory_space<vmem>>, vector<1x1x128xf32>
    %54 = vector.shape_cast %53 : vector<1x1x128xf32> to vector<1x1x1x128xf32>
    %55 = vector.broadcast %54 : vector<1x1x1x128xf32> to vector<4x8x8x128xf32>
    %56 = arith.mulf %52, %55 : vector<4x8x8x128xf32>
    %57 = arith.addf %51, %56 : vector<4x8x8x128xf32>
    %c0_61 = arith.constant 0 : index
    %c1_62 = arith.constant 1 : index
    %c1_63 = arith.constant 1 : index
    %c0_64 = arith.constant 0 : index
    %58 = vector.load %arg17[%c0_61, %c1_62, %c1_63, %c0_64] : memref<4x10x16x128xf32, #tpu.memory_space<vmem>>, vector<4x8x8x128xf32>
    %c1_65 = arith.constant 1 : index
    %c1_66 = arith.constant 1 : index
    %c0_67 = arith.constant 0 : index
    %59 = vector.load %arg6[%c1_65, %c1_66, %c0_67] : memref<3x3x128xf32, #tpu.memory_space<vmem>>, vector<1x1x128xf32>
    %60 = vector.shape_cast %59 : vector<1x1x128xf32> to vector<1x1x1x128xf32>
    %61 = vector.broadcast %60 : vector<1x1x1x128xf32> to vector<4x8x8x128xf32>
    %62 = arith.mulf %58, %61 : vector<4x8x8x128xf32>
    %63 = arith.addf %57, %62 : vector<4x8x8x128xf32>
    %c0_68 = arith.constant 0 : index
    %c1_69 = arith.constant 1 : index
    %c2_70 = arith.constant 2 : index
    %c0_71 = arith.constant 0 : index
    %64 = vector.load %arg17[%c0_68, %c1_69, %c2_70, %c0_71] : memref<4x10x16x128xf32, #tpu.memory_space<vmem>>, vector<4x8x8x128xf32>
    %c1_72 = arith.constant 1 : index
    %c2_73 = arith.constant 2 : index
    %c0_74 = arith.constant 0 : index
    %65 = vector.load %arg6[%c1_72, %c2_73, %c0_74] : memref<3x3x128xf32, #tpu.memory_space<vmem>>, vector<1x1x128xf32>
    %66 = vector.shape_cast %65 : vector<1x1x128xf32> to vector<1x1x1x128xf32>
    %67 = vector.broadcast %66 : vector<1x1x1x128xf32> to vector<4x8x8x128xf32>
    %68 = arith.mulf %64, %67 : vector<4x8x8x128xf32>
    %69 = arith.addf %63, %68 : vector<4x8x8x128xf32>
    %c0_75 = arith.constant 0 : index
    %c2_76 = arith.constant 2 : index
    %c0_77 = arith.constant 0 : index
    %c0_78 = arith.constant 0 : index
    %70 = vector.load %arg17[%c0_75, %c2_76, %c0_77, %c0_78] : memref<4x10x16x128xf32, #tpu.memory_space<vmem>>, vector<4x8x8x128xf32>
    %c2_79 = arith.constant 2 : index
    %c0_80 = arith.constant 0 : index
    %c0_81 = arith.constant 0 : index
    %71 = vector.load %arg6[%c2_79, %c0_80, %c0_81] : memref<3x3x128xf32, #tpu.memory_space<vmem>>, vector<1x1x128xf32>
    %72 = vector.shape_cast %71 : vector<1x1x128xf32> to vector<1x1x1x128xf32>
    %73 = vector.broadcast %72 : vector<1x1x1x128xf32> to vector<4x8x8x128xf32>
    %74 = arith.mulf %70, %73 : vector<4x8x8x128xf32>
    %75 = arith.addf %69, %74 : vector<4x8x8x128xf32>
    %c0_82 = arith.constant 0 : index
    %c2_83 = arith.constant 2 : index
    %c1_84 = arith.constant 1 : index
    %c0_85 = arith.constant 0 : index
    %76 = vector.load %arg17[%c0_82, %c2_83, %c1_84, %c0_85] : memref<4x10x16x128xf32, #tpu.memory_space<vmem>>, vector<4x8x8x128xf32>
    %c2_86 = arith.constant 2 : index
    %c1_87 = arith.constant 1 : index
    %c0_88 = arith.constant 0 : index
    %77 = vector.load %arg6[%c2_86, %c1_87, %c0_88] : memref<3x3x128xf32, #tpu.memory_space<vmem>>, vector<1x1x128xf32>
    %78 = vector.shape_cast %77 : vector<1x1x128xf32> to vector<1x1x1x128xf32>
    %79 = vector.broadcast %78 : vector<1x1x1x128xf32> to vector<4x8x8x128xf32>
    %80 = arith.mulf %76, %79 : vector<4x8x8x128xf32>
    %81 = arith.addf %75, %80 : vector<4x8x8x128xf32>
    %c0_89 = arith.constant 0 : index
    %c2_90 = arith.constant 2 : index
    %c2_91 = arith.constant 2 : index
    %c0_92 = arith.constant 0 : index
    %82 = vector.load %arg17[%c0_89, %c2_90, %c2_91, %c0_92] : memref<4x10x16x128xf32, #tpu.memory_space<vmem>>, vector<4x8x8x128xf32>
    %c2_93 = arith.constant 2 : index
    %c2_94 = arith.constant 2 : index
    %c0_95 = arith.constant 0 : index
    %83 = vector.load %arg6[%c2_93, %c2_94, %c0_95] : memref<3x3x128xf32, #tpu.memory_space<vmem>>, vector<1x1x128xf32>
    %84 = vector.shape_cast %83 : vector<1x1x128xf32> to vector<1x1x1x128xf32>
    %85 = vector.broadcast %84 : vector<1x1x1x128xf32> to vector<4x8x8x128xf32>
    %86 = arith.mulf %82, %85 : vector<4x8x8x128xf32>
    %87 = arith.addf %81, %86 : vector<4x8x8x128xf32>
    %c0_96 = arith.constant 0 : index
    %c0_97 = arith.constant 0 : index
    %88 = vector.load %arg7[%c0_96, %c0_97] : memref<1x128xf32, #tpu.memory_space<vmem>>, vector<1x128xf32>
    %89 = vector.shape_cast %88 : vector<1x128xf32> to vector<1x1x1x128xf32>
    %90 = vector.broadcast %89 : vector<1x1x1x128xf32> to vector<4x8x8x128xf32>
    %91 = arith.addf %87, %90 : vector<4x8x8x128xf32>
    %92 = arith.negf %91 : vector<4x8x8x128xf32>
    %93 = math.exp %92 : vector<4x8x8x128xf32>
    %cst_98 = arith.constant 1.000000e+00 : f32
    %94 = vector.broadcast %cst_98 : f32 to vector<4x8x8x128xf32>
    %95 = arith.addf %94, %93 : vector<4x8x8x128xf32>
    %96 = arith.divf %94, %95 : vector<4x8x8x128xf32>
    %97 = arith.mulf %91, %96 : vector<4x8x8x128xf32>
    %98 = vector.shape_cast %97 : vector<4x8x8x128xf32> to vector<4x64x128xf32>
    %cst_99 = arith.constant dense<0.000000e+00> : vector<4x128xf32>
    %99 = vector.multi_reduction <add>, %98, %cst_99 [1] : vector<4x64x128xf32> to vector<4x128xf32>
    %cst_100 = arith.constant 1.562500e-02 : f32
    %100 = vector.broadcast %cst_100 : f32 to vector<4x128xf32>
    %101 = arith.mulf %99, %100 : vector<4x128xf32>
    %102 = arith.truncf %101 : vector<4x128xf32> to vector<4x128xbf16>
    %c0_101 = arith.constant 0 : index
    %c0_102 = arith.constant 0 : index
    %103 = vector.load %arg8[%c0_101, %c0_102] : memref<128x128xbf16, #tpu.memory_space<vmem>>, vector<128x128xbf16>
    %cst_103 = arith.constant dense<0.000000e+00> : vector<4x128xf32>
    %104 = tpu.matmul %102, %103, %cst_103 {dimension_numbers = #tpu.dot_dimension_numbers<[1], [0], [0], [1], [0, 0, 1, 1], [], []>} : vector<4x128xbf16>, vector<128x128xbf16>, vector<4x128xf32> -> vector<4x128xf32>
    %c0_104 = arith.constant 0 : index
    %c0_105 = arith.constant 0 : index
    %105 = vector.load %arg9[%c0_104, %c0_105] : memref<1x128xf32, #tpu.memory_space<vmem>>, vector<1x128xf32>
    %106 = vector.broadcast %105 : vector<1x128xf32> to vector<4x128xf32>
    %107 = arith.addf %104, %106 : vector<4x128xf32>
    %108 = arith.negf %107 : vector<4x128xf32>
    %109 = math.exp %108 : vector<4x128xf32>
    %cst_106 = arith.constant 1.000000e+00 : f32
    %110 = vector.broadcast %cst_106 : f32 to vector<4x128xf32>
    %111 = arith.addf %110, %109 : vector<4x128xf32>
    %112 = arith.divf %110, %111 : vector<4x128xf32>
    %113 = arith.mulf %107, %112 : vector<4x128xf32>
    %114 = arith.truncf %113 : vector<4x128xf32> to vector<4x128xbf16>
    %c0_107 = arith.constant 0 : index
    %c0_108 = arith.constant 0 : index
    %115 = vector.load %arg10[%c0_107, %c0_108] : memref<128x128xbf16, #tpu.memory_space<vmem>>, vector<128x128xbf16>
    %cst_109 = arith.constant dense<0.000000e+00> : vector<4x128xf32>
    %116 = tpu.matmul %114, %115, %cst_109 {dimension_numbers = #tpu.dot_dimension_numbers<[1], [0], [0], [1], [0, 0, 1, 1], [], []>} : vector<4x128xbf16>, vector<128x128xbf16>, vector<4x128xf32> -> vector<4x128xf32>
    %c0_110 = arith.constant 0 : index
    %c0_111 = arith.constant 0 : index
    %117 = vector.load %arg11[%c0_110, %c0_111] : memref<1x128xf32, #tpu.memory_space<vmem>>, vector<1x128xf32>
    %118 = vector.broadcast %117 : vector<1x128xf32> to vector<4x128xf32>
    %119 = arith.addf %116, %118 : vector<4x128xf32>
    %120 = arith.negf %119 : vector<4x128xf32>
    %121 = math.exp %120 : vector<4x128xf32>
    %cst_112 = arith.constant 1.000000e+00 : f32
    %122 = vector.broadcast %cst_112 : f32 to vector<4x128xf32>
    %123 = arith.addf %122, %121 : vector<4x128xf32>
    %124 = arith.divf %122, %123 : vector<4x128xf32>
    %125 = vector.shape_cast %124 : vector<4x128xf32> to vector<4x1x128xf32>
    %126 = vector.broadcast %125 : vector<4x1x128xf32> to vector<4x64x128xf32>
    %127 = arith.mulf %98, %126 : vector<4x64x128xf32>
    %128 = vector.shape_cast %127 : vector<4x64x128xf32> to vector<256x128xf32>
    %129 = arith.truncf %128 : vector<256x128xf32> to vector<256x128xbf16>
    %cst_113 = arith.constant 0.000000e+00 : f32
    %130 = vector.broadcast %cst_113 : f32 to vector<4x128xf32>
    %c0_114 = arith.constant 0 : index
    %c0_115 = arith.constant 0 : index
    %131 = vector.load %arg12[%c0_114, %c0_115] : memref<128x1280xbf16, #tpu.memory_space<vmem>>, vector<128x128xbf16>
    %cst_116 = arith.constant dense<0.000000e+00> : vector<256x128xf32>
    %132 = tpu.matmul %129, %131, %cst_116 {dimension_numbers = #tpu.dot_dimension_numbers<[1], [0], [0], [1], [0, 0, 1, 1], [], []>} : vector<256x128xbf16>, vector<128x128xbf16>, vector<256x128xf32> -> vector<256x128xf32>
    %c0_117 = arith.constant 0 : index
    %c0_118 = arith.constant 0 : index
    %133 = vector.load %arg13[%c0_117, %c0_118] : memref<1x1280xf32, #tpu.memory_space<vmem>>, vector<1x128xf32>
    %134 = vector.broadcast %133 : vector<1x128xf32> to vector<256x128xf32>
    %135 = arith.addf %132, %134 : vector<256x128xf32>
    %136 = arith.negf %135 : vector<256x128xf32>
    %137 = math.exp %136 : vector<256x128xf32>
    %cst_119 = arith.constant 1.000000e+00 : f32
    %138 = vector.broadcast %cst_119 : f32 to vector<256x128xf32>
    %139 = arith.addf %138, %137 : vector<256x128xf32>
    %140 = arith.divf %138, %139 : vector<256x128xf32>
    %141 = arith.mulf %135, %140 : vector<256x128xf32>
    %142 = vector.shape_cast %141 : vector<256x128xf32> to vector<4x64x128xf32>
    %cst_120 = arith.constant dense<0.000000e+00> : vector<4x128xf32>
    %143 = vector.multi_reduction <add>, %142, %cst_120 [1] : vector<4x64x128xf32> to vector<4x128xf32>
    %cst_121 = arith.constant 1.562500e-02 : f32
    %144 = vector.broadcast %cst_121 : f32 to vector<4x128xf32>
    %145 = arith.mulf %143, %144 : vector<4x128xf32>
    %146 = arith.truncf %145 : vector<4x128xf32> to vector<4x128xbf16>
    %c0_122 = arith.constant 0 : index
    %c0_123 = arith.constant 0 : index
    %147 = vector.load %arg14[%c0_122, %c0_123] : memref<1280x128xbf16, #tpu.memory_space<vmem>>, vector<128x128xbf16>
    %cst_124 = arith.constant dense<0.000000e+00> : vector<4x128xf32>
    %148 = tpu.matmul %146, %147, %cst_124 {dimension_numbers = #tpu.dot_dimension_numbers<[1], [0], [0], [1], [0, 0, 1, 1], [], []>} : vector<4x128xbf16>, vector<128x128xbf16>, vector<4x128xf32> -> vector<4x128xf32>
    %149 = arith.addf %130, %148 : vector<4x128xf32>
    %c0_125 = arith.constant 0 : index
    %c128 = arith.constant 128 : index
    %150 = vector.load %arg12[%c0_125, %c128] : memref<128x1280xbf16, #tpu.memory_space<vmem>>, vector<128x128xbf16>
    %cst_126 = arith.constant dense<0.000000e+00> : vector<256x128xf32>
    %151 = tpu.matmul %129, %150, %cst_126 {dimension_numbers = #tpu.dot_dimension_numbers<[1], [0], [0], [1], [0, 0, 1, 1], [], []>} : vector<256x128xbf16>, vector<128x128xbf16>, vector<256x128xf32> -> vector<256x128xf32>
    %c0_127 = arith.constant 0 : index
    %c128_128 = arith.constant 128 : index
    %152 = vector.load %arg13[%c0_127, %c128_128] : memref<1x1280xf32, #tpu.memory_space<vmem>>, vector<1x128xf32>
    %153 = vector.broadcast %152 : vector<1x128xf32> to vector<256x128xf32>
    %154 = arith.addf %151, %153 : vector<256x128xf32>
    %155 = arith.negf %154 : vector<256x128xf32>
    %156 = math.exp %155 : vector<256x128xf32>
    %cst_129 = arith.constant 1.000000e+00 : f32
    %157 = vector.broadcast %cst_129 : f32 to vector<256x128xf32>
    %158 = arith.addf %157, %156 : vector<256x128xf32>
    %159 = arith.divf %157, %158 : vector<256x128xf32>
    %160 = arith.mulf %154, %159 : vector<256x128xf32>
    %161 = vector.shape_cast %160 : vector<256x128xf32> to vector<4x64x128xf32>
    %cst_130 = arith.constant dense<0.000000e+00> : vector<4x128xf32>
    %162 = vector.multi_reduction <add>, %161, %cst_130 [1] : vector<4x64x128xf32> to vector<4x128xf32>
    %cst_131 = arith.constant 1.562500e-02 : f32
    %163 = vector.broadcast %cst_131 : f32 to vector<4x128xf32>
    %164 = arith.mulf %162, %163 : vector<4x128xf32>
    %165 = arith.truncf %164 : vector<4x128xf32> to vector<4x128xbf16>
    %c128_132 = arith.constant 128 : index
    %c0_133 = arith.constant 0 : index
    %166 = vector.load %arg14[%c128_132, %c0_133] : memref<1280x128xbf16, #tpu.memory_space<vmem>>, vector<128x128xbf16>
    %cst_134 = arith.constant dense<0.000000e+00> : vector<4x128xf32>
    %167 = tpu.matmul %165, %166, %cst_134 {dimension_numbers = #tpu.dot_dimension_numbers<[1], [0], [0], [1], [0, 0, 1, 1], [], []>} : vector<4x128xbf16>, vector<128x128xbf16>, vector<4x128xf32> -> vector<4x128xf32>
    %168 = arith.addf %149, %167 : vector<4x128xf32>
    %c0_135 = arith.constant 0 : index
    %c256 = arith.constant 256 : index
    %169 = vector.load %arg12[%c0_135, %c256] : memref<128x1280xbf16, #tpu.memory_space<vmem>>, vector<128x128xbf16>
    %cst_136 = arith.constant dense<0.000000e+00> : vector<256x128xf32>
    %170 = tpu.matmul %129, %169, %cst_136 {dimension_numbers = #tpu.dot_dimension_numbers<[1], [0], [0], [1], [0, 0, 1, 1], [], []>} : vector<256x128xbf16>, vector<128x128xbf16>, vector<256x128xf32> -> vector<256x128xf32>
    %c0_137 = arith.constant 0 : index
    %c256_138 = arith.constant 256 : index
    %171 = vector.load %arg13[%c0_137, %c256_138] : memref<1x1280xf32, #tpu.memory_space<vmem>>, vector<1x128xf32>
    %172 = vector.broadcast %171 : vector<1x128xf32> to vector<256x128xf32>
    %173 = arith.addf %170, %172 : vector<256x128xf32>
    %174 = arith.negf %173 : vector<256x128xf32>
    %175 = math.exp %174 : vector<256x128xf32>
    %cst_139 = arith.constant 1.000000e+00 : f32
    %176 = vector.broadcast %cst_139 : f32 to vector<256x128xf32>
    %177 = arith.addf %176, %175 : vector<256x128xf32>
    %178 = arith.divf %176, %177 : vector<256x128xf32>
    %179 = arith.mulf %173, %178 : vector<256x128xf32>
    %180 = vector.shape_cast %179 : vector<256x128xf32> to vector<4x64x128xf32>
    %cst_140 = arith.constant dense<0.000000e+00> : vector<4x128xf32>
    %181 = vector.multi_reduction <add>, %180, %cst_140 [1] : vector<4x64x128xf32> to vector<4x128xf32>
    %cst_141 = arith.constant 1.562500e-02 : f32
    %182 = vector.broadcast %cst_141 : f32 to vector<4x128xf32>
    %183 = arith.mulf %181, %182 : vector<4x128xf32>
    %184 = arith.truncf %183 : vector<4x128xf32> to vector<4x128xbf16>
    %c256_142 = arith.constant 256 : index
    %c0_143 = arith.constant 0 : index
    %185 = vector.load %arg14[%c256_142, %c0_143] : memref<1280x128xbf16, #tpu.memory_space<vmem>>, vector<128x128xbf16>
    %cst_144 = arith.constant dense<0.000000e+00> : vector<4x128xf32>
    %186 = tpu.matmul %184, %185, %cst_144 {dimension_numbers = #tpu.dot_dimension_numbers<[1], [0], [0], [1], [0, 0, 1, 1], [], []>} : vector<4x128xbf16>, vector<128x128xbf16>, vector<4x128xf32> -> vector<4x128xf32>
    %187 = arith.addf %168, %186 : vector<4x128xf32>
    %c0_145 = arith.constant 0 : index
    %c384 = arith.constant 384 : index
    %188 = vector.load %arg12[%c0_145, %c384] : memref<128x1280xbf16, #tpu.memory_space<vmem>>, vector<128x128xbf16>
    %cst_146 = arith.constant dense<0.000000e+00> : vector<256x128xf32>
    %189 = tpu.matmul %129, %188, %cst_146 {dimension_numbers = #tpu.dot_dimension_numbers<[1], [0], [0], [1], [0, 0, 1, 1], [], []>} : vector<256x128xbf16>, vector<128x128xbf16>, vector<256x128xf32> -> vector<256x128xf32>
    %c0_147 = arith.constant 0 : index
    %c384_148 = arith.constant 384 : index
    %190 = vector.load %arg13[%c0_147, %c384_148] : memref<1x1280xf32, #tpu.memory_space<vmem>>, vector<1x128xf32>
    %191 = vector.broadcast %190 : vector<1x128xf32> to vector<256x128xf32>
    %192 = arith.addf %189, %191 : vector<256x128xf32>
    %193 = arith.negf %192 : vector<256x128xf32>
    %194 = math.exp %193 : vector<256x128xf32>
    %cst_149 = arith.constant 1.000000e+00 : f32
    %195 = vector.broadcast %cst_149 : f32 to vector<256x128xf32>
    %196 = arith.addf %195, %194 : vector<256x128xf32>
    %197 = arith.divf %195, %196 : vector<256x128xf32>
    %198 = arith.mulf %192, %197 : vector<256x128xf32>
    %199 = vector.shape_cast %198 : vector<256x128xf32> to vector<4x64x128xf32>
    %cst_150 = arith.constant dense<0.000000e+00> : vector<4x128xf32>
    %200 = vector.multi_reduction <add>, %199, %cst_150 [1] : vector<4x64x128xf32> to vector<4x128xf32>
    %cst_151 = arith.constant 1.562500e-02 : f32
    %201 = vector.broadcast %cst_151 : f32 to vector<4x128xf32>
    %202 = arith.mulf %200, %201 : vector<4x128xf32>
    %203 = arith.truncf %202 : vector<4x128xf32> to vector<4x128xbf16>
    %c384_152 = arith.constant 384 : index
    %c0_153 = arith.constant 0 : index
    %204 = vector.load %arg14[%c384_152, %c0_153] : memref<1280x128xbf16, #tpu.memory_space<vmem>>, vector<128x128xbf16>
    %cst_154 = arith.constant dense<0.000000e+00> : vector<4x128xf32>
    %205 = tpu.matmul %203, %204, %cst_154 {dimension_numbers = #tpu.dot_dimension_numbers<[1], [0], [0], [1], [0, 0, 1, 1], [], []>} : vector<4x128xbf16>, vector<128x128xbf16>, vector<4x128xf32> -> vector<4x128xf32>
    %206 = arith.addf %187, %205 : vector<4x128xf32>
    %c0_155 = arith.constant 0 : index
    %c512 = arith.constant 512 : index
    %207 = vector.load %arg12[%c0_155, %c512] : memref<128x1280xbf16, #tpu.memory_space<vmem>>, vector<128x128xbf16>
    %cst_156 = arith.constant dense<0.000000e+00> : vector<256x128xf32>
    %208 = tpu.matmul %129, %207, %cst_156 {dimension_numbers = #tpu.dot_dimension_numbers<[1], [0], [0], [1], [0, 0, 1, 1], [], []>} : vector<256x128xbf16>, vector<128x128xbf16>, vector<256x128xf32> -> vector<256x128xf32>
    %c0_157 = arith.constant 0 : index
    %c512_158 = arith.constant 512 : index
    %209 = vector.load %arg13[%c0_157, %c512_158] : memref<1x1280xf32, #tpu.memory_space<vmem>>, vector<1x128xf32>
    %210 = vector.broadcast %209 : vector<1x128xf32> to vector<256x128xf32>
    %211 = arith.addf %208, %210 : vector<256x128xf32>
    %212 = arith.negf %211 : vector<256x128xf32>
    %213 = math.exp %212 : vector<256x128xf32>
    %cst_159 = arith.constant 1.000000e+00 : f32
    %214 = vector.broadcast %cst_159 : f32 to vector<256x128xf32>
    %215 = arith.addf %214, %213 : vector<256x128xf32>
    %216 = arith.divf %214, %215 : vector<256x128xf32>
    %217 = arith.mulf %211, %216 : vector<256x128xf32>
    %218 = vector.shape_cast %217 : vector<256x128xf32> to vector<4x64x128xf32>
    %cst_160 = arith.constant dense<0.000000e+00> : vector<4x128xf32>
    %219 = vector.multi_reduction <add>, %218, %cst_160 [1] : vector<4x64x128xf32> to vector<4x128xf32>
    %cst_161 = arith.constant 1.562500e-02 : f32
    %220 = vector.broadcast %cst_161 : f32 to vector<4x128xf32>
    %221 = arith.mulf %219, %220 : vector<4x128xf32>
    %222 = arith.truncf %221 : vector<4x128xf32> to vector<4x128xbf16>
    %c512_162 = arith.constant 512 : index
    %c0_163 = arith.constant 0 : index
    %223 = vector.load %arg14[%c512_162, %c0_163] : memref<1280x128xbf16, #tpu.memory_space<vmem>>, vector<128x128xbf16>
    %cst_164 = arith.constant dense<0.000000e+00> : vector<4x128xf32>
    %224 = tpu.matmul %222, %223, %cst_164 {dimension_numbers = #tpu.dot_dimension_numbers<[1], [0], [0], [1], [0, 0, 1, 1], [], []>} : vector<4x128xbf16>, vector<128x128xbf16>, vector<4x128xf32> -> vector<4x128xf32>
    %225 = arith.addf %206, %224 : vector<4x128xf32>
    %c0_165 = arith.constant 0 : index
    %c640 = arith.constant 640 : index
    %226 = vector.load %arg12[%c0_165, %c640] : memref<128x1280xbf16, #tpu.memory_space<vmem>>, vector<128x128xbf16>
    %cst_166 = arith.constant dense<0.000000e+00> : vector<256x128xf32>
    %227 = tpu.matmul %129, %226, %cst_166 {dimension_numbers = #tpu.dot_dimension_numbers<[1], [0], [0], [1], [0, 0, 1, 1], [], []>} : vector<256x128xbf16>, vector<128x128xbf16>, vector<256x128xf32> -> vector<256x128xf32>
    %c0_167 = arith.constant 0 : index
    %c640_168 = arith.constant 640 : index
    %228 = vector.load %arg13[%c0_167, %c640_168] : memref<1x1280xf32, #tpu.memory_space<vmem>>, vector<1x128xf32>
    %229 = vector.broadcast %228 : vector<1x128xf32> to vector<256x128xf32>
    %230 = arith.addf %227, %229 : vector<256x128xf32>
    %231 = arith.negf %230 : vector<256x128xf32>
    %232 = math.exp %231 : vector<256x128xf32>
    %cst_169 = arith.constant 1.000000e+00 : f32
    %233 = vector.broadcast %cst_169 : f32 to vector<256x128xf32>
    %234 = arith.addf %233, %232 : vector<256x128xf32>
    %235 = arith.divf %233, %234 : vector<256x128xf32>
    %236 = arith.mulf %230, %235 : vector<256x128xf32>
    %237 = vector.shape_cast %236 : vector<256x128xf32> to vector<4x64x128xf32>
    %cst_170 = arith.constant dense<0.000000e+00> : vector<4x128xf32>
    %238 = vector.multi_reduction <add>, %237, %cst_170 [1] : vector<4x64x128xf32> to vector<4x128xf32>
    %cst_171 = arith.constant 1.562500e-02 : f32
    %239 = vector.broadcast %cst_171 : f32 to vector<4x128xf32>
    %240 = arith.mulf %238, %239 : vector<4x128xf32>
    %241 = arith.truncf %240 : vector<4x128xf32> to vector<4x128xbf16>
    %c640_172 = arith.constant 640 : index
    %c0_173 = arith.constant 0 : index
    %242 = vector.load %arg14[%c640_172, %c0_173] : memref<1280x128xbf16, #tpu.memory_space<vmem>>, vector<128x128xbf16>
    %cst_174 = arith.constant dense<0.000000e+00> : vector<4x128xf32>
    %243 = tpu.matmul %241, %242, %cst_174 {dimension_numbers = #tpu.dot_dimension_numbers<[1], [0], [0], [1], [0, 0, 1, 1], [], []>} : vector<4x128xbf16>, vector<128x128xbf16>, vector<4x128xf32> -> vector<4x128xf32>
    %244 = arith.addf %225, %243 : vector<4x128xf32>
    %c0_175 = arith.constant 0 : index
    %c768 = arith.constant 768 : index
    %245 = vector.load %arg12[%c0_175, %c768] : memref<128x1280xbf16, #tpu.memory_space<vmem>>, vector<128x128xbf16>
    %cst_176 = arith.constant dense<0.000000e+00> : vector<256x128xf32>
    %246 = tpu.matmul %129, %245, %cst_176 {dimension_numbers = #tpu.dot_dimension_numbers<[1], [0], [0], [1], [0, 0, 1, 1], [], []>} : vector<256x128xbf16>, vector<128x128xbf16>, vector<256x128xf32> -> vector<256x128xf32>
    %c0_177 = arith.constant 0 : index
    %c768_178 = arith.constant 768 : index
    %247 = vector.load %arg13[%c0_177, %c768_178] : memref<1x1280xf32, #tpu.memory_space<vmem>>, vector<1x128xf32>
    %248 = vector.broadcast %247 : vector<1x128xf32> to vector<256x128xf32>
    %249 = arith.addf %246, %248 : vector<256x128xf32>
    %250 = arith.negf %249 : vector<256x128xf32>
    %251 = math.exp %250 : vector<256x128xf32>
    %cst_179 = arith.constant 1.000000e+00 : f32
    %252 = vector.broadcast %cst_179 : f32 to vector<256x128xf32>
    %253 = arith.addf %252, %251 : vector<256x128xf32>
    %254 = arith.divf %252, %253 : vector<256x128xf32>
    %255 = arith.mulf %249, %254 : vector<256x128xf32>
    %256 = vector.shape_cast %255 : vector<256x128xf32> to vector<4x64x128xf32>
    %cst_180 = arith.constant dense<0.000000e+00> : vector<4x128xf32>
    %257 = vector.multi_reduction <add>, %256, %cst_180 [1] : vector<4x64x128xf32> to vector<4x128xf32>
    %cst_181 = arith.constant 1.562500e-02 : f32
    %258 = vector.broadcast %cst_181 : f32 to vector<4x128xf32>
    %259 = arith.mulf %257, %258 : vector<4x128xf32>
    %260 = arith.truncf %259 : vector<4x128xf32> to vector<4x128xbf16>
    %c768_182 = arith.constant 768 : index
    %c0_183 = arith.constant 0 : index
    %261 = vector.load %arg14[%c768_182, %c0_183] : memref<1280x128xbf16, #tpu.memory_space<vmem>>, vector<128x128xbf16>
    %cst_184 = arith.constant dense<0.000000e+00> : vector<4x128xf32>
    %262 = tpu.matmul %260, %261, %cst_184 {dimension_numbers = #tpu.dot_dimension_numbers<[1], [0], [0], [1], [0, 0, 1, 1], [], []>} : vector<4x128xbf16>, vector<128x128xbf16>, vector<4x128xf32> -> vector<4x128xf32>
    %263 = arith.addf %244, %262 : vector<4x128xf32>
    %c0_185 = arith.constant 0 : index
    %c896 = arith.constant 896 : index
    %264 = vector.load %arg12[%c0_185, %c896] : memref<128x1280xbf16, #tpu.memory_space<vmem>>, vector<128x128xbf16>
    %cst_186 = arith.constant dense<0.000000e+00> : vector<256x128xf32>
    %265 = tpu.matmul %129, %264, %cst_186 {dimension_numbers = #tpu.dot_dimension_numbers<[1], [0], [0], [1], [0, 0, 1, 1], [], []>} : vector<256x128xbf16>, vector<128x128xbf16>, vector<256x128xf32> -> vector<256x128xf32>
    %c0_187 = arith.constant 0 : index
    %c896_188 = arith.constant 896 : index
    %266 = vector.load %arg13[%c0_187, %c896_188] : memref<1x1280xf32, #tpu.memory_space<vmem>>, vector<1x128xf32>
    %267 = vector.broadcast %266 : vector<1x128xf32> to vector<256x128xf32>
    %268 = arith.addf %265, %267 : vector<256x128xf32>
    %269 = arith.negf %268 : vector<256x128xf32>
    %270 = math.exp %269 : vector<256x128xf32>
    %cst_189 = arith.constant 1.000000e+00 : f32
    %271 = vector.broadcast %cst_189 : f32 to vector<256x128xf32>
    %272 = arith.addf %271, %270 : vector<256x128xf32>
    %273 = arith.divf %271, %272 : vector<256x128xf32>
    %274 = arith.mulf %268, %273 : vector<256x128xf32>
    %275 = vector.shape_cast %274 : vector<256x128xf32> to vector<4x64x128xf32>
    %cst_190 = arith.constant dense<0.000000e+00> : vector<4x128xf32>
    %276 = vector.multi_reduction <add>, %275, %cst_190 [1] : vector<4x64x128xf32> to vector<4x128xf32>
    %cst_191 = arith.constant 1.562500e-02 : f32
    %277 = vector.broadcast %cst_191 : f32 to vector<4x128xf32>
    %278 = arith.mulf %276, %277 : vector<4x128xf32>
    %279 = arith.truncf %278 : vector<4x128xf32> to vector<4x128xbf16>
    %c896_192 = arith.constant 896 : index
    %c0_193 = arith.constant 0 : index
    %280 = vector.load %arg14[%c896_192, %c0_193] : memref<1280x128xbf16, #tpu.memory_space<vmem>>, vector<128x128xbf16>
    %cst_194 = arith.constant dense<0.000000e+00> : vector<4x128xf32>
    %281 = tpu.matmul %279, %280, %cst_194 {dimension_numbers = #tpu.dot_dimension_numbers<[1], [0], [0], [1], [0, 0, 1, 1], [], []>} : vector<4x128xbf16>, vector<128x128xbf16>, vector<4x128xf32> -> vector<4x128xf32>
    %282 = arith.addf %263, %281 : vector<4x128xf32>
    %c0_195 = arith.constant 0 : index
    %c1024 = arith.constant 1024 : index
    %283 = vector.load %arg12[%c0_195, %c1024] : memref<128x1280xbf16, #tpu.memory_space<vmem>>, vector<128x128xbf16>
    %cst_196 = arith.constant dense<0.000000e+00> : vector<256x128xf32>
    %284 = tpu.matmul %129, %283, %cst_196 {dimension_numbers = #tpu.dot_dimension_numbers<[1], [0], [0], [1], [0, 0, 1, 1], [], []>} : vector<256x128xbf16>, vector<128x128xbf16>, vector<256x128xf32> -> vector<256x128xf32>
    %c0_197 = arith.constant 0 : index
    %c1024_198 = arith.constant 1024 : index
    %285 = vector.load %arg13[%c0_197, %c1024_198] : memref<1x1280xf32, #tpu.memory_space<vmem>>, vector<1x128xf32>
    %286 = vector.broadcast %285 : vector<1x128xf32> to vector<256x128xf32>
    %287 = arith.addf %284, %286 : vector<256x128xf32>
    %288 = arith.negf %287 : vector<256x128xf32>
    %289 = math.exp %288 : vector<256x128xf32>
    %cst_199 = arith.constant 1.000000e+00 : f32
    %290 = vector.broadcast %cst_199 : f32 to vector<256x128xf32>
    %291 = arith.addf %290, %289 : vector<256x128xf32>
    %292 = arith.divf %290, %291 : vector<256x128xf32>
    %293 = arith.mulf %287, %292 : vector<256x128xf32>
    %294 = vector.shape_cast %293 : vector<256x128xf32> to vector<4x64x128xf32>
    %cst_200 = arith.constant dense<0.000000e+00> : vector<4x128xf32>
    %295 = vector.multi_reduction <add>, %294, %cst_200 [1] : vector<4x64x128xf32> to vector<4x128xf32>
    %cst_201 = arith.constant 1.562500e-02 : f32
    %296 = vector.broadcast %cst_201 : f32 to vector<4x128xf32>
    %297 = arith.mulf %295, %296 : vector<4x128xf32>
    %298 = arith.truncf %297 : vector<4x128xf32> to vector<4x128xbf16>
    %c1024_202 = arith.constant 1024 : index
    %c0_203 = arith.constant 0 : index
    %299 = vector.load %arg14[%c1024_202, %c0_203] : memref<1280x128xbf16, #tpu.memory_space<vmem>>, vector<128x128xbf16>
    %cst_204 = arith.constant dense<0.000000e+00> : vector<4x128xf32>
    %300 = tpu.matmul %298, %299, %cst_204 {dimension_numbers = #tpu.dot_dimension_numbers<[1], [0], [0], [1], [0, 0, 1, 1], [], []>} : vector<4x128xbf16>, vector<128x128xbf16>, vector<4x128xf32> -> vector<4x128xf32>
    %301 = arith.addf %282, %300 : vector<4x128xf32>
    %c0_205 = arith.constant 0 : index
    %c1152 = arith.constant 1152 : index
    %302 = vector.load %arg12[%c0_205, %c1152] : memref<128x1280xbf16, #tpu.memory_space<vmem>>, vector<128x128xbf16>
    %cst_206 = arith.constant dense<0.000000e+00> : vector<256x128xf32>
    %303 = tpu.matmul %129, %302, %cst_206 {dimension_numbers = #tpu.dot_dimension_numbers<[1], [0], [0], [1], [0, 0, 1, 1], [], []>} : vector<256x128xbf16>, vector<128x128xbf16>, vector<256x128xf32> -> vector<256x128xf32>
    %c0_207 = arith.constant 0 : index
    %c1152_208 = arith.constant 1152 : index
    %304 = vector.load %arg13[%c0_207, %c1152_208] : memref<1x1280xf32, #tpu.memory_space<vmem>>, vector<1x128xf32>
    %305 = vector.broadcast %304 : vector<1x128xf32> to vector<256x128xf32>
    %306 = arith.addf %303, %305 : vector<256x128xf32>
    %307 = arith.negf %306 : vector<256x128xf32>
    %308 = math.exp %307 : vector<256x128xf32>
    %cst_209 = arith.constant 1.000000e+00 : f32
    %309 = vector.broadcast %cst_209 : f32 to vector<256x128xf32>
    %310 = arith.addf %309, %308 : vector<256x128xf32>
    %311 = arith.divf %309, %310 : vector<256x128xf32>
    %312 = arith.mulf %306, %311 : vector<256x128xf32>
    %313 = vector.shape_cast %312 : vector<256x128xf32> to vector<4x64x128xf32>
    %cst_210 = arith.constant dense<0.000000e+00> : vector<4x128xf32>
    %314 = vector.multi_reduction <add>, %313, %cst_210 [1] : vector<4x64x128xf32> to vector<4x128xf32>
    %cst_211 = arith.constant 1.562500e-02 : f32
    %315 = vector.broadcast %cst_211 : f32 to vector<4x128xf32>
    %316 = arith.mulf %314, %315 : vector<4x128xf32>
    %317 = arith.truncf %316 : vector<4x128xf32> to vector<4x128xbf16>
    %c1152_212 = arith.constant 1152 : index
    %c0_213 = arith.constant 0 : index
    %318 = vector.load %arg14[%c1152_212, %c0_213] : memref<1280x128xbf16, #tpu.memory_space<vmem>>, vector<128x128xbf16>
    %cst_214 = arith.constant dense<0.000000e+00> : vector<4x128xf32>
    %319 = tpu.matmul %317, %318, %cst_214 {dimension_numbers = #tpu.dot_dimension_numbers<[1], [0], [0], [1], [0, 0, 1, 1], [], []>} : vector<4x128xbf16>, vector<128x128xbf16>, vector<4x128xf32> -> vector<4x128xf32>
    %320 = arith.addf %301, %319 : vector<4x128xf32>
    %c0_215 = arith.constant 0 : index
    %c0_216 = arith.constant 0 : index
    %321 = vector.load %arg15[%c0_215, %c0_216] : memref<1x128xf32, #tpu.memory_space<vmem>>, vector<1x128xf32>
    %322 = vector.broadcast %321 : vector<1x128xf32> to vector<4x128xf32>
    %323 = arith.addf %320, %322 : vector<4x128xf32>
    %c0_217 = arith.constant 0 : index
    %c0_218 = arith.constant 0 : index
    %c0_219 = arith.constant 0 : index
    %324 = vector.load %arg16[%c0_217, %c0_218, %c0_219] : memref<1x4x128xf32, #tpu.memory_space<vmem>>, vector<1x4x128xf32>
    %325 = vector.shape_cast %324 : vector<1x4x128xf32> to vector<4x128xf32>
    %326 = vector.shape_cast %323 : vector<4x128xf32> to vector<1x4x128xf32>
    tpu.vector_store %arg16[%c0_217, %c0_218, %c0_219], %326 {strides = array<i32>} : memref<1x4x128xf32, #tpu.memory_space<vmem>>, vector<1x4x128xf32>,
    return
  }
  func.func @transform_0(%arg0: i32) -> (i32, i32, i32) {
    %c0_i32 = arith.constant 0 : i32
    %c0_i32_0 = arith.constant 0 : i32
    %c0_i32_1 = arith.constant 0 : i32
    return %arg0, %c0_i32, %c0_i32_0 : i32, i32, i32
  }
  func.func @transform_1(%arg0: i32) -> (i32, i32) {
    %c0_i32 = arith.constant 0 : i32
    %c0_i32_0 = arith.constant 0 : i32
    %c0_i32_1 = arith.constant 0 : i32
    return %c0_i32, %c0_i32_0 : i32, i32
  }
  func.func @transform_2(%arg0: i32) -> (i32, i32) {
    %c0_i32 = arith.constant 0 : i32
    %c0_i32_0 = arith.constant 0 : i32
    %c0_i32_1 = arith.constant 0 : i32
    return %c0_i32, %c0_i32_0 : i32, i32
  }
  func.func @transform_3(%arg0: i32) -> (i32, i32) {
    %c0_i32 = arith.constant 0 : i32
    %c0_i32_0 = arith.constant 0 : i32
    %c0_i32_1 = arith.constant 0 : i32
    return %c0_i32, %c0_i32_0 : i32, i32
  }
  func.func @transform_4(%arg0: i32) -> (i32, i32) {
    %c0_i32 = arith.constant 0 : i32
    %c0_i32_0 = arith.constant 0 : i32
    %c0_i32_1 = arith.constant 0 : i32
    return %c0_i32, %c0_i32_0 : i32, i32
  }
  func.func @transform_5(%arg0: i32) -> (i32, i32, i32) {
    %c0_i32 = arith.constant 0 : i32
    %c0_i32_0 = arith.constant 0 : i32
    %c0_i32_1 = arith.constant 0 : i32
    %c0_i32_2 = arith.constant 0 : i32
    return %c0_i32, %c0_i32_0, %c0_i32_1 : i32, i32, i32
  }
  func.func @transform_6(%arg0: i32) -> (i32, i32) {
    %c0_i32 = arith.constant 0 : i32
    %c0_i32_0 = arith.constant 0 : i32
    %c0_i32_1 = arith.constant 0 : i32
    return %c0_i32, %c0_i32_0 : i32, i32
  }
  func.func @transform_7(%arg0: i32) -> (i32, i32) {
    %c0_i32 = arith.constant 0 : i32
    %c0_i32_0 = arith.constant 0 : i32
    %c0_i32_1 = arith.constant 0 : i32
    return %c0_i32, %c0_i32_0 : i32, i32
  }
  func.func @transform_8(%arg0: i32) -> (i32, i32) {
    %c0_i32 = arith.constant 0 : i32
    %c0_i32_0 = arith.constant 0 : i32
    %c0_i32_1 = arith.constant 0 : i32
    return %c0_i32, %c0_i32_0 : i32, i32
  }
  func.func @transform_9(%arg0: i32) -> (i32, i32) {
    %c0_i32 = arith.constant 0 : i32
    %c0_i32_0 = arith.constant 0 : i32
    %c0_i32_1 = arith.constant 0 : i32
    return %c0_i32, %c0_i32_0 : i32, i32
  }
  func.func @transform_10(%arg0: i32) -> (i32, i32) {
    %c0_i32 = arith.constant 0 : i32
    %c0_i32_0 = arith.constant 0 : i32
    %c0_i32_1 = arith.constant 0 : i32
    return %c0_i32, %c0_i32_0 : i32, i32
  }
  func.func @transform_11(%arg0: i32) -> (i32, i32) {
    %c0_i32 = arith.constant 0 : i32
    %c0_i32_0 = arith.constant 0 : i32
    %c0_i32_1 = arith.constant 0 : i32
    return %c0_i32, %c0_i32_0 : i32, i32
  }
  func.func @transform_12(%arg0: i32) -> (i32, i32) {
    %c0_i32 = arith.constant 0 : i32
    %c0_i32_0 = arith.constant 0 : i32
    %c0_i32_1 = arith.constant 0 : i32
    return %c0_i32, %c0_i32_0 : i32, i32
  }
  func.func @transform_13(%arg0: i32) -> (i32, i32) {
    %c0_i32 = arith.constant 0 : i32
    %c0_i32_0 = arith.constant 0 : i32
    %c0_i32_1 = arith.constant 0 : i32
    return %c0_i32, %c0_i32_0 : i32, i32
  }
  func.func @transform_14(%arg0: i32) -> (i32, i32) {
    %c0_i32 = arith.constant 0 : i32
    %c0_i32_0 = arith.constant 0 : i32
    %c0_i32_1 = arith.constant 0 : i32
    return %c0_i32, %c0_i32_0 : i32, i32
  }
  func.func @transform_15(%arg0: i32) -> (i32, i32, i32) {
    %c0_i32 = arith.constant 0 : i32
    %c0_i32_0 = arith.constant 0 : i32
    %c0_i32_1 = arith.constant 0 : i32
    return %arg0, %c0_i32, %c0_i32_0 : i32, i32, i32
  }
}

</mosaic_0001>

<llo_original>
// kernel: efficientnet_forward.1
$region0: #{efficientnet_forward.1}
  #allocation0 [shape = 'u32[]', space=smem, size = 0x4, offset = 0x4, fixed_abs, tag = 'smem constant byte address 0x4 - core index']
  #allocation1 [shape = 'u32[144,128]{1,0:T(1,128)}', space=vmem, size = 0x12000, scoped, tag = 'internal scratch']
  #allocation2 [shape = 'f32[4,10,16,128]{3,2,1,0:T(8,128)}', space=vmem, size = 0x50000, scoped, tag = 'scratch operand']
  %s0 = inlined_call_operand.vmem [shape: bf16[8,64,32], index: 0, kind: input, shape index: {}]
  %s1 = inlined_call_operand.vmem [shape: bf16[32,128], index: 1, kind: input, shape index: {}]
  %s2 = inlined_call_operand.vmem [shape: f32[1,128], index: 2, kind: input, shape index: {}]
  %s3 = inlined_call_operand.vmem [shape: bf16[128,128], index: 3, kind: input, shape index: {}]
  %s4 = inlined_call_operand.vmem [shape: f32[1,128], index: 4, kind: input, shape index: {}]
  %s5 = inlined_call_operand.vmem [shape: f32[3,3,128], index: 5, kind: input, shape index: {}]
  %s6 = inlined_call_operand.vmem [shape: f32[1,128], index: 6, kind: input, shape index: {}]
  %s7 = inlined_call_operand.vmem [shape: bf16[128,128], index: 7, kind: input, shape index: {}]
  %s8 = inlined_call_operand.vmem [shape: f32[1,128], index: 8, kind: input, shape index: {}]
  %s9 = inlined_call_operand.vmem [shape: bf16[128,128], index: 9, kind: input, shape index: {}]
  %s10 = inlined_call_operand.vmem [shape: f32[1,128], index: 10, kind: input, shape index: {}]
  %s11 = inlined_call_operand.vmem [shape: bf16[128,1280], index: 11, kind: input, shape index: {}]
  %s12 = inlined_call_operand.vmem [shape: f32[1,1280], index: 12, kind: input, shape index: {}]
  %s13 = inlined_call_operand.vmem [shape: bf16[1280,128], index: 13, kind: input, shape index: {}]
  %s14 = inlined_call_operand.vmem [shape: f32[1,128], index: 14, kind: input, shape index: {}]
  %s15 = inlined_call_operand.hbm [shape: f32[2,4,128], index: 15, kind: output, shape index: {}]
  %s16 = sld [smem:[#allocation0]]
  $region93: #{efficientnet_forward.1} parent=0
    _
  %s18 = ssub.s32 1, %s16
  %s19 = scalar_select 0, %s18, %s16
  $region1: #{efficientnet_forward.1} parent=0
    #allocation3 [shape = 'u8[4096]{0}', space=vmem, size = 0x1000, scoped, tag = 'output window, operand 0']
    #allocation4 [shape = 's32[2]{0}', space=sflag, size = 0x8, scoped, tag = 'scoped memory for efficientnet_forward.1']
    %20 = vsyncpa [#allocation4], 0
    %s21 = scalar_lea.sflag [#allocation4], 1
    %22 = vsyncpa %s21, 0
    loop: start=0, step=1, limit=4
    $region2: #{efficientnet_forward.1} parent=1 // loop_pre_header
      _
    $region3: #{efficientnet_forward.1} parent=1 // loop_header
      %s24 = sphi 0, %s28
      %p25 = scmp.ge.s32.totalorder %s24, 4
      %s34 = sphi 0, %s36
      %s37 = sphi 0, %s34
      %s38 = sphi 0, %s37
      %s54 = sphi 0, %s38
      %s58 = sphi 0, %s58
      %s60 = sphi 0, %s58
      %s61 = sphi 0, %s60
      %s75 = sphi 0, %s61
      %s79 = sphi 0, %s79
      %s81 = sphi 0, %s79
      %s82 = sphi 0, %s81
      %s96 = sphi 0, %s82
      %s100 = sphi 0, %s100
      %s102 = sphi 0, %s100
      %s103 = sphi 0, %s102
      %s117 = sphi 0, %s103
      %s121 = sphi 0, %s121
      %s123 = sphi 0, %s121
      %s124 = sphi 0, %s123
      %s138 = sphi 0, %s124
      %s142 = sphi 0, %s142
      %s144 = sphi 0, %s142
      %s145 = sphi 0, %s144
      %s159 = sphi 0, %s145
      %s163 = sphi 0, %s163
      %s165 = sphi 0, %s163
      %s166 = sphi 0, %s165
      %s180 = sphi 0, %s166
      %s184 = sphi 0, %s184
      %s186 = sphi 0, %s184
      %s187 = sphi 0, %s186
      %s201 = sphi 0, %s187
      %s205 = sphi 0, %s205
      %s207 = sphi 0, %s205
      %s208 = sphi 0, %s207
      %s222 = sphi 0, %s208
      %s226 = sphi 0, %s226
      %s228 = sphi 0, %s226
      %s229 = sphi 0, %s228
      %s243 = sphi 0, %s229
      %s247 = sphi 0, %s247
      %s249 = sphi 0, %s247
      %s250 = sphi 0, %s249
      %s264 = sphi 0, %s250
      %s268 = sphi 0, %s268
      %s270 = sphi 0, %s268
      %s271 = sphi 0, %s270
      %s285 = sphi 0, %s271
      %s289 = sphi 0, %s289
      %s291 = sphi 0, %s289
      %s292 = sphi 0, %s291
      %s306 = sphi 0, %s292
      %s310 = sphi 0, %s310
      %s312 = sphi 0, %s310
      %s313 = sphi 0, %s312
      %s327 = sphi 0, %s313
      %s331 = sphi 0, %s331
      %s333 = sphi 0, %s331
      %s334 = sphi 0, %s333
      %s348 = sphi 0, %s334
      %s354 = sphi 0, %s356
      %s357 = sphi 0, %s354
      %s358 = sphi 0, %s357
      %s374 = sphi 0, %s358
    $region4: #{efficientnet_forward.1} parent=1 // loop_header_branch
      %27 = sbr.rel (%p25) target = $region8
    $region5: #{efficientnet_forward.1} parent=1 // loop_body
      %s29 = ssub.s32 %s24, 1
      %s30 = ssub.s32 %s24, 2
      %s31 = sadd.s32 %s24, 1
      %s32 = ssub.s32 %s24, %s31
      %p33 = scmp.eq.s32.totalorder %s32, 0
      %s35 = sadd.s32 %s34, 1
      %s36 = scalar_select %p33, %s34, %s35
      %p39 = pneg %p33
      %p40 = scmp.eq.s32.totalorder %s24, 1
      %p41 = por %p39, %p40
      %p42 = scmp.ne.s32.totalorder %s34, %s37
      %p43 = scmp.eq.s32.totalorder %s24, 0
      %p44 = por %p42, %p43
      %p45 = scmp.ne.s32.totalorder %s34, %s37
      %p46 = scmp.eq.s32.totalorder %s29, 1
      %p47 = por %p45, %p46
      %p48 = scmp.ne.s32.totalorder %s37, %s38
      %p49 = scmp.eq.s32.totalorder %s29, 0
      %p50 = por %p48, %p49
      %p51 = scmp.ne.s32.totalorder %s37, %s38
      %p52 = scmp.eq.s32.totalorder %s30, 1
      %p53 = por %p51, %p52
      %p55 = scmp.ne.s32.totalorder %s38, %s54
      %p56 = scmp.eq.s32.totalorder %s30, 0
      %p57 = por %p55, %p56
      %s59 = sadd.s32 %s58, 1
      %p62 = scmp.eq.s32.totalorder %s24, 1
      %p63 = scmp.ne.s32.totalorder %s58, %s60
      %p64 = scmp.eq.s32.totalorder %s24, 0
      %p65 = por %p63, %p64
      %p66 = scmp.ne.s32.totalorder %s58, %s60
      %p67 = scmp.eq.s32.totalorder %s29, 1
      %p68 = por %p66, %p67
      %p69 = scmp.ne.s32.totalorder %s60, %s61
      %p70 = scmp.eq.s32.totalorder %s29, 0
      %p71 = por %p69, %p70
      %p72 = scmp.ne.s32.totalorder %s60, %s61
      %p73 = scmp.eq.s32.totalorder %s30, 1
      %p74 = por %p72, %p73
      %p76 = scmp.ne.s32.totalorder %s61, %s75
      %p77 = scmp.eq.s32.totalorder %s30, 0
      %p78 = por %p76, %p77
      %s80 = sadd.s32 %s79, 1
      %p83 = scmp.eq.s32.totalorder %s24, 1
      %p84 = scmp.ne.s32.totalorder %s79, %s81
      %p85 = scmp.eq.s32.totalorder %s24, 0
      %p86 = por %p84, %p85
      %p87 = scmp.ne.s32.totalorder %s79, %s81
      %p88 = scmp.eq.s32.totalorder %s29, 1
      %p89 = por %p87, %p88
      %p90 = scmp.ne.s32.totalorder %s81, %s82
      %p91 = scmp.eq.s32.totalorder %s29, 0
      %p92 = por %p90, %p91
      %p93 = scmp.ne.s32.totalorder %s81, %s82
      %p94 = scmp.eq.s32.totalorder %s30, 1
      %p95 = por %p93, %p94
      %p97 = scmp.ne.s32.totalorder %s82, %s96
      %p98 = scmp.eq.s32.totalorder %s30, 0
      %p99 = por %p97, %p98
      %s101 = sadd.s32 %s100, 1
      %p104 = scmp.eq.s32.totalorder %s24, 1
      %p105 = scmp.ne.s32.totalorder %s100, %s102
      %p106 = scmp.eq.s32.totalorder %s24, 0
      %p107 = por %p105, %p106
      %p108 = scmp.ne.s32.totalorder %s100, %s102
      %p109 = scmp.eq.s32.totalorder %s29, 1
      %p110 = por %p108, %p109
      %p111 = scmp.ne.s32.totalorder %s102, %s103
      %p112 = scmp.eq.s32.totalorder %s29, 0
      %p113 = por %p111, %p112
      %p114 = scmp.ne.s32.totalorder %s102, %s103
      %p115 = scmp.eq.s32.totalorder %s30, 1
      %p116 = por %p114, %p115
      %p118 = scmp.ne.s32.totalorder %s103, %s117
      %p119 = scmp.eq.s32.totalorder %s30, 0
      %p120 = por %p118, %p119
      %s122 = sadd.s32 %s121, 1
      %p125 = scmp.eq.s32.totalorder %s24, 1
      %p126 = scmp.ne.s32.totalorder %s121, %s123
      %p127 = scmp.eq.s32.totalorder %s24, 0
      %p128 = por %p126, %p127
      %p129 = scmp.ne.s32.totalorder %s121, %s123
      %p130 = scmp.eq.s32.totalorder %s29, 1
      %p131 = por %p129, %p130
      %p132 = scmp.ne.s32.totalorder %s123, %s124
      %p133 = scmp.eq.s32.totalorder %s29, 0
      %p134 = por %p132, %p133
      %p135 = scmp.ne.s32.totalorder %s123, %s124
      %p136 = scmp.eq.s32.totalorder %s30, 1
      %p137 = por %p135, %p136
      %p139 = scmp.ne.s32.totalorder %s124, %s138
      %p140 = scmp.eq.s32.totalorder %s30, 0
      %p141 = por %p139, %p140
      %s143 = sadd.s32 %s142, 1
      %p146 = scmp.eq.s32.totalorder %s24, 1
      %p147 = scmp.ne.s32.totalorder %s142, %s144
      %p148 = scmp.eq.s32.totalorder %s24, 0
      %p149 = por %p147, %p148
      %p150 = scmp.ne.s32.totalorder %s142, %s144
      %p151 = scmp.eq.s32.totalorder %s29, 1
      %p152 = por %p150, %p151
      %p153 = scmp.ne.s32.totalorder %s144, %s145
      %p154 = scmp.eq.s32.totalorder %s29, 0
      %p155 = por %p153, %p154
      %p156 = scmp.ne.s32.totalorder %s144, %s145
      %p157 = scmp.eq.s32.totalorder %s30, 1
      %p158 = por %p156, %p157
      %p160 = scmp.ne.s32.totalorder %s145, %s159
      %p161 = scmp.eq.s32.totalorder %s30, 0
      %p162 = por %p160, %p161
      %s164 = sadd.s32 %s163, 1
      %p167 = scmp.eq.s32.totalorder %s24, 1
      %p168 = scmp.ne.s32.totalorder %s163, %s165
      %p169 = scmp.eq.s32.totalorder %s24, 0
      %p170 = por %p168, %p169
      %p171 = scmp.ne.s32.totalorder %s163, %s165
      %p172 = scmp.eq.s32.totalorder %s29, 1
      %p173 = por %p171, %p172
      %p174 = scmp.ne.s32.totalorder %s165, %s166
      %p175 = scmp.eq.s32.totalorder %s29, 0
      %p176 = por %p174, %p175
      %p177 = scmp.ne.s32.totalorder %s165, %s166
      %p178 = scmp.eq.s32.totalorder %s30, 1
      %p179 = por %p177, %p178
      %p181 = scmp.ne.s32.totalorder %s166, %s180
      %p182 = scmp.eq.s32.totalorder %s30, 0
      %p183 = por %p181, %p182
      %s185 = sadd.s32 %s184, 1
      %p188 = scmp.eq.s32.totalorder %s24, 1
      %p189 = scmp.ne.s32.totalorder %s184, %s186
      %p190 = scmp.eq.s32.totalorder %s24, 0
      %p191 = por %p189, %p190
      %p192 = scmp.ne.s32.totalorder %s184, %s186
      %p193 = scmp.eq.s32.totalorder %s29, 1
      %p194 = por %p192, %p193
      %p195 = scmp.ne.s32.totalorder %s186, %s187
      %p196 = scmp.eq.s32.totalorder %s29, 0
      %p197 = por %p195, %p196
      %p198 = scmp.ne.s32.totalorder %s186, %s187
      %p199 = scmp.eq.s32.totalorder %s30, 1
      %p200 = por %p198, %p199
      %p202 = scmp.ne.s32.totalorder %s187, %s201
      %p203 = scmp.eq.s32.totalorder %s30, 0
      %p204 = por %p202, %p203
      %s206 = sadd.s32 %s205, 1
      %p209 = scmp.eq.s32.totalorder %s24, 1
      %p210 = scmp.ne.s32.totalorder %s205, %s207
      %p211 = scmp.eq.s32.totalorder %s24, 0
      %p212 = por %p210, %p211
      %p213 = scmp.ne.s32.totalorder %s205, %s207
      %p214 = scmp.eq.s32.totalorder %s29, 1
      %p215 = por %p213, %p214
      %p216 = scmp.ne.s32.totalorder %s207, %s208
      %p217 = scmp.eq.s32.totalorder %s29, 0
      %p218 = por %p216, %p217
      %p219 = scmp.ne.s32.totalorder %s207, %s208
      %p220 = scmp.eq.s32.totalorder %s30, 1
      %p221 = por %p219, %p220
      %p223 = scmp.ne.s32.totalorder %s208, %s222
      %p224 = scmp.eq.s32.totalorder %s30, 0
      %p225 = por %p223, %p224
      %s227 = sadd.s32 %s226, 1
      %p230 = scmp.eq.s32.totalorder %s24, 1
      %p231 = scmp.ne.s32.totalorder %s226, %s228
      %p232 = scmp.eq.s32.totalorder %s24, 0
      %p233 = por %p231, %p232
      %p234 = scmp.ne.s32.totalorder %s226, %s228
      %p235 = scmp.eq.s32.totalorder %s29, 1
      %p236 = por %p234, %p235
      %p237 = scmp.ne.s32.totalorder %s228, %s229
      %p238 = scmp.eq.s32.totalorder %s29, 0
      %p239 = por %p237, %p238
      %p240 = scmp.ne.s32.totalorder %s228, %s229
      %p241 = scmp.eq.s32.totalorder %s30, 1
      %p242 = por %p240, %p241
      %p244 = scmp.ne.s32.totalorder %s229, %s243
      %p245 = scmp.eq.s32.totalorder %s30, 0
      %p246 = por %p244, %p245
      %s248 = sadd.s32 %s247, 1
      %p251 = scmp.eq.s32.totalorder %s24, 1
      %p252 = scmp.ne.s32.totalorder %s247, %s249
      %p253 = scmp.eq.s32.totalorder %s24, 0
      %p254 = por %p252, %p253
      %p255 = scmp.ne.s32.totalorder %s247, %s249
      %p256 = scmp.eq.s32.totalorder %s29, 1
      %p257 = por %p255, %p256
      %p258 = scmp.ne.s32.totalorder %s249, %s250
      %p259 = scmp.eq.s32.totalorder %s29, 0
      %p260 = por %p258, %p259
      %p261 = scmp.ne.s32.totalorder %s249, %s250
      %p262 = scmp.eq.s32.totalorder %s30, 1
      %p263 = por %p261, %p262
      %p265 = scmp.ne.s32.totalorder %s250, %s264
      %p266 = scmp.eq.s32.totalorder %s30, 0
      %p267 = por %p265, %p266
      %s269 = sadd.s32 %s268, 1
      %p272 = scmp.eq.s32.totalorder %s24, 1
      %p273 = scmp.ne.s32.totalorder %s268, %s270
      %p274 = scmp.eq.s32.totalorder %s24, 0
      %p275 = por %p273, %p274
      %p276 = scmp.ne.s32.totalorder %s268, %s270
      %p277 = scmp.eq.s32.totalorder %s29, 1
      %p278 = por %p276, %p277
      %p279 = scmp.ne.s32.totalorder %s270, %s271
      %p280 = scmp.eq.s32.totalorder %s29, 0
      %p281 = por %p279, %p280
      %p282 = scmp.ne.s32.totalorder %s270, %s271
      %p283 = scmp.eq.s32.totalorder %s30, 1
      %p284 = por %p282, %p283
      %p286 = scmp.ne.s32.totalorder %s271, %s285
      %p287 = scmp.eq.s32.totalorder %s30, 0
      %p288 = por %p286, %p287
      %s290 = sadd.s32 %s289, 1
      %p293 = scmp.eq.s32.totalorder %s24, 1
      %p294 = scmp.ne.s32.totalorder %s289, %s291
      %p295 = scmp.eq.s32.totalorder %s24, 0
      %p296 = por %p294, %p295
      %p297 = scmp.ne.s32.totalorder %s289, %s291
      %p298 = scmp.eq.s32.totalorder %s29, 1
      %p299 = por %p297, %p298
      %p300 = scmp.ne.s32.totalorder %s291, %s292
      %p301 = scmp.eq.s32.totalorder %s29, 0
      %p302 = por %p300, %p301
      %p303 = scmp.ne.s32.totalorder %s291, %s292
      %p304 = scmp.eq.s32.totalorder %s30, 1
      %p305 = por %p303, %p304
      %p307 = scmp.ne.s32.totalorder %s292, %s306
      %p308 = scmp.eq.s32.totalorder %s30, 0
      %p309 = por %p307, %p308
      %s311 = sadd.s32 %s310, 1
      %p314 = scmp.eq.s32.totalorder %s24, 1
      %p315 = scmp.ne.s32.totalorder %s310, %s312
      %p316 = scmp.eq.s32.totalorder %s24, 0
      %p317 = por %p315, %p316
      %p318 = scmp.ne.s32.totalorder %s310, %s312
      %p319 = scmp.eq.s32.totalorder %s29, 1
      %p320 = por %p318, %p319
      %p321 = scmp.ne.s32.totalorder %s312, %s313
      %p322 = scmp.eq.s32.totalorder %s29, 0
      %p323 = por %p321, %p322
      %p324 = scmp.ne.s32.totalorder %s312, %s313
      %p325 = scmp.eq.s32.totalorder %s30, 1
      %p326 = por %p324, %p325
      %p328 = scmp.ne.s32.totalorder %s313, %s327
      %p329 = scmp.eq.s32.totalorder %s30, 0
      %p330 = por %p328, %p329
      %s332 = sadd.s32 %s331, 1
      %p335 = scmp.eq.s32.totalorder %s24, 1
      %p336 = scmp.ne.s32.totalorder %s331, %s333
      %p337 = scmp.eq.s32.totalorder %s24, 0
      %p338 = por %p336, %p337
      %p339 = scmp.ne.s32.totalorder %s331, %s333
      %p340 = scmp.eq.s32.totalorder %s29, 1
      %p341 = por %p339, %p340
      %p342 = scmp.ne.s32.totalorder %s333, %s334
      %p343 = scmp.eq.s32.totalorder %s29, 0
      %p344 = por %p342, %p343
      %p345 = scmp.ne.s32.totalorder %s333, %s334
      %p346 = scmp.eq.s32.totalorder %s30, 1
      %p347 = por %p345, %p346
      %p349 = scmp.ne.s32.totalorder %s334, %s348
      %p350 = scmp.eq.s32.totalorder %s30, 0
      %p351 = por %p349, %p350
      %s352 = ssub.s32 %s24, %s31
      %p353 = scmp.eq.s32.totalorder %s352, 0
      %s355 = sadd.s32 %s354, 1
      %s356 = scalar_select %p353, %s354, %s355
      %p359 = pneg %p353
      %p360 = scmp.eq.s32.totalorder %s24, 1
      %p361 = por %p359, %p360
      %p362 = scmp.ne.s32.totalorder %s354, %s357
      %p363 = scmp.eq.s32.totalorder %s24, 0
      %p364 = por %p362, %p363
      %p365 = scmp.ne.s32.totalorder %s354, %s357
      %p366 = scmp.eq.s32.totalorder %s29, 1
      %p367 = por %p365, %p366
      %p368 = scmp.ne.s32.totalorder %s357, %s358
      %p369 = scmp.eq.s32.totalorder %s29, 0
      %p370 = por %p368, %p369
      %p371 = scmp.ne.s32.totalorder %s357, %s358
      %p372 = scmp.eq.s32.totalorder %s30, 1
      %p373 = por %p371, %p372
      %p375 = scmp.ne.s32.totalorder %s358, %s374
      %p376 = scmp.eq.s32.totalorder %s30, 0
      %p377 = por %p375, %p376
      %p378 = scmp.le.s32.totalorder 1, %s24
      %p379 = scmp.lt.s32.totalorder %s24, 3
      %p380 = pnand %p378, %p379
      %p381 = pneg %p380
      // Predicated region
      $region9: #{efficientnet_forward.1} parent=5 // pred_check
        _
      $region10: #{efficientnet_forward.1} parent=5 // pred_check_branch
        %383 = sbr.rel (%p380) target = $region12
      $region11: #{efficientnet_forward.1} parent=5 // pred_region
        %s384 = ssub.s32 %s24, 1
        // Predicated region
        $region13: #{efficientnet_forward.1} parent=11 // pred_check
          %p385 = pneg %p71
        $region14: #{efficientnet_forward.1} parent=11 // pred_check_branch
          %387 = sbr.rel (%p385) target = $region16
        $region15: #{efficientnet_forward.1} parent=11 // pred_region
          _
        $region16: #{efficientnet_forward.1} parent=11 // pred_fallthru
          _
        // Predicated region
        $region17: #{efficientnet_forward.1} parent=11 // pred_check
          %p388 = pneg %p92
        $region18: #{efficientnet_forward.1} parent=11 // pred_check_branch
          %390 = sbr.rel (%p388) target = $region20
        $region19: #{efficientnet_forward.1} parent=11 // pred_region
          _
        $region20: #{efficientnet_forward.1} parent=11 // pred_fallthru
          _
        // Predicated region
        $region21: #{efficientnet_forward.1} parent=11 // pred_check
          %p391 = pneg %p113
        $region22: #{efficientnet_forward.1} parent=11 // pred_check_branch
          %393 = sbr.rel (%p391) target = $region24
        $region23: #{efficientnet_forward.1} parent=11 // pred_region
          _
        $region24: #{efficientnet_forward.1} parent=11 // pred_fallthru
          _
        // Predicated region
        $region25: #{efficientnet_forward.1} parent=11 // pred_check
          %p394 = pneg %p134
        $region26: #{efficientnet_forward.1} parent=11 // pred_check_branch
          %396 = sbr.rel (%p394) target = $region28
        $region27: #{efficientnet_forward.1} parent=11 // pred_region
          _
        $region28: #{efficientnet_forward.1} parent=11 // pred_fallthru
          _
        // Predicated region
        $region29: #{efficientnet_forward.1} parent=11 // pred_check
          %p397 = pneg %p155
        $region30: #{efficientnet_forward.1} parent=11 // pred_check_branch
          %399 = sbr.rel (%p397) target = $region32
        $region31: #{efficientnet_forward.1} parent=11 // pred_region
          _
        $region32: #{efficientnet_forward.1} parent=11 // pred_fallthru
          _
        // Predicated region
        $region33: #{efficientnet_forward.1} parent=11 // pred_check
          %p400 = pneg %p176
        $region34: #{efficientnet_forward.1} parent=11 // pred_check_branch
          %402 = sbr.rel (%p400) target = $region36
        $region35: #{efficientnet_forward.1} parent=11 // pred_region
          _
        $region36: #{efficientnet_forward.1} parent=11 // pred_fallthru
          _
        // Predicated region
        $region37: #{efficientnet_forward.1} parent=11 // pred_check
          %p403 = pneg %p197
        $region38: #{efficientnet_forward.1} parent=11 // pred_check_branch
          %405 = sbr.rel (%p403) target = $region40
        $region39: #{efficientnet_forward.1} parent=11 // pred_region
          _
        $region40: #{efficientnet_forward.1} parent=11 // pred_fallthru
          _
        // Predicated region
        $region41: #{efficientnet_forward.1} parent=11 // pred_check
          %p406 = pneg %p218
        $region42: #{efficientnet_forward.1} parent=11 // pred_check_branch
          %408 = sbr.rel (%p406) target = $region44
        $region43: #{efficientnet_forward.1} parent=11 // pred_region
          _
        $region44: #{efficientnet_forward.1} parent=11 // pred_fallthru
          _
        // Predicated region
        $region45: #{efficientnet_forward.1} parent=11 // pred_check
          %p409 = pneg %p239
        $region46: #{efficientnet_forward.1} parent=11 // pred_check_branch
          %411 = sbr.rel (%p409) target = $region48
        $region47: #{efficientnet_forward.1} parent=11 // pred_region
          _
        $region48: #{efficientnet_forward.1} parent=11 // pred_fallthru
          _
        // Predicated region
        $region49: #{efficientnet_forward.1} parent=11 // pred_check
          %p412 = pneg %p260
        $region50: #{efficientnet_forward.1} parent=11 // pred_check_branch
          %414 = sbr.rel (%p412) target = $region52
        $region51: #{efficientnet_forward.1} parent=11 // pred_region
          _
        $region52: #{efficientnet_forward.1} parent=11 // pred_fallthru
          _
        // Predicated region
        $region53: #{efficientnet_forward.1} parent=11 // pred_check
          %p415 = pneg %p281
        $region54: #{efficientnet_forward.1} parent=11 // pred_check_branch
          %417 = sbr.rel (%p415) target = $region56
        $region55: #{efficientnet_forward.1} parent=11 // pred_region
          _
        $region56: #{efficientnet_forward.1} parent=11 // pred_fallthru
          _
        // Predicated region
        $region57: #{efficientnet_forward.1} parent=11 // pred_check
          %p418 = pneg %p302
        $region58: #{efficientnet_forward.1} parent=11 // pred_check_branch
          %420 = sbr.rel (%p418) target = $region60
        $region59: #{efficientnet_forward.1} parent=11 // pred_region
          _
        $region60: #{efficientnet_forward.1} parent=11 // pred_fallthru
          _
        // Predicated region
        $region61: #{efficientnet_forward.1} parent=11 // pred_check
          %p421 = pneg %p323
        $region62: #{efficientnet_forward.1} parent=11 // pred_check_branch
          %423 = sbr.rel (%p421) target = $region64
        $region63: #{efficientnet_forward.1} parent=11 // pred_region
          _
        $region64: #{efficientnet_forward.1} parent=11 // pred_fallthru
          _
        // Predicated region
        $region65: #{efficientnet_forward.1} parent=11 // pred_check
          %p424 = pneg %p344
        $region66: #{efficientnet_forward.1} parent=11 // pred_check_branch
          %426 = sbr.rel (%p424) target = $region68
        $region67: #{efficientnet_forward.1} parent=11 // pred_region
          _
        $region68: #{efficientnet_forward.1} parent=11 // pred_fallthru
          _
      $region12: #{efficientnet_forward.1} parent=5 // pred_fallthru
        _
      %p427 = scmp.lt.s32.totalorder %s24, 2
      // Predicated region
      $region69: #{efficientnet_forward.1} parent=5 // pred_check
        %p428 = pneg %p427
      $region70: #{efficientnet_forward.1} parent=5 // pred_check_branch
        %430 = sbr.rel (%p428) target = $region72
      $region71: #{efficientnet_forward.1} parent=5 // pred_region
        // Predicated region
        $region73: #{efficientnet_forward.1} parent=71 // pred_check
          %p431 = pneg %p44
        $region74: #{efficientnet_forward.1} parent=71 // pred_check_branch
          %433 = sbr.rel (%p431) target = $region76
        $region75: #{efficientnet_forward.1} parent=71 // pred_region
          %s434 = smul.u32 4, %s24
          %p435 = scmp.lt.s32.totalorder %s434, 7
          %s436 = scalar_select %p435, %s434, 7
          %s437 = smul.addr %s436, 8
          %s438 = smul.addr %s437, 4
          %s439 = scalar_lea.vmem %s0, %s438
          %s440 = smul.u32 4, %s24
        $region76: #{efficientnet_forward.1} parent=71 // pred_fallthru
          _
      $region72: #{efficientnet_forward.1} parent=5 // pred_fallthru
        _
      %p441 = scmp.le.s32.totalorder 1, %s24
      %p442 = scmp.lt.s32.totalorder %s24, 3
      %p443 = pnand %p441, %p442
      %p444 = pneg %p443
      // Predicated region
      $region77: #{efficientnet_forward.1} parent=5 // pred_check
        _
      $region78: #{efficientnet_forward.1} parent=5 // pred_check_branch
        %446 = sbr.rel (%p443) target = $region80
      $region79: #{efficientnet_forward.1} parent=5 // pred_region
        %s447 = ssub.s32 %s24, 1
        %s448 = smul.u32 4, %s29
        %p449 = scmp.lt.s32.totalorder %s448, 7
        %s450 = scalar_select %p449, %s448, 7
        %s451 = smul.addr %s450, 8
        %s452 = smul.addr %s451, 4
        %s453 = scalar_lea.vmem %s0, %s452
        %p454 = pneg %p50
        %p455 = pneg %p47
        %p456 = pneg %p71
        %p457 = pneg %p68
        %p458 = pneg %p92
        %p459 = pneg %p89
        %p460 = pneg %p113
        %p461 = pneg %p110
        %p462 = pneg %p134
        %p463 = pneg %p131
        %p464 = pneg %p155
        %p465 = pneg %p152
        %p466 = pneg %p176
        %p467 = pneg %p173
        %p468 = pneg %p197
        %p469 = pneg %p194
        %p470 = pneg %p218
        %p471 = pneg %p215
        %p472 = pneg %p239
        %p473 = pneg %p236
        %p474 = pneg %p260
        %p475 = pneg %p257
        %p476 = pneg %p281
        %p477 = pneg %p278
        %p478 = pneg %p302
        %p479 = pneg %p299
        %p480 = pneg %p323
        %p481 = pneg %p320
        %p482 = pneg %p344
        %p483 = pneg %p341
        %p484 = pneg %p370
        %p485 = pneg %p367
        %s486 = sand.u32 %s357, 1
        %s487 = scalar_lea.sflag [#allocation4], %s486
        %s488 = sand.u32 %s357, 1
        %s489 = smul.addr %s488, 4
        %s490 = scalar_lea.vmem [#allocation3], %s489
        %s491 = smul.u32 4, %s29
        %p492 = scmp.lt.s32.totalorder %s491, 7
        %s493 = scalar_select %p492, %s491, 7
        %s494 = smul.addr %s493, 8
        %s495 = smul.addr %s494, 4
        %s496 = scalar_lea.vmem %s0, %s495
        %s497 = smul.u32 4, %s29
        %v499 = vld [vmem:[%s496] sm:$0xf]
        %v500 = vld [vmem:[%s496 + $0x4] sm:$0xf]
        %v501 = vld [vmem:[%s496 + $0x8] sm:$0xf]
        %v502 = vld [vmem:[%s496 + $0xc] sm:$0xf]
        %v503 = vld [vmem:[%s496 + $0x10] sm:$0xf]
        %v504 = vld [vmem:[%s496 + $0x14] sm:$0xf]
        %v505 = vld [vmem:[%s496 + $0x18] sm:$0xf]
        %v506 = vld [vmem:[%s496 + $0x1c] sm:$0xf]
        %v507 = vld [vmem:[%s496 + $0x20] sm:$0xf]
        %v508 = vld [vmem:[%s496 + $0x24] sm:$0xf]
        %v509 = vld [vmem:[%s496 + $0x28] sm:$0xf]
        %v510 = vld [vmem:[%s496 + $0x2c] sm:$0xf]
        %v511 = vld [vmem:[%s496 + $0x30] sm:$0xf]
        %v512 = vld [vmem:[%s496 + $0x34] sm:$0xf]
        %v513 = vld [vmem:[%s496 + $0x38] sm:$0xf]
        %v514 = vld [vmem:[%s496 + $0x3c] sm:$0xf]
        %v515 = vld [vmem:[%s496 + $0x40] sm:$0xf]
        %v516 = vld [vmem:[%s496 + $0x44] sm:$0xf]
        %v517 = vld [vmem:[%s496 + $0x48] sm:$0xf]
        %v518 = vld [vmem:[%s496 + $0x4c] sm:$0xf]
        %v519 = vld [vmem:[%s496 + $0x50] sm:$0xf]
        %v520 = vld [vmem:[%s496 + $0x54] sm:$0xf]
        %v521 = vld [vmem:[%s496 + $0x58] sm:$0xf]
        %v522 = vld [vmem:[%s496 + $0x5c] sm:$0xf]
        %v523 = vld [vmem:[%s496 + $0x60] sm:$0xf]
        %v524 = vld [vmem:[%s496 + $0x64] sm:$0xf]
        %v525 = vld [vmem:[%s496 + $0x68] sm:$0xf]
        %v526 = vld [vmem:[%s496 + $0x6c] sm:$0xf]
        %v527 = vld [vmem:[%s496 + $0x70] sm:$0xf]
        %v528 = vld [vmem:[%s496 + $0x74] sm:$0xf]
        %v529 = vld [vmem:[%s496 + $0x78] sm:$0xf]
        %v530 = vld [vmem:[%s496 + $0x7c] sm:$0xf]
        %v531 = vld [vmem:[%s1] sm:$0xf]
        %v532 = vld [vmem:[%s1 + $0x4] sm:$0xf]
        %v533 = vld [vmem:[%s1 + $0x8] sm:$0xf]
        %v534 = vld [vmem:[%s1 + $0xc] sm:$0xf]
        %v535 = vld [vmem:[%s2] sm:$0x1]
        %v537 = vlaneseq
        %v538 = vshrl.u32 %v537, 7
        %v539 = vsub.s32 0, %v538
        %v540 = vrot.slane %v535, %v539
        %v574 = vunpack.c.l.b16 %v499
        %v575 = vunpack.c.l.b16 %v500
        %v576 = vunpack.c.l.b16 %v501
        %v577 = vunpack.c.l.b16 %v502
        %v578 = vunpack.c.l.b16 %v503
        %v579 = vunpack.c.l.b16 %v504
        %v580 = vunpack.c.l.b16 %v505
        %v581 = vunpack.c.l.b16 %v506
        %v582 = vunpack.c.l.b16 %v507
        %v583 = vunpack.c.l.b16 %v508
        %v584 = vunpack.c.l.b16 %v509
        %v585 = vunpack.c.l.b16 %v510
        %v586 = vunpack.c.l.b16 %v511
        %v587 = vunpack.c.l.b16 %v512
        %v588 = vunpack.c.l.b16 %v513
        %v589 = vunpack.c.l.b16 %v514
        %v590 = vunpack.c.l.b16 %v515
        %v591 = vunpack.c.l.b16 %v516
        %v592 = vunpack.c.l.b16 %v517
        %v593 = vunpack.c.l.b16 %v518
        %v594 = vunpack.c.l.b16 %v519
        %v595 = vunpack.c.l.b16 %v520
        %v596 = vunpack.c.l.b16 %v521
        %v597 = vunpack.c.l.b16 %v522
        %v598 = vunpack.c.l.b16 %v523
        %v599 = vunpack.c.l.b16 %v524
        %v600 = vunpack.c.l.b16 %v525
        %v601 = vunpack.c.l.b16 %v526
        %v602 = vunpack.c.l.b16 %v527
        %v603 = vunpack.c.l.b16 %v528
        %v604 = vunpack.c.l.b16 %v529
        %v605 = vunpack.c.l.b16 %v530
        %v606 = vpack.c.b16 %v575, %v574
        %v607 = vpack.c.b16 %v577, %v576
        %v608 = vpack.c.b16 %v579, %v578
        %v609 = vpack.c.b16 %v581, %v580
        %v610 = vpack.c.b16 %v583, %v582
        %v611 = vpack.c.b16 %v585, %v584
        %v612 = vpack.c.b16 %v587, %v586
        %v613 = vpack.c.b16 %v589, %v588
        %v614 = vpack.c.b16 %v591, %v590
        %v615 = vpack.c.b16 %v593, %v592
        %v616 = vpack.c.b16 %v595, %v594
        %v617 = vpack.c.b16 %v597, %v596
        %v618 = vpack.c.b16 %v599, %v598
        %v619 = vpack.c.b16 %v601, %v600
        %v620 = vpack.c.b16 %v603, %v602
        %v621 = vpack.c.b16 %v605, %v604
        %v626 = vunpack.c.l.b16 %v531
        %v627 = vunpack.c.l.b16 %v532
        %v628 = vunpack.c.l.b16 %v533
        %v629 = vunpack.c.l.b16 %v534
        %v630 = vpack.c.b16 %v627, %v626
        %v631 = vpack.c.b16 %v629, %v628
        %vm634 = vcmask 261120
        %v636 = vsel %vm634, %v606, 0
        %v639 = vsel %vm634, %v607, 0
        %v642 = vsel %vm634, %v608, 0
        %v645 = vsel %vm634, %v609, 0
        %v648 = vsel %vm634, %v610, 0
        %v651 = vsel %vm634, %v611, 0
        %v654 = vsel %vm634, %v612, 0
        %v657 = vsel %vm634, %v613, 0
        %v660 = vsel %vm634, %v614, 0
        %v663 = vsel %vm634, %v615, 0
        %v666 = vsel %vm634, %v616, 0
        %v669 = vsel %vm634, %v617, 0
        %v672 = vsel %vm634, %v618, 0
        %v675 = vsel %vm634, %v619, 0
        %v678 = vsel %vm634, %v620, 0
        %v681 = vsel %vm634, %v621, 0
        %683 = vmatprep.subr.bf16.mxu0 0
        %684 = vmatpush1.bf16.msra.mxu0 %v630
        %685 = vmatprep.subr.bf16.mxu0 0
        %686 = vmatpush1.bf16.msra.mxu0 %v631
        %687 = vmatprep.subr.bf16.mxu0 0
        %688 = vmatpush1.bf16.msra.mxu0 0
        %689 = vmatprep.subr.bf16.mxu0 0
        %690 = vmatpush1.bf16.msra.mxu0 0
        %691 = vmatprep.subr.bf16.mxu0 0
        %692 = vmatpush1.bf16.msra.mxu0 0
        %693 = vmatprep.subr.bf16.mxu0 0
        %694 = vmatpush1.bf16.msra.mxu0 0
        %695 = vmatprep.subr.bf16.mxu0 0
        %696 = vmatpush1.bf16.msra.mxu0 0
        %697 = vmatprep.subr.bf16.mxu0 0
        %698 = vmatpush1.bf16.msra.mxu0 0
        %699 = vmatprep.subr.bf16.mxu0 0
        %700 = vmatpush1.bf16.msra.mxu0 0
        %701 = vmatprep.subr.bf16.mxu0 0
        %702 = vmatpush1.bf16.msra.mxu0 0
        %703 = vmatprep.subr.bf16.mxu0 0
        %704 = vmatpush1.bf16.msra.mxu0 0
        %705 = vmatprep.subr.bf16.mxu0 0
        %706 = vmatpush1.bf16.msra.mxu0 0
        %707 = vmatprep.subr.bf16.mxu0 0
        %708 = vmatpush1.bf16.msra.mxu0 0
        %709 = vmatprep.subr.bf16.mxu0 0
        %710 = vmatpush1.bf16.msra.mxu0 0
        %711 = vmatprep.subr.bf16.mxu0 0
        %712 = vmatpush1.bf16.msra.mxu0 0
        %713 = vmatprep.subr.bf16.mxu0 0
        %714 = vmatpush1.bf16.msra.mxu0 0
        %715 = vmatprep.mubr.bf16.mxu0 0
        %716 = vmatmul.mubr.bf16.gmra.mrb[0].mxu0 %v636
        %v717 = vpop.f32.mrb[0].mxu0
        %v718 = vadd.f32 %v540, %v717
        %v719 = vpop.f32.mrb[0].mxu0
        %v720 = vpop.f32.mrb[0].mxu0
        %v721 = vadd.f32 %v540, %v720
        %v722 = vpop.f32.mrb[0].mxu0
        %723 = vmatprep.mubr.bf16.mxu0 0
        %724 = vmatmul.mubr.bf16.gmra.mrb[0].mxu0 %v639
        %v725 = vpop.f32.mrb[0].mxu0
        %v726 = vadd.f32 %v540, %v725
        %v727 = vpop.f32.mrb[0].mxu0
        %v728 = vpop.f32.mrb[0].mxu0
        %v729 = vadd.f32 %v540, %v728
        %v730 = vpop.f32.mrb[0].mxu0
        %731 = vmatprep.mubr.bf16.mxu0 0
        %732 = vmatmul.mubr.bf16.gmra.mrb[0].mxu0 %v642
        %v733 = vpop.f32.mrb[0].mxu0
        %v734 = vadd.f32 %v540, %v733
        %v735 = vpop.f32.mrb[0].mxu0
        %v736 = vpop.f32.mrb[0].mxu0
        %v737 = vadd.f32 %v540, %v736
        %v738 = vpop.f32.mrb[0].mxu0
        %739 = vmatprep.mubr.bf16.mxu0 0
        %740 = vmatmul.mubr.bf16.gmra.mrb[0].mxu0 %v645
        %v741 = vpop.f32.mrb[0].mxu0
        %v742 = vadd.f32 %v540, %v741
        %v743 = vpop.f32.mrb[0].mxu0
        %v744 = vpop.f32.mrb[0].mxu0
        %v745 = vadd.f32 %v540, %v744
        %v746 = vpop.f32.mrb[0].mxu0
        %747 = vmatprep.mubr.bf16.mxu0 0
        %748 = vmatmul.mubr.bf16.gmra.mrb[0].mxu0 %v648
        %v749 = vpop.f32.mrb[0].mxu0
        %v750 = vadd.f32 %v540, %v749
        %v751 = vpop.f32.mrb[0].mxu0
        %v752 = vpop.f32.mrb[0].mxu0
        %v753 = vadd.f32 %v540, %v752
        %v754 = vpop.f32.mrb[0].mxu0
        %755 = vmatprep.mubr.bf16.mxu0 0
        %756 = vmatmul.mubr.bf16.gmra.mrb[0].mxu0 %v651
        %v757 = vpop.f32.mrb[0].mxu0
        %v758 = vadd.f32 %v540, %v757
        %v759 = vpop.f32.mrb[0].mxu0
        %v760 = vpop.f32.mrb[0].mxu0
        %v761 = vadd.f32 %v540, %v760
        %v762 = vpop.f32.mrb[0].mxu0
        %763 = vmatprep.mubr.bf16.mxu0 0
        %764 = vmatmul.mubr.bf16.gmra.mrb[0].mxu0 %v654
        %v765 = vpop.f32.mrb[0].mxu0
        %v766 = vadd.f32 %v540, %v765
        %v767 = vpop.f32.mrb[0].mxu0
        %v768 = vpop.f32.mrb[0].mxu0
        %v769 = vadd.f32 %v540, %v768
        %v770 = vpop.f32.mrb[0].mxu0
        %771 = vmatprep.mubr.bf16.mxu0 0
        %772 = vmatmul.mubr.bf16.gmra.mrb[0].mxu0 %v657
        %v773 = vpop.f32.mrb[0].mxu0
        %v774 = vadd.f32 %v540, %v773
        %v775 = vpop.f32.mrb[0].mxu0
        %v776 = vpop.f32.mrb[0].mxu0
        %v777 = vadd.f32 %v540, %v776
        %v778 = vpop.f32.mrb[0].mxu0
        %779 = vmatprep.mubr.bf16.mxu0 0
        %780 = vmatmul.mubr.bf16.gmra.mrb[0].mxu0 %v660
        %v781 = vpop.f32.mrb[0].mxu0
        %v782 = vadd.f32 %v540, %v781
        %v783 = vpop.f32.mrb[0].mxu0
        %v784 = vpop.f32.mrb[0].mxu0
        %v785 = vadd.f32 %v540, %v784
        %v786 = vpop.f32.mrb[0].mxu0
        %787 = vmatprep.mubr.bf16.mxu0 0
        %788 = vmatmul.mubr.bf16.gmra.mrb[0].mxu0 %v663
        %v789 = vpop.f32.mrb[0].mxu0
        %v790 = vadd.f32 %v540, %v789
        %v791 = vpop.f32.mrb[0].mxu0
        %v792 = vpop.f32.mrb[0].mxu0
        %v793 = vadd.f32 %v540, %v792
        %v794 = vpop.f32.mrb[0].mxu0
        %795 = vmatprep.mubr.bf16.mxu0 0
        %796 = vmatmul.mubr.bf16.gmra.mrb[0].mxu0 %v666
        %v797 = vpop.f32.mrb[0].mxu0
        %v798 = vadd.f32 %v540, %v797
        %v799 = vpop.f32.mrb[0].mxu0
        %v800 = vpop.f32.mrb[0].mxu0
        %v801 = vadd.f32 %v540, %v800
        %v802 = vpop.f32.mrb[0].mxu0
        %803 = vmatprep.mubr.bf16.mxu0 0
        %804 = vmatmul.mubr.bf16.gmra.mrb[0].mxu0 %v669
        %v805 = vpop.f32.mrb[0].mxu0
        %v806 = vadd.f32 %v540, %v805
        %v807 = vpop.f32.mrb[0].mxu0
        %v808 = vpop.f32.mrb[0].mxu0
        %v809 = vadd.f32 %v540, %v808
        %v810 = vpop.f32.mrb[0].mxu0
        %811 = vmatprep.mubr.bf16.mxu0 0
        %812 = vmatmul.mubr.bf16.gmra.mrb[0].mxu0 %v672
        %v813 = vpop.f32.mrb[0].mxu0
        %v814 = vadd.f32 %v540, %v813
        %v815 = vpop.f32.mrb[0].mxu0
        %v816 = vpop.f32.mrb[0].mxu0
        %v817 = vadd.f32 %v540, %v816
        %v818 = vpop.f32.mrb[0].mxu0
        %819 = vmatprep.mubr.bf16.mxu0 0
        %820 = vmatmul.mubr.bf16.gmra.mrb[0].mxu0 %v675
        %v821 = vpop.f32.mrb[0].mxu0
        %v822 = vadd.f32 %v540, %v821
        %v823 = vpop.f32.mrb[0].mxu0
        %v824 = vpop.f32.mrb[0].mxu0
        %v825 = vadd.f32 %v540, %v824
        %v826 = vpop.f32.mrb[0].mxu0
        %827 = vmatprep.mubr.bf16.mxu0 0
        %828 = vmatmul.mubr.bf16.gmra.mrb[0].mxu0 %v678
        %v829 = vpop.f32.mrb[0].mxu0
        %v830 = vadd.f32 %v540, %v829
        %v831 = vpop.f32.mrb[0].mxu0
        %v832 = vpop.f32.mrb[0].mxu0
        %v833 = vadd.f32 %v540, %v832
        %v834 = vpop.f32.mrb[0].mxu0
        %835 = vmatprep.mubr.bf16.mxu0 0
        %836 = vmatmul.mubr.bf16.gmra.mrb[0].mxu0 %v681
        %v837 = vpop.f32.mrb[0].mxu0
        %v838 = vadd.f32 %v540, %v837
        %v839 = vpop.f32.mrb[0].mxu0
        %v840 = vpop.f32.mrb[0].mxu0
        %v841 = vadd.f32 %v540, %v840
        %v842 = vpop.f32.mrb[0].mxu0
        %843 = vdwg.mxu0
        %v844 = vxor.u32 %v718, 2147483648
        %v845 = vxor.u32 %v721, 2147483648
        %v846 = vxor.u32 %v726, 2147483648
        %v847 = vxor.u32 %v729, 2147483648
        %v848 = vxor.u32 %v734, 2147483648
        %v849 = vxor.u32 %v737, 2147483648
        %v850 = vxor.u32 %v742, 2147483648
        %v851 = vxor.u32 %v745, 2147483648
        %v852 = vxor.u32 %v750, 2147483648
        %v853 = vxor.u32 %v753, 2147483648
        %v854 = vxor.u32 %v758, 2147483648
        %v855 = vxor.u32 %v761, 2147483648
        %v856 = vxor.u32 %v766, 2147483648
        %v857 = vxor.u32 %v769, 2147483648
        %v858 = vxor.u32 %v774, 2147483648
        %v859 = vxor.u32 %v777, 2147483648
        %v860 = vxor.u32 %v782, 2147483648
        %v861 = vxor.u32 %v785, 2147483648
        %v862 = vxor.u32 %v790, 2147483648
        %v863 = vxor.u32 %v793, 2147483648
        %v864 = vxor.u32 %v798, 2147483648
        %v865 = vxor.u32 %v801, 2147483648
        %v866 = vxor.u32 %v806, 2147483648
        %v867 = vxor.u32 %v809, 2147483648
        %v868 = vxor.u32 %v814, 2147483648
        %v869 = vxor.u32 %v817, 2147483648
        %v870 = vxor.u32 %v822, 2147483648
        %v871 = vxor.u32 %v825, 2147483648
        %v872 = vxor.u32 %v830, 2147483648
        %v873 = vxor.u32 %v833, 2147483648
        %v874 = vxor.u32 %v838, 2147483648
        %v875 = vxor.u32 %v841, 2147483648
        %v876 = vmul.f32 %v844, 1.442695
        %v877 = vpow.pop %v876
        %v878 = vmul.f32 %v845, 1.442695
        %v879 = vpow.pop %v878
        %v880 = vmul.f32 %v846, 1.442695
        %v881 = vpow.pop %v880
        %v882 = vmul.f32 %v847, 1.442695
        %v883 = vpow.pop %v882
        %v884 = vmul.f32 %v848, 1.442695
        %v885 = vpow.pop %v884
        %v886 = vmul.f32 %v849, 1.442695
        %v887 = vpow.pop %v886
        %v888 = vmul.f32 %v850, 1.442695
        %v889 = vpow.pop %v888
        %v890 = vmul.f32 %v851, 1.442695
        %v891 = vpow.pop %v890
        %v892 = vmul.f32 %v852, 1.442695
        %v893 = vpow.pop %v892
        %v894 = vmul.f32 %v853, 1.442695
        %v895 = vpow.pop %v894
        %v896 = vmul.f32 %v854, 1.442695
        %v897 = vpow.pop %v896
        %v898 = vmul.f32 %v855, 1.442695
        %v899 = vpow.pop %v898
        %v900 = vmul.f32 %v856, 1.442695
        %v901 = vpow.pop %v900
        %v902 = vmul.f32 %v857, 1.442695
        %v903 = vpow.pop %v902
        %v904 = vmul.f32 %v858, 1.442695
        %v905 = vpow.pop %v904
        %v906 = vmul.f32 %v859, 1.442695
        %v907 = vpow.pop %v906
        %v908 = vmul.f32 %v860, 1.442695
        %v909 = vpow.pop %v908
        %v910 = vmul.f32 %v861, 1.442695
        %v911 = vpow.pop %v910
        %v912 = vmul.f32 %v862, 1.442695
        %v913 = vpow.pop %v912
        %v914 = vmul.f32 %v863, 1.442695
        %v915 = vpow.pop %v914
        %v916 = vmul.f32 %v864, 1.442695
        %v917 = vpow.pop %v916
        %v918 = vmul.f32 %v865, 1.442695
        %v919 = vpow.pop %v918
        %v920 = vmul.f32 %v866, 1.442695
        %v921 = vpow.pop %v920
        %v922 = vmul.f32 %v867, 1.442695
        %v923 = vpow.pop %v922
        %v924 = vmul.f32 %v868, 1.442695
        %v925 = vpow.pop %v924
        %v926 = vmul.f32 %v869, 1.442695
        %v927 = vpow.pop %v926
        %v928 = vmul.f32 %v870, 1.442695
        %v929 = vpow.pop %v928
        %v930 = vmul.f32 %v871, 1.442695
        %v931 = vpow.pop %v930
        %v932 = vmul.f32 %v872, 1.442695
        %v933 = vpow.pop %v932
        %v934 = vmul.f32 %v873, 1.442695
        %v935 = vpow.pop %v934
        %v936 = vmul.f32 %v874, 1.442695
        %v937 = vpow.pop %v936
        %v938 = vmul.f32 %v875, 1.442695
        %v939 = vpow.pop %v938
        %v940 = vadd.f32 %v877, 1.0
        %v941 = vadd.f32 %v879, 1.0
        %v942 = vadd.f32 %v881, 1.0
        %v943 = vadd.f32 %v883, 1.0
        %v944 = vadd.f32 %v885, 1.0
        %v945 = vadd.f32 %v887, 1.0
        %v946 = vadd.f32 %v889, 1.0
        %v947 = vadd.f32 %v891, 1.0
        %v948 = vadd.f32 %v893, 1.0
        %v949 = vadd.f32 %v895, 1.0
        %v950 = vadd.f32 %v897, 1.0
        %v951 = vadd.f32 %v899, 1.0
        %v952 = vadd.f32 %v901, 1.0
        %v953 = vadd.f32 %v903, 1.0
        %v954 = vadd.f32 %v905, 1.0
        %v955 = vadd.f32 %v907, 1.0
        %v956 = vadd.f32 %v909, 1.0
        %v957 = vadd.f32 %v911, 1.0
        %v958 = vadd.f32 %v913, 1.0
        %v959 = vadd.f32 %v915, 1.0
        %v960 = vadd.f32 %v917, 1.0
        %v961 = vadd.f32 %v919, 1.0
        %v962 = vadd.f32 %v921, 1.0
        %v963 = vadd.f32 %v923, 1.0
        %v964 = vadd.f32 %v925, 1.0
        %v965 = vadd.f32 %v927, 1.0
        %v966 = vadd.f32 %v929, 1.0
        %v967 = vadd.f32 %v931, 1.0
        %v968 = vadd.f32 %v933, 1.0
        %v969 = vadd.f32 %v935, 1.0
        %v970 = vadd.f32 %v937, 1.0
        %v971 = vadd.f32 %v939, 1.0
        %v972 = vrcp.pop %v940
        %v973 = vmul.f32 1.0, %v972
        %v974 = vrcp.pop %v941
        %v975 = vmul.f32 1.0, %v974
        %v976 = vrcp.pop %v942
        %v977 = vmul.f32 1.0, %v976
        %v978 = vrcp.pop %v943
        %v979 = vmul.f32 1.0, %v978
        %v980 = vrcp.pop %v944
        %v981 = vmul.f32 1.0, %v980
        %v982 = vrcp.pop %v945
        %v983 = vmul.f32 1.0, %v982
        %v984 = vrcp.pop %v946
        %v985 = vmul.f32 1.0, %v984
        %v986 = vrcp.pop %v947
        %v987 = vmul.f32 1.0, %v986
        %v988 = vrcp.pop %v948
        %v989 = vmul.f32 1.0, %v988
        %v990 = vrcp.pop %v949
        %v991 = vmul.f32 1.0, %v990
        %v992 = vrcp.pop %v950
        %v993 = vmul.f32 1.0, %v992
        %v994 = vrcp.pop %v951
        %v995 = vmul.f32 1.0, %v994
        %v996 = vrcp.pop %v952
        %v997 = vmul.f32 1.0, %v996
        %v998 = vrcp.pop %v953
        %v999 = vmul.f32 1.0, %v998
        %v1000 = vrcp.pop %v954
        %v1001 = vmul.f32 1.0, %v1000
        %v1002 = vrcp.pop %v955
        %v1003 = vmul.f32 1.0, %v1002
        %v1004 = vrcp.pop %v956
        %v1005 = vmul.f32 1.0, %v1004
        %v1006 = vrcp.pop %v957
        %v1007 = vmul.f32 1.0, %v1006
        %v1008 = vrcp.pop %v958
        %v1009 = vmul.f32 1.0, %v1008
        %v1010 = vrcp.pop %v959
        %v1011 = vmul.f32 1.0, %v1010
        %v1012 = vrcp.pop %v960
        %v1013 = vmul.f32 1.0, %v1012
        %v1014 = vrcp.pop %v961
        %v1015 = vmul.f32 1.0, %v1014
        %v1016 = vrcp.pop %v962
        %v1017 = vmul.f32 1.0, %v1016
        %v1018 = vrcp.pop %v963
        %v1019 = vmul.f32 1.0, %v1018
        %v1020 = vrcp.pop %v964
        %v1021 = vmul.f32 1.0, %v1020
        %v1022 = vrcp.pop %v965
        %v1023 = vmul.f32 1.0, %v1022
        %v1024 = vrcp.pop %v966
        %v1025 = vmul.f32 1.0, %v1024
        %v1026 = vrcp.pop %v967
        %v1027 = vmul.f32 1.0, %v1026
        %v1028 = vrcp.pop %v968
        %v1029 = vmul.f32 1.0, %v1028
        %v1030 = vrcp.pop %v969
        %v1031 = vmul.f32 1.0, %v1030
        %v1032 = vrcp.pop %v970
        %v1033 = vmul.f32 1.0, %v1032
        %v1034 = vrcp.pop %v971
        %v1035 = vmul.f32 1.0, %v1034
        %v1036 = vmul.f32 %v718, %v973
        %v1037 = vmul.f32 %v721, %v975
        %v1038 = vmul.f32 %v726, %v977
        %v1039 = vmul.f32 %v729, %v979
        %v1040 = vmul.f32 %v734, %v981
        %v1041 = vmul.f32 %v737, %v983
        %v1042 = vmul.f32 %v742, %v985
        %v1043 = vmul.f32 %v745, %v987
        %v1044 = vmul.f32 %v750, %v989
        %v1045 = vmul.f32 %v753, %v991
        %v1046 = vmul.f32 %v758, %v993
        %v1047 = vmul.f32 %v761, %v995
        %v1048 = vmul.f32 %v766, %v997
        %v1049 = vmul.f32 %v769, %v999
        %v1050 = vmul.f32 %v774, %v1001
        %v1051 = vmul.f32 %v777, %v1003
        %v1052 = vmul.f32 %v782, %v1005
        %v1053 = vmul.f32 %v785, %v1007
        %v1054 = vmul.f32 %v790, %v1009
        %v1055 = vmul.f32 %v793, %v1011
        %v1056 = vmul.f32 %v798, %v1013
        %v1057 = vmul.f32 %v801, %v1015
        %v1058 = vmul.f32 %v806, %v1017
        %v1059 = vmul.f32 %v809, %v1019
        %v1060 = vmul.f32 %v814, %v1021
        %v1061 = vmul.f32 %v817, %v1023
        %v1062 = vmul.f32 %v822, %v1025
        %v1063 = vmul.f32 %v825, %v1027
        %v1064 = vmul.f32 %v830, %v1029
        %v1065 = vmul.f32 %v833, %v1031
        %v1066 = vmul.f32 %v838, %v1033
        %v1067 = vmul.f32 %v841, %v1035
        %v1068 = vpack.c.bf16 %v1037, %v1036
        %v1069 = vpack.c.bf16 %v1039, %v1038
        %v1070 = vpack.c.bf16 %v1041, %v1040
        %v1071 = vpack.c.bf16 %v1043, %v1042
        %v1072 = vpack.c.bf16 %v1045, %v1044
        %v1073 = vpack.c.bf16 %v1047, %v1046
        %v1074 = vpack.c.bf16 %v1049, %v1048
        %v1075 = vpack.c.bf16 %v1051, %v1050
        %v1076 = vpack.c.bf16 %v1053, %v1052
        %v1077 = vpack.c.bf16 %v1055, %v1054
        %v1078 = vpack.c.bf16 %v1057, %v1056
        %v1079 = vpack.c.bf16 %v1059, %v1058
        %v1080 = vpack.c.bf16 %v1061, %v1060
        %v1081 = vpack.c.bf16 %v1063, %v1062
        %v1082 = vpack.c.bf16 %v1065, %v1064
        %v1083 = vpack.c.bf16 %v1067, %v1066
        %v1084 = vld [vmem:[%s3] sm:$0xf]
        %v1085 = vld [vmem:[%s3 + $0x4] sm:$0xf]
        %v1086 = vld [vmem:[%s3 + $0x8] sm:$0xf]
        %v1087 = vld [vmem:[%s3 + $0xc] sm:$0xf]
        %v1088 = vld [vmem:[%s3 + $0x10] sm:$0xf]
        %v1089 = vld [vmem:[%s3 + $0x14] sm:$0xf]
        %v1090 = vld [vmem:[%s3 + $0x18] sm:$0xf]
        %v1091 = vld [vmem:[%s3 + $0x1c] sm:$0xf]
        %v1092 = vld [vmem:[%s3 + $0x20] sm:$0xf]
        %v1093 = vld [vmem:[%s3 + $0x24] sm:$0xf]
        %v1094 = vld [vmem:[%s3 + $0x28] sm:$0xf]
        %v1095 = vld [vmem:[%s3 + $0x2c] sm:$0xf]
        %v1096 = vld [vmem:[%s3 + $0x30] sm:$0xf]
        %v1097 = vld [vmem:[%s3 + $0x34] sm:$0xf]
        %v1098 = vld [vmem:[%s3 + $0x38] sm:$0xf]
        %v1099 = vld [vmem:[%s3 + $0x3c] sm:$0xf]
        %v1100 = vld [vmem:[%s4] sm:$0x1]
        %v1102 = vlaneseq
        %v1103 = vshrl.u32 %v1102, 7
        %v1104 = vsub.s32 0, %v1103
        %v1105 = vrot.slane %v1100, %v1104
        %v1123 = vunpack.c.l.b16 %v1084
        %v1124 = vunpack.c.l.b16 %v1085
        %v1125 = vunpack.c.l.b16 %v1086
        %v1126 = vunpack.c.l.b16 %v1087
        %v1127 = vunpack.c.l.b16 %v1088
        %v1128 = vunpack.c.l.b16 %v1089
        %v1129 = vunpack.c.l.b16 %v1090
        %v1130 = vunpack.c.l.b16 %v1091
        %v1131 = vunpack.c.l.b16 %v1092
        %v1132 = vunpack.c.l.b16 %v1093
        %v1133 = vunpack.c.l.b16 %v1094
        %v1134 = vunpack.c.l.b16 %v1095
        %v1135 = vunpack.c.l.b16 %v1096
        %v1136 = vunpack.c.l.b16 %v1097
        %v1137 = vunpack.c.l.b16 %v1098
        %v1138 = vunpack.c.l.b16 %v1099
        %v1139 = vpack.c.b16 %v1124, %v1123
        %v1140 = vpack.c.b16 %v1126, %v1125
        %v1141 = vpack.c.b16 %v1128, %v1127
        %v1142 = vpack.c.b16 %v1130, %v1129
        %v1143 = vpack.c.b16 %v1132, %v1131
        %v1144 = vpack.c.b16 %v1134, %v1133
        %v1145 = vpack.c.b16 %v1136, %v1135
        %v1146 = vpack.c.b16 %v1138, %v1137
        %1155 = vmatprep.subr.bf16.mxu0 0
        %1156 = vmatpush1.bf16.msra.mxu0 %v1139
        %1157 = vmatprep.subr.bf16.mxu0 0
        %1158 = vmatpush1.bf16.msra.mxu0 %v1140
        %1159 = vmatprep.subr.bf16.mxu0 0
        %1160 = vmatpush1.bf16.msra.mxu0 %v1141
        %1161 = vmatprep.subr.bf16.mxu0 0
        %1162 = vmatpush1.bf16.msra.mxu0 %v1142
        %1163 = vmatprep.subr.bf16.mxu0 0
        %1164 = vmatpush1.bf16.msra.mxu0 %v1143
        %1165 = vmatprep.subr.bf16.mxu0 0
        %1166 = vmatpush1.bf16.msra.mxu0 %v1144
        %1167 = vmatprep.subr.bf16.mxu0 0
        %1168 = vmatpush1.bf16.msra.mxu0 %v1145
        %1169 = vmatprep.subr.bf16.mxu0 0
        %1170 = vmatpush1.bf16.msra.mxu0 %v1146
        %1171 = vmatprep.subr.bf16.mxu0 0
        %1172 = vmatpush1.bf16.msra.mxu0 0
        %1173 = vmatprep.subr.bf16.mxu0 0
        %1174 = vmatpush1.bf16.msra.mxu0 0
        %1175 = vmatprep.subr.bf16.mxu0 0
        %1176 = vmatpush1.bf16.msra.mxu0 0
        %1177 = vmatprep.subr.bf16.mxu0 0
        %1178 = vmatpush1.bf16.msra.mxu0 0
        %1179 = vmatprep.subr.bf16.mxu0 0
        %1180 = vmatpush1.bf16.msra.mxu0 0
        %1181 = vmatprep.subr.bf16.mxu0 0
        %1182 = vmatpush1.bf16.msra.mxu0 0
        %1183 = vmatprep.subr.bf16.mxu0 0
        %1184 = vmatpush1.bf16.msra.mxu0 0
        %1185 = vmatprep.subr.bf16.mxu0 0
        %1186 = vmatpush1.bf16.msra.mxu0 0
        %1187 = vmatprep.mubr.bf16.mxu0 0
        %1188 = vmatmul.mubr.bf16.gmra.mrb[0].mxu0 %v1068
        %v1189 = vpop.f32.mrb[0].mxu0
        %v1190 = vadd.f32 %v1105, %v1189
        %v1191 = vpop.f32.mrb[0].mxu0
        %v1192 = vpop.f32.mrb[0].mxu0
        %v1193 = vadd.f32 %v1105, %v1192
        %v1194 = vpop.f32.mrb[0].mxu0
        %1195 = vmatprep.mubr.bf16.mxu0 0
        %1196 = vmatmul.mubr.bf16.gmra.mrb[0].mxu0 %v1069
        %v1197 = vpop.f32.mrb[0].mxu0
        %v1198 = vadd.f32 %v1105, %v1197
        %v1199 = vpop.f32.mrb[0].mxu0
        %v1200 = vpop.f32.mrb[0].mxu0
        %v1201 = vadd.f32 %v1105, %v1200
        %v1202 = vpop.f32.mrb[0].mxu0
        %1203 = vmatprep.mubr.bf16.mxu0 0
        %1204 = vmatmul.mubr.bf16.gmra.mrb[0].mxu0 %v1070
        %v1205 = vpop.f32.mrb[0].mxu0
        %v1206 = vadd.f32 %v1105, %v1205
        %v1207 = vpop.f32.mrb[0].mxu0
        %v1208 = vpop.f32.mrb[0].mxu0
        %v1209 = vadd.f32 %v1105, %v1208
        %v1210 = vpop.f32.mrb[0].mxu0
        %1211 = vmatprep.mubr.bf16.mxu0 0
        %1212 = vmatmul.mubr.bf16.gmra.mrb[0].mxu0 %v1071
        %v1213 = vpop.f32.mrb[0].mxu0
        %v1214 = vadd.f32 %v1105, %v1213
        %v1215 = vpop.f32.mrb[0].mxu0
        %v1216 = vpop.f32.mrb[0].mxu0
        %v1217 = vadd.f32 %v1105, %v1216
        %v1218 = vpop.f32.mrb[0].mxu0
        %1219 = vmatprep.mubr.bf16.mxu0 0
        %1220 = vmatmul.mubr.bf16.gmra.mrb[0].mxu0 %v1072
        %v1221 = vpop.f32.mrb[0].mxu0
        %v1222 = vadd.f32 %v1105, %v1221
        %v1223 = vpop.f32.mrb[0].mxu0
        %v1224 = vpop.f32.mrb[0].mxu0
        %v1225 = vadd.f32 %v1105, %v1224
        %v1226 = vpop.f32.mrb[0].mxu0
        %1227 = vmatprep.mubr.bf16.mxu0 0
        %1228 = vmatmul.mubr.bf16.gmra.mrb[0].mxu0 %v1073
        %v1229 = vpop.f32.mrb[0].mxu0
        %v1230 = vadd.f32 %v1105, %v1229
        %v1231 = vpop.f32.mrb[0].mxu0
        %v1232 = vpop.f32.mrb[0].mxu0
        %v1233 = vadd.f32 %v1105, %v1232
        %v1234 = vpop.f32.mrb[0].mxu0
        %1235 = vmatprep.mubr.bf16.mxu0 0
        %1236 = vmatmul.mubr.bf16.gmra.mrb[0].mxu0 %v1074
        %v1237 = vpop.f32.mrb[0].mxu0
        %v1238 = vadd.f32 %v1105, %v1237
        %v1239 = vpop.f32.mrb[0].mxu0
        %v1240 = vpop.f32.mrb[0].mxu0
        %v1241 = vadd.f32 %v1105, %v1240
        %v1242 = vpop.f32.mrb[0].mxu0
        %1243 = vmatprep.mubr.bf16.mxu0 0
        %1244 = vmatmul.mubr.bf16.gmra.mrb[0].mxu0 %v1075
        %v1245 = vpop.f32.mrb[0].mxu0
        %v1246 = vadd.f32 %v1105, %v1245
        %v1247 = vpop.f32.mrb[0].mxu0
        %v1248 = vpop.f32.mrb[0].mxu0
        %v1249 = vadd.f32 %v1105, %v1248
        %v1250 = vpop.f32.mrb[0].mxu0
        %1251 = vmatprep.mubr.bf16.mxu0 0
        %1252 = vmatmul.mubr.bf16.gmra.mrb[0].mxu0 %v1076
        %v1253 = vpop.f32.mrb[0].mxu0
        %v1254 = vadd.f32 %v1105, %v1253
        %v1255 = vpop.f32.mrb[0].mxu0
        %v1256 = vpop.f32.mrb[0].mxu0
        %v1257 = vadd.f32 %v1105, %v1256
        %v1258 = vpop.f32.mrb[0].mxu0
        %1259 = vmatprep.mubr.bf16.mxu0 0
        %1260 = vmatmul.mubr.bf16.gmra.mrb[0].mxu0 %v1077
        %v1261 = vpop.f32.mrb[0].mxu0
        %v1262 = vadd.f32 %v1105, %v1261
        %v1263 = vpop.f32.mrb[0].mxu0
        %v1264 = vpop.f32.mrb[0].mxu0
        %v1265 = vadd.f32 %v1105, %v1264
        %v1266 = vpop.f32.mrb[0].mxu0
        %1267 = vmatprep.mubr.bf16.mxu0 0
        %1268 = vmatmul.mubr.bf16.gmra.mrb[0].mxu0 %v1078
        %v1269 = vpop.f32.mrb[0].mxu0
        %v1270 = vadd.f32 %v1105, %v1269
        %v1271 = vpop.f32.mrb[0].mxu0
        %v1272 = vpop.f32.mrb[0].mxu0
        %v1273 = vadd.f32 %v1105, %v1272
        %v1274 = vpop.f32.mrb[0].mxu0
        %1275 = vmatprep.mubr.bf16.mxu0 0
        %1276 = vmatmul.mubr.bf16.gmra.mrb[0].mxu0 %v1079
        %v1277 = vpop.f32.mrb[0].mxu0
        %v1278 = vadd.f32 %v1105, %v1277
        %v1279 = vpop.f32.mrb[0].mxu0
        %v1280 = vpop.f32.mrb[0].mxu0
        %v1281 = vadd.f32 %v1105, %v1280
        %v1282 = vpop.f32.mrb[0].mxu0
        %1283 = vmatprep.mubr.bf16.mxu0 0
        %1284 = vmatmul.mubr.bf16.gmra.mrb[0].mxu0 %v1080
        %v1285 = vpop.f32.mrb[0].mxu0
        %v1286 = vadd.f32 %v1105, %v1285
        %v1287 = vpop.f32.mrb[0].mxu0
        %v1288 = vpop.f32.mrb[0].mxu0
        %v1289 = vadd.f32 %v1105, %v1288
        %v1290 = vpop.f32.mrb[0].mxu0
        %1291 = vmatprep.mubr.bf16.mxu0 0
        %1292 = vmatmul.mubr.bf16.gmra.mrb[0].mxu0 %v1081
        %v1293 = vpop.f32.mrb[0].mxu0
        %v1294 = vadd.f32 %v1105, %v1293
        %v1295 = vpop.f32.mrb[0].mxu0
        %v1296 = vpop.f32.mrb[0].mxu0
        %v1297 = vadd.f32 %v1105, %v1296
        %v1298 = vpop.f32.mrb[0].mxu0
        %1299 = vmatprep.mubr.bf16.mxu0 0
        %1300 = vmatmul.mubr.bf16.gmra.mrb[0].mxu0 %v1082
        %v1301 = vpop.f32.mrb[0].mxu0
        %v1302 = vadd.f32 %v1105, %v1301
        %v1303 = vpop.f32.mrb[0].mxu0
        %v1304 = vpop.f32.mrb[0].mxu0
        %v1305 = vadd.f32 %v1105, %v1304
        %v1306 = vpop.f32.mrb[0].mxu0
        %1307 = vmatprep.mubr.bf16.mxu0 0
        %1308 = vmatmul.mubr.bf16.gmra.mrb[0].mxu0 %v1083
        %v1309 = vpop.f32.mrb[0].mxu0
        %v1310 = vadd.f32 %v1105, %v1309
        %v1311 = vpop.f32.mrb[0].mxu0
        %v1312 = vpop.f32.mrb[0].mxu0
        %v1313 = vadd.f32 %v1105, %v1312
        %v1314 = vpop.f32.mrb[0].mxu0
        %1315 = vdwg.mxu0
        %v1316 = vxor.u32 %v1190, 2147483648
        %v1317 = vxor.u32 %v1193, 2147483648
        %v1318 = vxor.u32 %v1198, 2147483648
        %v1319 = vxor.u32 %v1201, 2147483648
        %v1320 = vxor.u32 %v1206, 2147483648
        %v1321 = vxor.u32 %v1209, 2147483648
        %v1322 = vxor.u32 %v1214, 2147483648
        %v1323 = vxor.u32 %v1217, 2147483648
        %v1324 = vxor.u32 %v1222, 2147483648
        %v1325 = vxor.u32 %v1225, 2147483648
        %v1326 = vxor.u32 %v1230, 2147483648
        %v1327 = vxor.u32 %v1233, 2147483648
        %v1328 = vxor.u32 %v1238, 2147483648
        %v1329 = vxor.u32 %v1241, 2147483648
        %v1330 = vxor.u32 %v1246, 2147483648
        %v1331 = vxor.u32 %v1249, 2147483648
        %v1332 = vxor.u32 %v1254, 2147483648
        %v1333 = vxor.u32 %v1257, 2147483648
        %v1334 = vxor.u32 %v1262, 2147483648
        %v1335 = vxor.u32 %v1265, 2147483648
        %v1336 = vxor.u32 %v1270, 2147483648
        %v1337 = vxor.u32 %v1273, 2147483648
        %v1338 = vxor.u32 %v1278, 2147483648
        %v1339 = vxor.u32 %v1281, 2147483648
        %v1340 = vxor.u32 %v1286, 2147483648
        %v1341 = vxor.u32 %v1289, 2147483648
        %v1342 = vxor.u32 %v1294, 2147483648
        %v1343 = vxor.u32 %v1297, 2147483648
        %v1344 = vxor.u32 %v1302, 2147483648
        %v1345 = vxor.u32 %v1305, 2147483648
        %v1346 = vxor.u32 %v1310, 2147483648
        %v1347 = vxor.u32 %v1313, 2147483648
        %v1348 = vmul.f32 %v1316, 1.442695
        %v1349 = vpow.pop %v1348
        %v1350 = vmul.f32 %v1317, 1.442695
        %v1351 = vpow.pop %v1350
        %v1352 = vmul.f32 %v1318, 1.442695
        %v1353 = vpow.pop %v1352
        %v1354 = vmul.f32 %v1319, 1.442695
        %v1355 = vpow.pop %v1354
        %v1356 = vmul.f32 %v1320, 1.442695
        %v1357 = vpow.pop %v1356
        %v1358 = vmul.f32 %v1321, 1.442695
        %v1359 = vpow.pop %v1358
        %v1360 = vmul.f32 %v1322, 1.442695
        %v1361 = vpow.pop %v1360
        %v1362 = vmul.f32 %v1323, 1.442695
        %v1363 = vpow.pop %v1362
        %v1364 = vmul.f32 %v1324, 1.442695
        %v1365 = vpow.pop %v1364
        %v1366 = vmul.f32 %v1325, 1.442695
        %v1367 = vpow.pop %v1366
        %v1368 = vmul.f32 %v1326, 1.442695
        %v1369 = vpow.pop %v1368
        %v1370 = vmul.f32 %v1327, 1.442695
        %v1371 = vpow.pop %v1370
        %v1372 = vmul.f32 %v1328, 1.442695
        %v1373 = vpow.pop %v1372
        %v1374 = vmul.f32 %v1329, 1.442695
        %v1375 = vpow.pop %v1374
        %v1376 = vmul.f32 %v1330, 1.442695
        %v1377 = vpow.pop %v1376
        %v1378 = vmul.f32 %v1331, 1.442695
        %v1379 = vpow.pop %v1378
        %v1380 = vmul.f32 %v1332, 1.442695
        %v1381 = vpow.pop %v1380
        %v1382 = vmul.f32 %v1333, 1.442695
        %v1383 = vpow.pop %v1382
        %v1384 = vmul.f32 %v1334, 1.442695
        %v1385 = vpow.pop %v1384
        %v1386 = vmul.f32 %v1335, 1.442695
        %v1387 = vpow.pop %v1386
        %v1388 = vmul.f32 %v1336, 1.442695
        %v1389 = vpow.pop %v1388
        %v1390 = vmul.f32 %v1337, 1.442695
        %v1391 = vpow.pop %v1390
        %v1392 = vmul.f32 %v1338, 1.442695
        %v1393 = vpow.pop %v1392
        %v1394 = vmul.f32 %v1339, 1.442695
        %v1395 = vpow.pop %v1394
        %v1396 = vmul.f32 %v1340, 1.442695
        %v1397 = vpow.pop %v1396
        %v1398 = vmul.f32 %v1341, 1.442695
        %v1399 = vpow.pop %v1398
        %v1400 = vmul.f32 %v1342, 1.442695
        %v1401 = vpow.pop %v1400
        %v1402 = vmul.f32 %v1343, 1.442695
        %v1403 = vpow.pop %v1402
        %v1404 = vmul.f32 %v1344, 1.442695
        %v1405 = vpow.pop %v1404
        %v1406 = vmul.f32 %v1345, 1.442695
        %v1407 = vpow.pop %v1406
        %v1408 = vmul.f32 %v1346, 1.442695
        %v1409 = vpow.pop %v1408
        %v1410 = vmul.f32 %v1347, 1.442695
        %v1411 = vpow.pop %v1410
        %v1412 = vadd.f32 %v1349, 1.0
        %v1413 = vadd.f32 %v1351, 1.0
        %v1414 = vadd.f32 %v1353, 1.0
        %v1415 = vadd.f32 %v1355, 1.0
        %v1416 = vadd.f32 %v1357, 1.0
        %v1417 = vadd.f32 %v1359, 1.0
        %v1418 = vadd.f32 %v1361, 1.0
        %v1419 = vadd.f32 %v1363, 1.0
        %v1420 = vadd.f32 %v1365, 1.0
        %v1421 = vadd.f32 %v1367, 1.0
        %v1422 = vadd.f32 %v1369, 1.0
        %v1423 = vadd.f32 %v1371, 1.0
        %v1424 = vadd.f32 %v1373, 1.0
        %v1425 = vadd.f32 %v1375, 1.0
        %v1426 = vadd.f32 %v1377, 1.0
        %v1427 = vadd.f32 %v1379, 1.0
        %v1428 = vadd.f32 %v1381, 1.0
        %v1429 = vadd.f32 %v1383, 1.0
        %v1430 = vadd.f32 %v1385, 1.0
        %v1431 = vadd.f32 %v1387, 1.0
        %v1432 = vadd.f32 %v1389, 1.0
        %v1433 = vadd.f32 %v1391, 1.0
        %v1434 = vadd.f32 %v1393, 1.0
        %v1435 = vadd.f32 %v1395, 1.0
        %v1436 = vadd.f32 %v1397, 1.0
        %v1437 = vadd.f32 %v1399, 1.0
        %v1438 = vadd.f32 %v1401, 1.0
        %v1439 = vadd.f32 %v1403, 1.0
        %v1440 = vadd.f32 %v1405, 1.0
        %v1441 = vadd.f32 %v1407, 1.0
        %v1442 = vadd.f32 %v1409, 1.0
        %v1443 = vadd.f32 %v1411, 1.0
        %v1444 = vrcp.pop %v1412
        %v1445 = vmul.f32 1.0, %v1444
        %v1446 = vrcp.pop %v1413
        %v1447 = vmul.f32 1.0, %v1446
        %v1448 = vrcp.pop %v1414
        %v1449 = vmul.f32 1.0, %v1448
        %v1450 = vrcp.pop %v1415
        %v1451 = vmul.f32 1.0, %v1450
        %v1452 = vrcp.pop %v1416
        %v1453 = vmul.f32 1.0, %v1452
        %v1454 = vrcp.pop %v1417
        %v1455 = vmul.f32 1.0, %v1454
        %v1456 = vrcp.pop %v1418
        %v1457 = vmul.f32 1.0, %v1456
        %v1458 = vrcp.pop %v1419
        %v1459 = vmul.f32 1.0, %v1458
        %v1460 = vrcp.pop %v1420
        %v1461 = vmul.f32 1.0, %v1460
        %v1462 = vrcp.pop %v1421
        %v1463 = vmul.f32 1.0, %v1462
        %v1464 = vrcp.pop %v1422
        %v1465 = vmul.f32 1.0, %v1464
        %v1466 = vrcp.pop %v1423
        %v1467 = vmul.f32 1.0, %v1466
        %v1468 = vrcp.pop %v1424
        %v1469 = vmul.f32 1.0, %v1468
        %v1470 = vrcp.pop %v1425
        %v1471 = vmul.f32 1.0, %v1470
        %v1472 = vrcp.pop %v1426
        %v1473 = vmul.f32 1.0, %v1472
        %v1474 = vrcp.pop %v1427
        %v1475 = vmul.f32 1.0, %v1474
        %v1476 = vrcp.pop %v1428
        %v1477 = vmul.f32 1.0, %v1476
        %v1478 = vrcp.pop %v1429
        %v1479 = vmul.f32 1.0, %v1478
        %v1480 = vrcp.pop %v1430
        %v1481 = vmul.f32 1.0, %v1480
        %v1482 = vrcp.pop %v1431
        %v1483 = vmul.f32 1.0, %v1482
        %v1484 = vrcp.pop %v1432
        %v1485 = vmul.f32 1.0, %v1484
        %v1486 = vrcp.pop %v1433
        %v1487 = vmul.f32 1.0, %v1486
        %v1488 = vrcp.pop %v1434
        %v1489 = vmul.f32 1.0, %v1488
        %v1490 = vrcp.pop %v1435
        %v1491 = vmul.f32 1.0, %v1490
        %v1492 = vrcp.pop %v1436
        %v1493 = vmul.f32 1.0, %v1492
        %v1494 = vrcp.pop %v1437
        %v1495 = vmul.f32 1.0, %v1494
        %v1496 = vrcp.pop %v1438
        %v1497 = vmul.f32 1.0, %v1496
        %v1498 = vrcp.pop %v1439
        %v1499 = vmul.f32 1.0, %v1498
        %v1500 = vrcp.pop %v1440
        %v1501 = vmul.f32 1.0, %v1500
        %v1502 = vrcp.pop %v1441
        %v1503 = vmul.f32 1.0, %v1502
        %v1504 = vrcp.pop %v1442
        %v1505 = vmul.f32 1.0, %v1504
        %v1506 = vrcp.pop %v1443
        %v1507 = vmul.f32 1.0, %v1506
        %v1508 = vmul.f32 %v1190, %v1445
        %v1509 = vmul.f32 %v1193, %v1447
        %v1510 = vmul.f32 %v1198, %v1449
        %v1511 = vmul.f32 %v1201, %v1451
        %v1512 = vmul.f32 %v1206, %v1453
        %v1513 = vmul.f32 %v1209, %v1455
        %v1514 = vmul.f32 %v1214, %v1457
        %v1515 = vmul.f32 %v1217, %v1459
        %v1516 = vmul.f32 %v1222, %v1461
        %v1517 = vmul.f32 %v1225, %v1463
        %v1518 = vmul.f32 %v1230, %v1465
        %v1519 = vmul.f32 %v1233, %v1467
        %v1520 = vmul.f32 %v1238, %v1469
        %v1521 = vmul.f32 %v1241, %v1471
        %v1522 = vmul.f32 %v1246, %v1473
        %v1523 = vmul.f32 %v1249, %v1475
        %v1524 = vmul.f32 %v1254, %v1477
        %v1525 = vmul.f32 %v1257, %v1479
        %v1526 = vmul.f32 %v1262, %v1481
        %v1527 = vmul.f32 %v1265, %v1483
        %v1528 = vmul.f32 %v1270, %v1485
        %v1529 = vmul.f32 %v1273, %v1487
        %v1530 = vmul.f32 %v1278, %v1489
        %v1531 = vmul.f32 %v1281, %v1491
        %v1532 = vmul.f32 %v1286, %v1493
        %v1533 = vmul.f32 %v1289, %v1495
        %v1534 = vmul.f32 %v1294, %v1497
        %v1535 = vmul.f32 %v1297, %v1499
        %v1536 = vmul.f32 %v1302, %v1501
        %v1537 = vmul.f32 %v1305, %v1503
        %v1538 = vmul.f32 %v1310, %v1505
        %v1539 = vmul.f32 %v1313, %v1507
        %1540 = vst [vmem:[#allocation2] sm:$0xff] 0.0
        %1541 = vst [vmem:[#allocation2 + $0x8] sm:$0xff] 0.0
        %1542 = vst [vmem:[#allocation2 + $0xa0] sm:$0xff] 0.0
        %1543 = vst [vmem:[#allocation2 + $0xa8] sm:$0xff] 0.0
        %1544 = vst [vmem:[#allocation2 + $0x140] sm:$0xff] 0.0
        %1545 = vst [vmem:[#allocation2 + $0x148] sm:$0xff] 0.0
        %1546 = vst [vmem:[#allocation2 + $0x1e0] sm:$0xff] 0.0
        %1547 = vst [vmem:[#allocation2 + $0x1e8] sm:$0xff] 0.0
        %s1548 = scalar_lea.vmem [#allocation2], 144
        %1549 = vst [vmem:[%s1548] sm:$0xff] 0.0
        %1550 = vst [vmem:[%s1548 + $0x8] sm:$0xff] 0.0
        %1551 = vst [vmem:[%s1548 + $0xa0] sm:$0xff] 0.0
        %1552 = vst [vmem:[%s1548 + $0xa8] sm:$0xff] 0.0
        %1553 = vst [vmem:[%s1548 + $0x140] sm:$0xff] 0.0
        %1554 = vst [vmem:[%s1548 + $0x148] sm:$0xff] 0.0
        %1555 = vst [vmem:[%s1548 + $0x1e0] sm:$0xff] 0.0
        %1556 = vst [vmem:[%s1548 + $0x1e8] sm:$0xff] 0.0
        %1557 = vst [vmem:[#allocation2] sm:$0x1] 0.0
        %1558 = vst [vmem:[#allocation2 + $0x10] sm:$0x1] 0.0
        %1559 = vst [vmem:[#allocation2 + $0x20] sm:$0x1] 0.0
        %1560 = vst [vmem:[#allocation2 + $0x30] sm:$0x1] 0.0
        %1561 = vst [vmem:[#allocation2 + $0x40] sm:$0x1] 0.0
        %1562 = vst [vmem:[#allocation2 + $0x50] sm:$0x1] 0.0
        %1563 = vst [vmem:[#allocation2 + $0x60] sm:$0x1] 0.0
        %1564 = vst [vmem:[#allocation2 + $0x70] sm:$0x1] 0.0
        %1565 = vst [vmem:[#allocation2 + $0x80] sm:$0x1] 0.0
        %1566 = vst [vmem:[#allocation2 + $0x90] sm:$0x1] 0.0
        %1567 = vst [vmem:[#allocation2 + $0xa0] sm:$0x1] 0.0
        %1568 = vst [vmem:[#allocation2 + $0xb0] sm:$0x1] 0.0
        %1569 = vst [vmem:[#allocation2 + $0xc0] sm:$0x1] 0.0
        %1570 = vst [vmem:[#allocation2 + $0xd0] sm:$0x1] 0.0
        %1571 = vst [vmem:[#allocation2 + $0xe0] sm:$0x1] 0.0
        %1572 = vst [vmem:[#allocation2 + $0xf0] sm:$0x1] 0.0
        %1573 = vst [vmem:[#allocation2 + $0x100] sm:$0x1] 0.0
        %1574 = vst [vmem:[#allocation2 + $0x110] sm:$0x1] 0.0
        %1575 = vst [vmem:[#allocation2 + $0x120] sm:$0x1] 0.0
        %1576 = vst [vmem:[#allocation2 + $0x130] sm:$0x1] 0.0
        %1577 = vst [vmem:[#allocation2 + $0x140] sm:$0x1] 0.0
        %1578 = vst [vmem:[#allocation2 + $0x150] sm:$0x1] 0.0
        %1579 = vst [vmem:[#allocation2 + $0x160] sm:$0x1] 0.0
        %1580 = vst [vmem:[#allocation2 + $0x170] sm:$0x1] 0.0
        %1581 = vst [vmem:[#allocation2 + $0x180] sm:$0x1] 0.0
        %1582 = vst [vmem:[#allocation2 + $0x190] sm:$0x1] 0.0
        %1583 = vst [vmem:[#allocation2 + $0x1a0] sm:$0x1] 0.0
        %1584 = vst [vmem:[#allocation2 + $0x1b0] sm:$0x1] 0.0
        %1585 = vst [vmem:[#allocation2 + $0x1c0] sm:$0x1] 0.0
        %1586 = vst [vmem:[#allocation2 + $0x1d0] sm:$0x1] 0.0
        %1587 = vst [vmem:[#allocation2 + $0x1e0] sm:$0x1] 0.0
        %1588 = vst [vmem:[#allocation2 + $0x1f0] sm:$0x1] 0.0
        %1589 = vst [vmem:[#allocation2 + $0x200] sm:$0x1] 0.0
        %1590 = vst [vmem:[#allocation2 + $0x210] sm:$0x1] 0.0
        %1591 = vst [vmem:[#allocation2 + $0x220] sm:$0x1] 0.0
        %1592 = vst [vmem:[#allocation2 + $0x230] sm:$0x1] 0.0
        %1593 = vst [vmem:[#allocation2 + $0x240] sm:$0x1] 0.0
        %1594 = vst [vmem:[#allocation2 + $0x250] sm:$0x1] 0.0
        %1595 = vst [vmem:[#allocation2 + $0x260] sm:$0x1] 0.0
        %1596 = vst [vmem:[#allocation2 + $0x270] sm:$0x1] 0.0
        %1597 = vst [vmem:[#allocation2 + $0x9] sm:$0x1] 0.0
        %1598 = vst [vmem:[#allocation2 + $0x19] sm:$0x1] 0.0
        %1599 = vst [vmem:[#allocation2 + $0x29] sm:$0x1] 0.0
        %1600 = vst [vmem:[#allocation2 + $0x39] sm:$0x1] 0.0
        %1601 = vst [vmem:[#allocation2 + $0x49] sm:$0x1] 0.0
        %1602 = vst [vmem:[#allocation2 + $0x59] sm:$0x1] 0.0
        %1603 = vst [vmem:[#allocation2 + $0x69] sm:$0x1] 0.0
        %1604 = vst [vmem:[#allocation2 + $0x79] sm:$0x1] 0.0
        %1605 = vst [vmem:[#allocation2 + $0x89] sm:$0x1] 0.0
        %1606 = vst [vmem:[#allocation2 + $0x99] sm:$0x1] 0.0
        %1607 = vst [vmem:[#allocation2 + $0xa9] sm:$0x1] 0.0
        %1608 = vst [vmem:[#allocation2 + $0xb9] sm:$0x1] 0.0
        %1609 = vst [vmem:[#allocation2 + $0xc9] sm:$0x1] 0.0
        %1610 = vst [vmem:[#allocation2 + $0xd9] sm:$0x1] 0.0
        %1611 = vst [vmem:[#allocation2 + $0xe9] sm:$0x1] 0.0
        %1612 = vst [vmem:[#allocation2 + $0xf9] sm:$0x1] 0.0
        %1613 = vst [vmem:[#allocation2 + $0x109] sm:$0x1] 0.0
        %1614 = vst [vmem:[#allocation2 + $0x119] sm:$0x1] 0.0
        %1615 = vst [vmem:[#allocation2 + $0x129] sm:$0x1] 0.0
        %1616 = vst [vmem:[#allocation2 + $0x139] sm:$0x1] 0.0
        %1617 = vst [vmem:[#allocation2 + $0x149] sm:$0x1] 0.0
        %1618 = vst [vmem:[#allocation2 + $0x159] sm:$0x1] 0.0
        %1619 = vst [vmem:[#allocation2 + $0x169] sm:$0x1] 0.0
        %1620 = vst [vmem:[#allocation2 + $0x179] sm:$0x1] 0.0
        %1621 = vst [vmem:[#allocation2 + $0x189] sm:$0x1] 0.0
        %1622 = vst [vmem:[#allocation2 + $0x199] sm:$0x1] 0.0
        %1623 = vst [vmem:[#allocation2 + $0x1a9] sm:$0x1] 0.0
        %1624 = vst [vmem:[#allocation2 + $0x1b9] sm:$0x1] 0.0
        %1625 = vst [vmem:[#allocation2 + $0x1c9] sm:$0x1] 0.0
        %1626 = vst [vmem:[#allocation2 + $0x1d9] sm:$0x1] 0.0
        %1627 = vst [vmem:[#allocation2 + $0x1e9] sm:$0x1] 0.0
        %1628 = vst [vmem:[#allocation2 + $0x1f9] sm:$0x1] 0.0
        %1629 = vst [vmem:[#allocation2 + $0x209] sm:$0x1] 0.0
        %1630 = vst [vmem:[#allocation2 + $0x219] sm:$0x1] 0.0
        %1631 = vst [vmem:[#allocation2 + $0x229] sm:$0x1] 0.0
        %1632 = vst [vmem:[#allocation2 + $0x239] sm:$0x1] 0.0
        %1633 = vst [vmem:[#allocation2 + $0x249] sm:$0x1] 0.0
        %1634 = vst [vmem:[#allocation2 + $0x259] sm:$0x1] 0.0
        %1635 = vst [vmem:[#allocation2 + $0x269] sm:$0x1] 0.0
        %1636 = vst [vmem:[#allocation2 + $0x279] sm:$0x1] 0.0
        %s1637 = scalar_lea.vmem [#allocation2], 16
        %1638 = vst [vmem:[%s1637 + $0x1] sm:$0xff] %v1508
        %1639 = vst [vmem:[%s1637 + $0x11] sm:$0xff] %v1509
        %1640 = vst [vmem:[%s1637 + $0x21] sm:$0xff] %v1510
        %1641 = vst [vmem:[%s1637 + $0x31] sm:$0xff] %v1511
        %1642 = vst [vmem:[%s1637 + $0x41] sm:$0xff] %v1512
        %1643 = vst [vmem:[%s1637 + $0x51] sm:$0xff] %v1513
        %1644 = vst [vmem:[%s1637 + $0x61] sm:$0xff] %v1514
        %1645 = vst [vmem:[%s1637 + $0x71] sm:$0xff] %v1515
        %1646 = vst [vmem:[%s1637 + $0xa1] sm:$0xff] %v1516
        %1647 = vst [vmem:[%s1637 + $0xb1] sm:$0xff] %v1517
        %1648 = vst [vmem:[%s1637 + $0xc1] sm:$0xff] %v1518
        %1649 = vst [vmem:[%s1637 + $0xd1] sm:$0xff] %v1519
        %1650 = vst [vmem:[%s1637 + $0xe1] sm:$0xff] %v1520
        %1651 = vst [vmem:[%s1637 + $0xf1] sm:$0xff] %v1521
        %1652 = vst [vmem:[%s1637 + $0x101] sm:$0xff] %v1522
        %1653 = vst [vmem:[%s1637 + $0x111] sm:$0xff] %v1523
        %1654 = vst [vmem:[%s1637 + $0x141] sm:$0xff] %v1524
        %1655 = vst [vmem:[%s1637 + $0x151] sm:$0xff] %v1525
        %1656 = vst [vmem:[%s1637 + $0x161] sm:$0xff] %v1526
        %1657 = vst [vmem:[%s1637 + $0x171] sm:$0xff] %v1527
        %1658 = vst [vmem:[%s1637 + $0x181] sm:$0xff] %v1528
        %1659 = vst [vmem:[%s1637 + $0x191] sm:$0xff] %v1529
        %1660 = vst [vmem:[%s1637 + $0x1a1] sm:$0xff] %v1530
        %1661 = vst [vmem:[%s1637 + $0x1b1] sm:$0xff] %v1531
        %1662 = vst [vmem:[%s1637 + $0x1e1] sm:$0xff] %v1532
        %1663 = vst [vmem:[%s1637 + $0x1f1] sm:$0xff] %v1533
        %1664 = vst [vmem:[%s1637 + $0x201] sm:$0xff] %v1534
        %1665 = vst [vmem:[%s1637 + $0x211] sm:$0xff] %v1535
        %1666 = vst [vmem:[%s1637 + $0x221] sm:$0xff] %v1536
        %1667 = vst [vmem:[%s1637 + $0x231] sm:$0xff] %v1537
        %1668 = vst [vmem:[%s1637 + $0x241] sm:$0xff] %v1538
        %1669 = vst [vmem:[%s1637 + $0x251] sm:$0xff] %v1539
        %v1670 = vld [vmem:[#allocation2] sm:$0xff]
        %v1671 = vld [vmem:[#allocation2 + $0x10] sm:$0xff]
        %v1672 = vld [vmem:[#allocation2 + $0x20] sm:$0xff]
        %v1673 = vld [vmem:[#allocation2 + $0x30] sm:$0xff]
        %v1674 = vld [vmem:[#allocation2 + $0x40] sm:$0xff]
        %v1675 = vld [vmem:[#allocation2 + $0x50] sm:$0xff]
        %v1676 = vld [vmem:[#allocation2 + $0x60] sm:$0xff]
        %v1677 = vld [vmem:[#allocation2 + $0x70] sm:$0xff]
        %v1678 = vld [vmem:[#allocation2 + $0xa0] sm:$0xff]
        %v1679 = vld [vmem:[#allocation2 + $0xb0] sm:$0xff]
        %v1680 = vld [vmem:[#allocation2 + $0xc0] sm:$0xff]
        %v1681 = vld [vmem:[#allocation2 + $0xd0] sm:$0xff]
        %v1682 = vld [vmem:[#allocation2 + $0xe0] sm:$0xff]
        %v1683 = vld [vmem:[#allocation2 + $0xf0] sm:$0xff]
        %v1684 = vld [vmem:[#allocation2 + $0x100] sm:$0xff]
        %v1685 = vld [vmem:[#allocation2 + $0x110] sm:$0xff]
        %v1686 = vld [vmem:[#allocation2 + $0x140] sm:$0xff]
        %v1687 = vld [vmem:[#allocation2 + $0x150] sm:$0xff]
        %v1688 = vld [vmem:[#allocation2 + $0x160] sm:$0xff]
        %v1689 = vld [vmem:[#allocation2 + $0x170] sm:$0xff]
        %v1690 = vld [vmem:[#allocation2 + $0x180] sm:$0xff]
        %v1691 = vld [vmem:[#allocation2 + $0x190] sm:$0xff]
        %v1692 = vld [vmem:[#allocation2 + $0x1a0] sm:$0xff]
        %v1693 = vld [vmem:[#allocation2 + $0x1b0] sm:$0xff]
        %v1694 = vld [vmem:[#allocation2 + $0x1e0] sm:$0xff]
        %v1695 = vld [vmem:[#allocation2 + $0x1f0] sm:$0xff]
        %v1696 = vld [vmem:[#allocation2 + $0x200] sm:$0xff]
        %v1697 = vld [vmem:[#allocation2 + $0x210] sm:$0xff]
        %v1698 = vld [vmem:[#allocation2 + $0x220] sm:$0xff]
        %v1699 = vld [vmem:[#allocation2 + $0x230] sm:$0xff]
        %v1700 = vld [vmem:[#allocation2 + $0x240] sm:$0xff]
        %v1701 = vld [vmem:[#allocation2 + $0x250] sm:$0xff]
        %v1702 = vld [vmem:[%s5] sm:$0x1]
        %v1703 = vlaneseq
        %v1704 = vshrl.u32 %v1703, 7
        %v1705 = vsub.s32 0, %v1704
        %v1706 = vrot.slane %v1702, %v1705
        %v1707 = vmul.f32 %v1670, %v1706
        %v1708 = vmul.f32 %v1671, %v1706
        %v1709 = vmul.f32 %v1672, %v1706
        %v1710 = vmul.f32 %v1673, %v1706
        %v1711 = vmul.f32 %v1674, %v1706
        %v1712 = vmul.f32 %v1675, %v1706
        %v1713 = vmul.f32 %v1676, %v1706
        %v1714 = vmul.f32 %v1677, %v1706
        %v1715 = vmul.f32 %v1678, %v1706
        %v1716 = vmul.f32 %v1679, %v1706
        %v1717 = vmul.f32 %v1680, %v1706
        %v1718 = vmul.f32 %v1681, %v1706
        %v1719 = vmul.f32 %v1682, %v1706
        %v1720 = vmul.f32 %v1683, %v1706
        %v1721 = vmul.f32 %v1684, %v1706
        %v1722 = vmul.f32 %v1685, %v1706
        %v1723 = vmul.f32 %v1686, %v1706
        %v1724 = vmul.f32 %v1687, %v1706
        %v1725 = vmul.f32 %v1688, %v1706
        %v1726 = vmul.f32 %v1689, %v1706
        %v1727 = vmul.f32 %v1690, %v1706
        %v1728 = vmul.f32 %v1691, %v1706
        %v1729 = vmul.f32 %v1692, %v1706
        %v1730 = vmul.f32 %v1693, %v1706
        %v1731 = vmul.f32 %v1694, %v1706
        %v1732 = vmul.f32 %v1695, %v1706
        %v1733 = vmul.f32 %v1696, %v1706
        %v1734 = vmul.f32 %v1697, %v1706
        %v1735 = vmul.f32 %v1698, %v1706
        %v1736 = vmul.f32 %v1699, %v1706
        %v1737 = vmul.f32 %v1700, %v1706
        %v1738 = vmul.f32 %v1701, %v1706
        %v1739 = vadd.f32 %v1707, 0.0
        %v1740 = vadd.f32 %v1708, 0.0
        %v1741 = vadd.f32 %v1709, 0.0
        %v1742 = vadd.f32 %v1710, 0.0
        %v1743 = vadd.f32 %v1711, 0.0
        %v1744 = vadd.f32 %v1712, 0.0
        %v1745 = vadd.f32 %v1713, 0.0
        %v1746 = vadd.f32 %v1714, 0.0
        %v1747 = vadd.f32 %v1715, 0.0
        %v1748 = vadd.f32 %v1716, 0.0
        %v1749 = vadd.f32 %v1717, 0.0
        %v1750 = vadd.f32 %v1718, 0.0
        %v1751 = vadd.f32 %v1719, 0.0
        %v1752 = vadd.f32 %v1720, 0.0
        %v1753 = vadd.f32 %v1721, 0.0
        %v1754 = vadd.f32 %v1722, 0.0
        %v1755 = vadd.f32 %v1723, 0.0
        %v1756 = vadd.f32 %v1724, 0.0
        %v1757 = vadd.f32 %v1725, 0.0
        %v1758 = vadd.f32 %v1726, 0.0
        %v1759 = vadd.f32 %v1727, 0.0
        %v1760 = vadd.f32 %v1728, 0.0
        %v1761 = vadd.f32 %v1729, 0.0
        %v1762 = vadd.f32 %v1730, 0.0
        %v1763 = vadd.f32 %v1731, 0.0
        %v1764 = vadd.f32 %v1732, 0.0
        %v1765 = vadd.f32 %v1733, 0.0
        %v1766 = vadd.f32 %v1734, 0.0
        %v1767 = vadd.f32 %v1735, 0.0
        %v1768 = vadd.f32 %v1736, 0.0
        %v1769 = vadd.f32 %v1737, 0.0
        %v1770 = vadd.f32 %v1738, 0.0
        %v1771 = vld [vmem:[#allocation2 + $0x1] sm:$0xff]
        %v1772 = vld [vmem:[#allocation2 + $0x11] sm:$0xff]
        %v1773 = vld [vmem:[#allocation2 + $0x21] sm:$0xff]
        %v1774 = vld [vmem:[#allocation2 + $0x31] sm:$0xff]
        %v1775 = vld [vmem:[#allocation2 + $0x41] sm:$0xff]
        %v1776 = vld [vmem:[#allocation2 + $0x51] sm:$0xff]
        %v1777 = vld [vmem:[#allocation2 + $0x61] sm:$0xff]
        %v1778 = vld [vmem:[#allocation2 + $0x71] sm:$0xff]
        %v1779 = vld [vmem:[#allocation2 + $0xa1] sm:$0xff]
        %v1780 = vld [vmem:[#allocation2 + $0xb1] sm:$0xff]
        %v1781 = vld [vmem:[#allocation2 + $0xc1] sm:$0xff]
        %v1782 = vld [vmem:[#allocation2 + $0xd1] sm:$0xff]
        %v1783 = vld [vmem:[#allocation2 + $0xe1] sm:$0xff]
        %v1784 = vld [vmem:[#allocation2 + $0xf1] sm:$0xff]
        %v1785 = vld [vmem:[#allocation2 + $0x101] sm:$0xff]
        %v1786 = vld [vmem:[#allocation2 + $0x111] sm:$0xff]
        %v1787 = vld [vmem:[#allocation2 + $0x141] sm:$0xff]
        %v1788 = vld [vmem:[#allocation2 + $0x151] sm:$0xff]
        %v1789 = vld [vmem:[#allocation2 + $0x161] sm:$0xff]
        %v1790 = vld [vmem:[#allocation2 + $0x171] sm:$0xff]
        %v1791 = vld [vmem:[#allocation2 + $0x181] sm:$0xff]
        %v1792 = vld [vmem:[#allocation2 + $0x191] sm:$0xff]
        %v1793 = vld [vmem:[#allocation2 + $0x1a1] sm:$0xff]
        %v1794 = vld [vmem:[#allocation2 + $0x1b1] sm:$0xff]
        %v1795 = vld [vmem:[#allocation2 + $0x1e1] sm:$0xff]
        %v1796 = vld [vmem:[#allocation2 + $0x1f1] sm:$0xff]
        %v1797 = vld [vmem:[#allocation2 + $0x201] sm:$0xff]
        %v1798 = vld [vmem:[#allocation2 + $0x211] sm:$0xff]
        %v1799 = vld [vmem:[#allocation2 + $0x221] sm:$0xff]
        %v1800 = vld [vmem:[#allocation2 + $0x231] sm:$0xff]
        %v1801 = vld [vmem:[#allocation2 + $0x241] sm:$0xff]
        %v1802 = vld [vmem:[#allocation2 + $0x251] sm:$0xff]
        %v1803 = vld [vmem:[%s5 + $0x1] sm:$0x1]
        %v1804 = vlaneseq
        %v1805 = vshrl.u32 %v1804, 7
        %v1806 = vsub.s32 0, %v1805
        %v1807 = vrot.slane %v1803, %v1806
        %v1808 = vmul.f32 %v1771, %v1807
        %v1809 = vmul.f32 %v1772, %v1807
        %v1810 = vmul.f32 %v1773, %v1807
        %v1811 = vmul.f32 %v1774, %v1807
        %v1812 = vmul.f32 %v1775, %v1807
        %v1813 = vmul.f32 %v1776, %v1807
        %v1814 = vmul.f32 %v1777, %v1807
        %v1815 = vmul.f32 %v1778, %v1807
        %v1816 = vmul.f32 %v1779, %v1807
        %v1817 = vmul.f32 %v1780, %v1807
        %v1818 = vmul.f32 %v1781, %v1807
        %v1819 = vmul.f32 %v1782, %v1807
        %v1820 = vmul.f32 %v1783, %v1807
        %v1821 = vmul.f32 %v1784, %v1807
        %v1822 = vmul.f32 %v1785, %v1807
        %v1823 = vmul.f32 %v1786, %v1807
        %v1824 = vmul.f32 %v1787, %v1807
        %v1825 = vmul.f32 %v1788, %v1807
        %v1826 = vmul.f32 %v1789, %v1807
        %v1827 = vmul.f32 %v1790, %v1807
        %v1828 = vmul.f32 %v1791, %v1807
        %v1829 = vmul.f32 %v1792, %v1807
        %v1830 = vmul.f32 %v1793, %v1807
        %v1831 = vmul.f32 %v1794, %v1807
        %v1832 = vmul.f32 %v1795, %v1807
        %v1833 = vmul.f32 %v1796, %v1807
        %v1834 = vmul.f32 %v1797, %v1807
        %v1835 = vmul.f32 %v1798, %v1807
        %v1836 = vmul.f32 %v1799, %v1807
        %v1837 = vmul.f32 %v1800, %v1807
        %v1838 = vmul.f32 %v1801, %v1807
        %v1839 = vmul.f32 %v1802, %v1807
        %v1840 = vadd.f32 %v1739, %v1808
        %v1841 = vadd.f32 %v1740, %v1809
        %v1842 = vadd.f32 %v1741, %v1810
        %v1843 = vadd.f32 %v1742, %v1811
        %v1844 = vadd.f32 %v1743, %v1812
        %v1845 = vadd.f32 %v1744, %v1813
        %v1846 = vadd.f32 %v1745, %v1814
        %v1847 = vadd.f32 %v1746, %v1815
        %v1848 = vadd.f32 %v1747, %v1816
        %v1849 = vadd.f32 %v1748, %v1817
        %v1850 = vadd.f32 %v1749, %v1818
        %v1851 = vadd.f32 %v1750, %v1819
        %v1852 = vadd.f32 %v1751, %v1820
        %v1853 = vadd.f32 %v1752, %v1821
        %v1854 = vadd.f32 %v1753, %v1822
        %v1855 = vadd.f32 %v1754, %v1823
        %v1856 = vadd.f32 %v1755, %v1824
        %v1857 = vadd.f32 %v1756, %v1825
        %v1858 = vadd.f32 %v1757, %v1826
        %v1859 = vadd.f32 %v1758, %v1827
        %v1860 = vadd.f32 %v1759, %v1828
        %v1861 = vadd.f32 %v1760, %v1829
        %v1862 = vadd.f32 %v1761, %v1830
        %v1863 = vadd.f32 %v1762, %v1831
        %v1864 = vadd.f32 %v1763, %v1832
        %v1865 = vadd.f32 %v1764, %v1833
        %v1866 = vadd.f32 %v1765, %v1834
        %v1867 = vadd.f32 %v1766, %v1835
        %v1868 = vadd.f32 %v1767, %v1836
        %v1869 = vadd.f32 %v1768, %v1837
        %v1870 = vadd.f32 %v1769, %v1838
        %v1871 = vadd.f32 %v1770, %v1839
        %v1872 = vld [vmem:[#allocation2 + $0x2] sm:$0xff]
        %v1873 = vld [vmem:[#allocation2 + $0x12] sm:$0xff]
        %v1874 = vld [vmem:[#allocation2 + $0x22] sm:$0xff]
        %v1875 = vld [vmem:[#allocation2 + $0x32] sm:$0xff]
        %v1876 = vld [vmem:[#allocation2 + $0x42] sm:$0xff]
        %v1877 = vld [vmem:[#allocation2 + $0x52] sm:$0xff]
        %v1878 = vld [vmem:[#allocation2 + $0x62] sm:$0xff]
        %v1879 = vld [vmem:[#allocation2 + $0x72] sm:$0xff]
        %v1880 = vld [vmem:[#allocation2 + $0xa2] sm:$0xff]
        %v1881 = vld [vmem:[#allocation2 + $0xb2] sm:$0xff]
        %v1882 = vld [vmem:[#allocation2 + $0xc2] sm:$0xff]
        %v1883 = vld [vmem:[#allocation2 + $0xd2] sm:$0xff]
        %v1884 = vld [vmem:[#allocation2 + $0xe2] sm:$0xff]
        %v1885 = vld [vmem:[#allocation2 + $0xf2] sm:$0xff]
        %v1886 = vld [vmem:[#allocation2 + $0x102] sm:$0xff]
        %v1887 = vld [vmem:[#allocation2 + $0x112] sm:$0xff]
        %v1888 = vld [vmem:[#allocation2 + $0x142] sm:$0xff]
        %v1889 = vld [vmem:[#allocation2 + $0x152] sm:$0xff]
        %v1890 = vld [vmem:[#allocation2 + $0x162] sm:$0xff]
        %v1891 = vld [vmem:[#allocation2 + $0x172] sm:$0xff]
        %v1892 = vld [vmem:[#allocation2 + $0x182] sm:$0xff]
        %v1893 = vld [vmem:[#allocation2 + $0x192] sm:$0xff]
        %v1894 = vld [vmem:[#allocation2 + $0x1a2] sm:$0xff]
        %v1895 = vld [vmem:[#allocation2 + $0x1b2] sm:$0xff]
        %v1896 = vld [vmem:[#allocation2 + $0x1e2] sm:$0xff]
        %v1897 = vld [vmem:[#allocation2 + $0x1f2] sm:$0xff]
        %v1898 = vld [vmem:[#allocation2 + $0x202] sm:$0xff]
        %v1899 = vld [vmem:[#allocation2 + $0x212] sm:$0xff]
        %v1900 = vld [vmem:[#allocation2 + $0x222] sm:$0xff]
        %v1901 = vld [vmem:[#allocation2 + $0x232] sm:$0xff]
        %v1902 = vld [vmem:[#allocation2 + $0x242] sm:$0xff]
        %v1903 = vld [vmem:[#allocation2 + $0x252] sm:$0xff]
        %v1904 = vld [vmem:[%s5 + $0x2] sm:$0x1]
        %v1905 = vlaneseq
        %v1906 = vshrl.u32 %v1905, 7
        %v1907 = vsub.s32 0, %v1906
        %v1908 = vrot.slane %v1904, %v1907
        %v1909 = vmul.f32 %v1872, %v1908
        %v1910 = vmul.f32 %v1873, %v1908
        %v1911 = vmul.f32 %v1874, %v1908
        %v1912 = vmul.f32 %v1875, %v1908
        %v1913 = vmul.f32 %v1876, %v1908
        %v1914 = vmul.f32 %v1877, %v1908
        %v1915 = vmul.f32 %v1878, %v1908
        %v1916 = vmul.f32 %v1879, %v1908
        %v1917 = vmul.f32 %v1880, %v1908
        %v1918 = vmul.f32 %v1881, %v1908
        %v1919 = vmul.f32 %v1882, %v1908
        %v1920 = vmul.f32 %v1883, %v1908
        %v1921 = vmul.f32 %v1884, %v1908
        %v1922 = vmul.f32 %v1885, %v1908
        %v1923 = vmul.f32 %v1886, %v1908
        %v1924 = vmul.f32 %v1887, %v1908
        %v1925 = vmul.f32 %v1888, %v1908
        %v1926 = vmul.f32 %v1889, %v1908
        %v1927 = vmul.f32 %v1890, %v1908
        %v1928 = vmul.f32 %v1891, %v1908
        %v1929 = vmul.f32 %v1892, %v1908
        %v1930 = vmul.f32 %v1893, %v1908
        %v1931 = vmul.f32 %v1894, %v1908
        %v1932 = vmul.f32 %v1895, %v1908
        %v1933 = vmul.f32 %v1896, %v1908
        %v1934 = vmul.f32 %v1897, %v1908
        %v1935 = vmul.f32 %v1898, %v1908
        %v1936 = vmul.f32 %v1899, %v1908
        %v1937 = vmul.f32 %v1900, %v1908
        %v1938 = vmul.f32 %v1901, %v1908
        %v1939 = vmul.f32 %v1902, %v1908
        %v1940 = vmul.f32 %v1903, %v1908
        %v1941 = vadd.f32 %v1840, %v1909
        %v1942 = vadd.f32 %v1841, %v1910
        %v1943 = vadd.f32 %v1842, %v1911
        %v1944 = vadd.f32 %v1843, %v1912
        %v1945 = vadd.f32 %v1844, %v1913
        %v1946 = vadd.f32 %v1845, %v1914
        %v1947 = vadd.f32 %v1846, %v1915
        %v1948 = vadd.f32 %v1847, %v1916
        %v1949 = vadd.f32 %v1848, %v1917
        %v1950 = vadd.f32 %v1849, %v1918
        %v1951 = vadd.f32 %v1850, %v1919
        %v1952 = vadd.f32 %v1851, %v1920
        %v1953 = vadd.f32 %v1852, %v1921
        %v1954 = vadd.f32 %v1853, %v1922
        %v1955 = vadd.f32 %v1854, %v1923
        %v1956 = vadd.f32 %v1855, %v1924
        %v1957 = vadd.f32 %v1856, %v1925
        %v1958 = vadd.f32 %v1857, %v1926
        %v1959 = vadd.f32 %v1858, %v1927
        %v1960 = vadd.f32 %v1859, %v1928
        %v1961 = vadd.f32 %v1860, %v1929
        %v1962 = vadd.f32 %v1861, %v1930
        %v1963 = vadd.f32 %v1862, %v1931
        %v1964 = vadd.f32 %v1863, %v1932
        %v1965 = vadd.f32 %v1864, %v1933
        %v1966 = vadd.f32 %v1865, %v1934
        %v1967 = vadd.f32 %v1866, %v1935
        %v1968 = vadd.f32 %v1867, %v1936
        %v1969 = vadd.f32 %v1868, %v1937
        %v1970 = vadd.f32 %v1869, %v1938
        %v1971 = vadd.f32 %v1870, %v1939
        %v1972 = vadd.f32 %v1871, %v1940
        %v1973 = vld [vmem:[%s1637] sm:$0xff]
        %v1974 = vld [vmem:[%s1637 + $0x10] sm:$0xff]
        %v1975 = vld [vmem:[%s1637 + $0x20] sm:$0xff]
        %v1976 = vld [vmem:[%s1637 + $0x30] sm:$0xff]
        %v1977 = vld [vmem:[%s1637 + $0x40] sm:$0xff]
        %v1978 = vld [vmem:[%s1637 + $0x50] sm:$0xff]
        %v1979 = vld [vmem:[%s1637 + $0x60] sm:$0xff]
        %v1980 = vld [vmem:[%s1637 + $0x70] sm:$0xff]
        %v1981 = vld [vmem:[%s1637 + $0xa0] sm:$0xff]
        %v1982 = vld [vmem:[%s1637 + $0xb0] sm:$0xff]
        %v1983 = vld [vmem:[%s1637 + $0xc0] sm:$0xff]
        %v1984 = vld [vmem:[%s1637 + $0xd0] sm:$0xff]
        %v1985 = vld [vmem:[%s1637 + $0xe0] sm:$0xff]
        %v1986 = vld [vmem:[%s1637 + $0xf0] sm:$0xff]
        %v1987 = vld [vmem:[%s1637 + $0x100] sm:$0xff]
        %v1988 = vld [vmem:[%s1637 + $0x110] sm:$0xff]
        %v1989 = vld [vmem:[%s1637 + $0x140] sm:$0xff]
        %v1990 = vld [vmem:[%s1637 + $0x150] sm:$0xff]
        %v1991 = vld [vmem:[%s1637 + $0x160] sm:$0xff]
        %v1992 = vld [vmem:[%s1637 + $0x170] sm:$0xff]
        %v1993 = vld [vmem:[%s1637 + $0x180] sm:$0xff]
        %v1994 = vld [vmem:[%s1637 + $0x190] sm:$0xff]
        %v1995 = vld [vmem:[%s1637 + $0x1a0] sm:$0xff]
        %v1996 = vld [vmem:[%s1637 + $0x1b0] sm:$0xff]
        %v1997 = vld [vmem:[%s1637 + $0x1e0] sm:$0xff]
        %v1998 = vld [vmem:[%s1637 + $0x1f0] sm:$0xff]
        %v1999 = vld [vmem:[%s1637 + $0x200] sm:$0xff]
        %v2000 = vld [vmem:[%s1637 + $0x210] sm:$0xff]
        %v2001 = vld [vmem:[%s1637 + $0x220] sm:$0xff]
        %v2002 = vld [vmem:[%s1637 + $0x230] sm:$0xff]
        %v2003 = vld [vmem:[%s1637 + $0x240] sm:$0xff]
        %v2004 = vld [vmem:[%s1637 + $0x250] sm:$0xff]
        %s2005 = scalar_lea.vmem %s5, 4
        %v2006 = vld [vmem:[%s2005] sm:$0x1]
        %v2007 = vlaneseq
        %v2008 = vshrl.u32 %v2007, 7
        %v2009 = vsub.s32 0, %v2008
        %v2010 = vrot.slane %v2006, %v2009
        %v2011 = vmul.f32 %v1973, %v2010
        %v2012 = vmul.f32 %v1974, %v2010
        %v2013 = vmul.f32 %v1975, %v2010
        %v2014 = vmul.f32 %v1976, %v2010
        %v2015 = vmul.f32 %v1977, %v2010
        %v2016 = vmul.f32 %v1978, %v2010
        %v2017 = vmul.f32 %v1979, %v2010
        %v2018 = vmul.f32 %v1980, %v2010
        %v2019 = vmul.f32 %v1981, %v2010
        %v2020 = vmul.f32 %v1982, %v2010
        %v2021 = vmul.f32 %v1983, %v2010
        %v2022 = vmul.f32 %v1984, %v2010
        %v2023 = vmul.f32 %v1985, %v2010
        %v2024 = vmul.f32 %v1986, %v2010
        %v2025 = vmul.f32 %v1987, %v2010
        %v2026 = vmul.f32 %v1988, %v2010
        %v2027 = vmul.f32 %v1989, %v2010
        %v2028 = vmul.f32 %v1990, %v2010
        %v2029 = vmul.f32 %v1991, %v2010
        %v2030 = vmul.f32 %v1992, %v2010
        %v2031 = vmul.f32 %v1993, %v2010
        %v2032 = vmul.f32 %v1994, %v2010
        %v2033 = vmul.f32 %v1995, %v2010
        %v2034 = vmul.f32 %v1996, %v2010
        %v2035 = vmul.f32 %v1997, %v2010
        %v2036 = vmul.f32 %v1998, %v2010
        %v2037 = vmul.f32 %v1999, %v2010
        %v2038 = vmul.f32 %v2000, %v2010
        %v2039 = vmul.f32 %v2001, %v2010
        %v2040 = vmul.f32 %v2002, %v2010
        %v2041 = vmul.f32 %v2003, %v2010
        %v2042 = vmul.f32 %v2004, %v2010
        %v2043 = vadd.f32 %v1941, %v2011
        %v2044 = vadd.f32 %v1942, %v2012
        %v2045 = vadd.f32 %v1943, %v2013
        %v2046 = vadd.f32 %v1944, %v2014
        %v2047 = vadd.f32 %v1945, %v2015
        %v2048 = vadd.f32 %v1946, %v2016
        %v2049 = vadd.f32 %v1947, %v2017
        %v2050 = vadd.f32 %v1948, %v2018
        %v2051 = vadd.f32 %v1949, %v2019
        %v2052 = vadd.f32 %v1950, %v2020
        %v2053 = vadd.f32 %v1951, %v2021
        %v2054 = vadd.f32 %v1952, %v2022
        %v2055 = vadd.f32 %v1953, %v2023
        %v2056 = vadd.f32 %v1954, %v2024
        %v2057 = vadd.f32 %v1955, %v2025
        %v2058 = vadd.f32 %v1956, %v2026
        %v2059 = vadd.f32 %v1957, %v2027
        %v2060 = vadd.f32 %v1958, %v2028
        %v2061 = vadd.f32 %v1959, %v2029
        %v2062 = vadd.f32 %v1960, %v2030
        %v2063 = vadd.f32 %v1961, %v2031
        %v2064 = vadd.f32 %v1962, %v2032
        %v2065 = vadd.f32 %v1963, %v2033
        %v2066 = vadd.f32 %v1964, %v2034
        %v2067 = vadd.f32 %v1965, %v2035
        %v2068 = vadd.f32 %v1966, %v2036
        %v2069 = vadd.f32 %v1967, %v2037
        %v2070 = vadd.f32 %v1968, %v2038
        %v2071 = vadd.f32 %v1969, %v2039
        %v2072 = vadd.f32 %v1970, %v2040
        %v2073 = vadd.f32 %v1971, %v2041
        %v2074 = vadd.f32 %v1972, %v2042
        %v2075 = vld [vmem:[%s1637 + $0x1] sm:$0xff]
        %v2076 = vld [vmem:[%s1637 + $0x11] sm:$0xff]
        %v2077 = vld [vmem:[%s1637 + $0x21] sm:$0xff]
        %v2078 = vld [vmem:[%s1637 + $0x31] sm:$0xff]
        %v2079 = vld [vmem:[%s1637 + $0x41] sm:$0xff]
        %v2080 = vld [vmem:[%s1637 + $0x51] sm:$0xff]
        %v2081 = vld [vmem:[%s1637 + $0x61] sm:$0xff]
        %v2082 = vld [vmem:[%s1637 + $0x71] sm:$0xff]
        %v2083 = vld [vmem:[%s1637 + $0xa1] sm:$0xff]
        %v2084 = vld [vmem:[%s1637 + $0xb1] sm:$0xff]
        %v2085 = vld [vmem:[%s1637 + $0xc1] sm:$0xff]
        %v2086 = vld [vmem:[%s1637 + $0xd1] sm:$0xff]
        %v2087 = vld [vmem:[%s1637 + $0xe1] sm:$0xff]
        %v2088 = vld [vmem:[%s1637 + $0xf1] sm:$0xff]
        %v2089 = vld [vmem:[%s1637 + $0x101] sm:$0xff]
        %v2090 = vld [vmem:[%s1637 + $0x111] sm:$0xff]
        %v2091 = vld [vmem:[%s1637 + $0x141] sm:$0xff]
        %v2092 = vld [vmem:[%s1637 + $0x151] sm:$0xff]
        %v2093 = vld [vmem:[%s1637 + $0x161] sm:$0xff]
        %v2094 = vld [vmem:[%s1637 + $0x171] sm:$0xff]
        %v2095 = vld [vmem:[%s1637 + $0x181] sm:$0xff]
        %v2096 = vld [vmem:[%s1637 + $0x191] sm:$0xff]
        %v2097 = vld [vmem:[%s1637 + $0x1a1] sm:$0xff]
        %v2098 = vld [vmem:[%s1637 + $0x1b1] sm:$0xff]
        %v2099 = vld [vmem:[%s1637 + $0x1e1] sm:$0xff]
        %v2100 = vld [vmem:[%s1637 + $0x1f1] sm:$0xff]
        %v2101 = vld [vmem:[%s1637 + $0x201] sm:$0xff]
        %v2102 = vld [vmem:[%s1637 + $0x211] sm:$0xff]
        %v2103 = vld [vmem:[%s1637 + $0x221] sm:$0xff]
        %v2104 = vld [vmem:[%s1637 + $0x231] sm:$0xff]
        %v2105 = vld [vmem:[%s1637 + $0x241] sm:$0xff]
        %v2106 = vld [vmem:[%s1637 + $0x251] sm:$0xff]
        %v2107 = vld [vmem:[%s2005 + $0x1] sm:$0x1]
        %v2108 = vlaneseq
        %v2109 = vshrl.u32 %v2108, 7
        %v2110 = vsub.s32 0, %v2109
        %v2111 = vrot.slane %v2107, %v2110
        %v2112 = vmul.f32 %v2075, %v2111
        %v2113 = vmul.f32 %v2076, %v2111
        %v2114 = vmul.f32 %v2077, %v2111
        %v2115 = vmul.f32 %v2078, %v2111
        %v2116 = vmul.f32 %v2079, %v2111
        %v2117 = vmul.f32 %v2080, %v2111
        %v2118 = vmul.f32 %v2081, %v2111
        %v2119 = vmul.f32 %v2082, %v2111
        %v2120 = vmul.f32 %v2083, %v2111
        %v2121 = vmul.f32 %v2084, %v2111
        %v2122 = vmul.f32 %v2085, %v2111
        %v2123 = vmul.f32 %v2086, %v2111
        %v2124 = vmul.f32 %v2087, %v2111
        %v2125 = vmul.f32 %v2088, %v2111
        %v2126 = vmul.f32 %v2089, %v2111
        %v2127 = vmul.f32 %v2090, %v2111
        %v2128 = vmul.f32 %v2091, %v2111
        %v2129 = vmul.f32 %v2092, %v2111
        %v2130 = vmul.f32 %v2093, %v2111
        %v2131 = vmul.f32 %v2094, %v2111
        %v2132 = vmul.f32 %v2095, %v2111
        %v2133 = vmul.f32 %v2096, %v2111
        %v2134 = vmul.f32 %v2097, %v2111
        %v2135 = vmul.f32 %v2098, %v2111
        %v2136 = vmul.f32 %v2099, %v2111
        %v2137 = vmul.f32 %v2100, %v2111
        %v2138 = vmul.f32 %v2101, %v2111
        %v2139 = vmul.f32 %v2102, %v2111
        %v2140 = vmul.f32 %v2103, %v2111
        %v2141 = vmul.f32 %v2104, %v2111
        %v2142 = vmul.f32 %v2105, %v2111
        %v2143 = vmul.f32 %v2106, %v2111
        %v2144 = vadd.f32 %v2043, %v2112
        %v2145 = vadd.f32 %v2044, %v2113
        %v2146 = vadd.f32 %v2045, %v2114
        %v2147 = vadd.f32 %v2046, %v2115
        %v2148 = vadd.f32 %v2047, %v2116
        %v2149 = vadd.f32 %v2048, %v2117
        %v2150 = vadd.f32 %v2049, %v2118
        %v2151 = vadd.f32 %v2050, %v2119
        %v2152 = vadd.f32 %v2051, %v2120
        %v2153 = vadd.f32 %v2052, %v2121
        %v2154 = vadd.f32 %v2053, %v2122
        %v2155 = vadd.f32 %v2054, %v2123
        %v2156 = vadd.f32 %v2055, %v2124
        %v2157 = vadd.f32 %v2056, %v2125
        %v2158 = vadd.f32 %v2057, %v2126
        %v2159 = vadd.f32 %v2058, %v2127
        %v2160 = vadd.f32 %v2059, %v2128
        %v2161 = vadd.f32 %v2060, %v2129
        %v2162 = vadd.f32 %v2061, %v2130
        %v2163 = vadd.f32 %v2062, %v2131
        %v2164 = vadd.f32 %v2063, %v2132
        %v2165 = vadd.f32 %v2064, %v2133
        %v2166 = vadd.f32 %v2065, %v2134
        %v2167 = vadd.f32 %v2066, %v2135
        %v2168 = vadd.f32 %v2067, %v2136
        %v2169 = vadd.f32 %v2068, %v2137
        %v2170 = vadd.f32 %v2069, %v2138
        %v2171 = vadd.f32 %v2070, %v2139
        %v2172 = vadd.f32 %v2071, %v2140
        %v2173 = vadd.f32 %v2072, %v2141
        %v2174 = vadd.f32 %v2073, %v2142
        %v2175 = vadd.f32 %v2074, %v2143
        %v2176 = vld [vmem:[%s1637 + $0x2] sm:$0xff]
        %v2177 = vld [vmem:[%s1637 + $0x12] sm:$0xff]
        %v2178 = vld [vmem:[%s1637 + $0x22] sm:$0xff]
        %v2179 = vld [vmem:[%s1637 + $0x32] sm:$0xff]
        %v2180 = vld [vmem:[%s1637 + $0x42] sm:$0xff]
        %v2181 = vld [vmem:[%s1637 + $0x52] sm:$0xff]
        %v2182 = vld [vmem:[%s1637 + $0x62] sm:$0xff]
        %v2183 = vld [vmem:[%s1637 + $0x72] sm:$0xff]
        %v2184 = vld [vmem:[%s1637 + $0xa2] sm:$0xff]
        %v2185 = vld [vmem:[%s1637 + $0xb2] sm:$0xff]
        %v2186 = vld [vmem:[%s1637 + $0xc2] sm:$0xff]
        %v2187 = vld [vmem:[%s1637 + $0xd2] sm:$0xff]
        %v2188 = vld [vmem:[%s1637 + $0xe2] sm:$0xff]
        %v2189 = vld [vmem:[%s1637 + $0xf2] sm:$0xff]
        %v2190 = vld [vmem:[%s1637 + $0x102] sm:$0xff]
        %v2191 = vld [vmem:[%s1637 + $0x112] sm:$0xff]
        %v2192 = vld [vmem:[%s1637 + $0x142] sm:$0xff]
        %v2193 = vld [vmem:[%s1637 + $0x152] sm:$0xff]
        %v2194 = vld [vmem:[%s1637 + $0x162] sm:$0xff]
        %v2195 = vld [vmem:[%s1637 + $0x172] sm:$0xff]
        %v2196 = vld [vmem:[%s1637 + $0x182] sm:$0xff]
        %v2197 = vld [vmem:[%s1637 + $0x192] sm:$0xff]
        %v2198 = vld [vmem:[%s1637 + $0x1a2] sm:$0xff]
        %v2199 = vld [vmem:[%s1637 + $0x1b2] sm:$0xff]
        %v2200 = vld [vmem:[%s1637 + $0x1e2] sm:$0xff]
        %v2201 = vld [vmem:[%s1637 + $0x1f2] sm:$0xff]
        %v2202 = vld [vmem:[%s1637 + $0x202] sm:$0xff]
        %v2203 = vld [vmem:[%s1637 + $0x212] sm:$0xff]
        %v2204 = vld [vmem:[%s1637 + $0x222] sm:$0xff]
        %v2205 = vld [vmem:[%s1637 + $0x232] sm:$0xff]
        %v2206 = vld [vmem:[%s1637 + $0x242] sm:$0xff]
        %v2207 = vld [vmem:[%s1637 + $0x252] sm:$0xff]
        %v2208 = vld [vmem:[%s2005 + $0x2] sm:$0x1]
        %v2209 = vlaneseq
        %v2210 = vshrl.u32 %v2209, 7
        %v2211 = vsub.s32 0, %v2210
        %v2212 = vrot.slane %v2208, %v2211
        %v2213 = vmul.f32 %v2176, %v2212
        %v2214 = vmul.f32 %v2177, %v2212
        %v2215 = vmul.f32 %v2178, %v2212
        %v2216 = vmul.f32 %v2179, %v2212
        %v2217 = vmul.f32 %v2180, %v2212
        %v2218 = vmul.f32 %v2181, %v2212
        %v2219 = vmul.f32 %v2182, %v2212
        %v2220 = vmul.f32 %v2183, %v2212
        %v2221 = vmul.f32 %v2184, %v2212
        %v2222 = vmul.f32 %v2185, %v2212
        %v2223 = vmul.f32 %v2186, %v2212
        %v2224 = vmul.f32 %v2187, %v2212
        %v2225 = vmul.f32 %v2188, %v2212
        %v2226 = vmul.f32 %v2189, %v2212
        %v2227 = vmul.f32 %v2190, %v2212
        %v2228 = vmul.f32 %v2191, %v2212
        %v2229 = vmul.f32 %v2192, %v2212
        %v2230 = vmul.f32 %v2193, %v2212
        %v2231 = vmul.f32 %v2194, %v2212
        %v2232 = vmul.f32 %v2195, %v2212
        %v2233 = vmul.f32 %v2196, %v2212
        %v2234 = vmul.f32 %v2197, %v2212
        %v2235 = vmul.f32 %v2198, %v2212
        %v2236 = vmul.f32 %v2199, %v2212
        %v2237 = vmul.f32 %v2200, %v2212
        %v2238 = vmul.f32 %v2201, %v2212
        %v2239 = vmul.f32 %v2202, %v2212
        %v2240 = vmul.f32 %v2203, %v2212
        %v2241 = vmul.f32 %v2204, %v2212
        %v2242 = vmul.f32 %v2205, %v2212
        %v2243 = vmul.f32 %v2206, %v2212
        %v2244 = vmul.f32 %v2207, %v2212
        %v2245 = vadd.f32 %v2144, %v2213
        %v2246 = vadd.f32 %v2145, %v2214
        %v2247 = vadd.f32 %v2146, %v2215
        %v2248 = vadd.f32 %v2147, %v2216
        %v2249 = vadd.f32 %v2148, %v2217
        %v2250 = vadd.f32 %v2149, %v2218
        %v2251 = vadd.f32 %v2150, %v2219
        %v2252 = vadd.f32 %v2151, %v2220
        %v2253 = vadd.f32 %v2152, %v2221
        %v2254 = vadd.f32 %v2153, %v2222
        %v2255 = vadd.f32 %v2154, %v2223
        %v2256 = vadd.f32 %v2155, %v2224
        %v2257 = vadd.f32 %v2156, %v2225
        %v2258 = vadd.f32 %v2157, %v2226
        %v2259 = vadd.f32 %v2158, %v2227
        %v2260 = vadd.f32 %v2159, %v2228
        %v2261 = vadd.f32 %v2160, %v2229
        %v2262 = vadd.f32 %v2161, %v2230
        %v2263 = vadd.f32 %v2162, %v2231
        %v2264 = vadd.f32 %v2163, %v2232
        %v2265 = vadd.f32 %v2164, %v2233
        %v2266 = vadd.f32 %v2165, %v2234
        %v2267 = vadd.f32 %v2166, %v2235
        %v2268 = vadd.f32 %v2167, %v2236
        %v2269 = vadd.f32 %v2168, %v2237
        %v2270 = vadd.f32 %v2169, %v2238
        %v2271 = vadd.f32 %v2170, %v2239
        %v2272 = vadd.f32 %v2171, %v2240
        %v2273 = vadd.f32 %v2172, %v2241
        %v2274 = vadd.f32 %v2173, %v2242
        %v2275 = vadd.f32 %v2174, %v2243
        %v2276 = vadd.f32 %v2175, %v2244
        %s2277 = scalar_lea.vmem [#allocation2], 32
        %v2278 = vld [vmem:[%s2277] sm:$0xff]
        %v2279 = vld [vmem:[%s2277 + $0x10] sm:$0xff]
        %v2280 = vld [vmem:[%s2277 + $0x20] sm:$0xff]
        %v2281 = vld [vmem:[%s2277 + $0x30] sm:$0xff]
        %v2282 = vld [vmem:[%s2277 + $0x40] sm:$0xff]
        %v2283 = vld [vmem:[%s2277 + $0x50] sm:$0xff]
        %v2284 = vld [vmem:[%s2277 + $0x60] sm:$0xff]
        %v2285 = vld [vmem:[%s2277 + $0x70] sm:$0xff]
        %v2286 = vld [vmem:[%s2277 + $0xa0] sm:$0xff]
        %v2287 = vld [vmem:[%s2277 + $0xb0] sm:$0xff]
        %v2288 = vld [vmem:[%s2277 + $0xc0] sm:$0xff]
        %v2289 = vld [vmem:[%s2277 + $0xd0] sm:$0xff]
        %v2290 = vld [vmem:[%s2277 + $0xe0] sm:$0xff]
        %v2291 = vld [vmem:[%s2277 + $0xf0] sm:$0xff]
        %v2292 = vld [vmem:[%s2277 + $0x100] sm:$0xff]
        %v2293 = vld [vmem:[%s2277 + $0x110] sm:$0xff]
        %v2294 = vld [vmem:[%s2277 + $0x140] sm:$0xff]
        %v2295 = vld [vmem:[%s2277 + $0x150] sm:$0xff]
        %v2296 = vld [vmem:[%s2277 + $0x160] sm:$0xff]
        %v2297 = vld [vmem:[%s2277 + $0x170] sm:$0xff]
        %v2298 = vld [vmem:[%s2277 + $0x180] sm:$0xff]
        %v2299 = vld [vmem:[%s2277 + $0x190] sm:$0xff]
        %v2300 = vld [vmem:[%s2277 + $0x1a0] sm:$0xff]
        %v2301 = vld [vmem:[%s2277 + $0x1b0] sm:$0xff]
        %v2302 = vld [vmem:[%s2277 + $0x1e0] sm:$0xff]
        %v2303 = vld [vmem:[%s2277 + $0x1f0] sm:$0xff]
        %v2304 = vld [vmem:[%s2277 + $0x200] sm:$0xff]
        %v2305 = vld [vmem:[%s2277 + $0x210] sm:$0xff]
        %v2306 = vld [vmem:[%s2277 + $0x220] sm:$0xff]
        %v2307 = vld [vmem:[%s2277 + $0x230] sm:$0xff]
        %v2308 = vld [vmem:[%s2277 + $0x240] sm:$0xff]
        %v2309 = vld [vmem:[%s2277 + $0x250] sm:$0xff]
        %s2310 = scalar_lea.vmem %s5, 8
        %v2311 = vld [vmem:[%s2310] sm:$0x1]
        %v2312 = vlaneseq
        %v2313 = vshrl.u32 %v2312, 7
        %v2314 = vsub.s32 0, %v2313
        %v2315 = vrot.slane %v2311, %v2314
        %v2316 = vmul.f32 %v2278, %v2315
        %v2317 = vmul.f32 %v2279, %v2315
        %v2318 = vmul.f32 %v2280, %v2315
        %v2319 = vmul.f32 %v2281, %v2315
        %v2320 = vmul.f32 %v2282, %v2315
        %v2321 = vmul.f32 %v2283, %v2315
        %v2322 = vmul.f32 %v2284, %v2315
        %v2323 = vmul.f32 %v2285, %v2315
        %v2324 = vmul.f32 %v2286, %v2315
        %v2325 = vmul.f32 %v2287, %v2315
        %v2326 = vmul.f32 %v2288, %v2315
        %v2327 = vmul.f32 %v2289, %v2315
        %v2328 = vmul.f32 %v2290, %v2315
        %v2329 = vmul.f32 %v2291, %v2315
        %v2330 = vmul.f32 %v2292, %v2315
        %v2331 = vmul.f32 %v2293, %v2315
        %v2332 = vmul.f32 %v2294, %v2315
        %v2333 = vmul.f32 %v2295, %v2315
        %v2334 = vmul.f32 %v2296, %v2315
        %v2335 = vmul.f32 %v2297, %v2315
        %v2336 = vmul.f32 %v2298, %v2315
        %v2337 = vmul.f32 %v2299, %v2315
        %v2338 = vmul.f32 %v2300, %v2315
        %v2339 = vmul.f32 %v2301, %v2315
        %v2340 = vmul.f32 %v2302, %v2315
        %v2341 = vmul.f32 %v2303, %v2315
        %v2342 = vmul.f32 %v2304, %v2315
        %v2343 = vmul.f32 %v2305, %v2315
        %v2344 = vmul.f32 %v2306, %v2315
        %v2345 = vmul.f32 %v2307, %v2315
        %v2346 = vmul.f32 %v2308, %v2315
        %v2347 = vmul.f32 %v2309, %v2315
        %v2348 = vadd.f32 %v2245, %v2316
        %v2349 = vadd.f32 %v2246, %v2317
        %v2350 = vadd.f32 %v2247, %v2318
        %v2351 = vadd.f32 %v2248, %v2319
        %v2352 = vadd.f32 %v2249, %v2320
        %v2353 = vadd.f32 %v2250, %v2321
        %v2354 = vadd.f32 %v2251, %v2322
        %v2355 = vadd.f32 %v2252, %v2323
        %v2356 = vadd.f32 %v2253, %v2324
        %v2357 = vadd.f32 %v2254, %v2325
        %v2358 = vadd.f32 %v2255, %v2326
        %v2359 = vadd.f32 %v2256, %v2327
        %v2360 = vadd.f32 %v2257, %v2328
        %v2361 = vadd.f32 %v2258, %v2329
        %v2362 = vadd.f32 %v2259, %v2330
        %v2363 = vadd.f32 %v2260, %v2331
        %v2364 = vadd.f32 %v2261, %v2332
        %v2365 = vadd.f32 %v2262, %v2333
        %v2366 = vadd.f32 %v2263, %v2334
        %v2367 = vadd.f32 %v2264, %v2335
        %v2368 = vadd.f32 %v2265, %v2336
        %v2369 = vadd.f32 %v2266, %v2337
        %v2370 = vadd.f32 %v2267, %v2338
        %v2371 = vadd.f32 %v2268, %v2339
        %v2372 = vadd.f32 %v2269, %v2340
        %v2373 = vadd.f32 %v2270, %v2341
        %v2374 = vadd.f32 %v2271, %v2342
        %v2375 = vadd.f32 %v2272, %v2343
        %v2376 = vadd.f32 %v2273, %v2344
        %v2377 = vadd.f32 %v2274, %v2345
        %v2378 = vadd.f32 %v2275, %v2346
        %v2379 = vadd.f32 %v2276, %v2347
        %v2380 = vld [vmem:[%s2277 + $0x1] sm:$0xff]
        %v2381 = vld [vmem:[%s2277 + $0x11] sm:$0xff]
        %v2382 = vld [vmem:[%s2277 + $0x21] sm:$0xff]
        %v2383 = vld [vmem:[%s2277 + $0x31] sm:$0xff]
        %v2384 = vld [vmem:[%s2277 + $0x41] sm:$0xff]
        %v2385 = vld [vmem:[%s2277 + $0x51] sm:$0xff]
        %v2386 = vld [vmem:[%s2277 + $0x61] sm:$0xff]
        %v2387 = vld [vmem:[%s2277 + $0x71] sm:$0xff]
        %v2388 = vld [vmem:[%s2277 + $0xa1] sm:$0xff]
        %v2389 = vld [vmem:[%s2277 + $0xb1] sm:$0xff]
        %v2390 = vld [vmem:[%s2277 + $0xc1] sm:$0xff]
        %v2391 = vld [vmem:[%s2277 + $0xd1] sm:$0xff]
        %v2392 = vld [vmem:[%s2277 + $0xe1] sm:$0xff]
        %v2393 = vld [vmem:[%s2277 + $0xf1] sm:$0xff]
        %v2394 = vld [vmem:[%s2277 + $0x101] sm:$0xff]
        %v2395 = vld [vmem:[%s2277 + $0x111] sm:$0xff]
        %v2396 = vld [vmem:[%s2277 + $0x141] sm:$0xff]
        %v2397 = vld [vmem:[%s2277 + $0x151] sm:$0xff]
        %v2398 = vld [vmem:[%s2277 + $0x161] sm:$0xff]
        %v2399 = vld [vmem:[%s2277 + $0x171] sm:$0xff]
        %v2400 = vld [vmem:[%s2277 + $0x181] sm:$0xff]
        %v2401 = vld [vmem:[%s2277 + $0x191] sm:$0xff]
        %v2402 = vld [vmem:[%s2277 + $0x1a1] sm:$0xff]
        %v2403 = vld [vmem:[%s2277 + $0x1b1] sm:$0xff]
        %v2404 = vld [vmem:[%s2277 + $0x1e1] sm:$0xff]
        %v2405 = vld [vmem:[%s2277 + $0x1f1] sm:$0xff]
        %v2406 = vld [vmem:[%s2277 + $0x201] sm:$0xff]
        %v2407 = vld [vmem:[%s2277 + $0x211] sm:$0xff]
        %v2408 = vld [vmem:[%s2277 + $0x221] sm:$0xff]
        %v2409 = vld [vmem:[%s2277 + $0x231] sm:$0xff]
        %v2410 = vld [vmem:[%s2277 + $0x241] sm:$0xff]
        %v2411 = vld [vmem:[%s2277 + $0x251] sm:$0xff]
        %v2412 = vld [vmem:[%s2310 + $0x1] sm:$0x1]
        %v2413 = vlaneseq
        %v2414 = vshrl.u32 %v2413, 7
        %v2415 = vsub.s32 0, %v2414
        %v2416 = vrot.slane %v2412, %v2415
        %v2417 = vmul.f32 %v2380, %v2416
        %v2418 = vmul.f32 %v2381, %v2416
        %v2419 = vmul.f32 %v2382, %v2416
        %v2420 = vmul.f32 %v2383, %v2416
        %v2421 = vmul.f32 %v2384, %v2416
        %v2422 = vmul.f32 %v2385, %v2416
        %v2423 = vmul.f32 %v2386, %v2416
        %v2424 = vmul.f32 %v2387, %v2416
        %v2425 = vmul.f32 %v2388, %v2416
        %v2426 = vmul.f32 %v2389, %v2416
        %v2427 = vmul.f32 %v2390, %v2416
        %v2428 = vmul.f32 %v2391, %v2416
        %v2429 = vmul.f32 %v2392, %v2416
        %v2430 = vmul.f32 %v2393, %v2416
        %v2431 = vmul.f32 %v2394, %v2416
        %v2432 = vmul.f32 %v2395, %v2416
        %v2433 = vmul.f32 %v2396, %v2416
        %v2434 = vmul.f32 %v2397, %v2416
        %v2435 = vmul.f32 %v2398, %v2416
        %v2436 = vmul.f32 %v2399, %v2416
        %v2437 = vmul.f32 %v2400, %v2416
        %v2438 = vmul.f32 %v2401, %v2416
        %v2439 = vmul.f32 %v2402, %v2416
        %v2440 = vmul.f32 %v2403, %v2416
        %v2441 = vmul.f32 %v2404, %v2416
        %v2442 = vmul.f32 %v2405, %v2416
        %v2443 = vmul.f32 %v2406, %v2416
        %v2444 = vmul.f32 %v2407, %v2416
        %v2445 = vmul.f32 %v2408, %v2416
        %v2446 = vmul.f32 %v2409, %v2416
        %v2447 = vmul.f32 %v2410, %v2416
        %v2448 = vmul.f32 %v2411, %v2416
        %v2449 = vadd.f32 %v2348, %v2417
        %v2450 = vadd.f32 %v2349, %v2418
        %v2451 = vadd.f32 %v2350, %v2419
        %v2452 = vadd.f32 %v2351, %v2420
        %v2453 = vadd.f32 %v2352, %v2421
        %v2454 = vadd.f32 %v2353, %v2422
        %v2455 = vadd.f32 %v2354, %v2423
        %v2456 = vadd.f32 %v2355, %v2424
        %v2457 = vadd.f32 %v2356, %v2425
        %v2458 = vadd.f32 %v2357, %v2426
        %v2459 = vadd.f32 %v2358, %v2427
        %v2460 = vadd.f32 %v2359, %v2428
        %v2461 = vadd.f32 %v2360, %v2429
        %v2462 = vadd.f32 %v2361, %v2430
        %v2463 = vadd.f32 %v2362, %v2431
        %v2464 = vadd.f32 %v2363, %v2432
        %v2465 = vadd.f32 %v2364, %v2433
        %v2466 = vadd.f32 %v2365, %v2434
        %v2467 = vadd.f32 %v2366, %v2435
        %v2468 = vadd.f32 %v2367, %v2436
        %v2469 = vadd.f32 %v2368, %v2437
        %v2470 = vadd.f32 %v2369, %v2438
        %v2471 = vadd.f32 %v2370, %v2439
        %v2472 = vadd.f32 %v2371, %v2440
        %v2473 = vadd.f32 %v2372, %v2441
        %v2474 = vadd.f32 %v2373, %v2442
        %v2475 = vadd.f32 %v2374, %v2443
        %v2476 = vadd.f32 %v2375, %v2444
        %v2477 = vadd.f32 %v2376, %v2445
        %v2478 = vadd.f32 %v2377, %v2446
        %v2479 = vadd.f32 %v2378, %v2447
        %v2480 = vadd.f32 %v2379, %v2448
        %v2481 = vld [vmem:[%s2277 + $0x2] sm:$0xff]
        %v2482 = vld [vmem:[%s2277 + $0x12] sm:$0xff]
        %v2483 = vld [vmem:[%s2277 + $0x22] sm:$0xff]
        %v2484 = vld [vmem:[%s2277 + $0x32] sm:$0xff]
        %v2485 = vld [vmem:[%s2277 + $0x42] sm:$0xff]
        %v2486 = vld [vmem:[%s2277 + $0x52] sm:$0xff]
        %v2487 = vld [vmem:[%s2277 + $0x62] sm:$0xff]
        %v2488 = vld [vmem:[%s2277 + $0x72] sm:$0xff]
        %v2489 = vld [vmem:[%s2277 + $0xa2] sm:$0xff]
        %v2490 = vld [vmem:[%s2277 + $0xb2] sm:$0xff]
        %v2491 = vld [vmem:[%s2277 + $0xc2] sm:$0xff]
        %v2492 = vld [vmem:[%s2277 + $0xd2] sm:$0xff]
        %v2493 = vld [vmem:[%s2277 + $0xe2] sm:$0xff]
        %v2494 = vld [vmem:[%s2277 + $0xf2] sm:$0xff]
        %v2495 = vld [vmem:[%s2277 + $0x102] sm:$0xff]
        %v2496 = vld [vmem:[%s2277 + $0x112] sm:$0xff]
        %v2497 = vld [vmem:[%s2277 + $0x142] sm:$0xff]
        %v2498 = vld [vmem:[%s2277 + $0x152] sm:$0xff]
        %v2499 = vld [vmem:[%s2277 + $0x162] sm:$0xff]
        %v2500 = vld [vmem:[%s2277 + $0x172] sm:$0xff]
        %v2501 = vld [vmem:[%s2277 + $0x182] sm:$0xff]
        %v2502 = vld [vmem:[%s2277 + $0x192] sm:$0xff]
        %v2503 = vld [vmem:[%s2277 + $0x1a2] sm:$0xff]
        %v2504 = vld [vmem:[%s2277 + $0x1b2] sm:$0xff]
        %v2505 = vld [vmem:[%s2277 + $0x1e2] sm:$0xff]
        %v2506 = vld [vmem:[%s2277 + $0x1f2] sm:$0xff]
        %v2507 = vld [vmem:[%s2277 + $0x202] sm:$0xff]
        %v2508 = vld [vmem:[%s2277 + $0x212] sm:$0xff]
        %v2509 = vld [vmem:[%s2277 + $0x222] sm:$0xff]
        %v2510 = vld [vmem:[%s2277 + $0x232] sm:$0xff]
        %v2511 = vld [vmem:[%s2277 + $0x242] sm:$0xff]
        %v2512 = vld [vmem:[%s2277 + $0x252] sm:$0xff]
        %v2513 = vld [vmem:[%s2310 + $0x2] sm:$0x1]
        %v2514 = vlaneseq
        %v2515 = vshrl.u32 %v2514, 7
        %v2516 = vsub.s32 0, %v2515
        %v2517 = vrot.slane %v2513, %v2516
        %v2518 = vmul.f32 %v2481, %v2517
        %v2519 = vmul.f32 %v2482, %v2517
        %v2520 = vmul.f32 %v2483, %v2517
        %v2521 = vmul.f32 %v2484, %v2517
        %v2522 = vmul.f32 %v2485, %v2517
        %v2523 = vmul.f32 %v2486, %v2517
        %v2524 = vmul.f32 %v2487, %v2517
        %v2525 = vmul.f32 %v2488, %v2517
        %v2526 = vmul.f32 %v2489, %v2517
        %v2527 = vmul.f32 %v2490, %v2517
        %v2528 = vmul.f32 %v2491, %v2517
        %v2529 = vmul.f32 %v2492, %v2517
        %v2530 = vmul.f32 %v2493, %v2517
        %v2531 = vmul.f32 %v2494, %v2517
        %v2532 = vmul.f32 %v2495, %v2517
        %v2533 = vmul.f32 %v2496, %v2517
        %v2534 = vmul.f32 %v2497, %v2517
        %v2535 = vmul.f32 %v2498, %v2517
        %v2536 = vmul.f32 %v2499, %v2517
        %v2537 = vmul.f32 %v2500, %v2517
        %v2538 = vmul.f32 %v2501, %v2517
        %v2539 = vmul.f32 %v2502, %v2517
        %v2540 = vmul.f32 %v2503, %v2517
        %v2541 = vmul.f32 %v2504, %v2517
        %v2542 = vmul.f32 %v2505, %v2517
        %v2543 = vmul.f32 %v2506, %v2517
        %v2544 = vmul.f32 %v2507, %v2517
        %v2545 = vmul.f32 %v2508, %v2517
        %v2546 = vmul.f32 %v2509, %v2517
        %v2547 = vmul.f32 %v2510, %v2517
        %v2548 = vmul.f32 %v2511, %v2517
        %v2549 = vmul.f32 %v2512, %v2517
        %v2550 = vadd.f32 %v2449, %v2518
        %v2551 = vadd.f32 %v2450, %v2519
        %v2552 = vadd.f32 %v2451, %v2520
        %v2553 = vadd.f32 %v2452, %v2521
        %v2554 = vadd.f32 %v2453, %v2522
        %v2555 = vadd.f32 %v2454, %v2523
        %v2556 = vadd.f32 %v2455, %v2524
        %v2557 = vadd.f32 %v2456, %v2525
        %v2558 = vadd.f32 %v2457, %v2526
        %v2559 = vadd.f32 %v2458, %v2527
        %v2560 = vadd.f32 %v2459, %v2528
        %v2561 = vadd.f32 %v2460, %v2529
        %v2562 = vadd.f32 %v2461, %v2530
        %v2563 = vadd.f32 %v2462, %v2531
        %v2564 = vadd.f32 %v2463, %v2532
        %v2565 = vadd.f32 %v2464, %v2533
        %v2566 = vadd.f32 %v2465, %v2534
        %v2567 = vadd.f32 %v2466, %v2535
        %v2568 = vadd.f32 %v2467, %v2536
        %v2569 = vadd.f32 %v2468, %v2537
        %v2570 = vadd.f32 %v2469, %v2538
        %v2571 = vadd.f32 %v2470, %v2539
        %v2572 = vadd.f32 %v2471, %v2540
        %v2573 = vadd.f32 %v2472, %v2541
        %v2574 = vadd.f32 %v2473, %v2542
        %v2575 = vadd.f32 %v2474, %v2543
        %v2576 = vadd.f32 %v2475, %v2544
        %v2577 = vadd.f32 %v2476, %v2545
        %v2578 = vadd.f32 %v2477, %v2546
        %v2579 = vadd.f32 %v2478, %v2547
        %v2580 = vadd.f32 %v2479, %v2548
        %v2581 = vadd.f32 %v2480, %v2549
        %v2582 = vld [vmem:[%s6] sm:$0x1]
        %v2584 = vlaneseq
        %v2585 = vshrl.u32 %v2584, 7
        %v2586 = vsub.s32 0, %v2585
        %v2587 = vrot.slane %v2582, %v2586
        %v2589 = vadd.f32 %v2550, %v2587
        %v2590 = vadd.f32 %v2551, %v2587
        %v2591 = vadd.f32 %v2552, %v2587
        %v2592 = vadd.f32 %v2553, %v2587
        %v2593 = vadd.f32 %v2554, %v2587
        %v2594 = vadd.f32 %v2555, %v2587
        %v2595 = vadd.f32 %v2556, %v2587
        %v2596 = vadd.f32 %v2557, %v2587
        %v2597 = vadd.f32 %v2558, %v2587
        %v2598 = vadd.f32 %v2559, %v2587
        %v2599 = vadd.f32 %v2560, %v2587
        %v2600 = vadd.f32 %v2561, %v2587
        %v2601 = vadd.f32 %v2562, %v2587
        %v2602 = vadd.f32 %v2563, %v2587
        %v2603 = vadd.f32 %v2564, %v2587
        %v2604 = vadd.f32 %v2565, %v2587
        %v2605 = vadd.f32 %v2566, %v2587
        %v2606 = vadd.f32 %v2567, %v2587
        %v2607 = vadd.f32 %v2568, %v2587
        %v2608 = vadd.f32 %v2569, %v2587
        %v2609 = vadd.f32 %v2570, %v2587
        %v2610 = vadd.f32 %v2571, %v2587
        %v2611 = vadd.f32 %v2572, %v2587
        %v2612 = vadd.f32 %v2573, %v2587
        %v2613 = vadd.f32 %v2574, %v2587
        %v2614 = vadd.f32 %v2575, %v2587
        %v2615 = vadd.f32 %v2576, %v2587
        %v2616 = vadd.f32 %v2577, %v2587
        %v2617 = vadd.f32 %v2578, %v2587
        %v2618 = vadd.f32 %v2579, %v2587
        %v2619 = vadd.f32 %v2580, %v2587
        %v2620 = vadd.f32 %v2581, %v2587
        %v2621 = vxor.u32 %v2589, 2147483648
        %v2622 = vxor.u32 %v2590, 2147483648
        %v2623 = vxor.u32 %v2591, 2147483648
        %v2624 = vxor.u32 %v2592, 2147483648
        %v2625 = vxor.u32 %v2593, 2147483648
        %v2626 = vxor.u32 %v2594, 2147483648
        %v2627 = vxor.u32 %v2595, 2147483648
        %v2628 = vxor.u32 %v2596, 2147483648
        %v2629 = vxor.u32 %v2597, 2147483648
        %v2630 = vxor.u32 %v2598, 2147483648
        %v2631 = vxor.u32 %v2599, 2147483648
        %v2632 = vxor.u32 %v2600, 2147483648
        %v2633 = vxor.u32 %v2601, 2147483648
        %v2634 = vxor.u32 %v2602, 2147483648
        %v2635 = vxor.u32 %v2603, 2147483648
        %v2636 = vxor.u32 %v2604, 2147483648
        %v2637 = vxor.u32 %v2605, 2147483648
        %v2638 = vxor.u32 %v2606, 2147483648
        %v2639 = vxor.u32 %v2607, 2147483648
        %v2640 = vxor.u32 %v2608, 2147483648
        %v2641 = vxor.u32 %v2609, 2147483648
        %v2642 = vxor.u32 %v2610, 2147483648
        %v2643 = vxor.u32 %v2611, 2147483648
        %v2644 = vxor.u32 %v2612, 2147483648
        %v2645 = vxor.u32 %v2613, 2147483648
        %v2646 = vxor.u32 %v2614, 2147483648
        %v2647 = vxor.u32 %v2615, 2147483648
        %v2648 = vxor.u32 %v2616, 2147483648
        %v2649 = vxor.u32 %v2617, 2147483648
        %v2650 = vxor.u32 %v2618, 2147483648
        %v2651 = vxor.u32 %v2619, 2147483648
        %v2652 = vxor.u32 %v2620, 2147483648
        %v2653 = vmul.f32 %v2621, 1.442695
        %v2654 = vpow.pop %v2653
        %v2655 = vmul.f32 %v2622, 1.442695
        %v2656 = vpow.pop %v2655
        %v2657 = vmul.f32 %v2623, 1.442695
        %v2658 = vpow.pop %v2657
        %v2659 = vmul.f32 %v2624, 1.442695
        %v2660 = vpow.pop %v2659
        %v2661 = vmul.f32 %v2625, 1.442695
        %v2662 = vpow.pop %v2661
        %v2663 = vmul.f32 %v2626, 1.442695
        %v2664 = vpow.pop %v2663
        %v2665 = vmul.f32 %v2627, 1.442695
        %v2666 = vpow.pop %v2665
        %v2667 = vmul.f32 %v2628, 1.442695
        %v2668 = vpow.pop %v2667
        %v2669 = vmul.f32 %v2629, 1.442695
        %v2670 = vpow.pop %v2669
        %v2671 = vmul.f32 %v2630, 1.442695
        %v2672 = vpow.pop %v2671
        %v2673 = vmul.f32 %v2631, 1.442695
        %v2674 = vpow.pop %v2673
        %v2675 = vmul.f32 %v2632, 1.442695
        %v2676 = vpow.pop %v2675
        %v2677 = vmul.f32 %v2633, 1.442695
        %v2678 = vpow.pop %v2677
        %v2679 = vmul.f32 %v2634, 1.442695
        %v2680 = vpow.pop %v2679
        %v2681 = vmul.f32 %v2635, 1.442695
        %v2682 = vpow.pop %v2681
        %v2683 = vmul.f32 %v2636, 1.442695
        %v2684 = vpow.pop %v2683
        %v2685 = vmul.f32 %v2637, 1.442695
        %v2686 = vpow.pop %v2685
        %v2687 = vmul.f32 %v2638, 1.442695
        %v2688 = vpow.pop %v2687
        %v2689 = vmul.f32 %v2639, 1.442695
        %v2690 = vpow.pop %v2689
        %v2691 = vmul.f32 %v2640, 1.442695
        %v2692 = vpow.pop %v2691
        %v2693 = vmul.f32 %v2641, 1.442695
        %v2694 = vpow.pop %v2693
        %v2695 = vmul.f32 %v2642, 1.442695
        %v2696 = vpow.pop %v2695
        %v2697 = vmul.f32 %v2643, 1.442695
        %v2698 = vpow.pop %v2697
        %v2699 = vmul.f32 %v2644, 1.442695
        %v2700 = vpow.pop %v2699
        %v2701 = vmul.f32 %v2645, 1.442695
        %v2702 = vpow.pop %v2701
        %v2703 = vmul.f32 %v2646, 1.442695
        %v2704 = vpow.pop %v2703
        %v2705 = vmul.f32 %v2647, 1.442695
        %v2706 = vpow.pop %v2705
        %v2707 = vmul.f32 %v2648, 1.442695
        %v2708 = vpow.pop %v2707
        %v2709 = vmul.f32 %v2649, 1.442695
        %v2710 = vpow.pop %v2709
        %v2711 = vmul.f32 %v2650, 1.442695
        %v2712 = vpow.pop %v2711
        %v2713 = vmul.f32 %v2651, 1.442695
        %v2714 = vpow.pop %v2713
        %v2715 = vmul.f32 %v2652, 1.442695
        %v2716 = vpow.pop %v2715
        %v2717 = vadd.f32 %v2654, 1.0
        %v2718 = vadd.f32 %v2656, 1.0
        %v2719 = vadd.f32 %v2658, 1.0
        %v2720 = vadd.f32 %v2660, 1.0
        %v2721 = vadd.f32 %v2662, 1.0
        %v2722 = vadd.f32 %v2664, 1.0
        %v2723 = vadd.f32 %v2666, 1.0
        %v2724 = vadd.f32 %v2668, 1.0
        %v2725 = vadd.f32 %v2670, 1.0
        %v2726 = vadd.f32 %v2672, 1.0
        %v2727 = vadd.f32 %v2674, 1.0
        %v2728 = vadd.f32 %v2676, 1.0
        %v2729 = vadd.f32 %v2678, 1.0
        %v2730 = vadd.f32 %v2680, 1.0
        %v2731 = vadd.f32 %v2682, 1.0
        %v2732 = vadd.f32 %v2684, 1.0
        %v2733 = vadd.f32 %v2686, 1.0
        %v2734 = vadd.f32 %v2688, 1.0
        %v2735 = vadd.f32 %v2690, 1.0
        %v2736 = vadd.f32 %v2692, 1.0
        %v2737 = vadd.f32 %v2694, 1.0
        %v2738 = vadd.f32 %v2696, 1.0
        %v2739 = vadd.f32 %v2698, 1.0
        %v2740 = vadd.f32 %v2700, 1.0
        %v2741 = vadd.f32 %v2702, 1.0
        %v2742 = vadd.f32 %v2704, 1.0
        %v2743 = vadd.f32 %v2706, 1.0
        %v2744 = vadd.f32 %v2708, 1.0
        %v2745 = vadd.f32 %v2710, 1.0
        %v2746 = vadd.f32 %v2712, 1.0
        %v2747 = vadd.f32 %v2714, 1.0
        %v2748 = vadd.f32 %v2716, 1.0
        %v2749 = vrcp.pop %v2717
        %v2750 = vmul.f32 1.0, %v2749
        %v2751 = vrcp.pop %v2718
        %v2752 = vmul.f32 1.0, %v2751
        %v2753 = vrcp.pop %v2719
        %v2754 = vmul.f32 1.0, %v2753
        %v2755 = vrcp.pop %v2720
        %v2756 = vmul.f32 1.0, %v2755
        %v2757 = vrcp.pop %v2721
        %v2758 = vmul.f32 1.0, %v2757
        %v2759 = vrcp.pop %v2722
        %v2760 = vmul.f32 1.0, %v2759
        %v2761 = vrcp.pop %v2723
        %v2762 = vmul.f32 1.0, %v2761
        %v2763 = vrcp.pop %v2724
        %v2764 = vmul.f32 1.0, %v2763
        %v2765 = vrcp.pop %v2725
        %v2766 = vmul.f32 1.0, %v2765
        %v2767 = vrcp.pop %v2726
        %v2768 = vmul.f32 1.0, %v2767
        %v2769 = vrcp.pop %v2727
        %v2770 = vmul.f32 1.0, %v2769
        %v2771 = vrcp.pop %v2728
        %v2772 = vmul.f32 1.0, %v2771
        %v2773 = vrcp.pop %v2729
        %v2774 = vmul.f32 1.0, %v2773
        %v2775 = vrcp.pop %v2730
        %v2776 = vmul.f32 1.0, %v2775
        %v2777 = vrcp.pop %v2731
        %v2778 = vmul.f32 1.0, %v2777
        %v2779 = vrcp.pop %v2732
        %v2780 = vmul.f32 1.0, %v2779
        %v2781 = vrcp.pop %v2733
        %v2782 = vmul.f32 1.0, %v2781
        %v2783 = vrcp.pop %v2734
        %v2784 = vmul.f32 1.0, %v2783
        %v2785 = vrcp.pop %v2735
        %v2786 = vmul.f32 1.0, %v2785
        %v2787 = vrcp.pop %v2736
        %v2788 = vmul.f32 1.0, %v2787
        %v2789 = vrcp.pop %v2737
        %v2790 = vmul.f32 1.0, %v2789
        %v2791 = vrcp.pop %v2738
        %v2792 = vmul.f32 1.0, %v2791
        %v2793 = vrcp.pop %v2739
        %v2794 = vmul.f32 1.0, %v2793
        %v2795 = vrcp.pop %v2740
        %v2796 = vmul.f32 1.0, %v2795
        %v2797 = vrcp.pop %v2741
        %v2798 = vmul.f32 1.0, %v2797
        %v2799 = vrcp.pop %v2742
        %v2800 = vmul.f32 1.0, %v2799
        %v2801 = vrcp.pop %v2743
        %v2802 = vmul.f32 1.0, %v2801
        %v2803 = vrcp.pop %v2744
        %v2804 = vmul.f32 1.0, %v2803
        %v2805 = vrcp.pop %v2745
        %v2806 = vmul.f32 1.0, %v2805
        %v2807 = vrcp.pop %v2746
        %v2808 = vmul.f32 1.0, %v2807
        %v2809 = vrcp.pop %v2747
        %v2810 = vmul.f32 1.0, %v2809
        %v2811 = vrcp.pop %v2748
        %v2812 = vmul.f32 1.0, %v2811
        %v2813 = vmul.f32 %v2589, %v2750
        %v2814 = vmul.f32 %v2590, %v2752
        %v2815 = vmul.f32 %v2591, %v2754
        %v2816 = vmul.f32 %v2592, %v2756
        %v2817 = vmul.f32 %v2593, %v2758
        %v2818 = vmul.f32 %v2594, %v2760
        %v2819 = vmul.f32 %v2595, %v2762
        %v2820 = vmul.f32 %v2596, %v2764
        %v2821 = vmul.f32 %v2597, %v2766
        %v2822 = vmul.f32 %v2598, %v2768
        %v2823 = vmul.f32 %v2599, %v2770
        %v2824 = vmul.f32 %v2600, %v2772
        %v2825 = vmul.f32 %v2601, %v2774
        %v2826 = vmul.f32 %v2602, %v2776
        %v2827 = vmul.f32 %v2603, %v2778
        %v2828 = vmul.f32 %v2604, %v2780
        %v2829 = vmul.f32 %v2605, %v2782
        %v2830 = vmul.f32 %v2606, %v2784
        %v2831 = vmul.f32 %v2607, %v2786
        %v2832 = vmul.f32 %v2608, %v2788
        %v2833 = vmul.f32 %v2609, %v2790
        %v2834 = vmul.f32 %v2610, %v2792
        %v2835 = vmul.f32 %v2611, %v2794
        %v2836 = vmul.f32 %v2612, %v2796
        %v2837 = vmul.f32 %v2613, %v2798
        %v2838 = vmul.f32 %v2614, %v2800
        %v2839 = vmul.f32 %v2615, %v2802
        %v2840 = vmul.f32 %v2616, %v2804
        %v2841 = vmul.f32 %v2617, %v2806
        %v2842 = vmul.f32 %v2618, %v2808
        %v2843 = vmul.f32 %v2619, %v2810
        %v2844 = vmul.f32 %v2620, %v2812
        %v2845 = vadd.f32 %v2813, %v2814
        %v2846 = vadd.f32 %v2845, %v2815
        %v2847 = vadd.f32 %v2846, %v2816
        %v2848 = vadd.f32 %v2847, %v2817
        %v2849 = vadd.f32 %v2848, %v2818
        %v2850 = vadd.f32 %v2849, %v2819
        %v2851 = vadd.f32 %v2850, %v2820
        %v2852 = vrot.slane %v2851, 4
        %v2853 = vadd.f32 %v2851, %v2852
        %v2854 = vrot.slane %v2853, 2
        %v2855 = vadd.f32 %v2853, %v2854
        %v2856 = vrot.slane %v2855, 1
        %v2857 = vadd.f32 %v2855, %v2856
        %v2858 = vadd.f32 %v2821, %v2822
        %v2859 = vadd.f32 %v2858, %v2823
        %v2860 = vadd.f32 %v2859, %v2824
        %v2861 = vadd.f32 %v2860, %v2825
        %v2862 = vadd.f32 %v2861, %v2826
        %v2863 = vadd.f32 %v2862, %v2827
        %v2864 = vadd.f32 %v2863, %v2828
        %v2865 = vrot.slane %v2864, 4
        %v2866 = vadd.f32 %v2864, %v2865
        %v2867 = vrot.slane %v2866, 2
        %v2868 = vadd.f32 %v2866, %v2867
        %v2869 = vrot.slane %v2868, 1
        %v2870 = vadd.f32 %v2868, %v2869
        %v2871 = vadd.f32 %v2829, %v2830
        %v2872 = vadd.f32 %v2871, %v2831
        %v2873 = vadd.f32 %v2872, %v2832
        %v2874 = vadd.f32 %v2873, %v2833
        %v2875 = vadd.f32 %v2874, %v2834
        %v2876 = vadd.f32 %v2875, %v2835
        %v2877 = vadd.f32 %v2876, %v2836
        %v2878 = vrot.slane %v2877, 4
        %v2879 = vadd.f32 %v2877, %v2878
        %v2880 = vrot.slane %v2879, 2
        %v2881 = vadd.f32 %v2879, %v2880
        %v2882 = vrot.slane %v2881, 1
        %v2883 = vadd.f32 %v2881, %v2882
        %v2884 = vadd.f32 %v2837, %v2838
        %v2885 = vadd.f32 %v2884, %v2839
        %v2886 = vadd.f32 %v2885, %v2840
        %v2887 = vadd.f32 %v2886, %v2841
        %v2888 = vadd.f32 %v2887, %v2842
        %v2889 = vadd.f32 %v2888, %v2843
        %v2890 = vadd.f32 %v2889, %v2844
        %v2891 = vrot.slane %v2890, 4
        %v2892 = vadd.f32 %v2890, %v2891
        %v2893 = vrot.slane %v2892, 2
        %v2894 = vadd.f32 %v2892, %v2893
        %v2895 = vrot.slane %v2894, 1
        %v2896 = vadd.f32 %v2894, %v2895
        %v2897 = vmul.f32 %v2857, 0.015625
        %v2898 = vmul.f32 %v2870, 0.015625
        %v2899 = vmul.f32 %v2883, 0.015625
        %v2900 = vmul.f32 %v2896, 0.015625
        %v2901 = vpack.c.bf16 %v2897, %v2897
        %v2902 = vpack.c.bf16 %v2898, %v2898
        %v2903 = vpack.c.bf16 %v2899, %v2899
        %v2904 = vpack.c.bf16 %v2900, %v2900
        %v2905 = vld [vmem:[%s7] sm:$0xf]
        %v2906 = vld [vmem:[%s7 + $0x4] sm:$0xf]
        %v2907 = vld [vmem:[%s7 + $0x8] sm:$0xf]
        %v2908 = vld [vmem:[%s7 + $0xc] sm:$0xf]
        %v2909 = vld [vmem:[%s7 + $0x10] sm:$0xf]
        %v2910 = vld [vmem:[%s7 + $0x14] sm:$0xf]
        %v2911 = vld [vmem:[%s7 + $0x18] sm:$0xf]
        %v2912 = vld [vmem:[%s7 + $0x1c] sm:$0xf]
        %v2913 = vld [vmem:[%s7 + $0x20] sm:$0xf]
        %v2914 = vld [vmem:[%s7 + $0x24] sm:$0xf]
        %v2915 = vld [vmem:[%s7 + $0x28] sm:$0xf]
        %v2916 = vld [vmem:[%s7 + $0x2c] sm:$0xf]
        %v2917 = vld [vmem:[%s7 + $0x30] sm:$0xf]
        %v2918 = vld [vmem:[%s7 + $0x34] sm:$0xf]
        %v2919 = vld [vmem:[%s7 + $0x38] sm:$0xf]
        %v2920 = vld [vmem:[%s7 + $0x3c] sm:$0xf]
        %v2921 = vld [vmem:[%s8] sm:$0x1]
        %v2923 = vlaneseq
        %v2924 = vshrl.u32 %v2923, 7
        %v2925 = vsub.s32 0, %v2924
        %v2926 = vrot.slane %v2921, %v2925
        %v2932 = vunpack.c.l.b16 %v2901
        %v2933 = vunpack.c.l.b16 %v2902
        %v2934 = vunpack.c.l.b16 %v2903
        %v2935 = vunpack.c.l.b16 %v2904
        %vm2936 = vcmask 1041409
        %v2937 = vsel %vm2936, %v2933, %v2932
        %vm2938 = vcmask 1042434
        %v2939 = vsel %vm2938, %v2934, %v2937
        %vm2940 = vcmask 1043459
        %v2941 = vsel %vm2940, %v2935, %v2939
        %v2942 = vpack.c.b16 %v2941, %v2941
        %v2960 = vunpack.c.l.b16 %v2905
        %v2961 = vunpack.c.l.b16 %v2906
        %v2962 = vunpack.c.l.b16 %v2907
        %v2963 = vunpack.c.l.b16 %v2908
        %v2964 = vunpack.c.l.b16 %v2909
        %v2965 = vunpack.c.l.b16 %v2910
        %v2966 = vunpack.c.l.b16 %v2911
        %v2967 = vunpack.c.l.b16 %v2912
        %v2968 = vunpack.c.l.b16 %v2913
        %v2969 = vunpack.c.l.b16 %v2914
        %v2970 = vunpack.c.l.b16 %v2915
        %v2971 = vunpack.c.l.b16 %v2916
        %v2972 = vunpack.c.l.b16 %v2917
        %v2973 = vunpack.c.l.b16 %v2918
        %v2974 = vunpack.c.l.b16 %v2919
        %v2975 = vunpack.c.l.b16 %v2920
        %v2976 = vpack.c.b16 %v2961, %v2960
        %v2977 = vpack.c.b16 %v2963, %v2962
        %v2978 = vpack.c.b16 %v2965, %v2964
        %v2979 = vpack.c.b16 %v2967, %v2966
        %v2980 = vpack.c.b16 %v2969, %v2968
        %v2981 = vpack.c.b16 %v2971, %v2970
        %v2982 = vpack.c.b16 %v2973, %v2972
        %v2983 = vpack.c.b16 %v2975, %v2974
        %2992 = vmatprep.subr.bf16.mxu0 0
        %2993 = vmatpush1.bf16.msra.mxu0 %v2976
        %2994 = vmatprep.subr.bf16.mxu0 0
        %2995 = vmatpush1.bf16.msra.mxu0 %v2977
        %2996 = vmatprep.subr.bf16.mxu0 0
        %2997 = vmatpush1.bf16.msra.mxu0 %v2978
        %2998 = vmatprep.subr.bf16.mxu0 0
        %2999 = vmatpush1.bf16.msra.mxu0 %v2979
        %3000 = vmatprep.subr.bf16.mxu0 0
        %3001 = vmatpush1.bf16.msra.mxu0 %v2980
        %3002 = vmatprep.subr.bf16.mxu0 0
        %3003 = vmatpush1.bf16.msra.mxu0 %v2981
        %3004 = vmatprep.subr.bf16.mxu0 0
        %3005 = vmatpush1.bf16.msra.mxu0 %v2982
        %3006 = vmatprep.subr.bf16.mxu0 0
        %3007 = vmatpush1.bf16.msra.mxu0 %v2983
        %3008 = vmatprep.subr.bf16.mxu0 0
        %3009 = vmatpush1.bf16.msra.mxu0 0
        %3010 = vmatprep.subr.bf16.mxu0 0
        %3011 = vmatpush1.bf16.msra.mxu0 0
        %3012 = vmatprep.subr.bf16.mxu0 0
        %3013 = vmatpush1.bf16.msra.mxu0 0
        %3014 = vmatprep.subr.bf16.mxu0 0
        %3015 = vmatpush1.bf16.msra.mxu0 0
        %3016 = vmatprep.subr.bf16.mxu0 0
        %3017 = vmatpush1.bf16.msra.mxu0 0
        %3018 = vmatprep.subr.bf16.mxu0 0
        %3019 = vmatpush1.bf16.msra.mxu0 0
        %3020 = vmatprep.subr.bf16.mxu0 0
        %3021 = vmatpush1.bf16.msra.mxu0 0
        %3022 = vmatprep.subr.bf16.mxu0 0
        %3023 = vmatpush1.bf16.msra.mxu0 0
        %3024 = vmatprep.mubr.bf16.mxu0 0
        %3025 = vmatmul.mubr.bf16.gmra.mrb[0].mxu0 %v2942
        %v3026 = vpop.f32.mrb[0].mxu0
        %v3027 = vadd.f32 %v2926, %v3026
        %v3028 = vpop.f32.mrb[0].mxu0
        %v3029 = vpop.f32.mrb[0].mxu0
        %v3030 = vpop.f32.mrb[0].mxu0
        %3031 = vdwg.mxu0
        %v3032 = vxor.u32 %v3027, 2147483648
        %v3033 = vmul.f32 %v3032, 1.442695
        %v3034 = vpow.pop %v3033
        %v3035 = vadd.f32 %v3034, 1.0
        %v3036 = vrcp.pop %v3035
        %v3037 = vmul.f32 1.0, %v3036
        %v3038 = vmul.f32 %v3027, %v3037
        %v3039 = vpack.c.bf16 %v3038, %v3038
        %v3040 = vld [vmem:[%s9] sm:$0xf]
        %v3041 = vld [vmem:[%s9 + $0x4] sm:$0xf]
        %v3042 = vld [vmem:[%s9 + $0x8] sm:$0xf]
        %v3043 = vld [vmem:[%s9 + $0xc] sm:$0xf]
        %v3044 = vld [vmem:[%s9 + $0x10] sm:$0xf]
        %v3045 = vld [vmem:[%s9 + $0x14] sm:$0xf]
        %v3046 = vld [vmem:[%s9 + $0x18] sm:$0xf]
        %v3047 = vld [vmem:[%s9 + $0x1c] sm:$0xf]
        %v3048 = vld [vmem:[%s9 + $0x20] sm:$0xf]
        %v3049 = vld [vmem:[%s9 + $0x24] sm:$0xf]
        %v3050 = vld [vmem:[%s9 + $0x28] sm:$0xf]
        %v3051 = vld [vmem:[%s9 + $0x2c] sm:$0xf]
        %v3052 = vld [vmem:[%s9 + $0x30] sm:$0xf]
        %v3053 = vld [vmem:[%s9 + $0x34] sm:$0xf]
        %v3054 = vld [vmem:[%s9 + $0x38] sm:$0xf]
        %v3055 = vld [vmem:[%s9 + $0x3c] sm:$0xf]
        %v3056 = vld [vmem:[%s10] sm:$0x1]
        %v3058 = vlaneseq
        %v3059 = vshrl.u32 %v3058, 7
        %v3060 = vsub.s32 0, %v3059
        %v3061 = vrot.slane %v3056, %v3060
        %v3079 = vunpack.c.l.b16 %v3040
        %v3080 = vunpack.c.l.b16 %v3041
        %v3081 = vunpack.c.l.b16 %v3042
        %v3082 = vunpack.c.l.b16 %v3043
        %v3083 = vunpack.c.l.b16 %v3044
        %v3084 = vunpack.c.l.b16 %v3045
        %v3085 = vunpack.c.l.b16 %v3046
        %v3086 = vunpack.c.l.b16 %v3047
        %v3087 = vunpack.c.l.b16 %v3048
        %v3088 = vunpack.c.l.b16 %v3049
        %v3089 = vunpack.c.l.b16 %v3050
        %v3090 = vunpack.c.l.b16 %v3051
        %v3091 = vunpack.c.l.b16 %v3052
        %v3092 = vunpack.c.l.b16 %v3053
        %v3093 = vunpack.c.l.b16 %v3054
        %v3094 = vunpack.c.l.b16 %v3055
        %v3095 = vpack.c.b16 %v3080, %v3079
        %v3096 = vpack.c.b16 %v3082, %v3081
        %v3097 = vpack.c.b16 %v3084, %v3083
        %v3098 = vpack.c.b16 %v3086, %v3085
        %v3099 = vpack.c.b16 %v3088, %v3087
        %v3100 = vpack.c.b16 %v3090, %v3089
        %v3101 = vpack.c.b16 %v3092, %v3091
        %v3102 = vpack.c.b16 %v3094, %v3093
        %3111 = vmatprep.subr.bf16.mxu0 0
        %3112 = vmatpush1.bf16.msra.mxu0 %v3095
        %3113 = vmatprep.subr.bf16.mxu0 0
        %3114 = vmatpush1.bf16.msra.mxu0 %v3096
        %3115 = vmatprep.subr.bf16.mxu0 0
        %3116 = vmatpush1.bf16.msra.mxu0 %v3097
        %3117 = vmatprep.subr.bf16.mxu0 0
        %3118 = vmatpush1.bf16.msra.mxu0 %v3098
        %3119 = vmatprep.subr.bf16.mxu0 0
        %3120 = vmatpush1.bf16.msra.mxu0 %v3099
        %3121 = vmatprep.subr.bf16.mxu0 0
        %3122 = vmatpush1.bf16.msra.mxu0 %v3100
        %3123 = vmatprep.subr.bf16.mxu0 0
        %3124 = vmatpush1.bf16.msra.mxu0 %v3101
        %3125 = vmatprep.subr.bf16.mxu0 0
        %3126 = vmatpush1.bf16.msra.mxu0 %v3102
        %3127 = vmatprep.subr.bf16.mxu0 0
        %3128 = vmatpush1.bf16.msra.mxu0 0
        %3129 = vmatprep.subr.bf16.mxu0 0
        %3130 = vmatpush1.bf16.msra.mxu0 0
        %3131 = vmatprep.subr.bf16.mxu0 0
        %3132 = vmatpush1.bf16.msra.mxu0 0
        %3133 = vmatprep.subr.bf16.mxu0 0
        %3134 = vmatpush1.bf16.msra.mxu0 0
        %3135 = vmatprep.subr.bf16.mxu0 0
        %3136 = vmatpush1.bf16.msra.mxu0 0
        %3137 = vmatprep.subr.bf16.mxu0 0
        %3138 = vmatpush1.bf16.msra.mxu0 0
        %3139 = vmatprep.subr.bf16.mxu0 0
        %3140 = vmatpush1.bf16.msra.mxu0 0
        %3141 = vmatprep.subr.bf16.mxu0 0
        %3142 = vmatpush1.bf16.msra.mxu0 0
        %3143 = vmatprep.mubr.bf16.mxu0 0
        %3144 = vmatmul.mubr.bf16.gmra.mrb[0].mxu0 %v3039
        %v3145 = vpop.f32.mrb[0].mxu0
        %v3146 = vadd.f32 %v3061, %v3145
        %v3147 = vpop.f32.mrb[0].mxu0
        %v3148 = vpop.f32.mrb[0].mxu0
        %v3149 = vpop.f32.mrb[0].mxu0
        %3150 = vdwg.mxu0
        %v3151 = vxor.u32 %v3146, 2147483648
        %v3152 = vmul.f32 %v3151, 1.442695
        %v3153 = vpow.pop %v3152
        %v3154 = vadd.f32 %v3153, 1.0
        %v3155 = vrcp.pop %v3154
        %v3156 = vmul.f32 1.0, %v3155
        %v3159 = vunpack.c.l.s4 1966171168
        %v3160 = vunpack.c.0.s8 %v3159
        %v3161 = vlaneseq
        %v3162 = vshrl.u32 %v3161, 7
        %v3163 = vsub.s32 %v3160, %v3162
        %v3164 = vrot.slane %v3156, %v3163
        %v3165 = vcombine.high %v3164, %v3164
        %v3167 = vunpack.c.l.s4 1966171168
        %v3168 = vunpack.c.0.s8 %v3167
        %v3169 = vlaneseq
        %v3170 = vshrl.u32 %v3169, 7
        %v3171 = vsub.s32 %v3168, %v3170
        %v3172 = vrot.slane %v3164, %v3171
        %v3174 = vunpack.c.l.s4 1966171168
        %v3175 = vunpack.c.0.s8 %v3174
        %v3176 = vlaneseq
        %v3177 = vshrl.u32 %v3176, 7
        %v3178 = vsub.s32 %v3175, %v3177
        %v3179 = vrot.slane %v3165, %v3178
        %v3180 = vcombine.high %v3172, %v3172
        %v3181 = vcombine.high %v3179, %v3179
        %v3182 = vlaneseq
        %v3183 = vshrl.u32 %v3182, 7
        %v3184 = vsub.s32 0, %v3183
        %v3185 = vrot.slane %v3172, %v3184
        %v3186 = vlaneseq
        %v3187 = vshrl.u32 %v3186, 7
        %v3188 = vsub.s32 0, %v3187
        %v3189 = vrot.slane %v3179, %v3188
        %v3190 = vlaneseq
        %v3191 = vshrl.u32 %v3190, 7
        %v3192 = vsub.s32 0, %v3191
        %v3193 = vrot.slane %v3180, %v3192
        %v3194 = vlaneseq
        %v3195 = vshrl.u32 %v3194, 7
        %v3196 = vsub.s32 0, %v3195
        %v3197 = vrot.slane %v3181, %v3196
        %v3202 = vmul.f32 %v2813, %v3185
        %v3203 = vmul.f32 %v2814, %v3185
        %v3204 = vmul.f32 %v2815, %v3185
        %v3205 = vmul.f32 %v2816, %v3185
        %v3206 = vmul.f32 %v2817, %v3185
        %v3207 = vmul.f32 %v2818, %v3185
        %v3208 = vmul.f32 %v2819, %v3185
        %v3209 = vmul.f32 %v2820, %v3185
        %v3210 = vmul.f32 %v2821, %v3189
        %v3211 = vmul.f32 %v2822, %v3189
        %v3212 = vmul.f32 %v2823, %v3189
        %v3213 = vmul.f32 %v2824, %v3189
        %v3214 = vmul.f32 %v2825, %v3189
        %v3215 = vmul.f32 %v2826, %v3189
        %v3216 = vmul.f32 %v2827, %v3189
        %v3217 = vmul.f32 %v2828, %v3189
        %v3218 = vmul.f32 %v2829, %v3193
        %v3219 = vmul.f32 %v2830, %v3193
        %v3220 = vmul.f32 %v2831, %v3193
        %v3221 = vmul.f32 %v2832, %v3193
        %v3222 = vmul.f32 %v2833, %v3193
        %v3223 = vmul.f32 %v2834, %v3193
        %v3224 = vmul.f32 %v2835, %v3193
        %v3225 = vmul.f32 %v2836, %v3193
        %v3226 = vmul.f32 %v2837, %v3197
        %v3227 = vmul.f32 %v2838, %v3197
        %v3228 = vmul.f32 %v2839, %v3197
        %v3229 = vmul.f32 %v2840, %v3197
        %v3230 = vmul.f32 %v2841, %v3197
        %v3231 = vmul.f32 %v2842, %v3197
        %v3232 = vmul.f32 %v2843, %v3197
        %v3233 = vmul.f32 %v2844, %v3197
        %v3234 = vpack.c.bf16 %v3203, %v3202
        %v3235 = vpack.c.bf16 %v3205, %v3204
        %v3236 = vpack.c.bf16 %v3207, %v3206
        %v3237 = vpack.c.bf16 %v3209, %v3208
        %v3238 = vpack.c.bf16 %v3211, %v3210
        %v3239 = vpack.c.bf16 %v3213, %v3212
        %v3240 = vpack.c.bf16 %v3215, %v3214
        %v3241 = vpack.c.bf16 %v3217, %v3216
        %v3242 = vpack.c.bf16 %v3219, %v3218
        %v3243 = vpack.c.bf16 %v3221, %v3220
        %v3244 = vpack.c.bf16 %v3223, %v3222
        %v3245 = vpack.c.bf16 %v3225, %v3224
        %v3246 = vpack.c.bf16 %v3227, %v3226
        %v3247 = vpack.c.bf16 %v3229, %v3228
        %v3248 = vpack.c.bf16 %v3231, %v3230
        %v3249 = vpack.c.bf16 %v3233, %v3232
        %v3250 = vld [vmem:[%s11] sm:$0xf]
        %v3251 = vld [vmem:[%s11 + $0x28] sm:$0xf]
        %v3252 = vld [vmem:[%s11 + $0x50] sm:$0xf]
        %v3253 = vld [vmem:[%s11 + $0x78] sm:$0xf]
        %v3254 = vld [vmem:[%s11 + $0xa0] sm:$0xf]
        %v3255 = vld [vmem:[%s11 + $0xc8] sm:$0xf]
        %v3256 = vld [vmem:[%s11 + $0xf0] sm:$0xf]
        %v3257 = vld [vmem:[%s11 + $0x118] sm:$0xf]
        %v3258 = vld [vmem:[%s11 + $0x140] sm:$0xf]
        %v3259 = vld [vmem:[%s11 + $0x168] sm:$0xf]
        %v3260 = vld [vmem:[%s11 + $0x190] sm:$0xf]
        %v3261 = vld [vmem:[%s11 + $0x1b8] sm:$0xf]
        %v3262 = vld [vmem:[%s11 + $0x1e0] sm:$0xf]
        %v3263 = vld [vmem:[%s11 + $0x208] sm:$0xf]
        %v3264 = vld [vmem:[%s11 + $0x230] sm:$0xf]
        %v3265 = vld [vmem:[%s11 + $0x258] sm:$0xf]
        %v3266 = vld [vmem:[%s12] sm:$0x1]
        %v3268 = vlaneseq
        %v3269 = vshrl.u32 %v3268, 7
        %v3270 = vsub.s32 0, %v3269
        %v3271 = vrot.slane %v3266, %v3270
        %v3289 = vunpack.c.l.b16 %v3250
        %v3290 = vunpack.c.l.b16 %v3251
        %v3291 = vunpack.c.l.b16 %v3252
        %v3292 = vunpack.c.l.b16 %v3253
        %v3293 = vunpack.c.l.b16 %v3254
        %v3294 = vunpack.c.l.b16 %v3255
        %v3295 = vunpack.c.l.b16 %v3256
        %v3296 = vunpack.c.l.b16 %v3257
        %v3297 = vunpack.c.l.b16 %v3258
        %v3298 = vunpack.c.l.b16 %v3259
        %v3299 = vunpack.c.l.b16 %v3260
        %v3300 = vunpack.c.l.b16 %v3261
        %v3301 = vunpack.c.l.b16 %v3262
        %v3302 = vunpack.c.l.b16 %v3263
        %v3303 = vunpack.c.l.b16 %v3264
        %v3304 = vunpack.c.l.b16 %v3265
        %v3305 = vpack.c.b16 %v3290, %v3289
        %v3306 = vpack.c.b16 %v3292, %v3291
        %v3307 = vpack.c.b16 %v3294, %v3293
        %v3308 = vpack.c.b16 %v3296, %v3295
        %v3309 = vpack.c.b16 %v3298, %v3297
        %v3310 = vpack.c.b16 %v3300, %v3299
        %v3311 = vpack.c.b16 %v3302, %v3301
        %v3312 = vpack.c.b16 %v3304, %v3303
        %3321 = vmatprep.subr.bf16.mxu0 0
        %3322 = vmatpush1.bf16.msra.mxu0 %v3305
        %3323 = vmatprep.subr.bf16.mxu0 0
        %3324 = vmatpush1.bf16.msra.mxu0 %v3306
        %3325 = vmatprep.subr.bf16.mxu0 0
        %3326 = vmatpush1.bf16.msra.mxu0 %v3307
        %3327 = vmatprep.subr.bf16.mxu0 0
        %3328 = vmatpush1.bf16.msra.mxu0 %v3308
        %3329 = vmatprep.subr.bf16.mxu0 0
        %3330 = vmatpush1.bf16.msra.mxu0 %v3309
        %3331 = vmatprep.subr.bf16.mxu0 0
        %3332 = vmatpush1.bf16.msra.mxu0 %v3310
        %3333 = vmatprep.subr.bf16.mxu0 0
        %3334 = vmatpush1.bf16.msra.mxu0 %v3311
        %3335 = vmatprep.subr.bf16.mxu0 0
        %3336 = vmatpush1.bf16.msra.mxu0 %v3312
        %3337 = vmatprep.subr.bf16.mxu0 0
        %3338 = vmatpush1.bf16.msra.mxu0 0
        %3339 = vmatprep.subr.bf16.mxu0 0
        %3340 = vmatpush1.bf16.msra.mxu0 0
        %3341 = vmatprep.subr.bf16.mxu0 0
        %3342 = vmatpush1.bf16.msra.mxu0 0
        %3343 = vmatprep.subr.bf16.mxu0 0
        %3344 = vmatpush1.bf16.msra.mxu0 0
        %3345 = vmatprep.subr.bf16.mxu0 0
        %3346 = vmatpush1.bf16.msra.mxu0 0
        %3347 = vmatprep.subr.bf16.mxu0 0
        %3348 = vmatpush1.bf16.msra.mxu0 0
        %3349 = vmatprep.subr.bf16.mxu0 0
        %3350 = vmatpush1.bf16.msra.mxu0 0
        %3351 = vmatprep.subr.bf16.mxu0 0
        %3352 = vmatpush1.bf16.msra.mxu0 0
        %3353 = vmatprep.mubr.bf16.mxu0 0
        %3354 = vmatmul.mubr.bf16.gmra.mrb[0].mxu0 %v3234
        %v3355 = vpop.f32.mrb[0].mxu0
        %v3356 = vadd.f32 %v3271, %v3355
        %v3357 = vpop.f32.mrb[0].mxu0
        %v3358 = vpop.f32.mrb[0].mxu0
        %v3359 = vadd.f32 %v3271, %v3358
        %v3360 = vpop.f32.mrb[0].mxu0
        %3361 = vmatprep.mubr.bf16.mxu0 0
        %3362 = vmatmul.mubr.bf16.gmra.mrb[0].mxu0 %v3235
        %v3363 = vpop.f32.mrb[0].mxu0
        %v3364 = vadd.f32 %v3271, %v3363
        %v3365 = vpop.f32.mrb[0].mxu0
        %v3366 = vpop.f32.mrb[0].mxu0
        %v3367 = vadd.f32 %v3271, %v3366
        %v3368 = vpop.f32.mrb[0].mxu0
        %3369 = vmatprep.mubr.bf16.mxu0 0
        %3370 = vmatmul.mubr.bf16.gmra.mrb[0].mxu0 %v3236
        %v3371 = vpop.f32.mrb[0].mxu0
        %v3372 = vadd.f32 %v3271, %v3371
        %v3373 = vpop.f32.mrb[0].mxu0
        %v3374 = vpop.f32.mrb[0].mxu0
        %v3375 = vadd.f32 %v3271, %v3374
        %v3376 = vpop.f32.mrb[0].mxu0
        %3377 = vmatprep.mubr.bf16.mxu0 0
        %3378 = vmatmul.mubr.bf16.gmra.mrb[0].mxu0 %v3237
        %v3379 = vpop.f32.mrb[0].mxu0
        %v3380 = vadd.f32 %v3271, %v3379
        %v3381 = vpop.f32.mrb[0].mxu0
        %v3382 = vpop.f32.mrb[0].mxu0
        %v3383 = vadd.f32 %v3271, %v3382
        %v3384 = vpop.f32.mrb[0].mxu0
        %3385 = vmatprep.mubr.bf16.mxu0 0
        %3386 = vmatmul.mubr.bf16.gmra.mrb[0].mxu0 %v3238
        %v3387 = vpop.f32.mrb[0].mxu0
        %v3388 = vadd.f32 %v3271, %v3387
        %v3389 = vpop.f32.mrb[0].mxu0
        %v3390 = vpop.f32.mrb[0].mxu0
        %v3391 = vadd.f32 %v3271, %v3390
        %v3392 = vpop.f32.mrb[0].mxu0
        %3393 = vmatprep.mubr.bf16.mxu0 0
        %3394 = vmatmul.mubr.bf16.gmra.mrb[0].mxu0 %v3239
        %v3395 = vpop.f32.mrb[0].mxu0
        %v3396 = vadd.f32 %v3271, %v3395
        %v3397 = vpop.f32.mrb[0].mxu0
        %v3398 = vpop.f32.mrb[0].mxu0
        %v3399 = vadd.f32 %v3271, %v3398
        %v3400 = vpop.f32.mrb[0].mxu0
        %3401 = vmatprep.mubr.bf16.mxu0 0
        %3402 = vmatmul.mubr.bf16.gmra.mrb[0].mxu0 %v3240
        %v3403 = vpop.f32.mrb[0].mxu0
        %v3404 = vadd.f32 %v3271, %v3403
        %v3405 = vpop.f32.mrb[0].mxu0
        %v3406 = vpop.f32.mrb[0].mxu0
        %v3407 = vadd.f32 %v3271, %v3406
        %v3408 = vpop.f32.mrb[0].mxu0
        %3409 = vmatprep.mubr.bf16.mxu0 0
        %3410 = vmatmul.mubr.bf16.gmra.mrb[0].mxu0 %v3241
        %v3411 = vpop.f32.mrb[0].mxu0
        %v3412 = vadd.f32 %v3271, %v3411
        %v3413 = vpop.f32.mrb[0].mxu0
        %v3414 = vpop.f32.mrb[0].mxu0
        %v3415 = vadd.f32 %v3271, %v3414
        %v3416 = vpop.f32.mrb[0].mxu0
        %3417 = vmatprep.mubr.bf16.mxu0 0
        %3418 = vmatmul.mubr.bf16.gmra.mrb[0].mxu0 %v3242
        %v3419 = vpop.f32.mrb[0].mxu0
        %v3420 = vadd.f32 %v3271, %v3419
        %v3421 = vpop.f32.mrb[0].mxu0
        %v3422 = vpop.f32.mrb[0].mxu0
        %v3423 = vadd.f32 %v3271, %v3422
        %v3424 = vpop.f32.mrb[0].mxu0
        %3425 = vmatprep.mubr.bf16.mxu0 0
        %3426 = vmatmul.mubr.bf16.gmra.mrb[0].mxu0 %v3243
        %v3427 = vpop.f32.mrb[0].mxu0
        %v3428 = vadd.f32 %v3271, %v3427
        %v3429 = vpop.f32.mrb[0].mxu0
        %v3430 = vpop.f32.mrb[0].mxu0
        %v3431 = vadd.f32 %v3271, %v3430
        %v3432 = vpop.f32.mrb[0].mxu0
        %3433 = vmatprep.mubr.bf16.mxu0 0
        %3434 = vmatmul.mubr.bf16.gmra.mrb[0].mxu0 %v3244
        %v3435 = vpop.f32.mrb[0].mxu0
        %v3436 = vadd.f32 %v3271, %v3435
        %v3437 = vpop.f32.mrb[0].mxu0
        %v3438 = vpop.f32.mrb[0].mxu0
        %v3439 = vadd.f32 %v3271, %v3438
        %v3440 = vpop.f32.mrb[0].mxu0
        %3441 = vmatprep.mubr.bf16.mxu0 0
        %3442 = vmatmul.mubr.bf16.gmra.mrb[0].mxu0 %v3245
        %v3443 = vpop.f32.mrb[0].mxu0
        %v3444 = vadd.f32 %v3271, %v3443
        %v3445 = vpop.f32.mrb[0].mxu0
        %v3446 = vpop.f32.mrb[0].mxu0
        %v3447 = vadd.f32 %v3271, %v3446
        %v3448 = vpop.f32.mrb[0].mxu0
        %3449 = vmatprep.mubr.bf16.mxu0 0
        %3450 = vmatmul.mubr.bf16.gmra.mrb[0].mxu0 %v3246
        %v3451 = vpop.f32.mrb[0].mxu0
        %v3452 = vadd.f32 %v3271, %v3451
        %v3453 = vpop.f32.mrb[0].mxu0
        %v3454 = vpop.f32.mrb[0].mxu0
        %v3455 = vadd.f32 %v3271, %v3454
        %v3456 = vpop.f32.mrb[0].mxu0
        %3457 = vmatprep.mubr.bf16.mxu0 0
        %3458 = vmatmul.mubr.bf16.gmra.mrb[0].mxu0 %v3247
        %v3459 = vpop.f32.mrb[0].mxu0
        %v3460 = vadd.f32 %v3271, %v3459
        %v3461 = vpop.f32.mrb[0].mxu0
        %v3462 = vpop.f32.mrb[0].mxu0
        %v3463 = vadd.f32 %v3271, %v3462
        %v3464 = vpop.f32.mrb[0].mxu0
        %3465 = vmatprep.mubr.bf16.mxu0 0
        %3466 = vmatmul.mubr.bf16.gmra.mrb[0].mxu0 %v3248
        %v3467 = vpop.f32.mrb[0].mxu0
        %v3468 = vadd.f32 %v3271, %v3467
        %v3469 = vpop.f32.mrb[0].mxu0
        %v3470 = vpop.f32.mrb[0].mxu0
        %v3471 = vadd.f32 %v3271, %v3470
        %v3472 = vpop.f32.mrb[0].mxu0
        %3473 = vmatprep.mubr.bf16.mxu0 0
        %3474 = vmatmul.mubr.bf16.gmra.mrb[0].mxu0 %v3249
        %v3475 = vpop.f32.mrb[0].mxu0
        %v3476 = vadd.f32 %v3271, %v3475
        %v3477 = vpop.f32.mrb[0].mxu0
        %v3478 = vpop.f32.mrb[0].mxu0
        %v3479 = vadd.f32 %v3271, %v3478
        %v3480 = vpop.f32.mrb[0].mxu0
        %3481 = vdwg.mxu0
        %v3482 = vxor.u32 %v3356, 2147483648
        %v3483 = vxor.u32 %v3359, 2147483648
        %v3484 = vxor.u32 %v3364, 2147483648
        %v3485 = vxor.u32 %v3367, 2147483648
        %v3486 = vxor.u32 %v3372, 2147483648
        %v3487 = vxor.u32 %v3375, 2147483648
        %v3488 = vxor.u32 %v3380, 2147483648
        %v3489 = vxor.u32 %v3383, 2147483648
        %v3490 = vxor.u32 %v3388, 2147483648
        %v3491 = vxor.u32 %v3391, 2147483648
        %v3492 = vxor.u32 %v3396, 2147483648
        %v3493 = vxor.u32 %v3399, 2147483648
        %v3494 = vxor.u32 %v3404, 2147483648
        %v3495 = vxor.u32 %v3407, 2147483648
        %v3496 = vxor.u32 %v3412, 2147483648
        %v3497 = vxor.u32 %v3415, 2147483648
        %v3498 = vxor.u32 %v3420, 2147483648
        %v3499 = vxor.u32 %v3423, 2147483648
        %v3500 = vxor.u32 %v3428, 2147483648
        %v3501 = vxor.u32 %v3431, 2147483648
        %v3502 = vxor.u32 %v3436, 2147483648
        %v3503 = vxor.u32 %v3439, 2147483648
        %v3504 = vxor.u32 %v3444, 2147483648
        %v3505 = vxor.u32 %v3447, 2147483648
        %v3506 = vxor.u32 %v3452, 2147483648
        %v3507 = vxor.u32 %v3455, 2147483648
        %v3508 = vxor.u32 %v3460, 2147483648
        %v3509 = vxor.u32 %v3463, 2147483648
        %v3510 = vxor.u32 %v3468, 2147483648
        %v3511 = vxor.u32 %v3471, 2147483648
        %v3512 = vxor.u32 %v3476, 2147483648
        %v3513 = vxor.u32 %v3479, 2147483648
        %v3514 = vmul.f32 %v3482, 1.442695
        %v3515 = vpow.pop %v3514
        %v3516 = vmul.f32 %v3483, 1.442695
        %v3517 = vpow.pop %v3516
        %v3518 = vmul.f32 %v3484, 1.442695
        %v3519 = vpow.pop %v3518
        %v3520 = vmul.f32 %v3485, 1.442695
        %v3521 = vpow.pop %v3520
        %v3522 = vmul.f32 %v3486, 1.442695
        %v3523 = vpow.pop %v3522
        %v3524 = vmul.f32 %v3487, 1.442695
        %v3525 = vpow.pop %v3524
        %v3526 = vmul.f32 %v3488, 1.442695
        %v3527 = vpow.pop %v3526
        %v3528 = vmul.f32 %v3489, 1.442695
        %v3529 = vpow.pop %v3528
        %v3530 = vmul.f32 %v3490, 1.442695
        %v3531 = vpow.pop %v3530
        %v3532 = vmul.f32 %v3491, 1.442695
        %v3533 = vpow.pop %v3532
        %v3534 = vmul.f32 %v3492, 1.442695
        %v3535 = vpow.pop %v3534
        %v3536 = vmul.f32 %v3493, 1.442695
        %v3537 = vpow.pop %v3536
        %v3538 = vmul.f32 %v3494, 1.442695
        %v3539 = vpow.pop %v3538
        %v3540 = vmul.f32 %v3495, 1.442695
        %v3541 = vpow.pop %v3540
        %v3542 = vmul.f32 %v3496, 1.442695
        %v3543 = vpow.pop %v3542
        %v3544 = vmul.f32 %v3497, 1.442695
        %v3545 = vpow.pop %v3544
        %v3546 = vmul.f32 %v3498, 1.442695
        %v3547 = vpow.pop %v3546
        %v3548 = vmul.f32 %v3499, 1.442695
        %v3549 = vpow.pop %v3548
        %v3550 = vmul.f32 %v3500, 1.442695
        %v3551 = vpow.pop %v3550
        %v3552 = vmul.f32 %v3501, 1.442695
        %v3553 = vpow.pop %v3552
        %v3554 = vmul.f32 %v3502, 1.442695
        %v3555 = vpow.pop %v3554
        %v3556 = vmul.f32 %v3503, 1.442695
        %v3557 = vpow.pop %v3556
        %v3558 = vmul.f32 %v3504, 1.442695
        %v3559 = vpow.pop %v3558
        %v3560 = vmul.f32 %v3505, 1.442695
        %v3561 = vpow.pop %v3560
        %v3562 = vmul.f32 %v3506, 1.442695
        %v3563 = vpow.pop %v3562
        %v3564 = vmul.f32 %v3507, 1.442695
        %v3565 = vpow.pop %v3564
        %v3566 = vmul.f32 %v3508, 1.442695
        %v3567 = vpow.pop %v3566
        %v3568 = vmul.f32 %v3509, 1.442695
        %v3569 = vpow.pop %v3568
        %v3570 = vmul.f32 %v3510, 1.442695
        %v3571 = vpow.pop %v3570
        %v3572 = vmul.f32 %v3511, 1.442695
        %v3573 = vpow.pop %v3572
        %v3574 = vmul.f32 %v3512, 1.442695
        %v3575 = vpow.pop %v3574
        %v3576 = vmul.f32 %v3513, 1.442695
        %v3577 = vpow.pop %v3576
        %v3578 = vadd.f32 %v3515, 1.0
        %v3579 = vadd.f32 %v3517, 1.0
        %v3580 = vadd.f32 %v3519, 1.0
        %v3581 = vadd.f32 %v3521, 1.0
        %v3582 = vadd.f32 %v3523, 1.0
        %v3583 = vadd.f32 %v3525, 1.0
        %v3584 = vadd.f32 %v3527, 1.0
        %v3585 = vadd.f32 %v3529, 1.0
        %v3586 = vadd.f32 %v3531, 1.0
        %v3587 = vadd.f32 %v3533, 1.0
        %v3588 = vadd.f32 %v3535, 1.0
        %v3589 = vadd.f32 %v3537, 1.0
        %v3590 = vadd.f32 %v3539, 1.0
        %v3591 = vadd.f32 %v3541, 1.0
        %v3592 = vadd.f32 %v3543, 1.0
        %v3593 = vadd.f32 %v3545, 1.0
        %v3594 = vadd.f32 %v3547, 1.0
        %v3595 = vadd.f32 %v3549, 1.0
        %v3596 = vadd.f32 %v3551, 1.0
        %v3597 = vadd.f32 %v3553, 1.0
        %v3598 = vadd.f32 %v3555, 1.0
        %v3599 = vadd.f32 %v3557, 1.0
        %v3600 = vadd.f32 %v3559, 1.0
        %v3601 = vadd.f32 %v3561, 1.0
        %v3602 = vadd.f32 %v3563, 1.0
        %v3603 = vadd.f32 %v3565, 1.0
        %v3604 = vadd.f32 %v3567, 1.0
        %v3605 = vadd.f32 %v3569, 1.0
        %v3606 = vadd.f32 %v3571, 1.0
        %v3607 = vadd.f32 %v3573, 1.0
        %v3608 = vadd.f32 %v3575, 1.0
        %v3609 = vadd.f32 %v3577, 1.0
        %v3610 = vrcp.pop %v3578
        %v3611 = vmul.f32 1.0, %v3610
        %v3612 = vrcp.pop %v3579
        %v3613 = vmul.f32 1.0, %v3612
        %v3614 = vrcp.pop %v3580
        %v3615 = vmul.f32 1.0, %v3614
        %v3616 = vrcp.pop %v3581
        %v3617 = vmul.f32 1.0, %v3616
        %v3618 = vrcp.pop %v3582
        %v3619 = vmul.f32 1.0, %v3618
        %v3620 = vrcp.pop %v3583
        %v3621 = vmul.f32 1.0, %v3620
        %v3622 = vrcp.pop %v3584
        %v3623 = vmul.f32 1.0, %v3622
        %v3624 = vrcp.pop %v3585
        %v3625 = vmul.f32 1.0, %v3624
        %v3626 = vrcp.pop %v3586
        %v3627 = vmul.f32 1.0, %v3626
        %v3628 = vrcp.pop %v3587
        %v3629 = vmul.f32 1.0, %v3628
        %v3630 = vrcp.pop %v3588
        %v3631 = vmul.f32 1.0, %v3630
        %v3632 = vrcp.pop %v3589
        %v3633 = vmul.f32 1.0, %v3632
        %v3634 = vrcp.pop %v3590
        %v3635 = vmul.f32 1.0, %v3634
        %v3636 = vrcp.pop %v3591
        %v3637 = vmul.f32 1.0, %v3636
        %v3638 = vrcp.pop %v3592
        %v3639 = vmul.f32 1.0, %v3638
        %v3640 = vrcp.pop %v3593
        %v3641 = vmul.f32 1.0, %v3640
        %v3642 = vrcp.pop %v3594
        %v3643 = vmul.f32 1.0, %v3642
        %v3644 = vrcp.pop %v3595
        %v3645 = vmul.f32 1.0, %v3644
        %v3646 = vrcp.pop %v3596
        %v3647 = vmul.f32 1.0, %v3646
        %v3648 = vrcp.pop %v3597
        %v3649 = vmul.f32 1.0, %v3648
        %v3650 = vrcp.pop %v3598
        %v3651 = vmul.f32 1.0, %v3650
        %v3652 = vrcp.pop %v3599
        %v3653 = vmul.f32 1.0, %v3652
        %v3654 = vrcp.pop %v3600
        %v3655 = vmul.f32 1.0, %v3654
        %v3656 = vrcp.pop %v3601
        %v3657 = vmul.f32 1.0, %v3656
        %v3658 = vrcp.pop %v3602
        %v3659 = vmul.f32 1.0, %v3658
        %v3660 = vrcp.pop %v3603
        %v3661 = vmul.f32 1.0, %v3660
        %v3662 = vrcp.pop %v3604
        %v3663 = vmul.f32 1.0, %v3662
        %v3664 = vrcp.pop %v3605
        %v3665 = vmul.f32 1.0, %v3664
        %v3666 = vrcp.pop %v3606
        %v3667 = vmul.f32 1.0, %v3666
        %v3668 = vrcp.pop %v3607
        %v3669 = vmul.f32 1.0, %v3668
        %v3670 = vrcp.pop %v3608
        %v3671 = vmul.f32 1.0, %v3670
        %v3672 = vrcp.pop %v3609
        %v3673 = vmul.f32 1.0, %v3672
        %v3674 = vmul.f32 %v3356, %v3611
        %v3675 = vmul.f32 %v3359, %v3613
        %v3676 = vmul.f32 %v3364, %v3615
        %v3677 = vmul.f32 %v3367, %v3617
        %v3678 = vmul.f32 %v3372, %v3619
        %v3679 = vmul.f32 %v3375, %v3621
        %v3680 = vmul.f32 %v3380, %v3623
        %v3681 = vmul.f32 %v3383, %v3625
        %v3682 = vmul.f32 %v3388, %v3627
        %v3683 = vmul.f32 %v3391, %v3629
        %v3684 = vmul.f32 %v3396, %v3631
        %v3685 = vmul.f32 %v3399, %v3633
        %v3686 = vmul.f32 %v3404, %v3635
        %v3687 = vmul.f32 %v3407, %v3637
        %v3688 = vmul.f32 %v3412, %v3639
        %v3689 = vmul.f32 %v3415, %v3641
        %v3690 = vmul.f32 %v3420, %v3643
        %v3691 = vmul.f32 %v3423, %v3645
        %v3692 = vmul.f32 %v3428, %v3647
        %v3693 = vmul.f32 %v3431, %v3649
        %v3694 = vmul.f32 %v3436, %v3651
        %v3695 = vmul.f32 %v3439, %v3653
        %v3696 = vmul.f32 %v3444, %v3655
        %v3697 = vmul.f32 %v3447, %v3657
        %v3698 = vmul.f32 %v3452, %v3659
        %v3699 = vmul.f32 %v3455, %v3661
        %v3700 = vmul.f32 %v3460, %v3663
        %v3701 = vmul.f32 %v3463, %v3665
        %v3702 = vmul.f32 %v3468, %v3667
        %v3703 = vmul.f32 %v3471, %v3669
        %v3704 = vmul.f32 %v3476, %v3671
        %v3705 = vmul.f32 %v3479, %v3673
        %v3706 = vadd.f32 %v3674, %v3675
        %v3707 = vadd.f32 %v3706, %v3676
        %v3708 = vadd.f32 %v3707, %v3677
        %v3709 = vadd.f32 %v3708, %v3678
        %v3710 = vadd.f32 %v3709, %v3679
        %v3711 = vadd.f32 %v3710, %v3680
        %v3712 = vadd.f32 %v3711, %v3681
        %v3713 = vrot.slane %v3712, 4
        %v3714 = vadd.f32 %v3712, %v3713
        %v3715 = vrot.slane %v3714, 2
        %v3716 = vadd.f32 %v3714, %v3715
        %v3717 = vrot.slane %v3716, 1
        %v3718 = vadd.f32 %v3716, %v3717
        %v3719 = vadd.f32 %v3682, %v3683
        %v3720 = vadd.f32 %v3719, %v3684
        %v3721 = vadd.f32 %v3720, %v3685
        %v3722 = vadd.f32 %v3721, %v3686
        %v3723 = vadd.f32 %v3722, %v3687
        %v3724 = vadd.f32 %v3723, %v3688
        %v3725 = vadd.f32 %v3724, %v3689
        %v3726 = vrot.slane %v3725, 4
        %v3727 = vadd.f32 %v3725, %v3726
        %v3728 = vrot.slane %v3727, 2
        %v3729 = vadd.f32 %v3727, %v3728
        %v3730 = vrot.slane %v3729, 1
        %v3731 = vadd.f32 %v3729, %v3730
        %v3732 = vadd.f32 %v3690, %v3691
        %v3733 = vadd.f32 %v3732, %v3692
        %v3734 = vadd.f32 %v3733, %v3693
        %v3735 = vadd.f32 %v3734, %v3694
        %v3736 = vadd.f32 %v3735, %v3695
        %v3737 = vadd.f32 %v3736, %v3696
        %v3738 = vadd.f32 %v3737, %v3697
        %v3739 = vrot.slane %v3738, 4
        %v3740 = vadd.f32 %v3738, %v3739
        %v3741 = vrot.slane %v3740, 2
        %v3742 = vadd.f32 %v3740, %v3741
        %v3743 = vrot.slane %v3742, 1
        %v3744 = vadd.f32 %v3742, %v3743
        %v3745 = vadd.f32 %v3698, %v3699
        %v3746 = vadd.f32 %v3745, %v3700
        %v3747 = vadd.f32 %v3746, %v3701
        %v3748 = vadd.f32 %v3747, %v3702
        %v3749 = vadd.f32 %v3748, %v3703
        %v3750 = vadd.f32 %v3749, %v3704
        %v3751 = vadd.f32 %v3750, %v3705
        %v3752 = vrot.slane %v3751, 4
        %v3753 = vadd.f32 %v3751, %v3752
        %v3754 = vrot.slane %v3753, 2
        %v3755 = vadd.f32 %v3753, %v3754
        %v3756 = vrot.slane %v3755, 1
        %v3757 = vadd.f32 %v3755, %v3756
        %v3758 = vmul.f32 %v3718, 0.015625
        %v3759 = vmul.f32 %v3731, 0.015625
        %v3760 = vmul.f32 %v3744, 0.015625
        %v3761 = vmul.f32 %v3757, 0.015625
        %v3762 = vpack.c.bf16 %v3758, %v3758
        %v3763 = vpack.c.bf16 %v3759, %v3759
        %v3764 = vpack.c.bf16 %v3760, %v3760
        %v3765 = vpack.c.bf16 %v3761, %v3761
        %v3766 = vld [vmem:[%s13] sm:$0xf]
        %v3767 = vld [vmem:[%s13 + $0x4] sm:$0xf]
        %v3768 = vld [vmem:[%s13 + $0x8] sm:$0xf]
        %v3769 = vld [vmem:[%s13 + $0xc] sm:$0xf]
        %v3770 = vld [vmem:[%s13 + $0x10] sm:$0xf]
        %v3771 = vld [vmem:[%s13 + $0x14] sm:$0xf]
        %v3772 = vld [vmem:[%s13 + $0x18] sm:$0xf]
        %v3773 = vld [vmem:[%s13 + $0x1c] sm:$0xf]
        %v3774 = vld [vmem:[%s13 + $0x20] sm:$0xf]
        %v3775 = vld [vmem:[%s13 + $0x24] sm:$0xf]
        %v3776 = vld [vmem:[%s13 + $0x28] sm:$0xf]
        %v3777 = vld [vmem:[%s13 + $0x2c] sm:$0xf]
        %v3778 = vld [vmem:[%s13 + $0x30] sm:$0xf]
        %v3779 = vld [vmem:[%s13 + $0x34] sm:$0xf]
        %v3780 = vld [vmem:[%s13 + $0x38] sm:$0xf]
        %v3781 = vld [vmem:[%s13 + $0x3c] sm:$0xf]
        %v3782 = vld [vmem:[%s11 + $0x4] sm:$0xf]
        %v3783 = vld [vmem:[%s11 + $0x2c] sm:$0xf]
        %v3784 = vld [vmem:[%s11 + $0x54] sm:$0xf]
        %v3785 = vld [vmem:[%s11 + $0x7c] sm:$0xf]
        %v3786 = vld [vmem:[%s11 + $0xa4] sm:$0xf]
        %v3787 = vld [vmem:[%s11 + $0xcc] sm:$0xf]
        %v3788 = vld [vmem:[%s11 + $0xf4] sm:$0xf]
        %v3789 = vld [vmem:[%s11 + $0x11c] sm:$0xf]
        %v3790 = vld [vmem:[%s11 + $0x144] sm:$0xf]
        %v3791 = vld [vmem:[%s11 + $0x16c] sm:$0xf]
        %v3792 = vld [vmem:[%s11 + $0x194] sm:$0xf]
        %v3793 = vld [vmem:[%s11 + $0x1bc] sm:$0xf]
        %v3794 = vld [vmem:[%s11 + $0x1e4] sm:$0xf]
        %v3795 = vld [vmem:[%s11 + $0x20c] sm:$0xf]
        %v3796 = vld [vmem:[%s11 + $0x234] sm:$0xf]
        %v3797 = vld [vmem:[%s11 + $0x25c] sm:$0xf]
        %v3798 = vld [vmem:[%s12 + $0x1] sm:$0x1]
        %v3800 = vlaneseq
        %v3801 = vshrl.u32 %v3800, 7
        %v3802 = vsub.s32 0, %v3801
        %v3803 = vrot.slane %v3798, %v3802
        %v3821 = vunpack.c.l.b16 %v3782
        %v3822 = vunpack.c.l.b16 %v3783
        %v3823 = vunpack.c.l.b16 %v3784
        %v3824 = vunpack.c.l.b16 %v3785
        %v3825 = vunpack.c.l.b16 %v3786
        %v3826 = vunpack.c.l.b16 %v3787
        %v3827 = vunpack.c.l.b16 %v3788
        %v3828 = vunpack.c.l.b16 %v3789
        %v3829 = vunpack.c.l.b16 %v3790
        %v3830 = vunpack.c.l.b16 %v3791
        %v3831 = vunpack.c.l.b16 %v3792
        %v3832 = vunpack.c.l.b16 %v3793
        %v3833 = vunpack.c.l.b16 %v3794
        %v3834 = vunpack.c.l.b16 %v3795
        %v3835 = vunpack.c.l.b16 %v3796
        %v3836 = vunpack.c.l.b16 %v3797
        %v3837 = vpack.c.b16 %v3822, %v3821
        %v3838 = vpack.c.b16 %v3824, %v3823
        %v3839 = vpack.c.b16 %v3826, %v3825
        %v3840 = vpack.c.b16 %v3828, %v3827
        %v3841 = vpack.c.b16 %v3830, %v3829
        %v3842 = vpack.c.b16 %v3832, %v3831
        %v3843 = vpack.c.b16 %v3834, %v3833
        %v3844 = vpack.c.b16 %v3836, %v3835
        %3853 = vmatprep.subr.bf16.mxu0 0
        %3854 = vmatpush1.bf16.msra.mxu0 %v3837
        %3855 = vmatprep.subr.bf16.mxu0 0
        %3856 = vmatpush1.bf16.msra.mxu0 %v3838
        %3857 = vmatprep.subr.bf16.mxu0 0
        %3858 = vmatpush1.bf16.msra.mxu0 %v3839
        %3859 = vmatprep.subr.bf16.mxu0 0
        %3860 = vmatpush1.bf16.msra.mxu0 %v3840
        %3861 = vmatprep.subr.bf16.mxu0 0
        %3862 = vmatpush1.bf16.msra.mxu0 %v3841
        %3863 = vmatprep.subr.bf16.mxu0 0
        %3864 = vmatpush1.bf16.msra.mxu0 %v3842
        %3865 = vmatprep.subr.bf16.mxu0 0
        %3866 = vmatpush1.bf16.msra.mxu0 %v3843
        %3867 = vmatprep.subr.bf16.mxu0 0
        %3868 = vmatpush1.bf16.msra.mxu0 %v3844
        %3869 = vmatprep.subr.bf16.mxu0 0
        %3870 = vmatpush1.bf16.msra.mxu0 0
        %3871 = vmatprep.subr.bf16.mxu0 0
        %3872 = vmatpush1.bf16.msra.mxu0 0
        %3873 = vmatprep.subr.bf16.mxu0 0
        %3874 = vmatpush1.bf16.msra.mxu0 0
        %3875 = vmatprep.subr.bf16.mxu0 0
        %3876 = vmatpush1.bf16.msra.mxu0 0
        %3877 = vmatprep.subr.bf16.mxu0 0
        %3878 = vmatpush1.bf16.msra.mxu0 0
        %3879 = vmatprep.subr.bf16.mxu0 0
        %3880 = vmatpush1.bf16.msra.mxu0 0
        %3881 = vmatprep.subr.bf16.mxu0 0
        %3882 = vmatpush1.bf16.msra.mxu0 0
        %3883 = vmatprep.subr.bf16.mxu0 0
        %3884 = vmatpush1.bf16.msra.mxu0 0
        %3885 = vmatprep.mubr.bf16.mxu0 0
        %3886 = vmatmul.mubr.bf16.gmra.mrb[0].mxu0 %v3234
        %v3887 = vpop.f32.mrb[0].mxu0
        %v3888 = vadd.f32 %v3803, %v3887
        %v3889 = vpop.f32.mrb[0].mxu0
        %v3890 = vpop.f32.mrb[0].mxu0
        %v3891 = vadd.f32 %v3803, %v3890
        %v3892 = vpop.f32.mrb[0].mxu0
        %3893 = vmatprep.mubr.bf16.mxu0 0
        %3894 = vmatmul.mubr.bf16.gmra.mrb[0].mxu0 %v3235
        %v3895 = vpop.f32.mrb[0].mxu0
        %v3896 = vadd.f32 %v3803, %v3895
        %v3897 = vpop.f32.mrb[0].mxu0
        %v3898 = vpop.f32.mrb[0].mxu0
        %v3899 = vadd.f32 %v3803, %v3898
        %v3900 = vpop.f32.mrb[0].mxu0
        %3901 = vmatprep.mubr.bf16.mxu0 0
        %3902 = vmatmul.mubr.bf16.gmra.mrb[0].mxu0 %v3236
        %v3903 = vpop.f32.mrb[0].mxu0
        %v3904 = vadd.f32 %v3803, %v3903
        %v3905 = vpop.f32.mrb[0].mxu0
        %v3906 = vpop.f32.mrb[0].mxu0
        %v3907 = vadd.f32 %v3803, %v3906
        %v3908 = vpop.f32.mrb[0].mxu0
        %3909 = vmatprep.mubr.bf16.mxu0 0
        %3910 = vmatmul.mubr.bf16.gmra.mrb[0].mxu0 %v3237
        %v3911 = vpop.f32.mrb[0].mxu0
        %v3912 = vadd.f32 %v3803, %v3911
        %v3913 = vpop.f32.mrb[0].mxu0
        %v3914 = vpop.f32.mrb[0].mxu0
        %v3915 = vadd.f32 %v3803, %v3914
        %v3916 = vpop.f32.mrb[0].mxu0
        %3917 = vmatprep.mubr.bf16.mxu0 0
        %3918 = vmatmul.mubr.bf16.gmra.mrb[0].mxu0 %v3238
        %v3919 = vpop.f32.mrb[0].mxu0
        %v3920 = vadd.f32 %v3803, %v3919
        %v3921 = vpop.f32.mrb[0].mxu0
        %v3922 = vpop.f32.mrb[0].mxu0
        %v3923 = vadd.f32 %v3803, %v3922
        %v3924 = vpop.f32.mrb[0].mxu0
        %3925 = vmatprep.mubr.bf16.mxu0 0
        %3926 = vmatmul.mubr.bf16.gmra.mrb[0].mxu0 %v3239
        %v3927 = vpop.f32.mrb[0].mxu0
        %v3928 = vadd.f32 %v3803, %v3927
        %v3929 = vpop.f32.mrb[0].mxu0
        %v3930 = vpop.f32.mrb[0].mxu0
        %v3931 = vadd.f32 %v3803, %v3930
        %v3932 = vpop.f32.mrb[0].mxu0
        %3933 = vmatprep.mubr.bf16.mxu0 0
        %3934 = vmatmul.mubr.bf16.gmra.mrb[0].mxu0 %v3240
        %v3935 = vpop.f32.mrb[0].mxu0
        %v3936 = vadd.f32 %v3803, %v3935
        %v3937 = vpop.f32.mrb[0].mxu0
        %v3938 = vpop.f32.mrb[0].mxu0
        %v3939 = vadd.f32 %v3803, %v3938
        %v3940 = vpop.f32.mrb[0].mxu0
        %3941 = vmatprep.mubr.bf16.mxu0 0
        %3942 = vmatmul.mubr.bf16.gmra.mrb[0].mxu0 %v3241
        %v3943 = vpop.f32.mrb[0].mxu0
        %v3944 = vadd.f32 %v3803, %v3943
        %v3945 = vpop.f32.mrb[0].mxu0
        %v3946 = vpop.f32.mrb[0].mxu0
        %v3947 = vadd.f32 %v3803, %v3946
        %v3948 = vpop.f32.mrb[0].mxu0
        %3949 = vmatprep.mubr.bf16.mxu0 0
        %3950 = vmatmul.mubr.bf16.gmra.mrb[0].mxu0 %v3242
        %v3951 = vpop.f32.mrb[0].mxu0
        %v3952 = vadd.f32 %v3803, %v3951
        %v3953 = vpop.f32.mrb[0].mxu0
        %v3954 = vpop.f32.mrb[0].mxu0
        %v3955 = vadd.f32 %v3803, %v3954
        %v3956 = vpop.f32.mrb[0].mxu0
        %3957 = vmatprep.mubr.bf16.mxu0 0
        %3958 = vmatmul.mubr.bf16.gmra.mrb[0].mxu0 %v3243
        %v3959 = vpop.f32.mrb[0].mxu0
        %v3960 = vadd.f32 %v3803, %v3959
        %v3961 = vpop.f32.mrb[0].mxu0
        %v3962 = vpop.f32.mrb[0].mxu0
        %v3963 = vadd.f32 %v3803, %v3962
        %v3964 = vpop.f32.mrb[0].mxu0
        %3965 = vmatprep.mubr.bf16.mxu0 0
        %3966 = vmatmul.mubr.bf16.gmra.mrb[0].mxu0 %v3244
        %v3967 = vpop.f32.mrb[0].mxu0
        %v3968 = vadd.f32 %v3803, %v3967
        %v3969 = vpop.f32.mrb[0].mxu0
        %v3970 = vpop.f32.mrb[0].mxu0
        %v3971 = vadd.f32 %v3803, %v3970
        %v3972 = vpop.f32.mrb[0].mxu0
        %3973 = vmatprep.mubr.bf16.mxu0 0
        %3974 = vmatmul.mubr.bf16.gmra.mrb[0].mxu0 %v3245
        %v3975 = vpop.f32.mrb[0].mxu0
        %v3976 = vadd.f32 %v3803, %v3975
        %v3977 = vpop.f32.mrb[0].mxu0
        %v3978 = vpop.f32.mrb[0].mxu0
        %v3979 = vadd.f32 %v3803, %v3978
        %v3980 = vpop.f32.mrb[0].mxu0
        %3981 = vmatprep.mubr.bf16.mxu0 0
        %3982 = vmatmul.mubr.bf16.gmra.mrb[0].mxu0 %v3246
        %v3983 = vpop.f32.mrb[0].mxu0
        %v3984 = vadd.f32 %v3803, %v3983
        %v3985 = vpop.f32.mrb[0].mxu0
        %v3986 = vpop.f32.mrb[0].mxu0
        %v3987 = vadd.f32 %v3803, %v3986
        %v3988 = vpop.f32.mrb[0].mxu0
        %3989 = vmatprep.mubr.bf16.mxu0 0
        %3990 = vmatmul.mubr.bf16.gmra.mrb[0].mxu0 %v3247
        %v3991 = vpop.f32.mrb[0].mxu0
        %v3992 = vadd.f32 %v3803, %v3991
        %v3993 = vpop.f32.mrb[0].mxu0
        %v3994 = vpop.f32.mrb[0].mxu0
        %v3995 = vadd.f32 %v3803, %v3994
        %v3996 = vpop.f32.mrb[0].mxu0
        %3997 = vmatprep.mubr.bf16.mxu0 0
        %3998 = vmatmul.mubr.bf16.gmra.mrb[0].mxu0 %v3248
        %v3999 = vpop.f32.mrb[0].mxu0
        %v4000 = vadd.f32 %v3803, %v3999
        %v4001 = vpop.f32.mrb[0].mxu0
        %v4002 = vpop.f32.mrb[0].mxu0
        %v4003 = vadd.f32 %v3803, %v4002
        %v4004 = vpop.f32.mrb[0].mxu0
        %4005 = vmatprep.mubr.bf16.mxu0 0
        %4006 = vmatmul.mubr.bf16.gmra.mrb[0].mxu0 %v3249
        %v4007 = vpop.f32.mrb[0].mxu0
        %v4008 = vadd.f32 %v3803, %v4007
        %v4009 = vpop.f32.mrb[0].mxu0
        %v4010 = vpop.f32.mrb[0].mxu0
        %v4011 = vadd.f32 %v3803, %v4010
        %v4012 = vpop.f32.mrb[0].mxu0
        %4013 = vdwg.mxu0
        %v4014 = vxor.u32 %v3888, 2147483648
        %v4015 = vxor.u32 %v3891, 2147483648
        %v4016 = vxor.u32 %v3896, 2147483648
        %v4017 = vxor.u32 %v3899, 2147483648
        %v4018 = vxor.u32 %v3904, 2147483648
        %v4019 = vxor.u32 %v3907, 2147483648
        %v4020 = vxor.u32 %v3912, 2147483648
        %v4021 = vxor.u32 %v3915, 2147483648
        %v4022 = vxor.u32 %v3920, 2147483648
        %v4023 = vxor.u32 %v3923, 2147483648
        %v4024 = vxor.u32 %v3928, 2147483648
        %v4025 = vxor.u32 %v3931, 2147483648
        %v4026 = vxor.u32 %v3936, 2147483648
        %v4027 = vxor.u32 %v3939, 2147483648
        %v4028 = vxor.u32 %v3944, 2147483648
        %v4029 = vxor.u32 %v3947, 2147483648
        %v4030 = vxor.u32 %v3952, 2147483648
        %v4031 = vxor.u32 %v3955, 2147483648
        %v4032 = vxor.u32 %v3960, 2147483648
        %v4033 = vxor.u32 %v3963, 2147483648
        %v4034 = vxor.u32 %v3968, 2147483648
        %v4035 = vxor.u32 %v3971, 2147483648
        %v4036 = vxor.u32 %v3976, 2147483648
        %v4037 = vxor.u32 %v3979, 2147483648
        %v4038 = vxor.u32 %v3984, 2147483648
        %v4039 = vxor.u32 %v3987, 2147483648
        %v4040 = vxor.u32 %v3992, 2147483648
        %v4041 = vxor.u32 %v3995, 2147483648
        %v4042 = vxor.u32 %v4000, 2147483648
        %v4043 = vxor.u32 %v4003, 2147483648
        %v4044 = vxor.u32 %v4008, 2147483648
        %v4045 = vxor.u32 %v4011, 2147483648
        %v4046 = vmul.f32 %v4014, 1.442695
        %v4047 = vpow.pop %v4046
        %v4048 = vmul.f32 %v4015, 1.442695
        %v4049 = vpow.pop %v4048
        %v4050 = vmul.f32 %v4016, 1.442695
        %v4051 = vpow.pop %v4050
        %v4052 = vmul.f32 %v4017, 1.442695
        %v4053 = vpow.pop %v4052
        %v4054 = vmul.f32 %v4018, 1.442695
        %v4055 = vpow.pop %v4054
        %v4056 = vmul.f32 %v4019, 1.442695
        %v4057 = vpow.pop %v4056
        %v4058 = vmul.f32 %v4020, 1.442695
        %v4059 = vpow.pop %v4058
        %v4060 = vmul.f32 %v4021, 1.442695
        %v4061 = vpow.pop %v4060
        %v4062 = vmul.f32 %v4022, 1.442695
        %v4063 = vpow.pop %v4062
        %v4064 = vmul.f32 %v4023, 1.442695
        %v4065 = vpow.pop %v4064
        %v4066 = vmul.f32 %v4024, 1.442695
        %v4067 = vpow.pop %v4066
        %v4068 = vmul.f32 %v4025, 1.442695
        %v4069 = vpow.pop %v4068
        %v4070 = vmul.f32 %v4026, 1.442695
        %v4071 = vpow.pop %v4070
        %v4072 = vmul.f32 %v4027, 1.442695
        %v4073 = vpow.pop %v4072
        %v4074 = vmul.f32 %v4028, 1.442695
        %v4075 = vpow.pop %v4074
        %v4076 = vmul.f32 %v4029, 1.442695
        %v4077 = vpow.pop %v4076
        %v4078 = vmul.f32 %v4030, 1.442695
        %v4079 = vpow.pop %v4078
        %v4080 = vmul.f32 %v4031, 1.442695
        %v4081 = vpow.pop %v4080
        %v4082 = vmul.f32 %v4032, 1.442695
        %v4083 = vpow.pop %v4082
        %v4084 = vmul.f32 %v4033, 1.442695
        %v4085 = vpow.pop %v4084
        %v4086 = vmul.f32 %v4034, 1.442695
        %v4087 = vpow.pop %v4086
        %v4088 = vmul.f32 %v4035, 1.442695
        %v4089 = vpow.pop %v4088
        %v4090 = vmul.f32 %v4036, 1.442695
        %v4091 = vpow.pop %v4090
        %v4092 = vmul.f32 %v4037, 1.442695
        %v4093 = vpow.pop %v4092
        %v4094 = vmul.f32 %v4038, 1.442695
        %v4095 = vpow.pop %v4094
        %v4096 = vmul.f32 %v4039, 1.442695
        %v4097 = vpow.pop %v4096
        %v4098 = vmul.f32 %v4040, 1.442695
        %v4099 = vpow.pop %v4098
        %v4100 = vmul.f32 %v4041, 1.442695
        %v4101 = vpow.pop %v4100
        %v4102 = vmul.f32 %v4042, 1.442695
        %v4103 = vpow.pop %v4102
        %v4104 = vmul.f32 %v4043, 1.442695
        %v4105 = vpow.pop %v4104
        %v4106 = vmul.f32 %v4044, 1.442695
        %v4107 = vpow.pop %v4106
        %v4108 = vmul.f32 %v4045, 1.442695
        %v4109 = vpow.pop %v4108
        %v4110 = vadd.f32 %v4047, 1.0
        %v4111 = vadd.f32 %v4049, 1.0
        %v4112 = vadd.f32 %v4051, 1.0
        %v4113 = vadd.f32 %v4053, 1.0
        %v4114 = vadd.f32 %v4055, 1.0
        %v4115 = vadd.f32 %v4057, 1.0
        %v4116 = vadd.f32 %v4059, 1.0
        %v4117 = vadd.f32 %v4061, 1.0
        %v4118 = vadd.f32 %v4063, 1.0
        %v4119 = vadd.f32 %v4065, 1.0
        %v4120 = vadd.f32 %v4067, 1.0
        %v4121 = vadd.f32 %v4069, 1.0
        %v4122 = vadd.f32 %v4071, 1.0
        %v4123 = vadd.f32 %v4073, 1.0
        %v4124 = vadd.f32 %v4075, 1.0
        %v4125 = vadd.f32 %v4077, 1.0
        %v4126 = vadd.f32 %v4079, 1.0
        %v4127 = vadd.f32 %v4081, 1.0
        %v4128 = vadd.f32 %v4083, 1.0
        %v4129 = vadd.f32 %v4085, 1.0
        %v4130 = vadd.f32 %v4087, 1.0
        %v4131 = vadd.f32 %v4089, 1.0
        %v4132 = vadd.f32 %v4091, 1.0
        %v4133 = vadd.f32 %v4093, 1.0
        %v4134 = vadd.f32 %v4095, 1.0
        %v4135 = vadd.f32 %v4097, 1.0
        %v4136 = vadd.f32 %v4099, 1.0
        %v4137 = vadd.f32 %v4101, 1.0
        %v4138 = vadd.f32 %v4103, 1.0
        %v4139 = vadd.f32 %v4105, 1.0
        %v4140 = vadd.f32 %v4107, 1.0
        %v4141 = vadd.f32 %v4109, 1.0
        %v4142 = vrcp.pop %v4110
        %v4143 = vmul.f32 1.0, %v4142
        %v4144 = vrcp.pop %v4111
        %v4145 = vmul.f32 1.0, %v4144
        %v4146 = vrcp.pop %v4112
        %v4147 = vmul.f32 1.0, %v4146
        %v4148 = vrcp.pop %v4113
        %v4149 = vmul.f32 1.0, %v4148
        %v4150 = vrcp.pop %v4114
        %v4151 = vmul.f32 1.0, %v4150
        %v4152 = vrcp.pop %v4115
        %v4153 = vmul.f32 1.0, %v4152
        %v4154 = vrcp.pop %v4116
        %v4155 = vmul.f32 1.0, %v4154
        %v4156 = vrcp.pop %v4117
        %v4157 = vmul.f32 1.0, %v4156
        %v4158 = vrcp.pop %v4118
        %v4159 = vmul.f32 1.0, %v4158
        %v4160 = vrcp.pop %v4119
        %v4161 = vmul.f32 1.0, %v4160
        %v4162 = vrcp.pop %v4120
        %v4163 = vmul.f32 1.0, %v4162
        %v4164 = vrcp.pop %v4121
        %v4165 = vmul.f32 1.0, %v4164
        %v4166 = vrcp.pop %v4122
        %v4167 = vmul.f32 1.0, %v4166
        %v4168 = vrcp.pop %v4123
        %v4169 = vmul.f32 1.0, %v4168
        %v4170 = vrcp.pop %v4124
        %v4171 = vmul.f32 1.0, %v4170
        %v4172 = vrcp.pop %v4125
        %v4173 = vmul.f32 1.0, %v4172
        %v4174 = vrcp.pop %v4126
        %v4175 = vmul.f32 1.0, %v4174
        %v4176 = vrcp.pop %v4127
        %v4177 = vmul.f32 1.0, %v4176
        %v4178 = vrcp.pop %v4128
        %v4179 = vmul.f32 1.0, %v4178
        %v4180 = vrcp.pop %v4129
        %v4181 = vmul.f32 1.0, %v4180
        %v4182 = vrcp.pop %v4130
        %v4183 = vmul.f32 1.0, %v4182
        %v4184 = vrcp.pop %v4131
        %v4185 = vmul.f32 1.0, %v4184
        %v4186 = vrcp.pop %v4132
        %v4187 = vmul.f32 1.0, %v4186
        %v4188 = vrcp.pop %v4133
        %v4189 = vmul.f32 1.0, %v4188
        %v4190 = vrcp.pop %v4134
        %v4191 = vmul.f32 1.0, %v4190
        %v4192 = vrcp.pop %v4135
        %v4193 = vmul.f32 1.0, %v4192
        %v4194 = vrcp.pop %v4136
        %v4195 = vmul.f32 1.0, %v4194
        %v4196 = vrcp.pop %v4137
        %v4197 = vmul.f32 1.0, %v4196
        %v4198 = vrcp.pop %v4138
        %v4199 = vmul.f32 1.0, %v4198
        %v4200 = vrcp.pop %v4139
        %v4201 = vmul.f32 1.0, %v4200
        %v4202 = vrcp.pop %v4140
        %v4203 = vmul.f32 1.0, %v4202
        %v4204 = vrcp.pop %v4141
        %v4205 = vmul.f32 1.0, %v4204
        %v4206 = vmul.f32 %v3888, %v4143
        %v4207 = vmul.f32 %v3891, %v4145
        %v4208 = vmul.f32 %v3896, %v4147
        %v4209 = vmul.f32 %v3899, %v4149
        %v4210 = vmul.f32 %v3904, %v4151
        %v4211 = vmul.f32 %v3907, %v4153
        %v4212 = vmul.f32 %v3912, %v4155
        %v4213 = vmul.f32 %v3915, %v4157
        %v4214 = vmul.f32 %v3920, %v4159
        %v4215 = vmul.f32 %v3923, %v4161
        %v4216 = vmul.f32 %v3928, %v4163
        %v4217 = vmul.f32 %v3931, %v4165
        %v4218 = vmul.f32 %v3936, %v4167
        %v4219 = vmul.f32 %v3939, %v4169
        %v4220 = vmul.f32 %v3944, %v4171
        %v4221 = vmul.f32 %v3947, %v4173
        %v4222 = vmul.f32 %v3952, %v4175
        %v4223 = vmul.f32 %v3955, %v4177
        %v4224 = vmul.f32 %v3960, %v4179
        %v4225 = vmul.f32 %v3963, %v4181
        %v4226 = vmul.f32 %v3968, %v4183
        %v4227 = vmul.f32 %v3971, %v4185
        %v4228 = vmul.f32 %v3976, %v4187
        %v4229 = vmul.f32 %v3979, %v4189
        %v4230 = vmul.f32 %v3984, %v4191
        %v4231 = vmul.f32 %v3987, %v4193
        %v4232 = vmul.f32 %v3992, %v4195
        %v4233 = vmul.f32 %v3995, %v4197
        %v4234 = vmul.f32 %v4000, %v4199
        %v4235 = vmul.f32 %v4003, %v4201
        %v4236 = vmul.f32 %v4008, %v4203
        %v4237 = vmul.f32 %v4011, %v4205
        %v4238 = vadd.f32 %v4206, %v4207
        %v4239 = vadd.f32 %v4238, %v4208
        %v4240 = vadd.f32 %v4239, %v4209
        %v4241 = vadd.f32 %v4240, %v4210
        %v4242 = vadd.f32 %v4241, %v4211
        %v4243 = vadd.f32 %v4242, %v4212
        %v4244 = vadd.f32 %v4243, %v4213
        %v4245 = vrot.slane %v4244, 4
        %v4246 = vadd.f32 %v4244, %v4245
        %v4247 = vrot.slane %v4246, 2
        %v4248 = vadd.f32 %v4246, %v4247
        %v4249 = vrot.slane %v4248, 1
        %v4250 = vadd.f32 %v4248, %v4249
        %v4251 = vadd.f32 %v4214, %v4215
        %v4252 = vadd.f32 %v4251, %v4216
        %v4253 = vadd.f32 %v4252, %v4217
        %v4254 = vadd.f32 %v4253, %v4218
        %v4255 = vadd.f32 %v4254, %v4219
        %v4256 = vadd.f32 %v4255, %v4220
        %v4257 = vadd.f32 %v4256, %v4221
        %v4258 = vrot.slane %v4257, 4
        %v4259 = vadd.f32 %v4257, %v4258
        %v4260 = vrot.slane %v4259, 2
        %v4261 = vadd.f32 %v4259, %v4260
        %v4262 = vrot.slane %v4261, 1
        %v4263 = vadd.f32 %v4261, %v4262
        %v4264 = vadd.f32 %v4222, %v4223
        %v4265 = vadd.f32 %v4264, %v4224
        %v4266 = vadd.f32 %v4265, %v4225
        %v4267 = vadd.f32 %v4266, %v4226
        %v4268 = vadd.f32 %v4267, %v4227
        %v4269 = vadd.f32 %v4268, %v4228
        %v4270 = vadd.f32 %v4269, %v4229
        %v4271 = vrot.slane %v4270, 4
        %v4272 = vadd.f32 %v4270, %v4271
        %v4273 = vrot.slane %v4272, 2
        %v4274 = vadd.f32 %v4272, %v4273
        %v4275 = vrot.slane %v4274, 1
        %v4276 = vadd.f32 %v4274, %v4275
        %v4277 = vadd.f32 %v4230, %v4231
        %v4278 = vadd.f32 %v4277, %v4232
        %v4279 = vadd.f32 %v4278, %v4233
        %v4280 = vadd.f32 %v4279, %v4234
        %v4281 = vadd.f32 %v4280, %v4235
        %v4282 = vadd.f32 %v4281, %v4236
        %v4283 = vadd.f32 %v4282, %v4237
        %v4284 = vrot.slane %v4283, 4
        %v4285 = vadd.f32 %v4283, %v4284
        %v4286 = vrot.slane %v4285, 2
        %v4287 = vadd.f32 %v4285, %v4286
        %v4288 = vrot.slane %v4287, 1
        %v4289 = vadd.f32 %v4287, %v4288
        %v4290 = vmul.f32 %v4250, 0.015625
        %v4291 = vmul.f32 %v4263, 0.015625
        %v4292 = vmul.f32 %v4276, 0.015625
        %v4293 = vmul.f32 %v4289, 0.015625
        %v4294 = vpack.c.bf16 %v4290, %v4290
        %v4295 = vpack.c.bf16 %v4291, %v4291
        %v4296 = vpack.c.bf16 %v4292, %v4292
        %v4297 = vpack.c.bf16 %v4293, %v4293
        %v4298 = vld [vmem:[%s13 + $0x40] sm:$0xf]
        %v4299 = vld [vmem:[%s13 + $0x44] sm:$0xf]
        %v4300 = vld [vmem:[%s13 + $0x48] sm:$0xf]
        %v4301 = vld [vmem:[%s13 + $0x4c] sm:$0xf]
        %v4302 = vld [vmem:[%s13 + $0x50] sm:$0xf]
        %v4303 = vld [vmem:[%s13 + $0x54] sm:$0xf]
        %v4304 = vld [vmem:[%s13 + $0x58] sm:$0xf]
        %v4305 = vld [vmem:[%s13 + $0x5c] sm:$0xf]
        %v4306 = vld [vmem:[%s13 + $0x60] sm:$0xf]
        %v4307 = vld [vmem:[%s13 + $0x64] sm:$0xf]
        %v4308 = vld [vmem:[%s13 + $0x68] sm:$0xf]
        %v4309 = vld [vmem:[%s13 + $0x6c] sm:$0xf]
        %v4310 = vld [vmem:[%s13 + $0x70] sm:$0xf]
        %v4311 = vld [vmem:[%s13 + $0x74] sm:$0xf]
        %v4312 = vld [vmem:[%s13 + $0x78] sm:$0xf]
        %v4313 = vld [vmem:[%s13 + $0x7c] sm:$0xf]
        %v4318 = vunpack.c.l.b16 %v4294
        %v4319 = vunpack.c.l.b16 %v4295
        %v4320 = vunpack.c.l.b16 %v4296
        %v4321 = vunpack.c.l.b16 %v4297
        %v4322 = vsel %vm2936, %v4319, %v4318
        %v4323 = vsel %vm2938, %v4320, %v4322
        %v4324 = vsel %vm2940, %v4321, %v4323
        %v4325 = vpack.c.b16 %v4324, %v4324
        %v4343 = vunpack.c.l.b16 %v4298
        %v4344 = vunpack.c.l.b16 %v4299
        %v4345 = vunpack.c.l.b16 %v4300
        %v4346 = vunpack.c.l.b16 %v4301
        %v4347 = vunpack.c.l.b16 %v4302
        %v4348 = vunpack.c.l.b16 %v4303
        %v4349 = vunpack.c.l.b16 %v4304
        %v4350 = vunpack.c.l.b16 %v4305
        %v4351 = vunpack.c.l.b16 %v4306
        %v4352 = vunpack.c.l.b16 %v4307
        %v4353 = vunpack.c.l.b16 %v4308
        %v4354 = vunpack.c.l.b16 %v4309
        %v4355 = vunpack.c.l.b16 %v4310
        %v4356 = vunpack.c.l.b16 %v4311
        %v4357 = vunpack.c.l.b16 %v4312
        %v4358 = vunpack.c.l.b16 %v4313
        %v4359 = vpack.c.b16 %v4344, %v4343
        %v4360 = vpack.c.b16 %v4346, %v4345
        %v4361 = vpack.c.b16 %v4348, %v4347
        %v4362 = vpack.c.b16 %v4350, %v4349
        %v4363 = vpack.c.b16 %v4352, %v4351
        %v4364 = vpack.c.b16 %v4354, %v4353
        %v4365 = vpack.c.b16 %v4356, %v4355
        %v4366 = vpack.c.b16 %v4358, %v4357
        %4375 = vmatprep.subr.bf16.mxu0 0
        %4376 = vmatpush1.bf16.msra.mxu0 %v4359
        %4377 = vmatprep.subr.bf16.mxu0 0
        %4378 = vmatpush1.bf16.msra.mxu0 %v4360
        %4379 = vmatprep.subr.bf16.mxu0 0
        %4380 = vmatpush1.bf16.msra.mxu0 %v4361
        %4381 = vmatprep.subr.bf16.mxu0 0
        %4382 = vmatpush1.bf16.msra.mxu0 %v4362
        %4383 = vmatprep.subr.bf16.mxu0 0
        %4384 = vmatpush1.bf16.msra.mxu0 %v4363
        %4385 = vmatprep.subr.bf16.mxu0 0
        %4386 = vmatpush1.bf16.msra.mxu0 %v4364
        %4387 = vmatprep.subr.bf16.mxu0 0
        %4388 = vmatpush1.bf16.msra.mxu0 %v4365
        %4389 = vmatprep.subr.bf16.mxu0 0
        %4390 = vmatpush1.bf16.msra.mxu0 %v4366
        %4391 = vmatprep.subr.bf16.mxu0 0
        %4392 = vmatpush1.bf16.msra.mxu0 0
        %4393 = vmatprep.subr.bf16.mxu0 0
        %4394 = vmatpush1.bf16.msra.mxu0 0
        %4395 = vmatprep.subr.bf16.mxu0 0
        %4396 = vmatpush1.bf16.msra.mxu0 0
        %4397 = vmatprep.subr.bf16.mxu0 0
        %4398 = vmatpush1.bf16.msra.mxu0 0
        %4399 = vmatprep.subr.bf16.mxu0 0
        %4400 = vmatpush1.bf16.msra.mxu0 0
        %4401 = vmatprep.subr.bf16.mxu0 0
        %4402 = vmatpush1.bf16.msra.mxu0 0
        %4403 = vmatprep.subr.bf16.mxu0 0
        %4404 = vmatpush1.bf16.msra.mxu0 0
        %4405 = vmatprep.subr.bf16.mxu0 0
        %4406 = vmatpush1.bf16.msra.mxu0 0
        %4407 = vmatprep.mubr.bf16.mxu0 0
        %4408 = vmatmul.mubr.bf16.gmra.mrb[0].mxu0 %v4325
        %v4409 = vpop.f32.mrb[0].mxu0
        %v4410 = vadd.f32 0.0, %v4409
        %v4411 = vpop.f32.mrb[0].mxu0
        %v4412 = vpop.f32.mrb[0].mxu0
        %v4413 = vpop.f32.mrb[0].mxu0
        %4414 = vdwg.mxu0
        %v4419 = vunpack.c.l.b16 %v3762
        %v4420 = vunpack.c.l.b16 %v3763
        %v4421 = vunpack.c.l.b16 %v3764
        %v4422 = vunpack.c.l.b16 %v3765
        %v4423 = vsel %vm2936, %v4420, %v4419
        %v4424 = vsel %vm2938, %v4421, %v4423
        %v4425 = vsel %vm2940, %v4422, %v4424
        %v4426 = vpack.c.b16 %v4425, %v4425
        %v4444 = vunpack.c.l.b16 %v3766
        %v4445 = vunpack.c.l.b16 %v3767
        %v4446 = vunpack.c.l.b16 %v3768
        %v4447 = vunpack.c.l.b16 %v3769
        %v4448 = vunpack.c.l.b16 %v3770
        %v4449 = vunpack.c.l.b16 %v3771
        %v4450 = vunpack.c.l.b16 %v3772
        %v4451 = vunpack.c.l.b16 %v3773
        %v4452 = vunpack.c.l.b16 %v3774
        %v4453 = vunpack.c.l.b16 %v3775
        %v4454 = vunpack.c.l.b16 %v3776
        %v4455 = vunpack.c.l.b16 %v3777
        %v4456 = vunpack.c.l.b16 %v3778
        %v4457 = vunpack.c.l.b16 %v3779
        %v4458 = vunpack.c.l.b16 %v3780
        %v4459 = vunpack.c.l.b16 %v3781
        %v4460 = vpack.c.b16 %v4445, %v4444
        %v4461 = vpack.c.b16 %v4447, %v4446
        %v4462 = vpack.c.b16 %v4449, %v4448
        %v4463 = vpack.c.b16 %v4451, %v4450
        %v4464 = vpack.c.b16 %v4453, %v4452
        %v4465 = vpack.c.b16 %v4455, %v4454
        %v4466 = vpack.c.b16 %v4457, %v4456
        %v4467 = vpack.c.b16 %v4459, %v4458
        %4476 = vmatprep.subr.bf16.mxu0 0
        %4477 = vmatpush1.bf16.msra.mxu0 %v4460
        %4478 = vmatprep.subr.bf16.mxu0 0
        %4479 = vmatpush1.bf16.msra.mxu0 %v4461
        %4480 = vmatprep.subr.bf16.mxu0 0
        %4481 = vmatpush1.bf16.msra.mxu0 %v4462
        %4482 = vmatprep.subr.bf16.mxu0 0
        %4483 = vmatpush1.bf16.msra.mxu0 %v4463
        %4484 = vmatprep.subr.bf16.mxu0 0
        %4485 = vmatpush1.bf16.msra.mxu0 %v4464
        %4486 = vmatprep.subr.bf16.mxu0 0
        %4487 = vmatpush1.bf16.msra.mxu0 %v4465
        %4488 = vmatprep.subr.bf16.mxu0 0
        %4489 = vmatpush1.bf16.msra.mxu0 %v4466
        %4490 = vmatprep.subr.bf16.mxu0 0
        %4491 = vmatpush1.bf16.msra.mxu0 %v4467
        %4492 = vmatprep.subr.bf16.mxu0 0
        %4493 = vmatpush1.bf16.msra.mxu0 0
        %4494 = vmatprep.subr.bf16.mxu0 0
        %4495 = vmatpush1.bf16.msra.mxu0 0
        %4496 = vmatprep.subr.bf16.mxu0 0
        %4497 = vmatpush1.bf16.msra.mxu0 0
        %4498 = vmatprep.subr.bf16.mxu0 0
        %4499 = vmatpush1.bf16.msra.mxu0 0
        %4500 = vmatprep.subr.bf16.mxu0 0
        %4501 = vmatpush1.bf16.msra.mxu0 0
        %4502 = vmatprep.subr.bf16.mxu0 0
        %4503 = vmatpush1.bf16.msra.mxu0 0
        %4504 = vmatprep.subr.bf16.mxu0 0
        %4505 = vmatpush1.bf16.msra.mxu0 0
        %4506 = vmatprep.subr.bf16.mxu0 0
        %4507 = vmatpush1.bf16.msra.mxu0 0
        %4508 = vmatprep.mubr.bf16.mxu0 0
        %4509 = vmatmul.mubr.bf16.gmra.mrb[0].mxu0 %v4426
        %v4510 = vpop.f32.mrb[0].mxu0
        %v4511 = vadd.f32 %v4410, %v4510
        %v4512 = vpop.f32.mrb[0].mxu0
        %v4513 = vpop.f32.mrb[0].mxu0
        %v4514 = vpop.f32.mrb[0].mxu0
        %4515 = vdwg.mxu0
        %v4516 = vld [vmem:[%s11 + $0x8] sm:$0xf]
        %v4517 = vld [vmem:[%s11 + $0x30] sm:$0xf]
        %v4518 = vld [vmem:[%s11 + $0x58] sm:$0xf]
        %v4519 = vld [vmem:[%s11 + $0x80] sm:$0xf]
        %v4520 = vld [vmem:[%s11 + $0xa8] sm:$0xf]
        %v4521 = vld [vmem:[%s11 + $0xd0] sm:$0xf]
        %v4522 = vld [vmem:[%s11 + $0xf8] sm:$0xf]
        %v4523 = vld [vmem:[%s11 + $0x120] sm:$0xf]
        %v4524 = vld [vmem:[%s11 + $0x148] sm:$0xf]
        %v4525 = vld [vmem:[%s11 + $0x170] sm:$0xf]
        %v4526 = vld [vmem:[%s11 + $0x198] sm:$0xf]
        %v4527 = vld [vmem:[%s11 + $0x1c0] sm:$0xf]
        %v4528 = vld [vmem:[%s11 + $0x1e8] sm:$0xf]
        %v4529 = vld [vmem:[%s11 + $0x210] sm:$0xf]
        %v4530 = vld [vmem:[%s11 + $0x238] sm:$0xf]
        %v4531 = vld [vmem:[%s11 + $0x260] sm:$0xf]
        %v4532 = vld [vmem:[%s12 + $0x2] sm:$0x1]
        %v4534 = vlaneseq
        %v4535 = vshrl.u32 %v4534, 7
        %v4536 = vsub.s32 0, %v4535
        %v4537 = vrot.slane %v4532, %v4536
        %v4555 = vunpack.c.l.b16 %v4516
        %v4556 = vunpack.c.l.b16 %v4517
        %v4557 = vunpack.c.l.b16 %v4518
        %v4558 = vunpack.c.l.b16 %v4519
        %v4559 = vunpack.c.l.b16 %v4520
        %v4560 = vunpack.c.l.b16 %v4521
        %v4561 = vunpack.c.l.b16 %v4522
        %v4562 = vunpack.c.l.b16 %v4523
        %v4563 = vunpack.c.l.b16 %v4524
        %v4564 = vunpack.c.l.b16 %v4525
        %v4565 = vunpack.c.l.b16 %v4526
        %v4566 = vunpack.c.l.b16 %v4527
        %v4567 = vunpack.c.l.b16 %v4528
        %v4568 = vunpack.c.l.b16 %v4529
        %v4569 = vunpack.c.l.b16 %v4530
        %v4570 = vunpack.c.l.b16 %v4531
        %v4571 = vpack.c.b16 %v4556, %v4555
        %v4572 = vpack.c.b16 %v4558, %v4557
        %v4573 = vpack.c.b16 %v4560, %v4559
        %v4574 = vpack.c.b16 %v4562, %v4561
        %v4575 = vpack.c.b16 %v4564, %v4563
        %v4576 = vpack.c.b16 %v4566, %v4565
        %v4577 = vpack.c.b16 %v4568, %v4567
        %v4578 = vpack.c.b16 %v4570, %v4569
        %4587 = vmatprep.subr.bf16.mxu0 0
        %4588 = vmatpush1.bf16.msra.mxu0 %v4571
        %4589 = vmatprep.subr.bf16.mxu0 0
        %4590 = vmatpush1.bf16.msra.mxu0 %v4572
        %4591 = vmatprep.subr.bf16.mxu0 0
        %4592 = vmatpush1.bf16.msra.mxu0 %v4573
        %4593 = vmatprep.subr.bf16.mxu0 0
        %4594 = vmatpush1.bf16.msra.mxu0 %v4574
        %4595 = vmatprep.subr.bf16.mxu0 0
        %4596 = vmatpush1.bf16.msra.mxu0 %v4575
        %4597 = vmatprep.subr.bf16.mxu0 0
        %4598 = vmatpush1.bf16.msra.mxu0 %v4576
        %4599 = vmatprep.subr.bf16.mxu0 0
        %4600 = vmatpush1.bf16.msra.mxu0 %v4577
        %4601 = vmatprep.subr.bf16.mxu0 0
        %4602 = vmatpush1.bf16.msra.mxu0 %v4578
        %4603 = vmatprep.subr.bf16.mxu0 0
        %4604 = vmatpush1.bf16.msra.mxu0 0
        %4605 = vmatprep.subr.bf16.mxu0 0
        %4606 = vmatpush1.bf16.msra.mxu0 0
        %4607 = vmatprep.subr.bf16.mxu0 0
        %4608 = vmatpush1.bf16.msra.mxu0 0
        %4609 = vmatprep.subr.bf16.mxu0 0
        %4610 = vmatpush1.bf16.msra.mxu0 0
        %4611 = vmatprep.subr.bf16.mxu0 0
        %4612 = vmatpush1.bf16.msra.mxu0 0
        %4613 = vmatprep.subr.bf16.mxu0 0
        %4614 = vmatpush1.bf16.msra.mxu0 0
        %4615 = vmatprep.subr.bf16.mxu0 0
        %4616 = vmatpush1.bf16.msra.mxu0 0
        %4617 = vmatprep.subr.bf16.mxu0 0
        %4618 = vmatpush1.bf16.msra.mxu0 0
        %4619 = vmatprep.mubr.bf16.mxu0 0
        %4620 = vmatmul.mubr.bf16.gmra.mrb[0].mxu0 %v3234
        %v4621 = vpop.f32.mrb[0].mxu0
        %v4622 = vadd.f32 %v4537, %v4621
        %v4623 = vpop.f32.mrb[0].mxu0
        %v4624 = vpop.f32.mrb[0].mxu0
        %v4625 = vadd.f32 %v4537, %v4624
        %v4626 = vpop.f32.mrb[0].mxu0
        %4627 = vmatprep.mubr.bf16.mxu0 0
        %4628 = vmatmul.mubr.bf16.gmra.mrb[0].mxu0 %v3235
        %v4629 = vpop.f32.mrb[0].mxu0
        %v4630 = vadd.f32 %v4537, %v4629
        %v4631 = vpop.f32.mrb[0].mxu0
        %v4632 = vpop.f32.mrb[0].mxu0
        %v4633 = vadd.f32 %v4537, %v4632
        %v4634 = vpop.f32.mrb[0].mxu0
        %4635 = vmatprep.mubr.bf16.mxu0 0
        %4636 = vmatmul.mubr.bf16.gmra.mrb[0].mxu0 %v3236
        %v4637 = vpop.f32.mrb[0].mxu0
        %v4638 = vadd.f32 %v4537, %v4637
        %v4639 = vpop.f32.mrb[0].mxu0
        %v4640 = vpop.f32.mrb[0].mxu0
        %v4641 = vadd.f32 %v4537, %v4640
        %v4642 = vpop.f32.mrb[0].mxu0
        %4643 = vmatprep.mubr.bf16.mxu0 0
        %4644 = vmatmul.mubr.bf16.gmra.mrb[0].mxu0 %v3237
        %v4645 = vpop.f32.mrb[0].mxu0
        %v4646 = vadd.f32 %v4537, %v4645
        %v4647 = vpop.f32.mrb[0].mxu0
        %v4648 = vpop.f32.mrb[0].mxu0
        %v4649 = vadd.f32 %v4537, %v4648
        %v4650 = vpop.f32.mrb[0].mxu0
        %4651 = vmatprep.mubr.bf16.mxu0 0
        %4652 = vmatmul.mubr.bf16.gmra.mrb[0].mxu0 %v3238
        %v4653 = vpop.f32.mrb[0].mxu0
        %v4654 = vadd.f32 %v4537, %v4653
        %v4655 = vpop.f32.mrb[0].mxu0
        %v4656 = vpop.f32.mrb[0].mxu0
        %v4657 = vadd.f32 %v4537, %v4656
        %v4658 = vpop.f32.mrb[0].mxu0
        %4659 = vmatprep.mubr.bf16.mxu0 0
        %4660 = vmatmul.mubr.bf16.gmra.mrb[0].mxu0 %v3239
        %v4661 = vpop.f32.mrb[0].mxu0
        %v4662 = vadd.f32 %v4537, %v4661
        %v4663 = vpop.f32.mrb[0].mxu0
        %v4664 = vpop.f32.mrb[0].mxu0
        %v4665 = vadd.f32 %v4537, %v4664
        %v4666 = vpop.f32.mrb[0].mxu0
        %4667 = vmatprep.mubr.bf16.mxu0 0
        %4668 = vmatmul.mubr.bf16.gmra.mrb[0].mxu0 %v3240
        %v4669 = vpop.f32.mrb[0].mxu0
        %v4670 = vadd.f32 %v4537, %v4669
        %v4671 = vpop.f32.mrb[0].mxu0
        %v4672 = vpop.f32.mrb[0].mxu0
        %v4673 = vadd.f32 %v4537, %v4672
        %v4674 = vpop.f32.mrb[0].mxu0
        %4675 = vmatprep.mubr.bf16.mxu0 0
        %4676 = vmatmul.mubr.bf16.gmra.mrb[0].mxu0 %v3241
        %v4677 = vpop.f32.mrb[0].mxu0
        %v4678 = vadd.f32 %v4537, %v4677
        %v4679 = vpop.f32.mrb[0].mxu0
        %v4680 = vpop.f32.mrb[0].mxu0
        %v4681 = vadd.f32 %v4537, %v4680
        %v4682 = vpop.f32.mrb[0].mxu0
        %4683 = vmatprep.mubr.bf16.mxu0 0
        %4684 = vmatmul.mubr.bf16.gmra.mrb[0].mxu0 %v3242
        %v4685 = vpop.f32.mrb[0].mxu0
        %v4686 = vadd.f32 %v4537, %v4685
        %v4687 = vpop.f32.mrb[0].mxu0
        %v4688 = vpop.f32.mrb[0].mxu0
        %v4689 = vadd.f32 %v4537, %v4688
        %v4690 = vpop.f32.mrb[0].mxu0
        %4691 = vmatprep.mubr.bf16.mxu0 0
        %4692 = vmatmul.mubr.bf16.gmra.mrb[0].mxu0 %v3243
        %v4693 = vpop.f32.mrb[0].mxu0
        %v4694 = vadd.f32 %v4537, %v4693
        %v4695 = vpop.f32.mrb[0].mxu0
        %v4696 = vpop.f32.mrb[0].mxu0
        %v4697 = vadd.f32 %v4537, %v4696
        %v4698 = vpop.f32.mrb[0].mxu0
        %4699 = vmatprep.mubr.bf16.mxu0 0
        %4700 = vmatmul.mubr.bf16.gmra.mrb[0].mxu0 %v3244
        %v4701 = vpop.f32.mrb[0].mxu0
        %v4702 = vadd.f32 %v4537, %v4701
        %v4703 = vpop.f32.mrb[0].mxu0
        %v4704 = vpop.f32.mrb[0].mxu0
        %v4705 = vadd.f32 %v4537, %v4704
        %v4706 = vpop.f32.mrb[0].mxu0
        %4707 = vmatprep.mubr.bf16.mxu0 0
        %4708 = vmatmul.mubr.bf16.gmra.mrb[0].mxu0 %v3245
        %v4709 = vpop.f32.mrb[0].mxu0
        %v4710 = vadd.f32 %v4537, %v4709
        %v4711 = vpop.f32.mrb[0].mxu0
        %v4712 = vpop.f32.mrb[0].mxu0
        %v4713 = vadd.f32 %v4537, %v4712
        %v4714 = vpop.f32.mrb[0].mxu0
        %4715 = vmatprep.mubr.bf16.mxu0 0
        %4716 = vmatmul.mubr.bf16.gmra.mrb[0].mxu0 %v3246
        %v4717 = vpop.f32.mrb[0].mxu0
        %v4718 = vadd.f32 %v4537, %v4717
        %v4719 = vpop.f32.mrb[0].mxu0
        %v4720 = vpop.f32.mrb[0].mxu0
        %v4721 = vadd.f32 %v4537, %v4720
        %v4722 = vpop.f32.mrb[0].mxu0
        %4723 = vmatprep.mubr.bf16.mxu0 0
        %4724 = vmatmul.mubr.bf16.gmra.mrb[0].mxu0 %v3247
        %v4725 = vpop.f32.mrb[0].mxu0
        %v4726 = vadd.f32 %v4537, %v4725
        %v4727 = vpop.f32.mrb[0].mxu0
        %v4728 = vpop.f32.mrb[0].mxu0
        %v4729 = vadd.f32 %v4537, %v4728
        %v4730 = vpop.f32.mrb[0].mxu0
        %4731 = vmatprep.mubr.bf16.mxu0 0
        %4732 = vmatmul.mubr.bf16.gmra.mrb[0].mxu0 %v3248
        %v4733 = vpop.f32.mrb[0].mxu0
        %v4734 = vadd.f32 %v4537, %v4733
        %v4735 = vpop.f32.mrb[0].mxu0
        %v4736 = vpop.f32.mrb[0].mxu0
        %v4737 = vadd.f32 %v4537, %v4736
        %v4738 = vpop.f32.mrb[0].mxu0
        %4739 = vmatprep.mubr.bf16.mxu0 0
        %4740 = vmatmul.mubr.bf16.gmra.mrb[0].mxu0 %v3249
        %v4741 = vpop.f32.mrb[0].mxu0
        %v4742 = vadd.f32 %v4537, %v4741
        %v4743 = vpop.f32.mrb[0].mxu0
        %v4744 = vpop.f32.mrb[0].mxu0
        %v4745 = vadd.f32 %v4537, %v4744
        %v4746 = vpop.f32.mrb[0].mxu0
        %4747 = vdwg.mxu0
        %v4748 = vxor.u32 %v4622, 2147483648
        %v4749 = vxor.u32 %v4625, 2147483648
        %v4750 = vxor.u32 %v4630, 2147483648
        %v4751 = vxor.u32 %v4633, 2147483648
        %v4752 = vxor.u32 %v4638, 2147483648
        %v4753 = vxor.u32 %v4641, 2147483648
        %v4754 = vxor.u32 %v4646, 2147483648
        %v4755 = vxor.u32 %v4649, 2147483648
        %v4756 = vxor.u32 %v4654, 2147483648
        %v4757 = vxor.u32 %v4657, 2147483648
        %v4758 = vxor.u32 %v4662, 2147483648
        %v4759 = vxor.u32 %v4665, 2147483648
        %v4760 = vxor.u32 %v4670, 2147483648
        %v4761 = vxor.u32 %v4673, 2147483648
        %v4762 = vxor.u32 %v4678, 2147483648
        %v4763 = vxor.u32 %v4681, 2147483648
        %v4764 = vxor.u32 %v4686, 2147483648
        %v4765 = vxor.u32 %v4689, 2147483648
        %v4766 = vxor.u32 %v4694, 2147483648
        %v4767 = vxor.u32 %v4697, 2147483648
        %v4768 = vxor.u32 %v4702, 2147483648
        %v4769 = vxor.u32 %v4705, 2147483648
        %v4770 = vxor.u32 %v4710, 2147483648
        %v4771 = vxor.u32 %v4713, 2147483648
        %v4772 = vxor.u32 %v4718, 2147483648
        %v4773 = vxor.u32 %v4721, 2147483648
        %v4774 = vxor.u32 %v4726, 2147483648
        %v4775 = vxor.u32 %v4729, 2147483648
        %v4776 = vxor.u32 %v4734, 2147483648
        %v4777 = vxor.u32 %v4737, 2147483648
        %v4778 = vxor.u32 %v4742, 2147483648
        %v4779 = vxor.u32 %v4745, 2147483648
        %v4780 = vmul.f32 %v4748, 1.442695
        %v4781 = vpow.pop %v4780
        %v4782 = vmul.f32 %v4749, 1.442695
        %v4783 = vpow.pop %v4782
        %v4784 = vmul.f32 %v4750, 1.442695
        %v4785 = vpow.pop %v4784
        %v4786 = vmul.f32 %v4751, 1.442695
        %v4787 = vpow.pop %v4786
        %v4788 = vmul.f32 %v4752, 1.442695
        %v4789 = vpow.pop %v4788
        %v4790 = vmul.f32 %v4753, 1.442695
        %v4791 = vpow.pop %v4790
        %v4792 = vmul.f32 %v4754, 1.442695
        %v4793 = vpow.pop %v4792
        %v4794 = vmul.f32 %v4755, 1.442695
        %v4795 = vpow.pop %v4794
        %v4796 = vmul.f32 %v4756, 1.442695
        %v4797 = vpow.pop %v4796
        %v4798 = vmul.f32 %v4757, 1.442695
        %v4799 = vpow.pop %v4798
        %v4800 = vmul.f32 %v4758, 1.442695
        %v4801 = vpow.pop %v4800
        %v4802 = vmul.f32 %v4759, 1.442695
        %v4803 = vpow.pop %v4802
        %v4804 = vmul.f32 %v4760, 1.442695
        %v4805 = vpow.pop %v4804
        %v4806 = vmul.f32 %v4761, 1.442695
        %v4807 = vpow.pop %v4806
        %v4808 = vmul.f32 %v4762, 1.442695
        %v4809 = vpow.pop %v4808
        %v4810 = vmul.f32 %v4763, 1.442695
        %v4811 = vpow.pop %v4810
        %v4812 = vmul.f32 %v4764, 1.442695
        %v4813 = vpow.pop %v4812
        %v4814 = vmul.f32 %v4765, 1.442695
        %v4815 = vpow.pop %v4814
        %v4816 = vmul.f32 %v4766, 1.442695
        %v4817 = vpow.pop %v4816
        %v4818 = vmul.f32 %v4767, 1.442695
        %v4819 = vpow.pop %v4818
        %v4820 = vmul.f32 %v4768, 1.442695
        %v4821 = vpow.pop %v4820
        %v4822 = vmul.f32 %v4769, 1.442695
        %v4823 = vpow.pop %v4822
        %v4824 = vmul.f32 %v4770, 1.442695
        %v4825 = vpow.pop %v4824
        %v4826 = vmul.f32 %v4771, 1.442695
        %v4827 = vpow.pop %v4826
        %v4828 = vmul.f32 %v4772, 1.442695
        %v4829 = vpow.pop %v4828
        %v4830 = vmul.f32 %v4773, 1.442695
        %v4831 = vpow.pop %v4830
        %v4832 = vmul.f32 %v4774, 1.442695
        %v4833 = vpow.pop %v4832
        %v4834 = vmul.f32 %v4775, 1.442695
        %v4835 = vpow.pop %v4834
        %v4836 = vmul.f32 %v4776, 1.442695
        %v4837 = vpow.pop %v4836
        %v4838 = vmul.f32 %v4777, 1.442695
        %v4839 = vpow.pop %v4838
        %v4840 = vmul.f32 %v4778, 1.442695
        %v4841 = vpow.pop %v4840
        %v4842 = vmul.f32 %v4779, 1.442695
        %v4843 = vpow.pop %v4842
        %v4844 = vadd.f32 %v4781, 1.0
        %v4845 = vadd.f32 %v4783, 1.0
        %v4846 = vadd.f32 %v4785, 1.0
        %v4847 = vadd.f32 %v4787, 1.0
        %v4848 = vadd.f32 %v4789, 1.0
        %v4849 = vadd.f32 %v4791, 1.0
        %v4850 = vadd.f32 %v4793, 1.0
        %v4851 = vadd.f32 %v4795, 1.0
        %v4852 = vadd.f32 %v4797, 1.0
        %v4853 = vadd.f32 %v4799, 1.0
        %v4854 = vadd.f32 %v4801, 1.0
        %v4855 = vadd.f32 %v4803, 1.0
        %v4856 = vadd.f32 %v4805, 1.0
        %v4857 = vadd.f32 %v4807, 1.0
        %v4858 = vadd.f32 %v4809, 1.0
        %v4859 = vadd.f32 %v4811, 1.0
        %v4860 = vadd.f32 %v4813, 1.0
        %v4861 = vadd.f32 %v4815, 1.0
        %v4862 = vadd.f32 %v4817, 1.0
        %v4863 = vadd.f32 %v4819, 1.0
        %v4864 = vadd.f32 %v4821, 1.0
        %v4865 = vadd.f32 %v4823, 1.0
        %v4866 = vadd.f32 %v4825, 1.0
        %v4867 = vadd.f32 %v4827, 1.0
        %v4868 = vadd.f32 %v4829, 1.0
        %v4869 = vadd.f32 %v4831, 1.0
        %v4870 = vadd.f32 %v4833, 1.0
        %v4871 = vadd.f32 %v4835, 1.0
        %v4872 = vadd.f32 %v4837, 1.0
        %v4873 = vadd.f32 %v4839, 1.0
        %v4874 = vadd.f32 %v4841, 1.0
        %v4875 = vadd.f32 %v4843, 1.0
        %v4876 = vrcp.pop %v4844
        %v4877 = vmul.f32 1.0, %v4876
        %v4878 = vrcp.pop %v4845
        %v4879 = vmul.f32 1.0, %v4878
        %v4880 = vrcp.pop %v4846
        %v4881 = vmul.f32 1.0, %v4880
        %v4882 = vrcp.pop %v4847
        %v4883 = vmul.f32 1.0, %v4882
        %v4884 = vrcp.pop %v4848
        %v4885 = vmul.f32 1.0, %v4884
        %v4886 = vrcp.pop %v4849
        %v4887 = vmul.f32 1.0, %v4886
        %v4888 = vrcp.pop %v4850
        %v4889 = vmul.f32 1.0, %v4888
        %v4890 = vrcp.pop %v4851
        %v4891 = vmul.f32 1.0, %v4890
        %v4892 = vrcp.pop %v4852
        %v4893 = vmul.f32 1.0, %v4892
        %v4894 = vrcp.pop %v4853
        %v4895 = vmul.f32 1.0, %v4894
        %v4896 = vrcp.pop %v4854
        %v4897 = vmul.f32 1.0, %v4896
        %v4898 = vrcp.pop %v4855
        %v4899 = vmul.f32 1.0, %v4898
        %v4900 = vrcp.pop %v4856
        %v4901 = vmul.f32 1.0, %v4900
        %v4902 = vrcp.pop %v4857
        %v4903 = vmul.f32 1.0, %v4902
        %v4904 = vrcp.pop %v4858
        %v4905 = vmul.f32 1.0, %v4904
        %v4906 = vrcp.pop %v4859
        %v4907 = vmul.f32 1.0, %v4906
        %v4908 = vrcp.pop %v4860
        %v4909 = vmul.f32 1.0, %v4908
        %v4910 = vrcp.pop %v4861
        %v4911 = vmul.f32 1.0, %v4910
        %v4912 = vrcp.pop %v4862
        %v4913 = vmul.f32 1.0, %v4912
        %v4914 = vrcp.pop %v4863
        %v4915 = vmul.f32 1.0, %v4914
        %v4916 = vrcp.pop %v4864
        %v4917 = vmul.f32 1.0, %v4916
        %v4918 = vrcp.pop %v4865
        %v4919 = vmul.f32 1.0, %v4918
        %v4920 = vrcp.pop %v4866
        %v4921 = vmul.f32 1.0, %v4920
        %v4922 = vrcp.pop %v4867
        %v4923 = vmul.f32 1.0, %v4922
        %v4924 = vrcp.pop %v4868
        %v4925 = vmul.f32 1.0, %v4924
        %v4926 = vrcp.pop %v4869
        %v4927 = vmul.f32 1.0, %v4926
        %v4928 = vrcp.pop %v4870
        %v4929 = vmul.f32 1.0, %v4928
        %v4930 = vrcp.pop %v4871
        %v4931 = vmul.f32 1.0, %v4930
        %v4932 = vrcp.pop %v4872
        %v4933 = vmul.f32 1.0, %v4932
        %v4934 = vrcp.pop %v4873
        %v4935 = vmul.f32 1.0, %v4934
        %v4936 = vrcp.pop %v4874
        %v4937 = vmul.f32 1.0, %v4936
        %v4938 = vrcp.pop %v4875
        %v4939 = vmul.f32 1.0, %v4938
        %v4940 = vmul.f32 %v4622, %v4877
        %v4941 = vmul.f32 %v4625, %v4879
        %v4942 = vmul.f32 %v4630, %v4881
        %v4943 = vmul.f32 %v4633, %v4883
        %v4944 = vmul.f32 %v4638, %v4885
        %v4945 = vmul.f32 %v4641, %v4887
        %v4946 = vmul.f32 %v4646, %v4889
        %v4947 = vmul.f32 %v4649, %v4891
        %v4948 = vmul.f32 %v4654, %v4893
        %v4949 = vmul.f32 %v4657, %v4895
        %v4950 = vmul.f32 %v4662, %v4897
        %v4951 = vmul.f32 %v4665, %v4899
        %v4952 = vmul.f32 %v4670, %v4901
        %v4953 = vmul.f32 %v4673, %v4903
        %v4954 = vmul.f32 %v4678, %v4905
        %v4955 = vmul.f32 %v4681, %v4907
        %v4956 = vmul.f32 %v4686, %v4909
        %v4957 = vmul.f32 %v4689, %v4911
        %v4958 = vmul.f32 %v4694, %v4913
        %v4959 = vmul.f32 %v4697, %v4915
        %v4960 = vmul.f32 %v4702, %v4917
        %v4961 = vmul.f32 %v4705, %v4919
        %v4962 = vmul.f32 %v4710, %v4921
        %v4963 = vmul.f32 %v4713, %v4923
        %v4964 = vmul.f32 %v4718, %v4925
        %v4965 = vmul.f32 %v4721, %v4927
        %v4966 = vmul.f32 %v4726, %v4929
        %v4967 = vmul.f32 %v4729, %v4931
        %v4968 = vmul.f32 %v4734, %v4933
        %v4969 = vmul.f32 %v4737, %v4935
        %v4970 = vmul.f32 %v4742, %v4937
        %v4971 = vmul.f32 %v4745, %v4939
        %v4972 = vadd.f32 %v4940, %v4941
        %v4973 = vadd.f32 %v4972, %v4942
        %v4974 = vadd.f32 %v4973, %v4943
        %v4975 = vadd.f32 %v4974, %v4944
        %v4976 = vadd.f32 %v4975, %v4945
        %v4977 = vadd.f32 %v4976, %v4946
        %v4978 = vadd.f32 %v4977, %v4947
        %v4979 = vrot.slane %v4978, 4
        %v4980 = vadd.f32 %v4978, %v4979
        %v4981 = vrot.slane %v4980, 2
        %v4982 = vadd.f32 %v4980, %v4981
        %v4983 = vrot.slane %v4982, 1
        %v4984 = vadd.f32 %v4982, %v4983
        %v4985 = vadd.f32 %v4948, %v4949
        %v4986 = vadd.f32 %v4985, %v4950
        %v4987 = vadd.f32 %v4986, %v4951
        %v4988 = vadd.f32 %v4987, %v4952
        %v4989 = vadd.f32 %v4988, %v4953
        %v4990 = vadd.f32 %v4989, %v4954
        %v4991 = vadd.f32 %v4990, %v4955
        %v4992 = vrot.slane %v4991, 4
        %v4993 = vadd.f32 %v4991, %v4992
        %v4994 = vrot.slane %v4993, 2
        %v4995 = vadd.f32 %v4993, %v4994
        %v4996 = vrot.slane %v4995, 1
        %v4997 = vadd.f32 %v4995, %v4996
        %v4998 = vadd.f32 %v4956, %v4957
        %v4999 = vadd.f32 %v4998, %v4958
        %v5000 = vadd.f32 %v4999, %v4959
        %v5001 = vadd.f32 %v5000, %v4960
        %v5002 = vadd.f32 %v5001, %v4961
        %v5003 = vadd.f32 %v5002, %v4962
        %v5004 = vadd.f32 %v5003, %v4963
        %v5005 = vrot.slane %v5004, 4
        %v5006 = vadd.f32 %v5004, %v5005
        %v5007 = vrot.slane %v5006, 2
        %v5008 = vadd.f32 %v5006, %v5007
        %v5009 = vrot.slane %v5008, 1
        %v5010 = vadd.f32 %v5008, %v5009
        %v5011 = vadd.f32 %v4964, %v4965
        %v5012 = vadd.f32 %v5011, %v4966
        %v5013 = vadd.f32 %v5012, %v4967
        %v5014 = vadd.f32 %v5013, %v4968
        %v5015 = vadd.f32 %v5014, %v4969
        %v5016 = vadd.f32 %v5015, %v4970
        %v5017 = vadd.f32 %v5016, %v4971
        %v5018 = vrot.slane %v5017, 4
        %v5019 = vadd.f32 %v5017, %v5018
        %v5020 = vrot.slane %v5019, 2
        %v5021 = vadd.f32 %v5019, %v5020
        %v5022 = vrot.slane %v5021, 1
        %v5023 = vadd.f32 %v5021, %v5022
        %v5024 = vmul.f32 %v4984, 0.015625
        %v5025 = vmul.f32 %v4997, 0.015625
        %v5026 = vmul.f32 %v5010, 0.015625
        %v5027 = vmul.f32 %v5023, 0.015625
        %v5028 = vpack.c.bf16 %v5024, %v5024
        %v5029 = vpack.c.bf16 %v5025, %v5025
        %v5030 = vpack.c.bf16 %v5026, %v5026
        %v5031 = vpack.c.bf16 %v5027, %v5027
        %v5032 = vld [vmem:[%s13 + $0x80] sm:$0xf]
        %v5033 = vld [vmem:[%s13 + $0x84] sm:$0xf]
        %v5034 = vld [vmem:[%s13 + $0x88] sm:$0xf]
        %v5035 = vld [vmem:[%s13 + $0x8c] sm:$0xf]
        %v5036 = vld [vmem:[%s13 + $0x90] sm:$0xf]
        %v5037 = vld [vmem:[%s13 + $0x94] sm:$0xf]
        %v5038 = vld [vmem:[%s13 + $0x98] sm:$0xf]
        %v5039 = vld [vmem:[%s13 + $0x9c] sm:$0xf]
        %v5040 = vld [vmem:[%s13 + $0xa0] sm:$0xf]
        %v5041 = vld [vmem:[%s13 + $0xa4] sm:$0xf]
        %v5042 = vld [vmem:[%s13 + $0xa8] sm:$0xf]
        %v5043 = vld [vmem:[%s13 + $0xac] sm:$0xf]
        %v5044 = vld [vmem:[%s13 + $0xb0] sm:$0xf]
        %v5045 = vld [vmem:[%s13 + $0xb4] sm:$0xf]
        %v5046 = vld [vmem:[%s13 + $0xb8] sm:$0xf]
        %v5047 = vld [vmem:[%s13 + $0xbc] sm:$0xf]
        %v5052 = vunpack.c.l.b16 %v5028
        %v5053 = vunpack.c.l.b16 %v5029
        %v5054 = vunpack.c.l.b16 %v5030
        %v5055 = vunpack.c.l.b16 %v5031
        %v5056 = vsel %vm2936, %v5053, %v5052
        %v5057 = vsel %vm2938, %v5054, %v5056
        %v5058 = vsel %vm2940, %v5055, %v5057
        %v5059 = vpack.c.b16 %v5058, %v5058
        %v5077 = vunpack.c.l.b16 %v5032
        %v5078 = vunpack.c.l.b16 %v5033
        %v5079 = vunpack.c.l.b16 %v5034
        %v5080 = vunpack.c.l.b16 %v5035
        %v5081 = vunpack.c.l.b16 %v5036
        %v5082 = vunpack.c.l.b16 %v5037
        %v5083 = vunpack.c.l.b16 %v5038
        %v5084 = vunpack.c.l.b16 %v5039
        %v5085 = vunpack.c.l.b16 %v5040
        %v5086 = vunpack.c.l.b16 %v5041
        %v5087 = vunpack.c.l.b16 %v5042
        %v5088 = vunpack.c.l.b16 %v5043
        %v5089 = vunpack.c.l.b16 %v5044
        %v5090 = vunpack.c.l.b16 %v5045
        %v5091 = vunpack.c.l.b16 %v5046
        %v5092 = vunpack.c.l.b16 %v5047
        %v5093 = vpack.c.b16 %v5078, %v5077
        %v5094 = vpack.c.b16 %v5080, %v5079
        %v5095 = vpack.c.b16 %v5082, %v5081
        %v5096 = vpack.c.b16 %v5084, %v5083
        %v5097 = vpack.c.b16 %v5086, %v5085
        %v5098 = vpack.c.b16 %v5088, %v5087
        %v5099 = vpack.c.b16 %v5090, %v5089
        %v5100 = vpack.c.b16 %v5092, %v5091
        %5109 = vmatprep.subr.bf16.mxu0 0
        %5110 = vmatpush1.bf16.msra.mxu0 %v5093
        %5111 = vmatprep.subr.bf16.mxu0 0
        %5112 = vmatpush1.bf16.msra.mxu0 %v5094
        %5113 = vmatprep.subr.bf16.mxu0 0
        %5114 = vmatpush1.bf16.msra.mxu0 %v5095
        %5115 = vmatprep.subr.bf16.mxu0 0
        %5116 = vmatpush1.bf16.msra.mxu0 %v5096
        %5117 = vmatprep.subr.bf16.mxu0 0
        %5118 = vmatpush1.bf16.msra.mxu0 %v5097
        %5119 = vmatprep.subr.bf16.mxu0 0
        %5120 = vmatpush1.bf16.msra.mxu0 %v5098
        %5121 = vmatprep.subr.bf16.mxu0 0
        %5122 = vmatpush1.bf16.msra.mxu0 %v5099
        %5123 = vmatprep.subr.bf16.mxu0 0
        %5124 = vmatpush1.bf16.msra.mxu0 %v5100
        %5125 = vmatprep.subr.bf16.mxu0 0
        %5126 = vmatpush1.bf16.msra.mxu0 0
        %5127 = vmatprep.subr.bf16.mxu0 0
        %5128 = vmatpush1.bf16.msra.mxu0 0
        %5129 = vmatprep.subr.bf16.mxu0 0
        %5130 = vmatpush1.bf16.msra.mxu0 0
        %5131 = vmatprep.subr.bf16.mxu0 0
        %5132 = vmatpush1.bf16.msra.mxu0 0
        %5133 = vmatprep.subr.bf16.mxu0 0
        %5134 = vmatpush1.bf16.msra.mxu0 0
        %5135 = vmatprep.subr.bf16.mxu0 0
        %5136 = vmatpush1.bf16.msra.mxu0 0
        %5137 = vmatprep.subr.bf16.mxu0 0
        %5138 = vmatpush1.bf16.msra.mxu0 0
        %5139 = vmatprep.subr.bf16.mxu0 0
        %5140 = vmatpush1.bf16.msra.mxu0 0
        %5141 = vmatprep.mubr.bf16.mxu0 0
        %5142 = vmatmul.mubr.bf16.gmra.mrb[0].mxu0 %v5059
        %v5143 = vpop.f32.mrb[0].mxu0
        %v5144 = vadd.f32 0.0, %v5143
        %v5145 = vpop.f32.mrb[0].mxu0
        %v5146 = vpop.f32.mrb[0].mxu0
        %v5147 = vpop.f32.mrb[0].mxu0
        %5148 = vdwg.mxu0
        %v5149 = vadd.f32 %v4511, %v5144
        %v5150 = vld [vmem:[%s11 + $0xc] sm:$0xf]
        %v5151 = vld [vmem:[%s11 + $0x34] sm:$0xf]
        %v5152 = vld [vmem:[%s11 + $0x5c] sm:$0xf]
        %v5153 = vld [vmem:[%s11 + $0x84] sm:$0xf]
        %v5154 = vld [vmem:[%s11 + $0xac] sm:$0xf]
        %v5155 = vld [vmem:[%s11 + $0xd4] sm:$0xf]
        %v5156 = vld [vmem:[%s11 + $0xfc] sm:$0xf]
        %v5157 = vld [vmem:[%s11 + $0x124] sm:$0xf]
        %v5158 = vld [vmem:[%s11 + $0x14c] sm:$0xf]
        %v5159 = vld [vmem:[%s11 + $0x174] sm:$0xf]
        %v5160 = vld [vmem:[%s11 + $0x19c] sm:$0xf]
        %v5161 = vld [vmem:[%s11 + $0x1c4] sm:$0xf]
        %v5162 = vld [vmem:[%s11 + $0x1ec] sm:$0xf]
        %v5163 = vld [vmem:[%s11 + $0x214] sm:$0xf]
        %v5164 = vld [vmem:[%s11 + $0x23c] sm:$0xf]
        %v5165 = vld [vmem:[%s11 + $0x264] sm:$0xf]
        %v5166 = vld [vmem:[%s12 + $0x3] sm:$0x1]
        %v5168 = vlaneseq
        %v5169 = vshrl.u32 %v5168, 7
        %v5170 = vsub.s32 0, %v5169
        %v5171 = vrot.slane %v5166, %v5170
        %v5189 = vunpack.c.l.b16 %v5150
        %v5190 = vunpack.c.l.b16 %v5151
        %v5191 = vunpack.c.l.b16 %v5152
        %v5192 = vunpack.c.l.b16 %v5153
        %v5193 = vunpack.c.l.b16 %v5154
        %v5194 = vunpack.c.l.b16 %v5155
        %v5195 = vunpack.c.l.b16 %v5156
        %v5196 = vunpack.c.l.b16 %v5157
        %v5197 = vunpack.c.l.b16 %v5158
        %v5198 = vunpack.c.l.b16 %v5159
        %v5199 = vunpack.c.l.b16 %v5160
        %v5200 = vunpack.c.l.b16 %v5161
        %v5201 = vunpack.c.l.b16 %v5162
        %v5202 = vunpack.c.l.b16 %v5163
        %v5203 = vunpack.c.l.b16 %v5164
        %v5204 = vunpack.c.l.b16 %v5165
        %v5205 = vpack.c.b16 %v5190, %v5189
        %v5206 = vpack.c.b16 %v5192, %v5191
        %v5207 = vpack.c.b16 %v5194, %v5193
        %v5208 = vpack.c.b16 %v5196, %v5195
        %v5209 = vpack.c.b16 %v5198, %v5197
        %v5210 = vpack.c.b16 %v5200, %v5199
        %v5211 = vpack.c.b16 %v5202, %v5201
        %v5212 = vpack.c.b16 %v5204, %v5203
        %5221 = vmatprep.subr.bf16.mxu0 0
        %5222 = vmatpush1.bf16.msra.mxu0 %v5205
        %5223 = vmatprep.subr.bf16.mxu0 0
        %5224 = vmatpush1.bf16.msra.mxu0 %v5206
        %5225 = vmatprep.subr.bf16.mxu0 0
        %5226 = vmatpush1.bf16.msra.mxu0 %v5207
        %5227 = vmatprep.subr.bf16.mxu0 0
        %5228 = vmatpush1.bf16.msra.mxu0 %v5208
        %5229 = vmatprep.subr.bf16.mxu0 0
        %5230 = vmatpush1.bf16.msra.mxu0 %v5209
        %5231 = vmatprep.subr.bf16.mxu0 0
        %5232 = vmatpush1.bf16.msra.mxu0 %v5210
        %5233 = vmatprep.subr.bf16.mxu0 0
        %5234 = vmatpush1.bf16.msra.mxu0 %v5211
        %5235 = vmatprep.subr.bf16.mxu0 0
        %5236 = vmatpush1.bf16.msra.mxu0 %v5212
        %5237 = vmatprep.subr.bf16.mxu0 0
        %5238 = vmatpush1.bf16.msra.mxu0 0
        %5239 = vmatprep.subr.bf16.mxu0 0
        %5240 = vmatpush1.bf16.msra.mxu0 0
        %5241 = vmatprep.subr.bf16.mxu0 0
        %5242 = vmatpush1.bf16.msra.mxu0 0
        %5243 = vmatprep.subr.bf16.mxu0 0
        %5244 = vmatpush1.bf16.msra.mxu0 0
        %5245 = vmatprep.subr.bf16.mxu0 0
        %5246 = vmatpush1.bf16.msra.mxu0 0
        %5247 = vmatprep.subr.bf16.mxu0 0
        %5248 = vmatpush1.bf16.msra.mxu0 0
        %5249 = vmatprep.subr.bf16.mxu0 0
        %5250 = vmatpush1.bf16.msra.mxu0 0
        %5251 = vmatprep.subr.bf16.mxu0 0
        %5252 = vmatpush1.bf16.msra.mxu0 0
        %5253 = vmatprep.mubr.bf16.mxu0 0
        %5254 = vmatmul.mubr.bf16.gmra.mrb[0].mxu0 %v3234
        %v5255 = vpop.f32.mrb[0].mxu0
        %v5256 = vadd.f32 %v5171, %v5255
        %v5257 = vpop.f32.mrb[0].mxu0
        %v5258 = vpop.f32.mrb[0].mxu0
        %v5259 = vadd.f32 %v5171, %v5258
        %v5260 = vpop.f32.mrb[0].mxu0
        %5261 = vmatprep.mubr.bf16.mxu0 0
        %5262 = vmatmul.mubr.bf16.gmra.mrb[0].mxu0 %v3235
        %v5263 = vpop.f32.mrb[0].mxu0
        %v5264 = vadd.f32 %v5171, %v5263
        %v5265 = vpop.f32.mrb[0].mxu0
        %v5266 = vpop.f32.mrb[0].mxu0
        %v5267 = vadd.f32 %v5171, %v5266
        %v5268 = vpop.f32.mrb[0].mxu0
        %5269 = vmatprep.mubr.bf16.mxu0 0
        %5270 = vmatmul.mubr.bf16.gmra.mrb[0].mxu0 %v3236
        %v5271 = vpop.f32.mrb[0].mxu0
        %v5272 = vadd.f32 %v5171, %v5271
        %v5273 = vpop.f32.mrb[0].mxu0
        %v5274 = vpop.f32.mrb[0].mxu0
        %v5275 = vadd.f32 %v5171, %v5274
        %v5276 = vpop.f32.mrb[0].mxu0
        %5277 = vmatprep.mubr.bf16.mxu0 0
        %5278 = vmatmul.mubr.bf16.gmra.mrb[0].mxu0 %v3237
        %v5279 = vpop.f32.mrb[0].mxu0
        %v5280 = vadd.f32 %v5171, %v5279
        %v5281 = vpop.f32.mrb[0].mxu0
        %v5282 = vpop.f32.mrb[0].mxu0
        %v5283 = vadd.f32 %v5171, %v5282
        %v5284 = vpop.f32.mrb[0].mxu0
        %5285 = vmatprep.mubr.bf16.mxu0 0
        %5286 = vmatmul.mubr.bf16.gmra.mrb[0].mxu0 %v3238
        %v5287 = vpop.f32.mrb[0].mxu0
        %v5288 = vadd.f32 %v5171, %v5287
        %v5289 = vpop.f32.mrb[0].mxu0
        %v5290 = vpop.f32.mrb[0].mxu0
        %v5291 = vadd.f32 %v5171, %v5290
        %v5292 = vpop.f32.mrb[0].mxu0
        %5293 = vmatprep.mubr.bf16.mxu0 0
        %5294 = vmatmul.mubr.bf16.gmra.mrb[0].mxu0 %v3239
        %v5295 = vpop.f32.mrb[0].mxu0
        %v5296 = vadd.f32 %v5171, %v5295
        %v5297 = vpop.f32.mrb[0].mxu0
        %v5298 = vpop.f32.mrb[0].mxu0
        %v5299 = vadd.f32 %v5171, %v5298
        %v5300 = vpop.f32.mrb[0].mxu0
        %5301 = vmatprep.mubr.bf16.mxu0 0
        %5302 = vmatmul.mubr.bf16.gmra.mrb[0].mxu0 %v3240
        %v5303 = vpop.f32.mrb[0].mxu0
        %v5304 = vadd.f32 %v5171, %v5303
        %v5305 = vpop.f32.mrb[0].mxu0
        %v5306 = vpop.f32.mrb[0].mxu0
        %v5307 = vadd.f32 %v5171, %v5306
        %v5308 = vpop.f32.mrb[0].mxu0
        %5309 = vmatprep.mubr.bf16.mxu0 0
        %5310 = vmatmul.mubr.bf16.gmra.mrb[0].mxu0 %v3241
        %v5311 = vpop.f32.mrb[0].mxu0
        %v5312 = vadd.f32 %v5171, %v5311
        %v5313 = vpop.f32.mrb[0].mxu0
        %v5314 = vpop.f32.mrb[0].mxu0
        %v5315 = vadd.f32 %v5171, %v5314
        %v5316 = vpop.f32.mrb[0].mxu0
        %5317 = vmatprep.mubr.bf16.mxu0 0
        %5318 = vmatmul.mubr.bf16.gmra.mrb[0].mxu0 %v3242
        %v5319 = vpop.f32.mrb[0].mxu0
        %v5320 = vadd.f32 %v5171, %v5319
        %v5321 = vpop.f32.mrb[0].mxu0
        %v5322 = vpop.f32.mrb[0].mxu0
        %v5323 = vadd.f32 %v5171, %v5322
        %v5324 = vpop.f32.mrb[0].mxu0
        %5325 = vmatprep.mubr.bf16.mxu0 0
        %5326 = vmatmul.mubr.bf16.gmra.mrb[0].mxu0 %v3243
        %v5327 = vpop.f32.mrb[0].mxu0
        %v5328 = vadd.f32 %v5171, %v5327
        %v5329 = vpop.f32.mrb[0].mxu0
        %v5330 = vpop.f32.mrb[0].mxu0
        %v5331 = vadd.f32 %v5171, %v5330
        %v5332 = vpop.f32.mrb[0].mxu0
        %5333 = vmatprep.mubr.bf16.mxu0 0
        %5334 = vmatmul.mubr.bf16.gmra.mrb[0].mxu0 %v3244
        %v5335 = vpop.f32.mrb[0].mxu0
        %v5336 = vadd.f32 %v5171, %v5335
        %v5337 = vpop.f32.mrb[0].mxu0
        %v5338 = vpop.f32.mrb[0].mxu0
        %v5339 = vadd.f32 %v5171, %v5338
        %v5340 = vpop.f32.mrb[0].mxu0
        %5341 = vmatprep.mubr.bf16.mxu0 0
        %5342 = vmatmul.mubr.bf16.gmra.mrb[0].mxu0 %v3245
        %v5343 = vpop.f32.mrb[0].mxu0
        %v5344 = vadd.f32 %v5171, %v5343
        %v5345 = vpop.f32.mrb[0].mxu0
        %v5346 = vpop.f32.mrb[0].mxu0
        %v5347 = vadd.f32 %v5171, %v5346
        %v5348 = vpop.f32.mrb[0].mxu0
        %5349 = vmatprep.mubr.bf16.mxu0 0
        %5350 = vmatmul.mubr.bf16.gmra.mrb[0].mxu0 %v3246
        %v5351 = vpop.f32.mrb[0].mxu0
        %v5352 = vadd.f32 %v5171, %v5351
        %v5353 = vpop.f32.mrb[0].mxu0
        %v5354 = vpop.f32.mrb[0].mxu0
        %v5355 = vadd.f32 %v5171, %v5354
        %v5356 = vpop.f32.mrb[0].mxu0
        %5357 = vmatprep.mubr.bf16.mxu0 0
        %5358 = vmatmul.mubr.bf16.gmra.mrb[0].mxu0 %v3247
        %v5359 = vpop.f32.mrb[0].mxu0
        %v5360 = vadd.f32 %v5171, %v5359
        %v5361 = vpop.f32.mrb[0].mxu0
        %v5362 = vpop.f32.mrb[0].mxu0
        %v5363 = vadd.f32 %v5171, %v5362
        %v5364 = vpop.f32.mrb[0].mxu0
        %5365 = vmatprep.mubr.bf16.mxu0 0
        %5366 = vmatmul.mubr.bf16.gmra.mrb[0].mxu0 %v3248
        %v5367 = vpop.f32.mrb[0].mxu0
        %v5368 = vadd.f32 %v5171, %v5367
        %v5369 = vpop.f32.mrb[0].mxu0
        %v5370 = vpop.f32.mrb[0].mxu0
        %v5371 = vadd.f32 %v5171, %v5370
        %v5372 = vpop.f32.mrb[0].mxu0
        %5373 = vmatprep.mubr.bf16.mxu0 0
        %5374 = vmatmul.mubr.bf16.gmra.mrb[0].mxu0 %v3249
        %v5375 = vpop.f32.mrb[0].mxu0
        %v5376 = vadd.f32 %v5171, %v5375
        %v5377 = vpop.f32.mrb[0].mxu0
        %v5378 = vpop.f32.mrb[0].mxu0
        %v5379 = vadd.f32 %v5171, %v5378
        %v5380 = vpop.f32.mrb[0].mxu0
        %5381 = vdwg.mxu0
        %v5382 = vxor.u32 %v5256, 2147483648
        %v5383 = vxor.u32 %v5259, 2147483648
        %v5384 = vxor.u32 %v5264, 2147483648
        %v5385 = vxor.u32 %v5267, 2147483648
        %v5386 = vxor.u32 %v5272, 2147483648
        %v5387 = vxor.u32 %v5275, 2147483648
        %v5388 = vxor.u32 %v5280, 2147483648
        %v5389 = vxor.u32 %v5283, 2147483648
        %v5390 = vxor.u32 %v5288, 2147483648
        %v5391 = vxor.u32 %v5291, 2147483648
        %v5392 = vxor.u32 %v5296, 2147483648
        %v5393 = vxor.u32 %v5299, 2147483648
        %v5394 = vxor.u32 %v5304, 2147483648
        %v5395 = vxor.u32 %v5307, 2147483648
        %v5396 = vxor.u32 %v5312, 2147483648
        %v5397 = vxor.u32 %v5315, 2147483648
        %v5398 = vxor.u32 %v5320, 2147483648
        %v5399 = vxor.u32 %v5323, 2147483648
        %v5400 = vxor.u32 %v5328, 2147483648
        %v5401 = vxor.u32 %v5331, 2147483648
        %v5402 = vxor.u32 %v5336, 2147483648
        %v5403 = vxor.u32 %v5339, 2147483648
        %v5404 = vxor.u32 %v5344, 2147483648
        %v5405 = vxor.u32 %v5347, 2147483648
        %v5406 = vxor.u32 %v5352, 2147483648
        %v5407 = vxor.u32 %v5355, 2147483648
        %v5408 = vxor.u32 %v5360, 2147483648
        %v5409 = vxor.u32 %v5363, 2147483648
        %v5410 = vxor.u32 %v5368, 2147483648
        %v5411 = vxor.u32 %v5371, 2147483648
        %v5412 = vxor.u32 %v5376, 2147483648
        %v5413 = vxor.u32 %v5379, 2147483648
        %v5414 = vmul.f32 %v5382, 1.442695
        %v5415 = vpow.pop %v5414
        %v5416 = vmul.f32 %v5383, 1.442695
        %v5417 = vpow.pop %v5416
        %v5418 = vmul.f32 %v5384, 1.442695
        %v5419 = vpow.pop %v5418
        %v5420 = vmul.f32 %v5385, 1.442695
        %v5421 = vpow.pop %v5420
        %v5422 = vmul.f32 %v5386, 1.442695
        %v5423 = vpow.pop %v5422
        %v5424 = vmul.f32 %v5387, 1.442695
        %v5425 = vpow.pop %v5424
        %v5426 = vmul.f32 %v5388, 1.442695
        %v5427 = vpow.pop %v5426
        %v5428 = vmul.f32 %v5389, 1.442695
        %v5429 = vpow.pop %v5428
        %v5430 = vmul.f32 %v5390, 1.442695
        %v5431 = vpow.pop %v5430
        %v5432 = vmul.f32 %v5391, 1.442695
        %v5433 = vpow.pop %v5432
        %v5434 = vmul.f32 %v5392, 1.442695
        %v5435 = vpow.pop %v5434
        %v5436 = vmul.f32 %v5393, 1.442695
        %v5437 = vpow.pop %v5436
        %v5438 = vmul.f32 %v5394, 1.442695
        %v5439 = vpow.pop %v5438
        %v5440 = vmul.f32 %v5395, 1.442695
        %v5441 = vpow.pop %v5440
        %v5442 = vmul.f32 %v5396, 1.442695
        %v5443 = vpow.pop %v5442
        %v5444 = vmul.f32 %v5397, 1.442695
        %v5445 = vpow.pop %v5444
        %v5446 = vmul.f32 %v5398, 1.442695
        %v5447 = vpow.pop %v5446
        %v5448 = vmul.f32 %v5399, 1.442695
        %v5449 = vpow.pop %v5448
        %v5450 = vmul.f32 %v5400, 1.442695
        %v5451 = vpow.pop %v5450
        %v5452 = vmul.f32 %v5401, 1.442695
        %v5453 = vpow.pop %v5452
        %v5454 = vmul.f32 %v5402, 1.442695
        %v5455 = vpow.pop %v5454
        %v5456 = vmul.f32 %v5403, 1.442695
        %v5457 = vpow.pop %v5456
        %v5458 = vmul.f32 %v5404, 1.442695
        %v5459 = vpow.pop %v5458
        %v5460 = vmul.f32 %v5405, 1.442695
        %v5461 = vpow.pop %v5460
        %v5462 = vmul.f32 %v5406, 1.442695
        %v5463 = vpow.pop %v5462
        %v5464 = vmul.f32 %v5407, 1.442695
        %v5465 = vpow.pop %v5464
        %v5466 = vmul.f32 %v5408, 1.442695
        %v5467 = vpow.pop %v5466
        %v5468 = vmul.f32 %v5409, 1.442695
        %v5469 = vpow.pop %v5468
        %v5470 = vmul.f32 %v5410, 1.442695
        %v5471 = vpow.pop %v5470
        %v5472 = vmul.f32 %v5411, 1.442695
        %v5473 = vpow.pop %v5472
        %v5474 = vmul.f32 %v5412, 1.442695
        %v5475 = vpow.pop %v5474
        %v5476 = vmul.f32 %v5413, 1.442695
        %v5477 = vpow.pop %v5476
        %v5478 = vadd.f32 %v5415, 1.0
        %v5479 = vadd.f32 %v5417, 1.0
        %v5480 = vadd.f32 %v5419, 1.0
        %v5481 = vadd.f32 %v5421, 1.0
        %v5482 = vadd.f32 %v5423, 1.0
        %v5483 = vadd.f32 %v5425, 1.0
        %v5484 = vadd.f32 %v5427, 1.0
        %v5485 = vadd.f32 %v5429, 1.0
        %v5486 = vadd.f32 %v5431, 1.0
        %v5487 = vadd.f32 %v5433, 1.0
        %v5488 = vadd.f32 %v5435, 1.0
        %v5489 = vadd.f32 %v5437, 1.0
        %v5490 = vadd.f32 %v5439, 1.0
        %v5491 = vadd.f32 %v5441, 1.0
        %v5492 = vadd.f32 %v5443, 1.0
        %v5493 = vadd.f32 %v5445, 1.0
        %v5494 = vadd.f32 %v5447, 1.0
        %v5495 = vadd.f32 %v5449, 1.0
        %v5496 = vadd.f32 %v5451, 1.0
        %v5497 = vadd.f32 %v5453, 1.0
        %v5498 = vadd.f32 %v5455, 1.0
        %v5499 = vadd.f32 %v5457, 1.0
        %v5500 = vadd.f32 %v5459, 1.0
        %v5501 = vadd.f32 %v5461, 1.0
        %v5502 = vadd.f32 %v5463, 1.0
        %v5503 = vadd.f32 %v5465, 1.0
        %v5504 = vadd.f32 %v5467, 1.0
        %v5505 = vadd.f32 %v5469, 1.0
        %v5506 = vadd.f32 %v5471, 1.0
        %v5507 = vadd.f32 %v5473, 1.0
        %v5508 = vadd.f32 %v5475, 1.0
        %v5509 = vadd.f32 %v5477, 1.0
        %v5510 = vrcp.pop %v5478
        %v5511 = vmul.f32 1.0, %v5510
        %v5512 = vrcp.pop %v5479
        %v5513 = vmul.f32 1.0, %v5512
        %v5514 = vrcp.pop %v5480
        %v5515 = vmul.f32 1.0, %v5514
        %v5516 = vrcp.pop %v5481
        %v5517 = vmul.f32 1.0, %v5516
        %v5518 = vrcp.pop %v5482
        %v5519 = vmul.f32 1.0, %v5518
        %v5520 = vrcp.pop %v5483
        %v5521 = vmul.f32 1.0, %v5520
        %v5522 = vrcp.pop %v5484
        %v5523 = vmul.f32 1.0, %v5522
        %v5524 = vrcp.pop %v5485
        %v5525 = vmul.f32 1.0, %v5524
        %v5526 = vrcp.pop %v5486
        %v5527 = vmul.f32 1.0, %v5526
        %v5528 = vrcp.pop %v5487
        %v5529 = vmul.f32 1.0, %v5528
        %v5530 = vrcp.pop %v5488
        %v5531 = vmul.f32 1.0, %v5530
        %v5532 = vrcp.pop %v5489
        %v5533 = vmul.f32 1.0, %v5532
        %v5534 = vrcp.pop %v5490
        %v5535 = vmul.f32 1.0, %v5534
        %v5536 = vrcp.pop %v5491
        %v5537 = vmul.f32 1.0, %v5536
        %v5538 = vrcp.pop %v5492
        %v5539 = vmul.f32 1.0, %v5538
        %v5540 = vrcp.pop %v5493
        %v5541 = vmul.f32 1.0, %v5540
        %v5542 = vrcp.pop %v5494
        %v5543 = vmul.f32 1.0, %v5542
        %v5544 = vrcp.pop %v5495
        %v5545 = vmul.f32 1.0, %v5544
        %v5546 = vrcp.pop %v5496
        %v5547 = vmul.f32 1.0, %v5546
        %v5548 = vrcp.pop %v5497
        %v5549 = vmul.f32 1.0, %v5548
        %v5550 = vrcp.pop %v5498
        %v5551 = vmul.f32 1.0, %v5550
        %v5552 = vrcp.pop %v5499
        %v5553 = vmul.f32 1.0, %v5552
        %v5554 = vrcp.pop %v5500
        %v5555 = vmul.f32 1.0, %v5554
        %v5556 = vrcp.pop %v5501
        %v5557 = vmul.f32 1.0, %v5556
        %v5558 = vrcp.pop %v5502
        %v5559 = vmul.f32 1.0, %v5558
        %v5560 = vrcp.pop %v5503
        %v5561 = vmul.f32 1.0, %v5560
        %v5562 = vrcp.pop %v5504
        %v5563 = vmul.f32 1.0, %v5562
        %v5564 = vrcp.pop %v5505
        %v5565 = vmul.f32 1.0, %v5564
        %v5566 = vrcp.pop %v5506
        %v5567 = vmul.f32 1.0, %v5566
        %v5568 = vrcp.pop %v5507
        %v5569 = vmul.f32 1.0, %v5568
        %v5570 = vrcp.pop %v5508
        %v5571 = vmul.f32 1.0, %v5570
        %v5572 = vrcp.pop %v5509
        %v5573 = vmul.f32 1.0, %v5572
        %v5574 = vmul.f32 %v5256, %v5511
        %v5575 = vmul.f32 %v5259, %v5513
        %v5576 = vmul.f32 %v5264, %v5515
        %v5577 = vmul.f32 %v5267, %v5517
        %v5578 = vmul.f32 %v5272, %v5519
        %v5579 = vmul.f32 %v5275, %v5521
        %v5580 = vmul.f32 %v5280, %v5523
        %v5581 = vmul.f32 %v5283, %v5525
        %v5582 = vmul.f32 %v5288, %v5527
        %v5583 = vmul.f32 %v5291, %v5529
        %v5584 = vmul.f32 %v5296, %v5531
        %v5585 = vmul.f32 %v5299, %v5533
        %v5586 = vmul.f32 %v5304, %v5535
        %v5587 = vmul.f32 %v5307, %v5537
        %v5588 = vmul.f32 %v5312, %v5539
        %v5589 = vmul.f32 %v5315, %v5541
        %v5590 = vmul.f32 %v5320, %v5543
        %v5591 = vmul.f32 %v5323, %v5545
        %v5592 = vmul.f32 %v5328, %v5547
        %v5593 = vmul.f32 %v5331, %v5549
        %v5594 = vmul.f32 %v5336, %v5551
        %v5595 = vmul.f32 %v5339, %v5553
        %v5596 = vmul.f32 %v5344, %v5555
        %v5597 = vmul.f32 %v5347, %v5557
        %v5598 = vmul.f32 %v5352, %v5559
        %v5599 = vmul.f32 %v5355, %v5561
        %v5600 = vmul.f32 %v5360, %v5563
        %v5601 = vmul.f32 %v5363, %v5565
        %v5602 = vmul.f32 %v5368, %v5567
        %v5603 = vmul.f32 %v5371, %v5569
        %v5604 = vmul.f32 %v5376, %v5571
        %v5605 = vmul.f32 %v5379, %v5573
        %v5606 = vadd.f32 %v5574, %v5575
        %v5607 = vadd.f32 %v5606, %v5576
        %v5608 = vadd.f32 %v5607, %v5577
        %v5609 = vadd.f32 %v5608, %v5578
        %v5610 = vadd.f32 %v5609, %v5579
        %v5611 = vadd.f32 %v5610, %v5580
        %v5612 = vadd.f32 %v5611, %v5581
        %v5613 = vrot.slane %v5612, 4
        %v5614 = vadd.f32 %v5612, %v5613
        %v5615 = vrot.slane %v5614, 2
        %v5616 = vadd.f32 %v5614, %v5615
        %v5617 = vrot.slane %v5616, 1
        %v5618 = vadd.f32 %v5616, %v5617
        %v5619 = vadd.f32 %v5582, %v5583
        %v5620 = vadd.f32 %v5619, %v5584
        %v5621 = vadd.f32 %v5620, %v5585
        %v5622 = vadd.f32 %v5621, %v5586
        %v5623 = vadd.f32 %v5622, %v5587
        %v5624 = vadd.f32 %v5623, %v5588
        %v5625 = vadd.f32 %v5624, %v5589
        %v5626 = vrot.slane %v5625, 4
        %v5627 = vadd.f32 %v5625, %v5626
        %v5628 = vrot.slane %v5627, 2
        %v5629 = vadd.f32 %v5627, %v5628
        %v5630 = vrot.slane %v5629, 1
        %v5631 = vadd.f32 %v5629, %v5630
        %v5632 = vadd.f32 %v5590, %v5591
        %v5633 = vadd.f32 %v5632, %v5592
        %v5634 = vadd.f32 %v5633, %v5593
        %v5635 = vadd.f32 %v5634, %v5594
        %v5636 = vadd.f32 %v5635, %v5595
        %v5637 = vadd.f32 %v5636, %v5596
        %v5638 = vadd.f32 %v5637, %v5597
        %v5639 = vrot.slane %v5638, 4
        %v5640 = vadd.f32 %v5638, %v5639
        %v5641 = vrot.slane %v5640, 2
        %v5642 = vadd.f32 %v5640, %v5641
        %v5643 = vrot.slane %v5642, 1
        %v5644 = vadd.f32 %v5642, %v5643
        %v5645 = vadd.f32 %v5598, %v5599
        %v5646 = vadd.f32 %v5645, %v5600
        %v5647 = vadd.f32 %v5646, %v5601
        %v5648 = vadd.f32 %v5647, %v5602
        %v5649 = vadd.f32 %v5648, %v5603
        %v5650 = vadd.f32 %v5649, %v5604
        %v5651 = vadd.f32 %v5650, %v5605
        %v5652 = vrot.slane %v5651, 4
        %v5653 = vadd.f32 %v5651, %v5652
        %v5654 = vrot.slane %v5653, 2
        %v5655 = vadd.f32 %v5653, %v5654
        %v5656 = vrot.slane %v5655, 1
        %v5657 = vadd.f32 %v5655, %v5656
        %v5658 = vmul.f32 %v5618, 0.015625
        %v5659 = vmul.f32 %v5631, 0.015625
        %v5660 = vmul.f32 %v5644, 0.015625
        %v5661 = vmul.f32 %v5657, 0.015625
        %v5662 = vpack.c.bf16 %v5658, %v5658
        %v5663 = vpack.c.bf16 %v5659, %v5659
        %v5664 = vpack.c.bf16 %v5660, %v5660
        %v5665 = vpack.c.bf16 %v5661, %v5661
        %v5666 = vld [vmem:[%s13 + $0xc0] sm:$0xf]
        %v5667 = vld [vmem:[%s13 + $0xc4] sm:$0xf]
        %v5668 = vld [vmem:[%s13 + $0xc8] sm:$0xf]
        %v5669 = vld [vmem:[%s13 + $0xcc] sm:$0xf]
        %v5670 = vld [vmem:[%s13 + $0xd0] sm:$0xf]
        %v5671 = vld [vmem:[%s13 + $0xd4] sm:$0xf]
        %v5672 = vld [vmem:[%s13 + $0xd8] sm:$0xf]
        %v5673 = vld [vmem:[%s13 + $0xdc] sm:$0xf]
        %v5674 = vld [vmem:[%s13 + $0xe0] sm:$0xf]
        %v5675 = vld [vmem:[%s13 + $0xe4] sm:$0xf]
        %v5676 = vld [vmem:[%s13 + $0xe8] sm:$0xf]
        %v5677 = vld [vmem:[%s13 + $0xec] sm:$0xf]
        %v5678 = vld [vmem:[%s13 + $0xf0] sm:$0xf]
        %v5679 = vld [vmem:[%s13 + $0xf4] sm:$0xf]
        %v5680 = vld [vmem:[%s13 + $0xf8] sm:$0xf]
        %v5681 = vld [vmem:[%s13 + $0xfc] sm:$0xf]
        %v5686 = vunpack.c.l.b16 %v5662
        %v5687 = vunpack.c.l.b16 %v5663
        %v5688 = vunpack.c.l.b16 %v5664
        %v5689 = vunpack.c.l.b16 %v5665
        %v5690 = vsel %vm2936, %v5687, %v5686
        %v5691 = vsel %vm2938, %v5688, %v5690
        %v5692 = vsel %vm2940, %v5689, %v5691
        %v5693 = vpack.c.b16 %v5692, %v5692
        %v5711 = vunpack.c.l.b16 %v5666
        %v5712 = vunpack.c.l.b16 %v5667
        %v5713 = vunpack.c.l.b16 %v5668
        %v5714 = vunpack.c.l.b16 %v5669
        %v5715 = vunpack.c.l.b16 %v5670
        %v5716 = vunpack.c.l.b16 %v5671
        %v5717 = vunpack.c.l.b16 %v5672
        %v5718 = vunpack.c.l.b16 %v5673
        %v5719 = vunpack.c.l.b16 %v5674
        %v5720 = vunpack.c.l.b16 %v5675
        %v5721 = vunpack.c.l.b16 %v5676
        %v5722 = vunpack.c.l.b16 %v5677
        %v5723 = vunpack.c.l.b16 %v5678
        %v5724 = vunpack.c.l.b16 %v5679
        %v5725 = vunpack.c.l.b16 %v5680
        %v5726 = vunpack.c.l.b16 %v5681
        %v5727 = vpack.c.b16 %v5712, %v5711
        %v5728 = vpack.c.b16 %v5714, %v5713
        %v5729 = vpack.c.b16 %v5716, %v5715
        %v5730 = vpack.c.b16 %v5718, %v5717
        %v5731 = vpack.c.b16 %v5720, %v5719
        %v5732 = vpack.c.b16 %v5722, %v5721
        %v5733 = vpack.c.b16 %v5724, %v5723
        %v5734 = vpack.c.b16 %v5726, %v5725
        %5743 = vmatprep.subr.bf16.mxu0 0
        %5744 = vmatpush1.bf16.msra.mxu0 %v5727
        %5745 = vmatprep.subr.bf16.mxu0 0
        %5746 = vmatpush1.bf16.msra.mxu0 %v5728
        %5747 = vmatprep.subr.bf16.mxu0 0
        %5748 = vmatpush1.bf16.msra.mxu0 %v5729
        %5749 = vmatprep.subr.bf16.mxu0 0
        %5750 = vmatpush1.bf16.msra.mxu0 %v5730
        %5751 = vmatprep.subr.bf16.mxu0 0
        %5752 = vmatpush1.bf16.msra.mxu0 %v5731
        %5753 = vmatprep.subr.bf16.mxu0 0
        %5754 = vmatpush1.bf16.msra.mxu0 %v5732
        %5755 = vmatprep.subr.bf16.mxu0 0
        %5756 = vmatpush1.bf16.msra.mxu0 %v5733
        %5757 = vmatprep.subr.bf16.mxu0 0
        %5758 = vmatpush1.bf16.msra.mxu0 %v5734
        %5759 = vmatprep.subr.bf16.mxu0 0
        %5760 = vmatpush1.bf16.msra.mxu0 0
        %5761 = vmatprep.subr.bf16.mxu0 0
        %5762 = vmatpush1.bf16.msra.mxu0 0
        %5763 = vmatprep.subr.bf16.mxu0 0
        %5764 = vmatpush1.bf16.msra.mxu0 0
        %5765 = vmatprep.subr.bf16.mxu0 0
        %5766 = vmatpush1.bf16.msra.mxu0 0
        %5767 = vmatprep.subr.bf16.mxu0 0
        %5768 = vmatpush1.bf16.msra.mxu0 0
        %5769 = vmatprep.subr.bf16.mxu0 0
        %5770 = vmatpush1.bf16.msra.mxu0 0
        %5771 = vmatprep.subr.bf16.mxu0 0
        %5772 = vmatpush1.bf16.msra.mxu0 0
        %5773 = vmatprep.subr.bf16.mxu0 0
        %5774 = vmatpush1.bf16.msra.mxu0 0
        %5775 = vmatprep.mubr.bf16.mxu0 0
        %5776 = vmatmul.mubr.bf16.gmra.mrb[0].mxu0 %v5693
        %v5777 = vpop.f32.mrb[0].mxu0
        %v5778 = vadd.f32 0.0, %v5777
        %v5779 = vpop.f32.mrb[0].mxu0
        %v5780 = vpop.f32.mrb[0].mxu0
        %v5781 = vpop.f32.mrb[0].mxu0
        %5782 = vdwg.mxu0
        %v5783 = vadd.f32 %v5149, %v5778
        %v5784 = vld [vmem:[%s11 + $0x10] sm:$0xf]
        %v5785 = vld [vmem:[%s11 + $0x38] sm:$0xf]
        %v5786 = vld [vmem:[%s11 + $0x60] sm:$0xf]
        %v5787 = vld [vmem:[%s11 + $0x88] sm:$0xf]
        %v5788 = vld [vmem:[%s11 + $0xb0] sm:$0xf]
        %v5789 = vld [vmem:[%s11 + $0xd8] sm:$0xf]
        %v5790 = vld [vmem:[%s11 + $0x100] sm:$0xf]
        %v5791 = vld [vmem:[%s11 + $0x128] sm:$0xf]
        %v5792 = vld [vmem:[%s11 + $0x150] sm:$0xf]
        %v5793 = vld [vmem:[%s11 + $0x178] sm:$0xf]
        %v5794 = vld [vmem:[%s11 + $0x1a0] sm:$0xf]
        %v5795 = vld [vmem:[%s11 + $0x1c8] sm:$0xf]
        %v5796 = vld [vmem:[%s11 + $0x1f0] sm:$0xf]
        %v5797 = vld [vmem:[%s11 + $0x218] sm:$0xf]
        %v5798 = vld [vmem:[%s11 + $0x240] sm:$0xf]
        %v5799 = vld [vmem:[%s11 + $0x268] sm:$0xf]
        %v5800 = vld [vmem:[%s12 + $0x4] sm:$0x1]
        %v5802 = vlaneseq
        %v5803 = vshrl.u32 %v5802, 7
        %v5804 = vsub.s32 0, %v5803
        %v5805 = vrot.slane %v5800, %v5804
        %v5823 = vunpack.c.l.b16 %v5784
        %v5824 = vunpack.c.l.b16 %v5785
        %v5825 = vunpack.c.l.b16 %v5786
        %v5826 = vunpack.c.l.b16 %v5787
        %v5827 = vunpack.c.l.b16 %v5788
        %v5828 = vunpack.c.l.b16 %v5789
        %v5829 = vunpack.c.l.b16 %v5790
        %v5830 = vunpack.c.l.b16 %v5791
        %v5831 = vunpack.c.l.b16 %v5792
        %v5832 = vunpack.c.l.b16 %v5793
        %v5833 = vunpack.c.l.b16 %v5794
        %v5834 = vunpack.c.l.b16 %v5795
        %v5835 = vunpack.c.l.b16 %v5796
        %v5836 = vunpack.c.l.b16 %v5797
        %v5837 = vunpack.c.l.b16 %v5798
        %v5838 = vunpack.c.l.b16 %v5799
        %v5839 = vpack.c.b16 %v5824, %v5823
        %v5840 = vpack.c.b16 %v5826, %v5825
        %v5841 = vpack.c.b16 %v5828, %v5827
        %v5842 = vpack.c.b16 %v5830, %v5829
        %v5843 = vpack.c.b16 %v5832, %v5831
        %v5844 = vpack.c.b16 %v5834, %v5833
        %v5845 = vpack.c.b16 %v5836, %v5835
        %v5846 = vpack.c.b16 %v5838, %v5837
        %5855 = vmatprep.subr.bf16.mxu0 0
        %5856 = vmatpush1.bf16.msra.mxu0 %v5839
        %5857 = vmatprep.subr.bf16.mxu0 0
        %5858 = vmatpush1.bf16.msra.mxu0 %v5840
        %5859 = vmatprep.subr.bf16.mxu0 0
        %5860 = vmatpush1.bf16.msra.mxu0 %v5841
        %5861 = vmatprep.subr.bf16.mxu0 0
        %5862 = vmatpush1.bf16.msra.mxu0 %v5842
        %5863 = vmatprep.subr.bf16.mxu0 0
        %5864 = vmatpush1.bf16.msra.mxu0 %v5843
        %5865 = vmatprep.subr.bf16.mxu0 0
        %5866 = vmatpush1.bf16.msra.mxu0 %v5844
        %5867 = vmatprep.subr.bf16.mxu0 0
        %5868 = vmatpush1.bf16.msra.mxu0 %v5845
        %5869 = vmatprep.subr.bf16.mxu0 0
        %5870 = vmatpush1.bf16.msra.mxu0 %v5846
        %5871 = vmatprep.subr.bf16.mxu0 0
        %5872 = vmatpush1.bf16.msra.mxu0 0
        %5873 = vmatprep.subr.bf16.mxu0 0
        %5874 = vmatpush1.bf16.msra.mxu0 0
        %5875 = vmatprep.subr.bf16.mxu0 0
        %5876 = vmatpush1.bf16.msra.mxu0 0
        %5877 = vmatprep.subr.bf16.mxu0 0
        %5878 = vmatpush1.bf16.msra.mxu0 0
        %5879 = vmatprep.subr.bf16.mxu0 0
        %5880 = vmatpush1.bf16.msra.mxu0 0
        %5881 = vmatprep.subr.bf16.mxu0 0
        %5882 = vmatpush1.bf16.msra.mxu0 0
        %5883 = vmatprep.subr.bf16.mxu0 0
        %5884 = vmatpush1.bf16.msra.mxu0 0
        %5885 = vmatprep.subr.bf16.mxu0 0
        %5886 = vmatpush1.bf16.msra.mxu0 0
        %5887 = vmatprep.mubr.bf16.mxu0 0
        %5888 = vmatmul.mubr.bf16.gmra.mrb[0].mxu0 %v3234
        %v5889 = vpop.f32.mrb[0].mxu0
        %v5890 = vadd.f32 %v5805, %v5889
        %v5891 = vpop.f32.mrb[0].mxu0
        %v5892 = vpop.f32.mrb[0].mxu0
        %v5893 = vadd.f32 %v5805, %v5892
        %v5894 = vpop.f32.mrb[0].mxu0
        %5895 = vmatprep.mubr.bf16.mxu0 0
        %5896 = vmatmul.mubr.bf16.gmra.mrb[0].mxu0 %v3235
        %v5897 = vpop.f32.mrb[0].mxu0
        %v5898 = vadd.f32 %v5805, %v5897
        %v5899 = vpop.f32.mrb[0].mxu0
        %v5900 = vpop.f32.mrb[0].mxu0
        %v5901 = vadd.f32 %v5805, %v5900
        %v5902 = vpop.f32.mrb[0].mxu0
        %5903 = vmatprep.mubr.bf16.mxu0 0
        %5904 = vmatmul.mubr.bf16.gmra.mrb[0].mxu0 %v3236
        %v5905 = vpop.f32.mrb[0].mxu0
        %v5906 = vadd.f32 %v5805, %v5905
        %v5907 = vpop.f32.mrb[0].mxu0
        %v5908 = vpop.f32.mrb[0].mxu0
        %v5909 = vadd.f32 %v5805, %v5908
        %v5910 = vpop.f32.mrb[0].mxu0
        %5911 = vmatprep.mubr.bf16.mxu0 0
        %5912 = vmatmul.mubr.bf16.gmra.mrb[0].mxu0 %v3237
        %v5913 = vpop.f32.mrb[0].mxu0
        %v5914 = vadd.f32 %v5805, %v5913
        %v5915 = vpop.f32.mrb[0].mxu0
        %v5916 = vpop.f32.mrb[0].mxu0
        %v5917 = vadd.f32 %v5805, %v5916
        %v5918 = vpop.f32.mrb[0].mxu0
        %5919 = vmatprep.mubr.bf16.mxu0 0
        %5920 = vmatmul.mubr.bf16.gmra.mrb[0].mxu0 %v3238
        %v5921 = vpop.f32.mrb[0].mxu0
        %v5922 = vadd.f32 %v5805, %v5921
        %v5923 = vpop.f32.mrb[0].mxu0
        %v5924 = vpop.f32.mrb[0].mxu0
        %v5925 = vadd.f32 %v5805, %v5924
        %v5926 = vpop.f32.mrb[0].mxu0
        %5927 = vmatprep.mubr.bf16.mxu0 0
        %5928 = vmatmul.mubr.bf16.gmra.mrb[0].mxu0 %v3239
        %v5929 = vpop.f32.mrb[0].mxu0
        %v5930 = vadd.f32 %v5805, %v5929
        %v5931 = vpop.f32.mrb[0].mxu0
        %v5932 = vpop.f32.mrb[0].mxu0
        %v5933 = vadd.f32 %v5805, %v5932
        %v5934 = vpop.f32.mrb[0].mxu0
        %5935 = vmatprep.mubr.bf16.mxu0 0
        %5936 = vmatmul.mubr.bf16.gmra.mrb[0].mxu0 %v3240
        %v5937 = vpop.f32.mrb[0].mxu0
        %v5938 = vadd.f32 %v5805, %v5937
        %v5939 = vpop.f32.mrb[0].mxu0
        %v5940 = vpop.f32.mrb[0].mxu0
        %v5941 = vadd.f32 %v5805, %v5940
        %v5942 = vpop.f32.mrb[0].mxu0
        %5943 = vmatprep.mubr.bf16.mxu0 0
        %5944 = vmatmul.mubr.bf16.gmra.mrb[0].mxu0 %v3241
        %v5945 = vpop.f32.mrb[0].mxu0
        %v5946 = vadd.f32 %v5805, %v5945
        %v5947 = vpop.f32.mrb[0].mxu0
        %v5948 = vpop.f32.mrb[0].mxu0
        %v5949 = vadd.f32 %v5805, %v5948
        %v5950 = vpop.f32.mrb[0].mxu0
        %5951 = vmatprep.mubr.bf16.mxu0 0
        %5952 = vmatmul.mubr.bf16.gmra.mrb[0].mxu0 %v3242
        %v5953 = vpop.f32.mrb[0].mxu0
        %v5954 = vadd.f32 %v5805, %v5953
        %v5955 = vpop.f32.mrb[0].mxu0
        %v5956 = vpop.f32.mrb[0].mxu0
        %v5957 = vadd.f32 %v5805, %v5956
        %v5958 = vpop.f32.mrb[0].mxu0
        %5959 = vmatprep.mubr.bf16.mxu0 0
        %5960 = vmatmul.mubr.bf16.gmra.mrb[0].mxu0 %v3243
        %v5961 = vpop.f32.mrb[0].mxu0
        %v5962 = vadd.f32 %v5805, %v5961
        %v5963 = vpop.f32.mrb[0].mxu0
        %v5964 = vpop.f32.mrb[0].mxu0
        %v5965 = vadd.f32 %v5805, %v5964
        %v5966 = vpop.f32.mrb[0].mxu0
        %5967 = vmatprep.mubr.bf16.mxu0 0
        %5968 = vmatmul.mubr.bf16.gmra.mrb[0].mxu0 %v3244
        %v5969 = vpop.f32.mrb[0].mxu0
        %v5970 = vadd.f32 %v5805, %v5969
        %v5971 = vpop.f32.mrb[0].mxu0
        %v5972 = vpop.f32.mrb[0].mxu0
        %v5973 = vadd.f32 %v5805, %v5972
        %v5974 = vpop.f32.mrb[0].mxu0
        %5975 = vmatprep.mubr.bf16.mxu0 0
        %5976 = vmatmul.mubr.bf16.gmra.mrb[0].mxu0 %v3245
        %v5977 = vpop.f32.mrb[0].mxu0
        %v5978 = vadd.f32 %v5805, %v5977
        %v5979 = vpop.f32.mrb[0].mxu0
        %v5980 = vpop.f32.mrb[0].mxu0
        %v5981 = vadd.f32 %v5805, %v5980
        %v5982 = vpop.f32.mrb[0].mxu0
        %5983 = vmatprep.mubr.bf16.mxu0 0
        %5984 = vmatmul.mubr.bf16.gmra.mrb[0].mxu0 %v3246
        %v5985 = vpop.f32.mrb[0].mxu0
        %v5986 = vadd.f32 %v5805, %v5985
        %v5987 = vpop.f32.mrb[0].mxu0
        %v5988 = vpop.f32.mrb[0].mxu0
        %v5989 = vadd.f32 %v5805, %v5988
        %v5990 = vpop.f32.mrb[0].mxu0
        %5991 = vmatprep.mubr.bf16.mxu0 0
        %5992 = vmatmul.mubr.bf16.gmra.mrb[0].mxu0 %v3247
        %v5993 = vpop.f32.mrb[0].mxu0
        %v5994 = vadd.f32 %v5805, %v5993
        %v5995 = vpop.f32.mrb[0].mxu0
        %v5996 = vpop.f32.mrb[0].mxu0
        %v5997 = vadd.f32 %v5805, %v5996
        %v5998 = vpop.f32.mrb[0].mxu0
        %5999 = vmatprep.mubr.bf16.mxu0 0
        %6000 = vmatmul.mubr.bf16.gmra.mrb[0].mxu0 %v3248
        %v6001 = vpop.f32.mrb[0].mxu0
        %v6002 = vadd.f32 %v5805, %v6001
        %v6003 = vpop.f32.mrb[0].mxu0
        %v6004 = vpop.f32.mrb[0].mxu0
        %v6005 = vadd.f32 %v5805, %v6004
        %v6006 = vpop.f32.mrb[0].mxu0
        %6007 = vmatprep.mubr.bf16.mxu0 0
        %6008 = vmatmul.mubr.bf16.gmra.mrb[0].mxu0 %v3249
        %v6009 = vpop.f32.mrb[0].mxu0
        %v6010 = vadd.f32 %v5805, %v6009
        %v6011 = vpop.f32.mrb[0].mxu0
        %v6012 = vpop.f32.mrb[0].mxu0
        %v6013 = vadd.f32 %v5805, %v6012
        %v6014 = vpop.f32.mrb[0].mxu0
        %6015 = vdwg.mxu0
        %v6016 = vxor.u32 %v5890, 2147483648
        %v6017 = vxor.u32 %v5893, 2147483648
        %v6018 = vxor.u32 %v5898, 2147483648
        %v6019 = vxor.u32 %v5901, 2147483648
        %v6020 = vxor.u32 %v5906, 2147483648
        %v6021 = vxor.u32 %v5909, 2147483648
        %v6022 = vxor.u32 %v5914, 2147483648
        %v6023 = vxor.u32 %v5917, 2147483648
        %v6024 = vxor.u32 %v5922, 2147483648
        %v6025 = vxor.u32 %v5925, 2147483648
        %v6026 = vxor.u32 %v5930, 2147483648
        %v6027 = vxor.u32 %v5933, 2147483648
        %v6028 = vxor.u32 %v5938, 2147483648
        %v6029 = vxor.u32 %v5941, 2147483648
        %v6030 = vxor.u32 %v5946, 2147483648
        %v6031 = vxor.u32 %v5949, 2147483648
        %v6032 = vxor.u32 %v5954, 2147483648
        %v6033 = vxor.u32 %v5957, 2147483648
        %v6034 = vxor.u32 %v5962, 2147483648
        %v6035 = vxor.u32 %v5965, 2147483648
        %v6036 = vxor.u32 %v5970, 2147483648
        %v6037 = vxor.u32 %v5973, 2147483648
        %v6038 = vxor.u32 %v5978, 2147483648
        %v6039 = vxor.u32 %v5981, 2147483648
        %v6040 = vxor.u32 %v5986, 2147483648
        %v6041 = vxor.u32 %v5989, 2147483648
        %v6042 = vxor.u32 %v5994, 2147483648
        %v6043 = vxor.u32 %v5997, 2147483648
        %v6044 = vxor.u32 %v6002, 2147483648
        %v6045 = vxor.u32 %v6005, 2147483648
        %v6046 = vxor.u32 %v6010, 2147483648
        %v6047 = vxor.u32 %v6013, 2147483648
        %v6048 = vmul.f32 %v6016, 1.442695
        %v6049 = vpow.pop %v6048
        %v6050 = vmul.f32 %v6017, 1.442695
        %v6051 = vpow.pop %v6050
        %v6052 = vmul.f32 %v6018, 1.442695
        %v6053 = vpow.pop %v6052
        %v6054 = vmul.f32 %v6019, 1.442695
        %v6055 = vpow.pop %v6054
        %v6056 = vmul.f32 %v6020, 1.442695
        %v6057 = vpow.pop %v6056
        %v6058 = vmul.f32 %v6021, 1.442695
        %v6059 = vpow.pop %v6058
        %v6060 = vmul.f32 %v6022, 1.442695
        %v6061 = vpow.pop %v6060
        %v6062 = vmul.f32 %v6023, 1.442695
        %v6063 = vpow.pop %v6062
        %v6064 = vmul.f32 %v6024, 1.442695
        %v6065 = vpow.pop %v6064
        %v6066 = vmul.f32 %v6025, 1.442695
        %v6067 = vpow.pop %v6066
        %v6068 = vmul.f32 %v6026, 1.442695
        %v6069 = vpow.pop %v6068
        %v6070 = vmul.f32 %v6027, 1.442695
        %v6071 = vpow.pop %v6070
        %v6072 = vmul.f32 %v6028, 1.442695
        %v6073 = vpow.pop %v6072
        %v6074 = vmul.f32 %v6029, 1.442695
        %v6075 = vpow.pop %v6074
        %v6076 = vmul.f32 %v6030, 1.442695
        %v6077 = vpow.pop %v6076
        %v6078 = vmul.f32 %v6031, 1.442695
        %v6079 = vpow.pop %v6078
        %v6080 = vmul.f32 %v6032, 1.442695
        %v6081 = vpow.pop %v6080
        %v6082 = vmul.f32 %v6033, 1.442695
        %v6083 = vpow.pop %v6082
        %v6084 = vmul.f32 %v6034, 1.442695
        %v6085 = vpow.pop %v6084
        %v6086 = vmul.f32 %v6035, 1.442695
        %v6087 = vpow.pop %v6086
        %v6088 = vmul.f32 %v6036, 1.442695
        %v6089 = vpow.pop %v6088
        %v6090 = vmul.f32 %v6037, 1.442695
        %v6091 = vpow.pop %v6090
        %v6092 = vmul.f32 %v6038, 1.442695
        %v6093 = vpow.pop %v6092
        %v6094 = vmul.f32 %v6039, 1.442695
        %v6095 = vpow.pop %v6094
        %v6096 = vmul.f32 %v6040, 1.442695
        %v6097 = vpow.pop %v6096
        %v6098 = vmul.f32 %v6041, 1.442695
        %v6099 = vpow.pop %v6098
        %v6100 = vmul.f32 %v6042, 1.442695
        %v6101 = vpow.pop %v6100
        %v6102 = vmul.f32 %v6043, 1.442695
        %v6103 = vpow.pop %v6102
        %v6104 = vmul.f32 %v6044, 1.442695
        %v6105 = vpow.pop %v6104
        %v6106 = vmul.f32 %v6045, 1.442695
        %v6107 = vpow.pop %v6106
        %v6108 = vmul.f32 %v6046, 1.442695
        %v6109 = vpow.pop %v6108
        %v6110 = vmul.f32 %v6047, 1.442695
        %v6111 = vpow.pop %v6110
        %v6112 = vadd.f32 %v6049, 1.0
        %v6113 = vadd.f32 %v6051, 1.0
        %v6114 = vadd.f32 %v6053, 1.0
        %v6115 = vadd.f32 %v6055, 1.0
        %v6116 = vadd.f32 %v6057, 1.0
        %v6117 = vadd.f32 %v6059, 1.0
        %v6118 = vadd.f32 %v6061, 1.0
        %v6119 = vadd.f32 %v6063, 1.0
        %v6120 = vadd.f32 %v6065, 1.0
        %v6121 = vadd.f32 %v6067, 1.0
        %v6122 = vadd.f32 %v6069, 1.0
        %v6123 = vadd.f32 %v6071, 1.0
        %v6124 = vadd.f32 %v6073, 1.0
        %v6125 = vadd.f32 %v6075, 1.0
        %v6126 = vadd.f32 %v6077, 1.0
        %v6127 = vadd.f32 %v6079, 1.0
        %v6128 = vadd.f32 %v6081, 1.0
        %v6129 = vadd.f32 %v6083, 1.0
        %v6130 = vadd.f32 %v6085, 1.0
        %v6131 = vadd.f32 %v6087, 1.0
        %v6132 = vadd.f32 %v6089, 1.0
        %v6133 = vadd.f32 %v6091, 1.0
        %v6134 = vadd.f32 %v6093, 1.0
        %v6135 = vadd.f32 %v6095, 1.0
        %v6136 = vadd.f32 %v6097, 1.0
        %v6137 = vadd.f32 %v6099, 1.0
        %v6138 = vadd.f32 %v6101, 1.0
        %v6139 = vadd.f32 %v6103, 1.0
        %v6140 = vadd.f32 %v6105, 1.0
        %v6141 = vadd.f32 %v6107, 1.0
        %v6142 = vadd.f32 %v6109, 1.0
        %v6143 = vadd.f32 %v6111, 1.0
        %v6144 = vrcp.pop %v6112
        %v6145 = vmul.f32 1.0, %v6144
        %v6146 = vrcp.pop %v6113
        %v6147 = vmul.f32 1.0, %v6146
        %v6148 = vrcp.pop %v6114
        %v6149 = vmul.f32 1.0, %v6148
        %v6150 = vrcp.pop %v6115
        %v6151 = vmul.f32 1.0, %v6150
        %v6152 = vrcp.pop %v6116
        %v6153 = vmul.f32 1.0, %v6152
        %v6154 = vrcp.pop %v6117
        %v6155 = vmul.f32 1.0, %v6154
        %v6156 = vrcp.pop %v6118
        %v6157 = vmul.f32 1.0, %v6156
        %v6158 = vrcp.pop %v6119
        %v6159 = vmul.f32 1.0, %v6158
        %v6160 = vrcp.pop %v6120
        %v6161 = vmul.f32 1.0, %v6160
        %v6162 = vrcp.pop %v6121
        %v6163 = vmul.f32 1.0, %v6162
        %v6164 = vrcp.pop %v6122
        %v6165 = vmul.f32 1.0, %v6164
        %v6166 = vrcp.pop %v6123
        %v6167 = vmul.f32 1.0, %v6166
        %v6168 = vrcp.pop %v6124
        %v6169 = vmul.f32 1.0, %v6168
        %v6170 = vrcp.pop %v6125
        %v6171 = vmul.f32 1.0, %v6170
        %v6172 = vrcp.pop %v6126
        %v6173 = vmul.f32 1.0, %v6172
        %v6174 = vrcp.pop %v6127
        %v6175 = vmul.f32 1.0, %v6174
        %v6176 = vrcp.pop %v6128
        %v6177 = vmul.f32 1.0, %v6176
        %v6178 = vrcp.pop %v6129
        %v6179 = vmul.f32 1.0, %v6178
        %v6180 = vrcp.pop %v6130
        %v6181 = vmul.f32 1.0, %v6180
        %v6182 = vrcp.pop %v6131
        %v6183 = vmul.f32 1.0, %v6182
        %v6184 = vrcp.pop %v6132
        %v6185 = vmul.f32 1.0, %v6184
        %v6186 = vrcp.pop %v6133
        %v6187 = vmul.f32 1.0, %v6186
        %v6188 = vrcp.pop %v6134
        %v6189 = vmul.f32 1.0, %v6188
        %v6190 = vrcp.pop %v6135
        %v6191 = vmul.f32 1.0, %v6190
        %v6192 = vrcp.pop %v6136
        %v6193 = vmul.f32 1.0, %v6192
        %v6194 = vrcp.pop %v6137
        %v6195 = vmul.f32 1.0, %v6194
        %v6196 = vrcp.pop %v6138
        %v6197 = vmul.f32 1.0, %v6196
        %v6198 = vrcp.pop %v6139
        %v6199 = vmul.f32 1.0, %v6198
        %v6200 = vrcp.pop %v6140
        %v6201 = vmul.f32 1.0, %v6200
        %v6202 = vrcp.pop %v6141
        %v6203 = vmul.f32 1.0, %v6202
        %v6204 = vrcp.pop %v6142
        %v6205 = vmul.f32 1.0, %v6204
        %v6206 = vrcp.pop %v6143
        %v6207 = vmul.f32 1.0, %v6206
        %v6208 = vmul.f32 %v5890, %v6145
        %v6209 = vmul.f32 %v5893, %v6147
        %v6210 = vmul.f32 %v5898, %v6149
        %v6211 = vmul.f32 %v5901, %v6151
        %v6212 = vmul.f32 %v5906, %v6153
        %v6213 = vmul.f32 %v5909, %v6155
        %v6214 = vmul.f32 %v5914, %v6157
        %v6215 = vmul.f32 %v5917, %v6159
        %v6216 = vmul.f32 %v5922, %v6161
        %v6217 = vmul.f32 %v5925, %v6163
        %v6218 = vmul.f32 %v5930, %v6165
        %v6219 = vmul.f32 %v5933, %v6167
        %v6220 = vmul.f32 %v5938, %v6169
        %v6221 = vmul.f32 %v5941, %v6171
        %v6222 = vmul.f32 %v5946, %v6173
        %v6223 = vmul.f32 %v5949, %v6175
        %v6224 = vmul.f32 %v5954, %v6177
        %v6225 = vmul.f32 %v5957, %v6179
        %v6226 = vmul.f32 %v5962, %v6181
        %v6227 = vmul.f32 %v5965, %v6183
        %v6228 = vmul.f32 %v5970, %v6185
        %v6229 = vmul.f32 %v5973, %v6187
        %v6230 = vmul.f32 %v5978, %v6189
        %v6231 = vmul.f32 %v5981, %v6191
        %v6232 = vmul.f32 %v5986, %v6193
        %v6233 = vmul.f32 %v5989, %v6195
        %v6234 = vmul.f32 %v5994, %v6197
        %v6235 = vmul.f32 %v5997, %v6199
        %v6236 = vmul.f32 %v6002, %v6201
        %v6237 = vmul.f32 %v6005, %v6203
        %v6238 = vmul.f32 %v6010, %v6205
        %v6239 = vmul.f32 %v6013, %v6207
        %v6240 = vadd.f32 %v6208, %v6209
        %v6241 = vadd.f32 %v6240, %v6210
        %v6242 = vadd.f32 %v6241, %v6211
        %v6243 = vadd.f32 %v6242, %v6212
        %v6244 = vadd.f32 %v6243, %v6213
        %v6245 = vadd.f32 %v6244, %v6214
        %v6246 = vadd.f32 %v6245, %v6215
        %v6247 = vrot.slane %v6246, 4
        %v6248 = vadd.f32 %v6246, %v6247
        %v6249 = vrot.slane %v6248, 2
        %v6250 = vadd.f32 %v6248, %v6249
        %v6251 = vrot.slane %v6250, 1
        %v6252 = vadd.f32 %v6250, %v6251
        %v6253 = vadd.f32 %v6216, %v6217
        %v6254 = vadd.f32 %v6253, %v6218
        %v6255 = vadd.f32 %v6254, %v6219
        %v6256 = vadd.f32 %v6255, %v6220
        %v6257 = vadd.f32 %v6256, %v6221
        %v6258 = vadd.f32 %v6257, %v6222
        %v6259 = vadd.f32 %v6258, %v6223
        %v6260 = vrot.slane %v6259, 4
        %v6261 = vadd.f32 %v6259, %v6260
        %v6262 = vrot.slane %v6261, 2
        %v6263 = vadd.f32 %v6261, %v6262
        %v6264 = vrot.slane %v6263, 1
        %v6265 = vadd.f32 %v6263, %v6264
        %v6266 = vadd.f32 %v6224, %v6225
        %v6267 = vadd.f32 %v6266, %v6226
        %v6268 = vadd.f32 %v6267, %v6227
        %v6269 = vadd.f32 %v6268, %v6228
        %v6270 = vadd.f32 %v6269, %v6229
        %v6271 = vadd.f32 %v6270, %v6230
        %v6272 = vadd.f32 %v6271, %v6231
        %v6273 = vrot.slane %v6272, 4
        %v6274 = vadd.f32 %v6272, %v6273
        %v6275 = vrot.slane %v6274, 2
        %v6276 = vadd.f32 %v6274, %v6275
        %v6277 = vrot.slane %v6276, 1
        %v6278 = vadd.f32 %v6276, %v6277
        %v6279 = vadd.f32 %v6232, %v6233
        %v6280 = vadd.f32 %v6279, %v6234
        %v6281 = vadd.f32 %v6280, %v6235
        %v6282 = vadd.f32 %v6281, %v6236
        %v6283 = vadd.f32 %v6282, %v6237
        %v6284 = vadd.f32 %v6283, %v6238
        %v6285 = vadd.f32 %v6284, %v6239
        %v6286 = vrot.slane %v6285, 4
        %v6287 = vadd.f32 %v6285, %v6286
        %v6288 = vrot.slane %v6287, 2
        %v6289 = vadd.f32 %v6287, %v6288
        %v6290 = vrot.slane %v6289, 1
        %v6291 = vadd.f32 %v6289, %v6290
        %v6292 = vmul.f32 %v6252, 0.015625
        %v6293 = vmul.f32 %v6265, 0.015625
        %v6294 = vmul.f32 %v6278, 0.015625
        %v6295 = vmul.f32 %v6291, 0.015625
        %v6296 = vpack.c.bf16 %v6292, %v6292
        %v6297 = vpack.c.bf16 %v6293, %v6293
        %v6298 = vpack.c.bf16 %v6294, %v6294
        %v6299 = vpack.c.bf16 %v6295, %v6295
        %v6300 = vld [vmem:[%s13 + $0x100] sm:$0xf]
        %v6301 = vld [vmem:[%s13 + $0x104] sm:$0xf]
        %v6302 = vld [vmem:[%s13 + $0x108] sm:$0xf]
        %v6303 = vld [vmem:[%s13 + $0x10c] sm:$0xf]
        %v6304 = vld [vmem:[%s13 + $0x110] sm:$0xf]
        %v6305 = vld [vmem:[%s13 + $0x114] sm:$0xf]
        %v6306 = vld [vmem:[%s13 + $0x118] sm:$0xf]
        %v6307 = vld [vmem:[%s13 + $0x11c] sm:$0xf]
        %v6308 = vld [vmem:[%s13 + $0x120] sm:$0xf]
        %v6309 = vld [vmem:[%s13 + $0x124] sm:$0xf]
        %v6310 = vld [vmem:[%s13 + $0x128] sm:$0xf]
        %v6311 = vld [vmem:[%s13 + $0x12c] sm:$0xf]
        %v6312 = vld [vmem:[%s13 + $0x130] sm:$0xf]
        %v6313 = vld [vmem:[%s13 + $0x134] sm:$0xf]
        %v6314 = vld [vmem:[%s13 + $0x138] sm:$0xf]
        %v6315 = vld [vmem:[%s13 + $0x13c] sm:$0xf]
        %v6320 = vunpack.c.l.b16 %v6296
        %v6321 = vunpack.c.l.b16 %v6297
        %v6322 = vunpack.c.l.b16 %v6298
        %v6323 = vunpack.c.l.b16 %v6299
        %v6324 = vsel %vm2936, %v6321, %v6320
        %v6325 = vsel %vm2938, %v6322, %v6324
        %v6326 = vsel %vm2940, %v6323, %v6325
        %v6327 = vpack.c.b16 %v6326, %v6326
        %v6345 = vunpack.c.l.b16 %v6300
        %v6346 = vunpack.c.l.b16 %v6301
        %v6347 = vunpack.c.l.b16 %v6302
        %v6348 = vunpack.c.l.b16 %v6303
        %v6349 = vunpack.c.l.b16 %v6304
        %v6350 = vunpack.c.l.b16 %v6305
        %v6351 = vunpack.c.l.b16 %v6306
        %v6352 = vunpack.c.l.b16 %v6307
        %v6353 = vunpack.c.l.b16 %v6308
        %v6354 = vunpack.c.l.b16 %v6309
        %v6355 = vunpack.c.l.b16 %v6310
        %v6356 = vunpack.c.l.b16 %v6311
        %v6357 = vunpack.c.l.b16 %v6312
        %v6358 = vunpack.c.l.b16 %v6313
        %v6359 = vunpack.c.l.b16 %v6314
        %v6360 = vunpack.c.l.b16 %v6315
        %v6361 = vpack.c.b16 %v6346, %v6345
        %v6362 = vpack.c.b16 %v6348, %v6347
        %v6363 = vpack.c.b16 %v6350, %v6349
        %v6364 = vpack.c.b16 %v6352, %v6351
        %v6365 = vpack.c.b16 %v6354, %v6353
        %v6366 = vpack.c.b16 %v6356, %v6355
        %v6367 = vpack.c.b16 %v6358, %v6357
        %v6368 = vpack.c.b16 %v6360, %v6359
        %6377 = vmatprep.subr.bf16.mxu0 0
        %6378 = vmatpush1.bf16.msra.mxu0 %v6361
        %6379 = vmatprep.subr.bf16.mxu0 0
        %6380 = vmatpush1.bf16.msra.mxu0 %v6362
        %6381 = vmatprep.subr.bf16.mxu0 0
        %6382 = vmatpush1.bf16.msra.mxu0 %v6363
        %6383 = vmatprep.subr.bf16.mxu0 0
        %6384 = vmatpush1.bf16.msra.mxu0 %v6364
        %6385 = vmatprep.subr.bf16.mxu0 0
        %6386 = vmatpush1.bf16.msra.mxu0 %v6365
        %6387 = vmatprep.subr.bf16.mxu0 0
        %6388 = vmatpush1.bf16.msra.mxu0 %v6366
        %6389 = vmatprep.subr.bf16.mxu0 0
        %6390 = vmatpush1.bf16.msra.mxu0 %v6367
        %6391 = vmatprep.subr.bf16.mxu0 0
        %6392 = vmatpush1.bf16.msra.mxu0 %v6368
        %6393 = vmatprep.subr.bf16.mxu0 0
        %6394 = vmatpush1.bf16.msra.mxu0 0
        %6395 = vmatprep.subr.bf16.mxu0 0
        %6396 = vmatpush1.bf16.msra.mxu0 0
        %6397 = vmatprep.subr.bf16.mxu0 0
        %6398 = vmatpush1.bf16.msra.mxu0 0
        %6399 = vmatprep.subr.bf16.mxu0 0
        %6400 = vmatpush1.bf16.msra.mxu0 0
        %6401 = vmatprep.subr.bf16.mxu0 0
        %6402 = vmatpush1.bf16.msra.mxu0 0
        %6403 = vmatprep.subr.bf16.mxu0 0
        %6404 = vmatpush1.bf16.msra.mxu0 0
        %6405 = vmatprep.subr.bf16.mxu0 0
        %6406 = vmatpush1.bf16.msra.mxu0 0
        %6407 = vmatprep.subr.bf16.mxu0 0
        %6408 = vmatpush1.bf16.msra.mxu0 0
        %6409 = vmatprep.mubr.bf16.mxu0 0
        %6410 = vmatmul.mubr.bf16.gmra.mrb[0].mxu0 %v6327
        %v6411 = vpop.f32.mrb[0].mxu0
        %v6412 = vadd.f32 0.0, %v6411
        %v6413 = vpop.f32.mrb[0].mxu0
        %v6414 = vpop.f32.mrb[0].mxu0
        %v6415 = vpop.f32.mrb[0].mxu0
        %6416 = vdwg.mxu0
        %v6417 = vadd.f32 %v5783, %v6412
        %v6418 = vld [vmem:[%s11 + $0x14] sm:$0xf]
        %v6419 = vld [vmem:[%s11 + $0x3c] sm:$0xf]
        %v6420 = vld [vmem:[%s11 + $0x64] sm:$0xf]
        %v6421 = vld [vmem:[%s11 + $0x8c] sm:$0xf]
        %v6422 = vld [vmem:[%s11 + $0xb4] sm:$0xf]
        %v6423 = vld [vmem:[%s11 + $0xdc] sm:$0xf]
        %v6424 = vld [vmem:[%s11 + $0x104] sm:$0xf]
        %v6425 = vld [vmem:[%s11 + $0x12c] sm:$0xf]
        %v6426 = vld [vmem:[%s11 + $0x154] sm:$0xf]
        %v6427 = vld [vmem:[%s11 + $0x17c] sm:$0xf]
        %v6428 = vld [vmem:[%s11 + $0x1a4] sm:$0xf]
        %v6429 = vld [vmem:[%s11 + $0x1cc] sm:$0xf]
        %v6430 = vld [vmem:[%s11 + $0x1f4] sm:$0xf]
        %v6431 = vld [vmem:[%s11 + $0x21c] sm:$0xf]
        %v6432 = vld [vmem:[%s11 + $0x244] sm:$0xf]
        %v6433 = vld [vmem:[%s11 + $0x26c] sm:$0xf]
        %v6434 = vld [vmem:[%s12 + $0x5] sm:$0x1]
        %v6436 = vlaneseq
        %v6437 = vshrl.u32 %v6436, 7
        %v6438 = vsub.s32 0, %v6437
        %v6439 = vrot.slane %v6434, %v6438
        %v6457 = vunpack.c.l.b16 %v6418
        %v6458 = vunpack.c.l.b16 %v6419
        %v6459 = vunpack.c.l.b16 %v6420
        %v6460 = vunpack.c.l.b16 %v6421
        %v6461 = vunpack.c.l.b16 %v6422
        %v6462 = vunpack.c.l.b16 %v6423
        %v6463 = vunpack.c.l.b16 %v6424
        %v6464 = vunpack.c.l.b16 %v6425
        %v6465 = vunpack.c.l.b16 %v6426
        %v6466 = vunpack.c.l.b16 %v6427
        %v6467 = vunpack.c.l.b16 %v6428
        %v6468 = vunpack.c.l.b16 %v6429
        %v6469 = vunpack.c.l.b16 %v6430
        %v6470 = vunpack.c.l.b16 %v6431
        %v6471 = vunpack.c.l.b16 %v6432
        %v6472 = vunpack.c.l.b16 %v6433
        %v6473 = vpack.c.b16 %v6458, %v6457
        %v6474 = vpack.c.b16 %v6460, %v6459
        %v6475 = vpack.c.b16 %v6462, %v6461
        %v6476 = vpack.c.b16 %v6464, %v6463
        %v6477 = vpack.c.b16 %v6466, %v6465
        %v6478 = vpack.c.b16 %v6468, %v6467
        %v6479 = vpack.c.b16 %v6470, %v6469
        %v6480 = vpack.c.b16 %v6472, %v6471
        %6489 = vmatprep.subr.bf16.mxu0 0
        %6490 = vmatpush1.bf16.msra.mxu0 %v6473
        %6491 = vmatprep.subr.bf16.mxu0 0
        %6492 = vmatpush1.bf16.msra.mxu0 %v6474
        %6493 = vmatprep.subr.bf16.mxu0 0
        %6494 = vmatpush1.bf16.msra.mxu0 %v6475
        %6495 = vmatprep.subr.bf16.mxu0 0
        %6496 = vmatpush1.bf16.msra.mxu0 %v6476
        %6497 = vmatprep.subr.bf16.mxu0 0
        %6498 = vmatpush1.bf16.msra.mxu0 %v6477
        %6499 = vmatprep.subr.bf16.mxu0 0
        %6500 = vmatpush1.bf16.msra.mxu0 %v6478
        %6501 = vmatprep.subr.bf16.mxu0 0
        %6502 = vmatpush1.bf16.msra.mxu0 %v6479
        %6503 = vmatprep.subr.bf16.mxu0 0
        %6504 = vmatpush1.bf16.msra.mxu0 %v6480
        %6505 = vmatprep.subr.bf16.mxu0 0
        %6506 = vmatpush1.bf16.msra.mxu0 0
        %6507 = vmatprep.subr.bf16.mxu0 0
        %6508 = vmatpush1.bf16.msra.mxu0 0
        %6509 = vmatprep.subr.bf16.mxu0 0
        %6510 = vmatpush1.bf16.msra.mxu0 0
        %6511 = vmatprep.subr.bf16.mxu0 0
        %6512 = vmatpush1.bf16.msra.mxu0 0
        %6513 = vmatprep.subr.bf16.mxu0 0
        %6514 = vmatpush1.bf16.msra.mxu0 0
        %6515 = vmatprep.subr.bf16.mxu0 0
        %6516 = vmatpush1.bf16.msra.mxu0 0
        %6517 = vmatprep.subr.bf16.mxu0 0
        %6518 = vmatpush1.bf16.msra.mxu0 0
        %6519 = vmatprep.subr.bf16.mxu0 0
        %6520 = vmatpush1.bf16.msra.mxu0 0
        %6521 = vmatprep.mubr.bf16.mxu0 0
        %6522 = vmatmul.mubr.bf16.gmra.mrb[0].mxu0 %v3234
        %v6523 = vpop.f32.mrb[0].mxu0
        %v6524 = vadd.f32 %v6439, %v6523
        %v6525 = vpop.f32.mrb[0].mxu0
        %v6526 = vpop.f32.mrb[0].mxu0
        %v6527 = vadd.f32 %v6439, %v6526
        %v6528 = vpop.f32.mrb[0].mxu0
        %6529 = vmatprep.mubr.bf16.mxu0 0
        %6530 = vmatmul.mubr.bf16.gmra.mrb[0].mxu0 %v3235
        %v6531 = vpop.f32.mrb[0].mxu0
        %v6532 = vadd.f32 %v6439, %v6531
        %v6533 = vpop.f32.mrb[0].mxu0
        %v6534 = vpop.f32.mrb[0].mxu0
        %v6535 = vadd.f32 %v6439, %v6534
        %v6536 = vpop.f32.mrb[0].mxu0
        %6537 = vmatprep.mubr.bf16.mxu0 0
        %6538 = vmatmul.mubr.bf16.gmra.mrb[0].mxu0 %v3236
        %v6539 = vpop.f32.mrb[0].mxu0
        %v6540 = vadd.f32 %v6439, %v6539
        %v6541 = vpop.f32.mrb[0].mxu0
        %v6542 = vpop.f32.mrb[0].mxu0
        %v6543 = vadd.f32 %v6439, %v6542
        %v6544 = vpop.f32.mrb[0].mxu0
        %6545 = vmatprep.mubr.bf16.mxu0 0
        %6546 = vmatmul.mubr.bf16.gmra.mrb[0].mxu0 %v3237
        %v6547 = vpop.f32.mrb[0].mxu0
        %v6548 = vadd.f32 %v6439, %v6547
        %v6549 = vpop.f32.mrb[0].mxu0
        %v6550 = vpop.f32.mrb[0].mxu0
        %v6551 = vadd.f32 %v6439, %v6550
        %v6552 = vpop.f32.mrb[0].mxu0
        %6553 = vmatprep.mubr.bf16.mxu0 0
        %6554 = vmatmul.mubr.bf16.gmra.mrb[0].mxu0 %v3238
        %v6555 = vpop.f32.mrb[0].mxu0
        %v6556 = vadd.f32 %v6439, %v6555
        %v6557 = vpop.f32.mrb[0].mxu0
        %v6558 = vpop.f32.mrb[0].mxu0
        %v6559 = vadd.f32 %v6439, %v6558
        %v6560 = vpop.f32.mrb[0].mxu0
        %6561 = vmatprep.mubr.bf16.mxu0 0
        %6562 = vmatmul.mubr.bf16.gmra.mrb[0].mxu0 %v3239
        %v6563 = vpop.f32.mrb[0].mxu0
        %v6564 = vadd.f32 %v6439, %v6563
        %v6565 = vpop.f32.mrb[0].mxu0
        %v6566 = vpop.f32.mrb[0].mxu0
        %v6567 = vadd.f32 %v6439, %v6566
        %v6568 = vpop.f32.mrb[0].mxu0
        %6569 = vmatprep.mubr.bf16.mxu0 0
        %6570 = vmatmul.mubr.bf16.gmra.mrb[0].mxu0 %v3240
        %v6571 = vpop.f32.mrb[0].mxu0
        %v6572 = vadd.f32 %v6439, %v6571
        %v6573 = vpop.f32.mrb[0].mxu0
        %v6574 = vpop.f32.mrb[0].mxu0
        %v6575 = vadd.f32 %v6439, %v6574
        %v6576 = vpop.f32.mrb[0].mxu0
        %6577 = vmatprep.mubr.bf16.mxu0 0
        %6578 = vmatmul.mubr.bf16.gmra.mrb[0].mxu0 %v3241
        %v6579 = vpop.f32.mrb[0].mxu0
        %v6580 = vadd.f32 %v6439, %v6579
        %v6581 = vpop.f32.mrb[0].mxu0
        %v6582 = vpop.f32.mrb[0].mxu0
        %v6583 = vadd.f32 %v6439, %v6582
        %v6584 = vpop.f32.mrb[0].mxu0
        %6585 = vmatprep.mubr.bf16.mxu0 0
        %6586 = vmatmul.mubr.bf16.gmra.mrb[0].mxu0 %v3242
        %v6587 = vpop.f32.mrb[0].mxu0
        %v6588 = vadd.f32 %v6439, %v6587
        %v6589 = vpop.f32.mrb[0].mxu0
        %v6590 = vpop.f32.mrb[0].mxu0
        %v6591 = vadd.f32 %v6439, %v6590
        %v6592 = vpop.f32.mrb[0].mxu0
        %6593 = vmatprep.mubr.bf16.mxu0 0
        %6594 = vmatmul.mubr.bf16.gmra.mrb[0].mxu0 %v3243
        %v6595 = vpop.f32.mrb[0].mxu0
        %v6596 = vadd.f32 %v6439, %v6595
        %v6597 = vpop.f32.mrb[0].mxu0
        %v6598 = vpop.f32.mrb[0].mxu0
        %v6599 = vadd.f32 %v6439, %v6598
        %v6600 = vpop.f32.mrb[0].mxu0
        %6601 = vmatprep.mubr.bf16.mxu0 0
        %6602 = vmatmul.mubr.bf16.gmra.mrb[0].mxu0 %v3244
        %v6603 = vpop.f32.mrb[0].mxu0
        %v6604 = vadd.f32 %v6439, %v6603
        %v6605 = vpop.f32.mrb[0].mxu0
        %v6606 = vpop.f32.mrb[0].mxu0
        %v6607 = vadd.f32 %v6439, %v6606
        %v6608 = vpop.f32.mrb[0].mxu0
        %6609 = vmatprep.mubr.bf16.mxu0 0
        %6610 = vmatmul.mubr.bf16.gmra.mrb[0].mxu0 %v3245
        %v6611 = vpop.f32.mrb[0].mxu0
        %v6612 = vadd.f32 %v6439, %v6611
        %v6613 = vpop.f32.mrb[0].mxu0
        %v6614 = vpop.f32.mrb[0].mxu0
        %v6615 = vadd.f32 %v6439, %v6614
        %v6616 = vpop.f32.mrb[0].mxu0
        %6617 = vmatprep.mubr.bf16.mxu0 0
        %6618 = vmatmul.mubr.bf16.gmra.mrb[0].mxu0 %v3246
        %v6619 = vpop.f32.mrb[0].mxu0
        %v6620 = vadd.f32 %v6439, %v6619
        %v6621 = vpop.f32.mrb[0].mxu0
        %v6622 = vpop.f32.mrb[0].mxu0
        %v6623 = vadd.f32 %v6439, %v6622
        %v6624 = vpop.f32.mrb[0].mxu0
        %6625 = vmatprep.mubr.bf16.mxu0 0
        %6626 = vmatmul.mubr.bf16.gmra.mrb[0].mxu0 %v3247
        %v6627 = vpop.f32.mrb[0].mxu0
        %v6628 = vadd.f32 %v6439, %v6627
        %v6629 = vpop.f32.mrb[0].mxu0
        %v6630 = vpop.f32.mrb[0].mxu0
        %v6631 = vadd.f32 %v6439, %v6630
        %v6632 = vpop.f32.mrb[0].mxu0
        %6633 = vmatprep.mubr.bf16.mxu0 0
        %6634 = vmatmul.mubr.bf16.gmra.mrb[0].mxu0 %v3248
        %v6635 = vpop.f32.mrb[0].mxu0
        %v6636 = vadd.f32 %v6439, %v6635
        %v6637 = vpop.f32.mrb[0].mxu0
        %v6638 = vpop.f32.mrb[0].mxu0
        %v6639 = vadd.f32 %v6439, %v6638
        %v6640 = vpop.f32.mrb[0].mxu0
        %6641 = vmatprep.mubr.bf16.mxu0 0
        %6642 = vmatmul.mubr.bf16.gmra.mrb[0].mxu0 %v3249
        %v6643 = vpop.f32.mrb[0].mxu0
        %v6644 = vadd.f32 %v6439, %v6643
        %v6645 = vpop.f32.mrb[0].mxu0
        %v6646 = vpop.f32.mrb[0].mxu0
        %v6647 = vadd.f32 %v6439, %v6646
        %v6648 = vpop.f32.mrb[0].mxu0
        %6649 = vdwg.mxu0
        %v6650 = vxor.u32 %v6524, 2147483648
        %v6651 = vxor.u32 %v6527, 2147483648
        %v6652 = vxor.u32 %v6532, 2147483648
        %v6653 = vxor.u32 %v6535, 2147483648
        %v6654 = vxor.u32 %v6540, 2147483648
        %v6655 = vxor.u32 %v6543, 2147483648
        %v6656 = vxor.u32 %v6548, 2147483648
        %v6657 = vxor.u32 %v6551, 2147483648
        %v6658 = vxor.u32 %v6556, 2147483648
        %v6659 = vxor.u32 %v6559, 2147483648
        %v6660 = vxor.u32 %v6564, 2147483648
        %v6661 = vxor.u32 %v6567, 2147483648
        %v6662 = vxor.u32 %v6572, 2147483648
        %v6663 = vxor.u32 %v6575, 2147483648
        %v6664 = vxor.u32 %v6580, 2147483648
        %v6665 = vxor.u32 %v6583, 2147483648
        %v6666 = vxor.u32 %v6588, 2147483648
        %v6667 = vxor.u32 %v6591, 2147483648
        %v6668 = vxor.u32 %v6596, 2147483648
        %v6669 = vxor.u32 %v6599, 2147483648
        %v6670 = vxor.u32 %v6604, 2147483648
        %v6671 = vxor.u32 %v6607, 2147483648
        %v6672 = vxor.u32 %v6612, 2147483648
        %v6673 = vxor.u32 %v6615, 2147483648
        %v6674 = vxor.u32 %v6620, 2147483648
        %v6675 = vxor.u32 %v6623, 2147483648
        %v6676 = vxor.u32 %v6628, 2147483648
        %v6677 = vxor.u32 %v6631, 2147483648
        %v6678 = vxor.u32 %v6636, 2147483648
        %v6679 = vxor.u32 %v6639, 2147483648
        %v6680 = vxor.u32 %v6644, 2147483648
        %v6681 = vxor.u32 %v6647, 2147483648
        %v6682 = vmul.f32 %v6650, 1.442695
        %v6683 = vpow.pop %v6682
        %v6684 = vmul.f32 %v6651, 1.442695
        %v6685 = vpow.pop %v6684
        %v6686 = vmul.f32 %v6652, 1.442695
        %v6687 = vpow.pop %v6686
        %v6688 = vmul.f32 %v6653, 1.442695
        %v6689 = vpow.pop %v6688
        %v6690 = vmul.f32 %v6654, 1.442695
        %v6691 = vpow.pop %v6690
        %v6692 = vmul.f32 %v6655, 1.442695
        %v6693 = vpow.pop %v6692
        %v6694 = vmul.f32 %v6656, 1.442695
        %v6695 = vpow.pop %v6694
        %v6696 = vmul.f32 %v6657, 1.442695
        %v6697 = vpow.pop %v6696
        %v6698 = vmul.f32 %v6658, 1.442695
        %v6699 = vpow.pop %v6698
        %v6700 = vmul.f32 %v6659, 1.442695
        %v6701 = vpow.pop %v6700
        %v6702 = vmul.f32 %v6660, 1.442695
        %v6703 = vpow.pop %v6702
        %v6704 = vmul.f32 %v6661, 1.442695
        %v6705 = vpow.pop %v6704
        %v6706 = vmul.f32 %v6662, 1.442695
        %v6707 = vpow.pop %v6706
        %v6708 = vmul.f32 %v6663, 1.442695
        %v6709 = vpow.pop %v6708
        %v6710 = vmul.f32 %v6664, 1.442695
        %v6711 = vpow.pop %v6710
        %v6712 = vmul.f32 %v6665, 1.442695
        %v6713 = vpow.pop %v6712
        %v6714 = vmul.f32 %v6666, 1.442695
        %v6715 = vpow.pop %v6714
        %v6716 = vmul.f32 %v6667, 1.442695
        %v6717 = vpow.pop %v6716
        %v6718 = vmul.f32 %v6668, 1.442695
        %v6719 = vpow.pop %v6718
        %v6720 = vmul.f32 %v6669, 1.442695
        %v6721 = vpow.pop %v6720
        %v6722 = vmul.f32 %v6670, 1.442695
        %v6723 = vpow.pop %v6722
        %v6724 = vmul.f32 %v6671, 1.442695
        %v6725 = vpow.pop %v6724
        %v6726 = vmul.f32 %v6672, 1.442695
        %v6727 = vpow.pop %v6726
        %v6728 = vmul.f32 %v6673, 1.442695
        %v6729 = vpow.pop %v6728
        %v6730 = vmul.f32 %v6674, 1.442695
        %v6731 = vpow.pop %v6730
        %v6732 = vmul.f32 %v6675, 1.442695
        %v6733 = vpow.pop %v6732
        %v6734 = vmul.f32 %v6676, 1.442695
        %v6735 = vpow.pop %v6734
        %v6736 = vmul.f32 %v6677, 1.442695
        %v6737 = vpow.pop %v6736
        %v6738 = vmul.f32 %v6678, 1.442695
        %v6739 = vpow.pop %v6738
        %v6740 = vmul.f32 %v6679, 1.442695
        %v6741 = vpow.pop %v6740
        %v6742 = vmul.f32 %v6680, 1.442695
        %v6743 = vpow.pop %v6742
        %v6744 = vmul.f32 %v6681, 1.442695
        %v6745 = vpow.pop %v6744
        %v6746 = vadd.f32 %v6683, 1.0
        %v6747 = vadd.f32 %v6685, 1.0
        %v6748 = vadd.f32 %v6687, 1.0
        %v6749 = vadd.f32 %v6689, 1.0
        %v6750 = vadd.f32 %v6691, 1.0
        %v6751 = vadd.f32 %v6693, 1.0
        %v6752 = vadd.f32 %v6695, 1.0
        %v6753 = vadd.f32 %v6697, 1.0
        %v6754 = vadd.f32 %v6699, 1.0
        %v6755 = vadd.f32 %v6701, 1.0
        %v6756 = vadd.f32 %v6703, 1.0
        %v6757 = vadd.f32 %v6705, 1.0
        %v6758 = vadd.f32 %v6707, 1.0
        %v6759 = vadd.f32 %v6709, 1.0
        %v6760 = vadd.f32 %v6711, 1.0
        %v6761 = vadd.f32 %v6713, 1.0
        %v6762 = vadd.f32 %v6715, 1.0
        %v6763 = vadd.f32 %v6717, 1.0
        %v6764 = vadd.f32 %v6719, 1.0
        %v6765 = vadd.f32 %v6721, 1.0
        %v6766 = vadd.f32 %v6723, 1.0
        %v6767 = vadd.f32 %v6725, 1.0
        %v6768 = vadd.f32 %v6727, 1.0
        %v6769 = vadd.f32 %v6729, 1.0
        %v6770 = vadd.f32 %v6731, 1.0
        %v6771 = vadd.f32 %v6733, 1.0
        %v6772 = vadd.f32 %v6735, 1.0
        %v6773 = vadd.f32 %v6737, 1.0
        %v6774 = vadd.f32 %v6739, 1.0
        %v6775 = vadd.f32 %v6741, 1.0
        %v6776 = vadd.f32 %v6743, 1.0
        %v6777 = vadd.f32 %v6745, 1.0
        %v6778 = vrcp.pop %v6746
        %v6779 = vmul.f32 1.0, %v6778
        %v6780 = vrcp.pop %v6747
        %v6781 = vmul.f32 1.0, %v6780
        %v6782 = vrcp.pop %v6748
        %v6783 = vmul.f32 1.0, %v6782
        %v6784 = vrcp.pop %v6749
        %v6785 = vmul.f32 1.0, %v6784
        %v6786 = vrcp.pop %v6750
        %v6787 = vmul.f32 1.0, %v6786
        %v6788 = vrcp.pop %v6751
        %v6789 = vmul.f32 1.0, %v6788
        %v6790 = vrcp.pop %v6752
        %v6791 = vmul.f32 1.0, %v6790
        %v6792 = vrcp.pop %v6753
        %v6793 = vmul.f32 1.0, %v6792
        %v6794 = vrcp.pop %v6754
        %v6795 = vmul.f32 1.0, %v6794
        %v6796 = vrcp.pop %v6755
        %v6797 = vmul.f32 1.0, %v6796
        %v6798 = vrcp.pop %v6756
        %v6799 = vmul.f32 1.0, %v6798
        %v6800 = vrcp.pop %v6757
        %v6801 = vmul.f32 1.0, %v6800
        %v6802 = vrcp.pop %v6758
        %v6803 = vmul.f32 1.0, %v6802
        %v6804 = vrcp.pop %v6759
        %v6805 = vmul.f32 1.0, %v6804
        %v6806 = vrcp.pop %v6760
        %v6807 = vmul.f32 1.0, %v6806
        %v6808 = vrcp.pop %v6761
        %v6809 = vmul.f32 1.0, %v6808
        %v6810 = vrcp.pop %v6762
        %v6811 = vmul.f32 1.0, %v6810
        %v6812 = vrcp.pop %v6763
        %v6813 = vmul.f32 1.0, %v6812
        %v6814 = vrcp.pop %v6764
        %v6815 = vmul.f32 1.0, %v6814
        %v6816 = vrcp.pop %v6765
        %v6817 = vmul.f32 1.0, %v6816
        %v6818 = vrcp.pop %v6766
        %v6819 = vmul.f32 1.0, %v6818
        %v6820 = vrcp.pop %v6767
        %v6821 = vmul.f32 1.0, %v6820
        %v6822 = vrcp.pop %v6768
        %v6823 = vmul.f32 1.0, %v6822
        %v6824 = vrcp.pop %v6769
        %v6825 = vmul.f32 1.0, %v6824
        %v6826 = vrcp.pop %v6770
        %v6827 = vmul.f32 1.0, %v6826
        %v6828 = vrcp.pop %v6771
        %v6829 = vmul.f32 1.0, %v6828
        %v6830 = vrcp.pop %v6772
        %v6831 = vmul.f32 1.0, %v6830
        %v6832 = vrcp.pop %v6773
        %v6833 = vmul.f32 1.0, %v6832
        %v6834 = vrcp.pop %v6774
        %v6835 = vmul.f32 1.0, %v6834
        %v6836 = vrcp.pop %v6775
        %v6837 = vmul.f32 1.0, %v6836
        %v6838 = vrcp.pop %v6776
        %v6839 = vmul.f32 1.0, %v6838
        %v6840 = vrcp.pop %v6777
        %v6841 = vmul.f32 1.0, %v6840
        %v6842 = vmul.f32 %v6524, %v6779
        %v6843 = vmul.f32 %v6527, %v6781
        %v6844 = vmul.f32 %v6532, %v6783
        %v6845 = vmul.f32 %v6535, %v6785
        %v6846 = vmul.f32 %v6540, %v6787
        %v6847 = vmul.f32 %v6543, %v6789
        %v6848 = vmul.f32 %v6548, %v6791
        %v6849 = vmul.f32 %v6551, %v6793
        %v6850 = vmul.f32 %v6556, %v6795
        %v6851 = vmul.f32 %v6559, %v6797
        %v6852 = vmul.f32 %v6564, %v6799
        %v6853 = vmul.f32 %v6567, %v6801
        %v6854 = vmul.f32 %v6572, %v6803
        %v6855 = vmul.f32 %v6575, %v6805
        %v6856 = vmul.f32 %v6580, %v6807
        %v6857 = vmul.f32 %v6583, %v6809
        %v6858 = vmul.f32 %v6588, %v6811
        %v6859 = vmul.f32 %v6591, %v6813
        %v6860 = vmul.f32 %v6596, %v6815
        %v6861 = vmul.f32 %v6599, %v6817
        %v6862 = vmul.f32 %v6604, %v6819
        %v6863 = vmul.f32 %v6607, %v6821
        %v6864 = vmul.f32 %v6612, %v6823
        %v6865 = vmul.f32 %v6615, %v6825
        %v6866 = vmul.f32 %v6620, %v6827
        %v6867 = vmul.f32 %v6623, %v6829
        %v6868 = vmul.f32 %v6628, %v6831
        %v6869 = vmul.f32 %v6631, %v6833
        %v6870 = vmul.f32 %v6636, %v6835
        %v6871 = vmul.f32 %v6639, %v6837
        %v6872 = vmul.f32 %v6644, %v6839
        %v6873 = vmul.f32 %v6647, %v6841
        %v6874 = vadd.f32 %v6842, %v6843
        %v6875 = vadd.f32 %v6874, %v6844
        %v6876 = vadd.f32 %v6875, %v6845
        %v6877 = vadd.f32 %v6876, %v6846
        %v6878 = vadd.f32 %v6877, %v6847
        %v6879 = vadd.f32 %v6878, %v6848
        %v6880 = vadd.f32 %v6879, %v6849
        %v6881 = vrot.slane %v6880, 4
        %v6882 = vadd.f32 %v6880, %v6881
        %v6883 = vrot.slane %v6882, 2
        %v6884 = vadd.f32 %v6882, %v6883
        %v6885 = vrot.slane %v6884, 1
        %v6886 = vadd.f32 %v6884, %v6885
        %v6887 = vadd.f32 %v6850, %v6851
        %v6888 = vadd.f32 %v6887, %v6852
        %v6889 = vadd.f32 %v6888, %v6853
        %v6890 = vadd.f32 %v6889, %v6854
        %v6891 = vadd.f32 %v6890, %v6855
        %v6892 = vadd.f32 %v6891, %v6856
        %v6893 = vadd.f32 %v6892, %v6857
        %v6894 = vrot.slane %v6893, 4
        %v6895 = vadd.f32 %v6893, %v6894
        %v6896 = vrot.slane %v6895, 2
        %v6897 = vadd.f32 %v6895, %v6896
        %v6898 = vrot.slane %v6897, 1
        %v6899 = vadd.f32 %v6897, %v6898
        %v6900 = vadd.f32 %v6858, %v6859
        %v6901 = vadd.f32 %v6900, %v6860
        %v6902 = vadd.f32 %v6901, %v6861
        %v6903 = vadd.f32 %v6902, %v6862
        %v6904 = vadd.f32 %v6903, %v6863
        %v6905 = vadd.f32 %v6904, %v6864
        %v6906 = vadd.f32 %v6905, %v6865
        %v6907 = vrot.slane %v6906, 4
        %v6908 = vadd.f32 %v6906, %v6907
        %v6909 = vrot.slane %v6908, 2
        %v6910 = vadd.f32 %v6908, %v6909
        %v6911 = vrot.slane %v6910, 1
        %v6912 = vadd.f32 %v6910, %v6911
        %v6913 = vadd.f32 %v6866, %v6867
        %v6914 = vadd.f32 %v6913, %v6868
        %v6915 = vadd.f32 %v6914, %v6869
        %v6916 = vadd.f32 %v6915, %v6870
        %v6917 = vadd.f32 %v6916, %v6871
        %v6918 = vadd.f32 %v6917, %v6872
        %v6919 = vadd.f32 %v6918, %v6873
        %v6920 = vrot.slane %v6919, 4
        %v6921 = vadd.f32 %v6919, %v6920
        %v6922 = vrot.slane %v6921, 2
        %v6923 = vadd.f32 %v6921, %v6922
        %v6924 = vrot.slane %v6923, 1
        %v6925 = vadd.f32 %v6923, %v6924
        %v6926 = vmul.f32 %v6886, 0.015625
        %v6927 = vmul.f32 %v6899, 0.015625
        %v6928 = vmul.f32 %v6912, 0.015625
        %v6929 = vmul.f32 %v6925, 0.015625
        %v6930 = vpack.c.bf16 %v6926, %v6926
        %v6931 = vpack.c.bf16 %v6927, %v6927
        %v6932 = vpack.c.bf16 %v6928, %v6928
        %v6933 = vpack.c.bf16 %v6929, %v6929
        %v6934 = vld [vmem:[%s13 + $0x140] sm:$0xf]
        %v6935 = vld [vmem:[%s13 + $0x144] sm:$0xf]
        %v6936 = vld [vmem:[%s13 + $0x148] sm:$0xf]
        %v6937 = vld [vmem:[%s13 + $0x14c] sm:$0xf]
        %v6938 = vld [vmem:[%s13 + $0x150] sm:$0xf]
        %v6939 = vld [vmem:[%s13 + $0x154] sm:$0xf]
        %v6940 = vld [vmem:[%s13 + $0x158] sm:$0xf]
        %v6941 = vld [vmem:[%s13 + $0x15c] sm:$0xf]
        %v6942 = vld [vmem:[%s13 + $0x160] sm:$0xf]
        %v6943 = vld [vmem:[%s13 + $0x164] sm:$0xf]
        %v6944 = vld [vmem:[%s13 + $0x168] sm:$0xf]
        %v6945 = vld [vmem:[%s13 + $0x16c] sm:$0xf]
        %v6946 = vld [vmem:[%s13 + $0x170] sm:$0xf]
        %v6947 = vld [vmem:[%s13 + $0x174] sm:$0xf]
        %v6948 = vld [vmem:[%s13 + $0x178] sm:$0xf]
        %v6949 = vld [vmem:[%s13 + $0x17c] sm:$0xf]
        %v6954 = vunpack.c.l.b16 %v6930
        %v6955 = vunpack.c.l.b16 %v6931
        %v6956 = vunpack.c.l.b16 %v6932
        %v6957 = vunpack.c.l.b16 %v6933
        %v6958 = vsel %vm2936, %v6955, %v6954
        %v6959 = vsel %vm2938, %v6956, %v6958
        %v6960 = vsel %vm2940, %v6957, %v6959
        %v6961 = vpack.c.b16 %v6960, %v6960
        %v6979 = vunpack.c.l.b16 %v6934
        %v6980 = vunpack.c.l.b16 %v6935
        %v6981 = vunpack.c.l.b16 %v6936
        %v6982 = vunpack.c.l.b16 %v6937
        %v6983 = vunpack.c.l.b16 %v6938
        %v6984 = vunpack.c.l.b16 %v6939
        %v6985 = vunpack.c.l.b16 %v6940
        %v6986 = vunpack.c.l.b16 %v6941
        %v6987 = vunpack.c.l.b16 %v6942
        %v6988 = vunpack.c.l.b16 %v6943
        %v6989 = vunpack.c.l.b16 %v6944
        %v6990 = vunpack.c.l.b16 %v6945
        %v6991 = vunpack.c.l.b16 %v6946
        %v6992 = vunpack.c.l.b16 %v6947
        %v6993 = vunpack.c.l.b16 %v6948
        %v6994 = vunpack.c.l.b16 %v6949
        %v6995 = vpack.c.b16 %v6980, %v6979
        %v6996 = vpack.c.b16 %v6982, %v6981
        %v6997 = vpack.c.b16 %v6984, %v6983
        %v6998 = vpack.c.b16 %v6986, %v6985
        %v6999 = vpack.c.b16 %v6988, %v6987
        %v7000 = vpack.c.b16 %v6990, %v6989
        %v7001 = vpack.c.b16 %v6992, %v6991
        %v7002 = vpack.c.b16 %v6994, %v6993
        %7011 = vmatprep.subr.bf16.mxu0 0
        %7012 = vmatpush1.bf16.msra.mxu0 %v6995
        %7013 = vmatprep.subr.bf16.mxu0 0
        %7014 = vmatpush1.bf16.msra.mxu0 %v6996
        %7015 = vmatprep.subr.bf16.mxu0 0
        %7016 = vmatpush1.bf16.msra.mxu0 %v6997
        %7017 = vmatprep.subr.bf16.mxu0 0
        %7018 = vmatpush1.bf16.msra.mxu0 %v6998
        %7019 = vmatprep.subr.bf16.mxu0 0
        %7020 = vmatpush1.bf16.msra.mxu0 %v6999
        %7021 = vmatprep.subr.bf16.mxu0 0
        %7022 = vmatpush1.bf16.msra.mxu0 %v7000
        %7023 = vmatprep.subr.bf16.mxu0 0
        %7024 = vmatpush1.bf16.msra.mxu0 %v7001
        %7025 = vmatprep.subr.bf16.mxu0 0
        %7026 = vmatpush1.bf16.msra.mxu0 %v7002
        %7027 = vmatprep.subr.bf16.mxu0 0
        %7028 = vmatpush1.bf16.msra.mxu0 0
        %7029 = vmatprep.subr.bf16.mxu0 0
        %7030 = vmatpush1.bf16.msra.mxu0 0
        %7031 = vmatprep.subr.bf16.mxu0 0
        %7032 = vmatpush1.bf16.msra.mxu0 0
        %7033 = vmatprep.subr.bf16.mxu0 0
        %7034 = vmatpush1.bf16.msra.mxu0 0
        %7035 = vmatprep.subr.bf16.mxu0 0
        %7036 = vmatpush1.bf16.msra.mxu0 0
        %7037 = vmatprep.subr.bf16.mxu0 0
        %7038 = vmatpush1.bf16.msra.mxu0 0
        %7039 = vmatprep.subr.bf16.mxu0 0
        %7040 = vmatpush1.bf16.msra.mxu0 0
        %7041 = vmatprep.subr.bf16.mxu0 0
        %7042 = vmatpush1.bf16.msra.mxu0 0
        %7043 = vmatprep.mubr.bf16.mxu0 0
        %7044 = vmatmul.mubr.bf16.gmra.mrb[0].mxu0 %v6961
        %v7045 = vpop.f32.mrb[0].mxu0
        %v7046 = vadd.f32 0.0, %v7045
        %v7047 = vpop.f32.mrb[0].mxu0
        %v7048 = vpop.f32.mrb[0].mxu0
        %v7049 = vpop.f32.mrb[0].mxu0
        %7050 = vdwg.mxu0
        %v7051 = vadd.f32 %v6417, %v7046
        %v7052 = vld [vmem:[%s11 + $0x18] sm:$0xf]
        %v7053 = vld [vmem:[%s11 + $0x40] sm:$0xf]
        %v7054 = vld [vmem:[%s11 + $0x68] sm:$0xf]
        %v7055 = vld [vmem:[%s11 + $0x90] sm:$0xf]
        %v7056 = vld [vmem:[%s11 + $0xb8] sm:$0xf]
        %v7057 = vld [vmem:[%s11 + $0xe0] sm:$0xf]
        %v7058 = vld [vmem:[%s11 + $0x108] sm:$0xf]
        %v7059 = vld [vmem:[%s11 + $0x130] sm:$0xf]
        %v7060 = vld [vmem:[%s11 + $0x158] sm:$0xf]
        %v7061 = vld [vmem:[%s11 + $0x180] sm:$0xf]
        %v7062 = vld [vmem:[%s11 + $0x1a8] sm:$0xf]
        %v7063 = vld [vmem:[%s11 + $0x1d0] sm:$0xf]
        %v7064 = vld [vmem:[%s11 + $0x1f8] sm:$0xf]
        %v7065 = vld [vmem:[%s11 + $0x220] sm:$0xf]
        %v7066 = vld [vmem:[%s11 + $0x248] sm:$0xf]
        %v7067 = vld [vmem:[%s11 + $0x270] sm:$0xf]
        %v7068 = vld [vmem:[%s12 + $0x6] sm:$0x1]
        %v7070 = vlaneseq
        %v7071 = vshrl.u32 %v7070, 7
        %v7072 = vsub.s32 0, %v7071
        %v7073 = vrot.slane %v7068, %v7072
        %v7091 = vunpack.c.l.b16 %v7052
        %v7092 = vunpack.c.l.b16 %v7053
        %v7093 = vunpack.c.l.b16 %v7054
        %v7094 = vunpack.c.l.b16 %v7055
        %v7095 = vunpack.c.l.b16 %v7056
        %v7096 = vunpack.c.l.b16 %v7057
        %v7097 = vunpack.c.l.b16 %v7058
        %v7098 = vunpack.c.l.b16 %v7059
        %v7099 = vunpack.c.l.b16 %v7060
        %v7100 = vunpack.c.l.b16 %v7061
        %v7101 = vunpack.c.l.b16 %v7062
        %v7102 = vunpack.c.l.b16 %v7063
        %v7103 = vunpack.c.l.b16 %v7064
        %v7104 = vunpack.c.l.b16 %v7065
        %v7105 = vunpack.c.l.b16 %v7066
        %v7106 = vunpack.c.l.b16 %v7067
        %v7107 = vpack.c.b16 %v7092, %v7091
        %v7108 = vpack.c.b16 %v7094, %v7093
        %v7109 = vpack.c.b16 %v7096, %v7095
        %v7110 = vpack.c.b16 %v7098, %v7097
        %v7111 = vpack.c.b16 %v7100, %v7099
        %v7112 = vpack.c.b16 %v7102, %v7101
        %v7113 = vpack.c.b16 %v7104, %v7103
        %v7114 = vpack.c.b16 %v7106, %v7105
        %7123 = vmatprep.subr.bf16.mxu0 0
        %7124 = vmatpush1.bf16.msra.mxu0 %v7107
        %7125 = vmatprep.subr.bf16.mxu0 0
        %7126 = vmatpush1.bf16.msra.mxu0 %v7108
        %7127 = vmatprep.subr.bf16.mxu0 0
        %7128 = vmatpush1.bf16.msra.mxu0 %v7109
        %7129 = vmatprep.subr.bf16.mxu0 0
        %7130 = vmatpush1.bf16.msra.mxu0 %v7110
        %7131 = vmatprep.subr.bf16.mxu0 0
        %7132 = vmatpush1.bf16.msra.mxu0 %v7111
        %7133 = vmatprep.subr.bf16.mxu0 0
        %7134 = vmatpush1.bf16.msra.mxu0 %v7112
        %7135 = vmatprep.subr.bf16.mxu0 0
        %7136 = vmatpush1.bf16.msra.mxu0 %v7113
        %7137 = vmatprep.subr.bf16.mxu0 0
        %7138 = vmatpush1.bf16.msra.mxu0 %v7114
        %7139 = vmatprep.subr.bf16.mxu0 0
        %7140 = vmatpush1.bf16.msra.mxu0 0
        %7141 = vmatprep.subr.bf16.mxu0 0
        %7142 = vmatpush1.bf16.msra.mxu0 0
        %7143 = vmatprep.subr.bf16.mxu0 0
        %7144 = vmatpush1.bf16.msra.mxu0 0
        %7145 = vmatprep.subr.bf16.mxu0 0
        %7146 = vmatpush1.bf16.msra.mxu0 0
        %7147 = vmatprep.subr.bf16.mxu0 0
        %7148 = vmatpush1.bf16.msra.mxu0 0
        %7149 = vmatprep.subr.bf16.mxu0 0
        %7150 = vmatpush1.bf16.msra.mxu0 0
        %7151 = vmatprep.subr.bf16.mxu0 0
        %7152 = vmatpush1.bf16.msra.mxu0 0
        %7153 = vmatprep.subr.bf16.mxu0 0
        %7154 = vmatpush1.bf16.msra.mxu0 0
        %7155 = vmatprep.mubr.bf16.mxu0 0
        %7156 = vmatmul.mubr.bf16.gmra.mrb[0].mxu0 %v3234
        %v7157 = vpop.f32.mrb[0].mxu0
        %v7158 = vadd.f32 %v7073, %v7157
        %v7159 = vpop.f32.mrb[0].mxu0
        %v7160 = vpop.f32.mrb[0].mxu0
        %v7161 = vadd.f32 %v7073, %v7160
        %v7162 = vpop.f32.mrb[0].mxu0
        %7163 = vmatprep.mubr.bf16.mxu0 0
        %7164 = vmatmul.mubr.bf16.gmra.mrb[0].mxu0 %v3235
        %v7165 = vpop.f32.mrb[0].mxu0
        %v7166 = vadd.f32 %v7073, %v7165
        %v7167 = vpop.f32.mrb[0].mxu0
        %v7168 = vpop.f32.mrb[0].mxu0
        %v7169 = vadd.f32 %v7073, %v7168
        %v7170 = vpop.f32.mrb[0].mxu0
        %7171 = vmatprep.mubr.bf16.mxu0 0
        %7172 = vmatmul.mubr.bf16.gmra.mrb[0].mxu0 %v3236
        %v7173 = vpop.f32.mrb[0].mxu0
        %v7174 = vadd.f32 %v7073, %v7173
        %v7175 = vpop.f32.mrb[0].mxu0
        %v7176 = vpop.f32.mrb[0].mxu0
        %v7177 = vadd.f32 %v7073, %v7176
        %v7178 = vpop.f32.mrb[0].mxu0
        %7179 = vmatprep.mubr.bf16.mxu0 0
        %7180 = vmatmul.mubr.bf16.gmra.mrb[0].mxu0 %v3237
        %v7181 = vpop.f32.mrb[0].mxu0
        %v7182 = vadd.f32 %v7073, %v7181
        %v7183 = vpop.f32.mrb[0].mxu0
        %v7184 = vpop.f32.mrb[0].mxu0
        %v7185 = vadd.f32 %v7073, %v7184
        %v7186 = vpop.f32.mrb[0].mxu0
        %7187 = vmatprep.mubr.bf16.mxu0 0
        %7188 = vmatmul.mubr.bf16.gmra.mrb[0].mxu0 %v3238
        %v7189 = vpop.f32.mrb[0].mxu0
        %v7190 = vadd.f32 %v7073, %v7189
        %v7191 = vpop.f32.mrb[0].mxu0
        %v7192 = vpop.f32.mrb[0].mxu0
        %v7193 = vadd.f32 %v7073, %v7192
        %v7194 = vpop.f32.mrb[0].mxu0
        %7195 = vmatprep.mubr.bf16.mxu0 0
        %7196 = vmatmul.mubr.bf16.gmra.mrb[0].mxu0 %v3239
        %v7197 = vpop.f32.mrb[0].mxu0
        %v7198 = vadd.f32 %v7073, %v7197
        %v7199 = vpop.f32.mrb[0].mxu0
        %v7200 = vpop.f32.mrb[0].mxu0
        %v7201 = vadd.f32 %v7073, %v7200
        %v7202 = vpop.f32.mrb[0].mxu0
        %7203 = vmatprep.mubr.bf16.mxu0 0
        %7204 = vmatmul.mubr.bf16.gmra.mrb[0].mxu0 %v3240
        %v7205 = vpop.f32.mrb[0].mxu0
        %v7206 = vadd.f32 %v7073, %v7205
        %v7207 = vpop.f32.mrb[0].mxu0
        %v7208 = vpop.f32.mrb[0].mxu0
        %v7209 = vadd.f32 %v7073, %v7208
        %v7210 = vpop.f32.mrb[0].mxu0
        %7211 = vmatprep.mubr.bf16.mxu0 0
        %7212 = vmatmul.mubr.bf16.gmra.mrb[0].mxu0 %v3241
        %v7213 = vpop.f32.mrb[0].mxu0
        %v7214 = vadd.f32 %v7073, %v7213
        %v7215 = vpop.f32.mrb[0].mxu0
        %v7216 = vpop.f32.mrb[0].mxu0
        %v7217 = vadd.f32 %v7073, %v7216
        %v7218 = vpop.f32.mrb[0].mxu0
        %7219 = vmatprep.mubr.bf16.mxu0 0
        %7220 = vmatmul.mubr.bf16.gmra.mrb[0].mxu0 %v3242
        %v7221 = vpop.f32.mrb[0].mxu0
        %v7222 = vadd.f32 %v7073, %v7221
        %v7223 = vpop.f32.mrb[0].mxu0
        %v7224 = vpop.f32.mrb[0].mxu0
        %v7225 = vadd.f32 %v7073, %v7224
        %v7226 = vpop.f32.mrb[0].mxu0
        %7227 = vmatprep.mubr.bf16.mxu0 0
        %7228 = vmatmul.mubr.bf16.gmra.mrb[0].mxu0 %v3243
        %v7229 = vpop.f32.mrb[0].mxu0
        %v7230 = vadd.f32 %v7073, %v7229
        %v7231 = vpop.f32.mrb[0].mxu0
        %v7232 = vpop.f32.mrb[0].mxu0
        %v7233 = vadd.f32 %v7073, %v7232
        %v7234 = vpop.f32.mrb[0].mxu0
        %7235 = vmatprep.mubr.bf16.mxu0 0
        %7236 = vmatmul.mubr.bf16.gmra.mrb[0].mxu0 %v3244
        %v7237 = vpop.f32.mrb[0].mxu0
        %v7238 = vadd.f32 %v7073, %v7237
        %v7239 = vpop.f32.mrb[0].mxu0
        %v7240 = vpop.f32.mrb[0].mxu0
        %v7241 = vadd.f32 %v7073, %v7240
        %v7242 = vpop.f32.mrb[0].mxu0
        %7243 = vmatprep.mubr.bf16.mxu0 0
        %7244 = vmatmul.mubr.bf16.gmra.mrb[0].mxu0 %v3245
        %v7245 = vpop.f32.mrb[0].mxu0
        %v7246 = vadd.f32 %v7073, %v7245
        %v7247 = vpop.f32.mrb[0].mxu0
        %v7248 = vpop.f32.mrb[0].mxu0
        %v7249 = vadd.f32 %v7073, %v7248
        %v7250 = vpop.f32.mrb[0].mxu0
        %7251 = vmatprep.mubr.bf16.mxu0 0
        %7252 = vmatmul.mubr.bf16.gmra.mrb[0].mxu0 %v3246
        %v7253 = vpop.f32.mrb[0].mxu0
        %v7254 = vadd.f32 %v7073, %v7253
        %v7255 = vpop.f32.mrb[0].mxu0
        %v7256 = vpop.f32.mrb[0].mxu0
        %v7257 = vadd.f32 %v7073, %v7256
        %v7258 = vpop.f32.mrb[0].mxu0
        %7259 = vmatprep.mubr.bf16.mxu0 0
        %7260 = vmatmul.mubr.bf16.gmra.mrb[0].mxu0 %v3247
        %v7261 = vpop.f32.mrb[0].mxu0
        %v7262 = vadd.f32 %v7073, %v7261
        %v7263 = vpop.f32.mrb[0].mxu0
        %v7264 = vpop.f32.mrb[0].mxu0
        %v7265 = vadd.f32 %v7073, %v7264
        %v7266 = vpop.f32.mrb[0].mxu0
        %7267 = vmatprep.mubr.bf16.mxu0 0
        %7268 = vmatmul.mubr.bf16.gmra.mrb[0].mxu0 %v3248
        %v7269 = vpop.f32.mrb[0].mxu0
        %v7270 = vadd.f32 %v7073, %v7269
        %v7271 = vpop.f32.mrb[0].mxu0
        %v7272 = vpop.f32.mrb[0].mxu0
        %v7273 = vadd.f32 %v7073, %v7272
        %v7274 = vpop.f32.mrb[0].mxu0
        %7275 = vmatprep.mubr.bf16.mxu0 0
        %7276 = vmatmul.mubr.bf16.gmra.mrb[0].mxu0 %v3249
        %v7277 = vpop.f32.mrb[0].mxu0
        %v7278 = vadd.f32 %v7073, %v7277
        %v7279 = vpop.f32.mrb[0].mxu0
        %v7280 = vpop.f32.mrb[0].mxu0
        %v7281 = vadd.f32 %v7073, %v7280
        %v7282 = vpop.f32.mrb[0].mxu0
        %7283 = vdwg.mxu0
        %v7284 = vxor.u32 %v7158, 2147483648
        %v7285 = vxor.u32 %v7161, 2147483648
        %v7286 = vxor.u32 %v7166, 2147483648
        %v7287 = vxor.u32 %v7169, 2147483648
        %v7288 = vxor.u32 %v7174, 2147483648
        %v7289 = vxor.u32 %v7177, 2147483648
        %v7290 = vxor.u32 %v7182, 2147483648
        %v7291 = vxor.u32 %v7185, 2147483648
        %v7292 = vxor.u32 %v7190, 2147483648
        %v7293 = vxor.u32 %v7193, 2147483648
        %v7294 = vxor.u32 %v7198, 2147483648
        %v7295 = vxor.u32 %v7201, 2147483648
        %v7296 = vxor.u32 %v7206, 2147483648
        %v7297 = vxor.u32 %v7209, 2147483648
        %v7298 = vxor.u32 %v7214, 2147483648
        %v7299 = vxor.u32 %v7217, 2147483648
        %v7300 = vxor.u32 %v7222, 2147483648
        %v7301 = vxor.u32 %v7225, 2147483648
        %v7302 = vxor.u32 %v7230, 2147483648
        %v7303 = vxor.u32 %v7233, 2147483648
        %v7304 = vxor.u32 %v7238, 2147483648
        %v7305 = vxor.u32 %v7241, 2147483648
        %v7306 = vxor.u32 %v7246, 2147483648
        %v7307 = vxor.u32 %v7249, 2147483648
        %v7308 = vxor.u32 %v7254, 2147483648
        %v7309 = vxor.u32 %v7257, 2147483648
        %v7310 = vxor.u32 %v7262, 2147483648
        %v7311 = vxor.u32 %v7265, 2147483648
        %v7312 = vxor.u32 %v7270, 2147483648
        %v7313 = vxor.u32 %v7273, 2147483648
        %v7314 = vxor.u32 %v7278, 2147483648
        %v7315 = vxor.u32 %v7281, 2147483648
        %v7316 = vmul.f32 %v7284, 1.442695
        %v7317 = vpow.pop %v7316
        %v7318 = vmul.f32 %v7285, 1.442695
        %v7319 = vpow.pop %v7318
        %v7320 = vmul.f32 %v7286, 1.442695
        %v7321 = vpow.pop %v7320
        %v7322 = vmul.f32 %v7287, 1.442695
        %v7323 = vpow.pop %v7322
        %v7324 = vmul.f32 %v7288, 1.442695
        %v7325 = vpow.pop %v7324
        %v7326 = vmul.f32 %v7289, 1.442695
        %v7327 = vpow.pop %v7326
        %v7328 = vmul.f32 %v7290, 1.442695
        %v7329 = vpow.pop %v7328
        %v7330 = vmul.f32 %v7291, 1.442695
        %v7331 = vpow.pop %v7330
        %v7332 = vmul.f32 %v7292, 1.442695
        %v7333 = vpow.pop %v7332
        %v7334 = vmul.f32 %v7293, 1.442695
        %v7335 = vpow.pop %v7334
        %v7336 = vmul.f32 %v7294, 1.442695
        %v7337 = vpow.pop %v7336
        %v7338 = vmul.f32 %v7295, 1.442695
        %v7339 = vpow.pop %v7338
        %v7340 = vmul.f32 %v7296, 1.442695
        %v7341 = vpow.pop %v7340
        %v7342 = vmul.f32 %v7297, 1.442695
        %v7343 = vpow.pop %v7342
        %v7344 = vmul.f32 %v7298, 1.442695
        %v7345 = vpow.pop %v7344
        %v7346 = vmul.f32 %v7299, 1.442695
        %v7347 = vpow.pop %v7346
        %v7348 = vmul.f32 %v7300, 1.442695
        %v7349 = vpow.pop %v7348
        %v7350 = vmul.f32 %v7301, 1.442695
        %v7351 = vpow.pop %v7350
        %v7352 = vmul.f32 %v7302, 1.442695
        %v7353 = vpow.pop %v7352
        %v7354 = vmul.f32 %v7303, 1.442695
        %v7355 = vpow.pop %v7354
        %v7356 = vmul.f32 %v7304, 1.442695
        %v7357 = vpow.pop %v7356
        %v7358 = vmul.f32 %v7305, 1.442695
        %v7359 = vpow.pop %v7358
        %v7360 = vmul.f32 %v7306, 1.442695
        %v7361 = vpow.pop %v7360
        %v7362 = vmul.f32 %v7307, 1.442695
        %v7363 = vpow.pop %v7362
        %v7364 = vmul.f32 %v7308, 1.442695
        %v7365 = vpow.pop %v7364
        %v7366 = vmul.f32 %v7309, 1.442695
        %v7367 = vpow.pop %v7366
        %v7368 = vmul.f32 %v7310, 1.442695
        %v7369 = vpow.pop %v7368
        %v7370 = vmul.f32 %v7311, 1.442695
        %v7371 = vpow.pop %v7370
        %v7372 = vmul.f32 %v7312, 1.442695
        %v7373 = vpow.pop %v7372
        %v7374 = vmul.f32 %v7313, 1.442695
        %v7375 = vpow.pop %v7374
        %v7376 = vmul.f32 %v7314, 1.442695
        %v7377 = vpow.pop %v7376
        %v7378 = vmul.f32 %v7315, 1.442695
        %v7379 = vpow.pop %v7378
        %v7380 = vadd.f32 %v7317, 1.0
        %v7381 = vadd.f32 %v7319, 1.0
        %v7382 = vadd.f32 %v7321, 1.0
        %v7383 = vadd.f32 %v7323, 1.0
        %v7384 = vadd.f32 %v7325, 1.0
        %v7385 = vadd.f32 %v7327, 1.0
        %v7386 = vadd.f32 %v7329, 1.0
        %v7387 = vadd.f32 %v7331, 1.0
        %v7388 = vadd.f32 %v7333, 1.0
        %v7389 = vadd.f32 %v7335, 1.0
        %v7390 = vadd.f32 %v7337, 1.0
        %v7391 = vadd.f32 %v7339, 1.0
        %v7392 = vadd.f32 %v7341, 1.0
        %v7393 = vadd.f32 %v7343, 1.0
        %v7394 = vadd.f32 %v7345, 1.0
        %v7395 = vadd.f32 %v7347, 1.0
        %v7396 = vadd.f32 %v7349, 1.0
        %v7397 = vadd.f32 %v7351, 1.0
        %v7398 = vadd.f32 %v7353, 1.0
        %v7399 = vadd.f32 %v7355, 1.0
        %v7400 = vadd.f32 %v7357, 1.0
        %v7401 = vadd.f32 %v7359, 1.0
        %v7402 = vadd.f32 %v7361, 1.0
        %v7403 = vadd.f32 %v7363, 1.0
        %v7404 = vadd.f32 %v7365, 1.0
        %v7405 = vadd.f32 %v7367, 1.0
        %v7406 = vadd.f32 %v7369, 1.0
        %v7407 = vadd.f32 %v7371, 1.0
        %v7408 = vadd.f32 %v7373, 1.0
        %v7409 = vadd.f32 %v7375, 1.0
        %v7410 = vadd.f32 %v7377, 1.0
        %v7411 = vadd.f32 %v7379, 1.0
        %v7412 = vrcp.pop %v7380
        %v7413 = vmul.f32 1.0, %v7412
        %v7414 = vrcp.pop %v7381
        %v7415 = vmul.f32 1.0, %v7414
        %v7416 = vrcp.pop %v7382
        %v7417 = vmul.f32 1.0, %v7416
        %v7418 = vrcp.pop %v7383
        %v7419 = vmul.f32 1.0, %v7418
        %v7420 = vrcp.pop %v7384
        %v7421 = vmul.f32 1.0, %v7420
        %v7422 = vrcp.pop %v7385
        %v7423 = vmul.f32 1.0, %v7422
        %v7424 = vrcp.pop %v7386
        %v7425 = vmul.f32 1.0, %v7424
        %v7426 = vrcp.pop %v7387
        %v7427 = vmul.f32 1.0, %v7426
        %v7428 = vrcp.pop %v7388
        %v7429 = vmul.f32 1.0, %v7428
        %v7430 = vrcp.pop %v7389
        %v7431 = vmul.f32 1.0, %v7430
        %v7432 = vrcp.pop %v7390
        %v7433 = vmul.f32 1.0, %v7432
        %v7434 = vrcp.pop %v7391
        %v7435 = vmul.f32 1.0, %v7434
        %v7436 = vrcp.pop %v7392
        %v7437 = vmul.f32 1.0, %v7436
        %v7438 = vrcp.pop %v7393
        %v7439 = vmul.f32 1.0, %v7438
        %v7440 = vrcp.pop %v7394
        %v7441 = vmul.f32 1.0, %v7440
        %v7442 = vrcp.pop %v7395
        %v7443 = vmul.f32 1.0, %v7442
        %v7444 = vrcp.pop %v7396
        %v7445 = vmul.f32 1.0, %v7444
        %v7446 = vrcp.pop %v7397
        %v7447 = vmul.f32 1.0, %v7446
        %v7448 = vrcp.pop %v7398
        %v7449 = vmul.f32 1.0, %v7448
        %v7450 = vrcp.pop %v7399
        %v7451 = vmul.f32 1.0, %v7450
        %v7452 = vrcp.pop %v7400
        %v7453 = vmul.f32 1.0, %v7452
        %v7454 = vrcp.pop %v7401
        %v7455 = vmul.f32 1.0, %v7454
        %v7456 = vrcp.pop %v7402
        %v7457 = vmul.f32 1.0, %v7456
        %v7458 = vrcp.pop %v7403
        %v7459 = vmul.f32 1.0, %v7458
        %v7460 = vrcp.pop %v7404
        %v7461 = vmul.f32 1.0, %v7460
        %v7462 = vrcp.pop %v7405
        %v7463 = vmul.f32 1.0, %v7462
        %v7464 = vrcp.pop %v7406
        %v7465 = vmul.f32 1.0, %v7464
        %v7466 = vrcp.pop %v7407
        %v7467 = vmul.f32 1.0, %v7466
        %v7468 = vrcp.pop %v7408
        %v7469 = vmul.f32 1.0, %v7468
        %v7470 = vrcp.pop %v7409
        %v7471 = vmul.f32 1.0, %v7470
        %v7472 = vrcp.pop %v7410
        %v7473 = vmul.f32 1.0, %v7472
        %v7474 = vrcp.pop %v7411
        %v7475 = vmul.f32 1.0, %v7474
        %v7476 = vmul.f32 %v7158, %v7413
        %v7477 = vmul.f32 %v7161, %v7415
        %v7478 = vmul.f32 %v7166, %v7417
        %v7479 = vmul.f32 %v7169, %v7419
        %v7480 = vmul.f32 %v7174, %v7421
        %v7481 = vmul.f32 %v7177, %v7423
        %v7482 = vmul.f32 %v7182, %v7425
        %v7483 = vmul.f32 %v7185, %v7427
        %v7484 = vmul.f32 %v7190, %v7429
        %v7485 = vmul.f32 %v7193, %v7431
        %v7486 = vmul.f32 %v7198, %v7433
        %v7487 = vmul.f32 %v7201, %v7435
        %v7488 = vmul.f32 %v7206, %v7437
        %v7489 = vmul.f32 %v7209, %v7439
        %v7490 = vmul.f32 %v7214, %v7441
        %v7491 = vmul.f32 %v7217, %v7443
        %v7492 = vmul.f32 %v7222, %v7445
        %v7493 = vmul.f32 %v7225, %v7447
        %v7494 = vmul.f32 %v7230, %v7449
        %v7495 = vmul.f32 %v7233, %v7451
        %v7496 = vmul.f32 %v7238, %v7453
        %v7497 = vmul.f32 %v7241, %v7455
        %v7498 = vmul.f32 %v7246, %v7457
        %v7499 = vmul.f32 %v7249, %v7459
        %v7500 = vmul.f32 %v7254, %v7461
        %v7501 = vmul.f32 %v7257, %v7463
        %v7502 = vmul.f32 %v7262, %v7465
        %v7503 = vmul.f32 %v7265, %v7467
        %v7504 = vmul.f32 %v7270, %v7469
        %v7505 = vmul.f32 %v7273, %v7471
        %v7506 = vmul.f32 %v7278, %v7473
        %v7507 = vmul.f32 %v7281, %v7475
        %v7508 = vadd.f32 %v7476, %v7477
        %v7509 = vadd.f32 %v7508, %v7478
        %v7510 = vadd.f32 %v7509, %v7479
        %v7511 = vadd.f32 %v7510, %v7480
        %v7512 = vadd.f32 %v7511, %v7481
        %v7513 = vadd.f32 %v7512, %v7482
        %v7514 = vadd.f32 %v7513, %v7483
        %v7515 = vrot.slane %v7514, 4
        %v7516 = vadd.f32 %v7514, %v7515
        %v7517 = vrot.slane %v7516, 2
        %v7518 = vadd.f32 %v7516, %v7517
        %v7519 = vrot.slane %v7518, 1
        %v7520 = vadd.f32 %v7518, %v7519
        %v7521 = vadd.f32 %v7484, %v7485
        %v7522 = vadd.f32 %v7521, %v7486
        %v7523 = vadd.f32 %v7522, %v7487
        %v7524 = vadd.f32 %v7523, %v7488
        %v7525 = vadd.f32 %v7524, %v7489
        %v7526 = vadd.f32 %v7525, %v7490
        %v7527 = vadd.f32 %v7526, %v7491
        %v7528 = vrot.slane %v7527, 4
        %v7529 = vadd.f32 %v7527, %v7528
        %v7530 = vrot.slane %v7529, 2
        %v7531 = vadd.f32 %v7529, %v7530
        %v7532 = vrot.slane %v7531, 1
        %v7533 = vadd.f32 %v7531, %v7532
        %v7534 = vadd.f32 %v7492, %v7493
        %v7535 = vadd.f32 %v7534, %v7494
        %v7536 = vadd.f32 %v7535, %v7495
        %v7537 = vadd.f32 %v7536, %v7496
        %v7538 = vadd.f32 %v7537, %v7497
        %v7539 = vadd.f32 %v7538, %v7498
        %v7540 = vadd.f32 %v7539, %v7499
        %v7541 = vrot.slane %v7540, 4
        %v7542 = vadd.f32 %v7540, %v7541
        %v7543 = vrot.slane %v7542, 2
        %v7544 = vadd.f32 %v7542, %v7543
        %v7545 = vrot.slane %v7544, 1
        %v7546 = vadd.f32 %v7544, %v7545
        %v7547 = vadd.f32 %v7500, %v7501
        %v7548 = vadd.f32 %v7547, %v7502
        %v7549 = vadd.f32 %v7548, %v7503
        %v7550 = vadd.f32 %v7549, %v7504
        %v7551 = vadd.f32 %v7550, %v7505
        %v7552 = vadd.f32 %v7551, %v7506
        %v7553 = vadd.f32 %v7552, %v7507
        %v7554 = vrot.slane %v7553, 4
        %v7555 = vadd.f32 %v7553, %v7554
        %v7556 = vrot.slane %v7555, 2
        %v7557 = vadd.f32 %v7555, %v7556
        %v7558 = vrot.slane %v7557, 1
        %v7559 = vadd.f32 %v7557, %v7558
        %v7560 = vmul.f32 %v7520, 0.015625
        %v7561 = vmul.f32 %v7533, 0.015625
        %v7562 = vmul.f32 %v7546, 0.015625
        %v7563 = vmul.f32 %v7559, 0.015625
        %v7564 = vpack.c.bf16 %v7560, %v7560
        %v7565 = vpack.c.bf16 %v7561, %v7561
        %v7566 = vpack.c.bf16 %v7562, %v7562
        %v7567 = vpack.c.bf16 %v7563, %v7563
        %v7568 = vld [vmem:[%s13 + $0x180] sm:$0xf]
        %v7569 = vld [vmem:[%s13 + $0x184] sm:$0xf]
        %v7570 = vld [vmem:[%s13 + $0x188] sm:$0xf]
        %v7571 = vld [vmem:[%s13 + $0x18c] sm:$0xf]
        %v7572 = vld [vmem:[%s13 + $0x190] sm:$0xf]
        %v7573 = vld [vmem:[%s13 + $0x194] sm:$0xf]
        %v7574 = vld [vmem:[%s13 + $0x198] sm:$0xf]
        %v7575 = vld [vmem:[%s13 + $0x19c] sm:$0xf]
        %v7576 = vld [vmem:[%s13 + $0x1a0] sm:$0xf]
        %v7577 = vld [vmem:[%s13 + $0x1a4] sm:$0xf]
        %v7578 = vld [vmem:[%s13 + $0x1a8] sm:$0xf]
        %v7579 = vld [vmem:[%s13 + $0x1ac] sm:$0xf]
        %v7580 = vld [vmem:[%s13 + $0x1b0] sm:$0xf]
        %v7581 = vld [vmem:[%s13 + $0x1b4] sm:$0xf]
        %v7582 = vld [vmem:[%s13 + $0x1b8] sm:$0xf]
        %v7583 = vld [vmem:[%s13 + $0x1bc] sm:$0xf]
        %v7588 = vunpack.c.l.b16 %v7564
        %v7589 = vunpack.c.l.b16 %v7565
        %v7590 = vunpack.c.l.b16 %v7566
        %v7591 = vunpack.c.l.b16 %v7567
        %v7592 = vsel %vm2936, %v7589, %v7588
        %v7593 = vsel %vm2938, %v7590, %v7592
        %v7594 = vsel %vm2940, %v7591, %v7593
        %v7595 = vpack.c.b16 %v7594, %v7594
        %v7613 = vunpack.c.l.b16 %v7568
        %v7614 = vunpack.c.l.b16 %v7569
        %v7615 = vunpack.c.l.b16 %v7570
        %v7616 = vunpack.c.l.b16 %v7571
        %v7617 = vunpack.c.l.b16 %v7572
        %v7618 = vunpack.c.l.b16 %v7573
        %v7619 = vunpack.c.l.b16 %v7574
        %v7620 = vunpack.c.l.b16 %v7575
        %v7621 = vunpack.c.l.b16 %v7576
        %v7622 = vunpack.c.l.b16 %v7577
        %v7623 = vunpack.c.l.b16 %v7578
        %v7624 = vunpack.c.l.b16 %v7579
        %v7625 = vunpack.c.l.b16 %v7580
        %v7626 = vunpack.c.l.b16 %v7581
        %v7627 = vunpack.c.l.b16 %v7582
        %v7628 = vunpack.c.l.b16 %v7583
        %v7629 = vpack.c.b16 %v7614, %v7613
        %v7630 = vpack.c.b16 %v7616, %v7615
        %v7631 = vpack.c.b16 %v7618, %v7617
        %v7632 = vpack.c.b16 %v7620, %v7619
        %v7633 = vpack.c.b16 %v7622, %v7621
        %v7634 = vpack.c.b16 %v7624, %v7623
        %v7635 = vpack.c.b16 %v7626, %v7625
        %v7636 = vpack.c.b16 %v7628, %v7627
        %7645 = vmatprep.subr.bf16.mxu0 0
        %7646 = vmatpush1.bf16.msra.mxu0 %v7629
        %7647 = vmatprep.subr.bf16.mxu0 0
        %7648 = vmatpush1.bf16.msra.mxu0 %v7630
        %7649 = vmatprep.subr.bf16.mxu0 0
        %7650 = vmatpush1.bf16.msra.mxu0 %v7631
        %7651 = vmatprep.subr.bf16.mxu0 0
        %7652 = vmatpush1.bf16.msra.mxu0 %v7632
        %7653 = vmatprep.subr.bf16.mxu0 0
        %7654 = vmatpush1.bf16.msra.mxu0 %v7633
        %7655 = vmatprep.subr.bf16.mxu0 0
        %7656 = vmatpush1.bf16.msra.mxu0 %v7634
        %7657 = vmatprep.subr.bf16.mxu0 0
        %7658 = vmatpush1.bf16.msra.mxu0 %v7635
        %7659 = vmatprep.subr.bf16.mxu0 0
        %7660 = vmatpush1.bf16.msra.mxu0 %v7636
        %7661 = vmatprep.subr.bf16.mxu0 0
        %7662 = vmatpush1.bf16.msra.mxu0 0
        %7663 = vmatprep.subr.bf16.mxu0 0
        %7664 = vmatpush1.bf16.msra.mxu0 0
        %7665 = vmatprep.subr.bf16.mxu0 0
        %7666 = vmatpush1.bf16.msra.mxu0 0
        %7667 = vmatprep.subr.bf16.mxu0 0
        %7668 = vmatpush1.bf16.msra.mxu0 0
        %7669 = vmatprep.subr.bf16.mxu0 0
        %7670 = vmatpush1.bf16.msra.mxu0 0
        %7671 = vmatprep.subr.bf16.mxu0 0
        %7672 = vmatpush1.bf16.msra.mxu0 0
        %7673 = vmatprep.subr.bf16.mxu0 0
        %7674 = vmatpush1.bf16.msra.mxu0 0
        %7675 = vmatprep.subr.bf16.mxu0 0
        %7676 = vmatpush1.bf16.msra.mxu0 0
        %7677 = vmatprep.mubr.bf16.mxu0 0
        %7678 = vmatmul.mubr.bf16.gmra.mrb[0].mxu0 %v7595
        %v7679 = vpop.f32.mrb[0].mxu0
        %v7680 = vadd.f32 0.0, %v7679
        %v7681 = vpop.f32.mrb[0].mxu0
        %v7682 = vpop.f32.mrb[0].mxu0
        %v7683 = vpop.f32.mrb[0].mxu0
        %7684 = vdwg.mxu0
        %v7685 = vadd.f32 %v7051, %v7680
        %v7686 = vld [vmem:[%s11 + $0x1c] sm:$0xf]
        %v7687 = vld [vmem:[%s11 + $0x44] sm:$0xf]
        %v7688 = vld [vmem:[%s11 + $0x6c] sm:$0xf]
        %v7689 = vld [vmem:[%s11 + $0x94] sm:$0xf]
        %v7690 = vld [vmem:[%s11 + $0xbc] sm:$0xf]
        %v7691 = vld [vmem:[%s11 + $0xe4] sm:$0xf]
        %v7692 = vld [vmem:[%s11 + $0x10c] sm:$0xf]
        %v7693 = vld [vmem:[%s11 + $0x134] sm:$0xf]
        %v7694 = vld [vmem:[%s11 + $0x15c] sm:$0xf]
        %v7695 = vld [vmem:[%s11 + $0x184] sm:$0xf]
        %v7696 = vld [vmem:[%s11 + $0x1ac] sm:$0xf]
        %v7697 = vld [vmem:[%s11 + $0x1d4] sm:$0xf]
        %v7698 = vld [vmem:[%s11 + $0x1fc] sm:$0xf]
        %v7699 = vld [vmem:[%s11 + $0x224] sm:$0xf]
        %v7700 = vld [vmem:[%s11 + $0x24c] sm:$0xf]
        %v7701 = vld [vmem:[%s11 + $0x274] sm:$0xf]
        %v7702 = vld [vmem:[%s12 + $0x7] sm:$0x1]
        %v7704 = vlaneseq
        %v7705 = vshrl.u32 %v7704, 7
        %v7706 = vsub.s32 0, %v7705
        %v7707 = vrot.slane %v7702, %v7706
        %v7725 = vunpack.c.l.b16 %v7686
        %v7726 = vunpack.c.l.b16 %v7687
        %v7727 = vunpack.c.l.b16 %v7688
        %v7728 = vunpack.c.l.b16 %v7689
        %v7729 = vunpack.c.l.b16 %v7690
        %v7730 = vunpack.c.l.b16 %v7691
        %v7731 = vunpack.c.l.b16 %v7692
        %v7732 = vunpack.c.l.b16 %v7693
        %v7733 = vunpack.c.l.b16 %v7694
        %v7734 = vunpack.c.l.b16 %v7695
        %v7735 = vunpack.c.l.b16 %v7696
        %v7736 = vunpack.c.l.b16 %v7697
        %v7737 = vunpack.c.l.b16 %v7698
        %v7738 = vunpack.c.l.b16 %v7699
        %v7739 = vunpack.c.l.b16 %v7700
        %v7740 = vunpack.c.l.b16 %v7701
        %v7741 = vpack.c.b16 %v7726, %v7725
        %v7742 = vpack.c.b16 %v7728, %v7727
        %v7743 = vpack.c.b16 %v7730, %v7729
        %v7744 = vpack.c.b16 %v7732, %v7731
        %v7745 = vpack.c.b16 %v7734, %v7733
        %v7746 = vpack.c.b16 %v7736, %v7735
        %v7747 = vpack.c.b16 %v7738, %v7737
        %v7748 = vpack.c.b16 %v7740, %v7739
        %7757 = vmatprep.subr.bf16.mxu0 0
        %7758 = vmatpush1.bf16.msra.mxu0 %v7741
        %7759 = vmatprep.subr.bf16.mxu0 0
        %7760 = vmatpush1.bf16.msra.mxu0 %v7742
        %7761 = vmatprep.subr.bf16.mxu0 0
        %7762 = vmatpush1.bf16.msra.mxu0 %v7743
        %7763 = vmatprep.subr.bf16.mxu0 0
        %7764 = vmatpush1.bf16.msra.mxu0 %v7744
        %7765 = vmatprep.subr.bf16.mxu0 0
        %7766 = vmatpush1.bf16.msra.mxu0 %v7745
        %7767 = vmatprep.subr.bf16.mxu0 0
        %7768 = vmatpush1.bf16.msra.mxu0 %v7746
        %7769 = vmatprep.subr.bf16.mxu0 0
        %7770 = vmatpush1.bf16.msra.mxu0 %v7747
        %7771 = vmatprep.subr.bf16.mxu0 0
        %7772 = vmatpush1.bf16.msra.mxu0 %v7748
        %7773 = vmatprep.subr.bf16.mxu0 0
        %7774 = vmatpush1.bf16.msra.mxu0 0
        %7775 = vmatprep.subr.bf16.mxu0 0
        %7776 = vmatpush1.bf16.msra.mxu0 0
        %7777 = vmatprep.subr.bf16.mxu0 0
        %7778 = vmatpush1.bf16.msra.mxu0 0
        %7779 = vmatprep.subr.bf16.mxu0 0
        %7780 = vmatpush1.bf16.msra.mxu0 0
        %7781 = vmatprep.subr.bf16.mxu0 0
        %7782 = vmatpush1.bf16.msra.mxu0 0
        %7783 = vmatprep.subr.bf16.mxu0 0
        %7784 = vmatpush1.bf16.msra.mxu0 0
        %7785 = vmatprep.subr.bf16.mxu0 0
        %7786 = vmatpush1.bf16.msra.mxu0 0
        %7787 = vmatprep.subr.bf16.mxu0 0
        %7788 = vmatpush1.bf16.msra.mxu0 0
        %7789 = vmatprep.mubr.bf16.mxu0 0
        %7790 = vmatmul.mubr.bf16.gmra.mrb[0].mxu0 %v3234
        %v7791 = vpop.f32.mrb[0].mxu0
        %v7792 = vadd.f32 %v7707, %v7791
        %v7793 = vpop.f32.mrb[0].mxu0
        %v7794 = vpop.f32.mrb[0].mxu0
        %v7795 = vadd.f32 %v7707, %v7794
        %v7796 = vpop.f32.mrb[0].mxu0
        %7797 = vmatprep.mubr.bf16.mxu0 0
        %7798 = vmatmul.mubr.bf16.gmra.mrb[0].mxu0 %v3235
        %v7799 = vpop.f32.mrb[0].mxu0
        %v7800 = vadd.f32 %v7707, %v7799
        %v7801 = vpop.f32.mrb[0].mxu0
        %v7802 = vpop.f32.mrb[0].mxu0
        %v7803 = vadd.f32 %v7707, %v7802
        %v7804 = vpop.f32.mrb[0].mxu0
        %7805 = vmatprep.mubr.bf16.mxu0 0
        %7806 = vmatmul.mubr.bf16.gmra.mrb[0].mxu0 %v3236
        %v7807 = vpop.f32.mrb[0].mxu0
        %v7808 = vadd.f32 %v7707, %v7807
        %v7809 = vpop.f32.mrb[0].mxu0
        %v7810 = vpop.f32.mrb[0].mxu0
        %v7811 = vadd.f32 %v7707, %v7810
        %v7812 = vpop.f32.mrb[0].mxu0
        %7813 = vmatprep.mubr.bf16.mxu0 0
        %7814 = vmatmul.mubr.bf16.gmra.mrb[0].mxu0 %v3237
        %v7815 = vpop.f32.mrb[0].mxu0
        %v7816 = vadd.f32 %v7707, %v7815
        %v7817 = vpop.f32.mrb[0].mxu0
        %v7818 = vpop.f32.mrb[0].mxu0
        %v7819 = vadd.f32 %v7707, %v7818
        %v7820 = vpop.f32.mrb[0].mxu0
        %7821 = vmatprep.mubr.bf16.mxu0 0
        %7822 = vmatmul.mubr.bf16.gmra.mrb[0].mxu0 %v3238
        %v7823 = vpop.f32.mrb[0].mxu0
        %v7824 = vadd.f32 %v7707, %v7823
        %v7825 = vpop.f32.mrb[0].mxu0
        %v7826 = vpop.f32.mrb[0].mxu0
        %v7827 = vadd.f32 %v7707, %v7826
        %v7828 = vpop.f32.mrb[0].mxu0
        %7829 = vmatprep.mubr.bf16.mxu0 0
        %7830 = vmatmul.mubr.bf16.gmra.mrb[0].mxu0 %v3239
        %v7831 = vpop.f32.mrb[0].mxu0
        %v7832 = vadd.f32 %v7707, %v7831
        %v7833 = vpop.f32.mrb[0].mxu0
        %v7834 = vpop.f32.mrb[0].mxu0
        %v7835 = vadd.f32 %v7707, %v7834
        %v7836 = vpop.f32.mrb[0].mxu0
        %7837 = vmatprep.mubr.bf16.mxu0 0
        %7838 = vmatmul.mubr.bf16.gmra.mrb[0].mxu0 %v3240
        %v7839 = vpop.f32.mrb[0].mxu0
        %v7840 = vadd.f32 %v7707, %v7839
        %v7841 = vpop.f32.mrb[0].mxu0
        %v7842 = vpop.f32.mrb[0].mxu0
        %v7843 = vadd.f32 %v7707, %v7842
        %v7844 = vpop.f32.mrb[0].mxu0
        %7845 = vmatprep.mubr.bf16.mxu0 0
        %7846 = vmatmul.mubr.bf16.gmra.mrb[0].mxu0 %v3241
        %v7847 = vpop.f32.mrb[0].mxu0
        %v7848 = vadd.f32 %v7707, %v7847
        %v7849 = vpop.f32.mrb[0].mxu0
        %v7850 = vpop.f32.mrb[0].mxu0
        %v7851 = vadd.f32 %v7707, %v7850
        %v7852 = vpop.f32.mrb[0].mxu0
        %7853 = vmatprep.mubr.bf16.mxu0 0
        %7854 = vmatmul.mubr.bf16.gmra.mrb[0].mxu0 %v3242
        %v7855 = vpop.f32.mrb[0].mxu0
        %v7856 = vadd.f32 %v7707, %v7855
        %v7857 = vpop.f32.mrb[0].mxu0
        %v7858 = vpop.f32.mrb[0].mxu0
        %v7859 = vadd.f32 %v7707, %v7858
        %v7860 = vpop.f32.mrb[0].mxu0
        %7861 = vmatprep.mubr.bf16.mxu0 0
        %7862 = vmatmul.mubr.bf16.gmra.mrb[0].mxu0 %v3243
        %v7863 = vpop.f32.mrb[0].mxu0
        %v7864 = vadd.f32 %v7707, %v7863
        %v7865 = vpop.f32.mrb[0].mxu0
        %v7866 = vpop.f32.mrb[0].mxu0
        %v7867 = vadd.f32 %v7707, %v7866
        %v7868 = vpop.f32.mrb[0].mxu0
        %7869 = vmatprep.mubr.bf16.mxu0 0
        %7870 = vmatmul.mubr.bf16.gmra.mrb[0].mxu0 %v3244
        %v7871 = vpop.f32.mrb[0].mxu0
        %v7872 = vadd.f32 %v7707, %v7871
        %v7873 = vpop.f32.mrb[0].mxu0
        %v7874 = vpop.f32.mrb[0].mxu0
        %v7875 = vadd.f32 %v7707, %v7874
        %v7876 = vpop.f32.mrb[0].mxu0
        %7877 = vmatprep.mubr.bf16.mxu0 0
        %7878 = vmatmul.mubr.bf16.gmra.mrb[0].mxu0 %v3245
        %v7879 = vpop.f32.mrb[0].mxu0
        %v7880 = vadd.f32 %v7707, %v7879
        %v7881 = vpop.f32.mrb[0].mxu0
        %v7882 = vpop.f32.mrb[0].mxu0
        %v7883 = vadd.f32 %v7707, %v7882
        %v7884 = vpop.f32.mrb[0].mxu0
        %7885 = vmatprep.mubr.bf16.mxu0 0
        %7886 = vmatmul.mubr.bf16.gmra.mrb[0].mxu0 %v3246
        %v7887 = vpop.f32.mrb[0].mxu0
        %v7888 = vadd.f32 %v7707, %v7887
        %v7889 = vpop.f32.mrb[0].mxu0
        %v7890 = vpop.f32.mrb[0].mxu0
        %v7891 = vadd.f32 %v7707, %v7890
        %v7892 = vpop.f32.mrb[0].mxu0
        %7893 = vmatprep.mubr.bf16.mxu0 0
        %7894 = vmatmul.mubr.bf16.gmra.mrb[0].mxu0 %v3247
        %v7895 = vpop.f32.mrb[0].mxu0
        %v7896 = vadd.f32 %v7707, %v7895
        %v7897 = vpop.f32.mrb[0].mxu0
        %v7898 = vpop.f32.mrb[0].mxu0
        %v7899 = vadd.f32 %v7707, %v7898
        %v7900 = vpop.f32.mrb[0].mxu0
        %7901 = vmatprep.mubr.bf16.mxu0 0
        %7902 = vmatmul.mubr.bf16.gmra.mrb[0].mxu0 %v3248
        %v7903 = vpop.f32.mrb[0].mxu0
        %v7904 = vadd.f32 %v7707, %v7903
        %v7905 = vpop.f32.mrb[0].mxu0
        %v7906 = vpop.f32.mrb[0].mxu0
        %v7907 = vadd.f32 %v7707, %v7906
        %v7908 = vpop.f32.mrb[0].mxu0
        %7909 = vmatprep.mubr.bf16.mxu0 0
        %7910 = vmatmul.mubr.bf16.gmra.mrb[0].mxu0 %v3249
        %v7911 = vpop.f32.mrb[0].mxu0
        %v7912 = vadd.f32 %v7707, %v7911
        %v7913 = vpop.f32.mrb[0].mxu0
        %v7914 = vpop.f32.mrb[0].mxu0
        %v7915 = vadd.f32 %v7707, %v7914
        %v7916 = vpop.f32.mrb[0].mxu0
        %7917 = vdwg.mxu0
        %v7918 = vxor.u32 %v7792, 2147483648
        %v7919 = vxor.u32 %v7795, 2147483648
        %v7920 = vxor.u32 %v7800, 2147483648
        %v7921 = vxor.u32 %v7803, 2147483648
        %v7922 = vxor.u32 %v7808, 2147483648
        %v7923 = vxor.u32 %v7811, 2147483648
        %v7924 = vxor.u32 %v7816, 2147483648
        %v7925 = vxor.u32 %v7819, 2147483648
        %v7926 = vxor.u32 %v7824, 2147483648
        %v7927 = vxor.u32 %v7827, 2147483648
        %v7928 = vxor.u32 %v7832, 2147483648
        %v7929 = vxor.u32 %v7835, 2147483648
        %v7930 = vxor.u32 %v7840, 2147483648
        %v7931 = vxor.u32 %v7843, 2147483648
        %v7932 = vxor.u32 %v7848, 2147483648
        %v7933 = vxor.u32 %v7851, 2147483648
        %v7934 = vxor.u32 %v7856, 2147483648
        %v7935 = vxor.u32 %v7859, 2147483648
        %v7936 = vxor.u32 %v7864, 2147483648
        %v7937 = vxor.u32 %v7867, 2147483648
        %v7938 = vxor.u32 %v7872, 2147483648
        %v7939 = vxor.u32 %v7875, 2147483648
        %v7940 = vxor.u32 %v7880, 2147483648
        %v7941 = vxor.u32 %v7883, 2147483648
        %v7942 = vxor.u32 %v7888, 2147483648
        %v7943 = vxor.u32 %v7891, 2147483648
        %v7944 = vxor.u32 %v7896, 2147483648
        %v7945 = vxor.u32 %v7899, 2147483648
        %v7946 = vxor.u32 %v7904, 2147483648
        %v7947 = vxor.u32 %v7907, 2147483648
        %v7948 = vxor.u32 %v7912, 2147483648
        %v7949 = vxor.u32 %v7915, 2147483648
        %v7950 = vmul.f32 %v7918, 1.442695
        %v7951 = vpow.pop %v7950
        %v7952 = vmul.f32 %v7919, 1.442695
        %v7953 = vpow.pop %v7952
        %v7954 = vmul.f32 %v7920, 1.442695
        %v7955 = vpow.pop %v7954
        %v7956 = vmul.f32 %v7921, 1.442695
        %v7957 = vpow.pop %v7956
        %v7958 = vmul.f32 %v7922, 1.442695
        %v7959 = vpow.pop %v7958
        %v7960 = vmul.f32 %v7923, 1.442695
        %v7961 = vpow.pop %v7960
        %v7962 = vmul.f32 %v7924, 1.442695
        %v7963 = vpow.pop %v7962
        %v7964 = vmul.f32 %v7925, 1.442695
        %v7965 = vpow.pop %v7964
        %v7966 = vmul.f32 %v7926, 1.442695
        %v7967 = vpow.pop %v7966
        %v7968 = vmul.f32 %v7927, 1.442695
        %v7969 = vpow.pop %v7968
        %v7970 = vmul.f32 %v7928, 1.442695
        %v7971 = vpow.pop %v7970
        %v7972 = vmul.f32 %v7929, 1.442695
        %v7973 = vpow.pop %v7972
        %v7974 = vmul.f32 %v7930, 1.442695
        %v7975 = vpow.pop %v7974
        %v7976 = vmul.f32 %v7931, 1.442695
        %v7977 = vpow.pop %v7976
        %v7978 = vmul.f32 %v7932, 1.442695
        %v7979 = vpow.pop %v7978
        %v7980 = vmul.f32 %v7933, 1.442695
        %v7981 = vpow.pop %v7980
        %v7982 = vmul.f32 %v7934, 1.442695
        %v7983 = vpow.pop %v7982
        %v7984 = vmul.f32 %v7935, 1.442695
        %v7985 = vpow.pop %v7984
        %v7986 = vmul.f32 %v7936, 1.442695
        %v7987 = vpow.pop %v7986
        %v7988 = vmul.f32 %v7937, 1.442695
        %v7989 = vpow.pop %v7988
        %v7990 = vmul.f32 %v7938, 1.442695
        %v7991 = vpow.pop %v7990
        %v7992 = vmul.f32 %v7939, 1.442695
        %v7993 = vpow.pop %v7992
        %v7994 = vmul.f32 %v7940, 1.442695
        %v7995 = vpow.pop %v7994
        %v7996 = vmul.f32 %v7941, 1.442695
        %v7997 = vpow.pop %v7996
        %v7998 = vmul.f32 %v7942, 1.442695
        %v7999 = vpow.pop %v7998
        %v8000 = vmul.f32 %v7943, 1.442695
        %v8001 = vpow.pop %v8000
        %v8002 = vmul.f32 %v7944, 1.442695
        %v8003 = vpow.pop %v8002
        %v8004 = vmul.f32 %v7945, 1.442695
        %v8005 = vpow.pop %v8004
        %v8006 = vmul.f32 %v7946, 1.442695
        %v8007 = vpow.pop %v8006
        %v8008 = vmul.f32 %v7947, 1.442695
        %v8009 = vpow.pop %v8008
        %v8010 = vmul.f32 %v7948, 1.442695
        %v8011 = vpow.pop %v8010
        %v8012 = vmul.f32 %v7949, 1.442695
        %v8013 = vpow.pop %v8012
        %v8014 = vadd.f32 %v7951, 1.0
        %v8015 = vadd.f32 %v7953, 1.0
        %v8016 = vadd.f32 %v7955, 1.0
        %v8017 = vadd.f32 %v7957, 1.0
        %v8018 = vadd.f32 %v7959, 1.0
        %v8019 = vadd.f32 %v7961, 1.0
        %v8020 = vadd.f32 %v7963, 1.0
        %v8021 = vadd.f32 %v7965, 1.0
        %v8022 = vadd.f32 %v7967, 1.0
        %v8023 = vadd.f32 %v7969, 1.0
        %v8024 = vadd.f32 %v7971, 1.0
        %v8025 = vadd.f32 %v7973, 1.0
        %v8026 = vadd.f32 %v7975, 1.0
        %v8027 = vadd.f32 %v7977, 1.0
        %v8028 = vadd.f32 %v7979, 1.0
        %v8029 = vadd.f32 %v7981, 1.0
        %v8030 = vadd.f32 %v7983, 1.0
        %v8031 = vadd.f32 %v7985, 1.0
        %v8032 = vadd.f32 %v7987, 1.0
        %v8033 = vadd.f32 %v7989, 1.0
        %v8034 = vadd.f32 %v7991, 1.0
        %v8035 = vadd.f32 %v7993, 1.0
        %v8036 = vadd.f32 %v7995, 1.0
        %v8037 = vadd.f32 %v7997, 1.0
        %v8038 = vadd.f32 %v7999, 1.0
        %v8039 = vadd.f32 %v8001, 1.0
        %v8040 = vadd.f32 %v8003, 1.0
        %v8041 = vadd.f32 %v8005, 1.0
        %v8042 = vadd.f32 %v8007, 1.0
        %v8043 = vadd.f32 %v8009, 1.0
        %v8044 = vadd.f32 %v8011, 1.0
        %v8045 = vadd.f32 %v8013, 1.0
        %v8046 = vrcp.pop %v8014
        %v8047 = vmul.f32 1.0, %v8046
        %v8048 = vrcp.pop %v8015
        %v8049 = vmul.f32 1.0, %v8048
        %v8050 = vrcp.pop %v8016
        %v8051 = vmul.f32 1.0, %v8050
        %v8052 = vrcp.pop %v8017
        %v8053 = vmul.f32 1.0, %v8052
        %v8054 = vrcp.pop %v8018
        %v8055 = vmul.f32 1.0, %v8054
        %v8056 = vrcp.pop %v8019
        %v8057 = vmul.f32 1.0, %v8056
        %v8058 = vrcp.pop %v8020
        %v8059 = vmul.f32 1.0, %v8058
        %v8060 = vrcp.pop %v8021
        %v8061 = vmul.f32 1.0, %v8060
        %v8062 = vrcp.pop %v8022
        %v8063 = vmul.f32 1.0, %v8062
        %v8064 = vrcp.pop %v8023
        %v8065 = vmul.f32 1.0, %v8064
        %v8066 = vrcp.pop %v8024
        %v8067 = vmul.f32 1.0, %v8066
        %v8068 = vrcp.pop %v8025
        %v8069 = vmul.f32 1.0, %v8068
        %v8070 = vrcp.pop %v8026
        %v8071 = vmul.f32 1.0, %v8070
        %v8072 = vrcp.pop %v8027
        %v8073 = vmul.f32 1.0, %v8072
        %v8074 = vrcp.pop %v8028
        %v8075 = vmul.f32 1.0, %v8074
        %v8076 = vrcp.pop %v8029
        %v8077 = vmul.f32 1.0, %v8076
        %v8078 = vrcp.pop %v8030
        %v8079 = vmul.f32 1.0, %v8078
        %v8080 = vrcp.pop %v8031
        %v8081 = vmul.f32 1.0, %v8080
        %v8082 = vrcp.pop %v8032
        %v8083 = vmul.f32 1.0, %v8082
        %v8084 = vrcp.pop %v8033
        %v8085 = vmul.f32 1.0, %v8084
        %v8086 = vrcp.pop %v8034
        %v8087 = vmul.f32 1.0, %v8086
        %v8088 = vrcp.pop %v8035
        %v8089 = vmul.f32 1.0, %v8088
        %v8090 = vrcp.pop %v8036
        %v8091 = vmul.f32 1.0, %v8090
        %v8092 = vrcp.pop %v8037
        %v8093 = vmul.f32 1.0, %v8092
        %v8094 = vrcp.pop %v8038
        %v8095 = vmul.f32 1.0, %v8094
        %v8096 = vrcp.pop %v8039
        %v8097 = vmul.f32 1.0, %v8096
        %v8098 = vrcp.pop %v8040
        %v8099 = vmul.f32 1.0, %v8098
        %v8100 = vrcp.pop %v8041
        %v8101 = vmul.f32 1.0, %v8100
        %v8102 = vrcp.pop %v8042
        %v8103 = vmul.f32 1.0, %v8102
        %v8104 = vrcp.pop %v8043
        %v8105 = vmul.f32 1.0, %v8104
        %v8106 = vrcp.pop %v8044
        %v8107 = vmul.f32 1.0, %v8106
        %v8108 = vrcp.pop %v8045
        %v8109 = vmul.f32 1.0, %v8108
        %v8110 = vmul.f32 %v7792, %v8047
        %v8111 = vmul.f32 %v7795, %v8049
        %v8112 = vmul.f32 %v7800, %v8051
        %v8113 = vmul.f32 %v7803, %v8053
        %v8114 = vmul.f32 %v7808, %v8055
        %v8115 = vmul.f32 %v7811, %v8057
        %v8116 = vmul.f32 %v7816, %v8059
        %v8117 = vmul.f32 %v7819, %v8061
        %v8118 = vmul.f32 %v7824, %v8063
        %v8119 = vmul.f32 %v7827, %v8065
        %v8120 = vmul.f32 %v7832, %v8067
        %v8121 = vmul.f32 %v7835, %v8069
        %v8122 = vmul.f32 %v7840, %v8071
        %v8123 = vmul.f32 %v7843, %v8073
        %v8124 = vmul.f32 %v7848, %v8075
        %v8125 = vmul.f32 %v7851, %v8077
        %v8126 = vmul.f32 %v7856, %v8079
        %v8127 = vmul.f32 %v7859, %v8081
        %v8128 = vmul.f32 %v7864, %v8083
        %v8129 = vmul.f32 %v7867, %v8085
        %v8130 = vmul.f32 %v7872, %v8087
        %v8131 = vmul.f32 %v7875, %v8089
        %v8132 = vmul.f32 %v7880, %v8091
        %v8133 = vmul.f32 %v7883, %v8093
        %v8134 = vmul.f32 %v7888, %v8095
        %v8135 = vmul.f32 %v7891, %v8097
        %v8136 = vmul.f32 %v7896, %v8099
        %v8137 = vmul.f32 %v7899, %v8101
        %v8138 = vmul.f32 %v7904, %v8103
        %v8139 = vmul.f32 %v7907, %v8105
        %v8140 = vmul.f32 %v7912, %v8107
        %v8141 = vmul.f32 %v7915, %v8109
        %v8142 = vadd.f32 %v8110, %v8111
        %v8143 = vadd.f32 %v8142, %v8112
        %v8144 = vadd.f32 %v8143, %v8113
        %v8145 = vadd.f32 %v8144, %v8114
        %v8146 = vadd.f32 %v8145, %v8115
        %v8147 = vadd.f32 %v8146, %v8116
        %v8148 = vadd.f32 %v8147, %v8117
        %v8149 = vrot.slane %v8148, 4
        %v8150 = vadd.f32 %v8148, %v8149
        %v8151 = vrot.slane %v8150, 2
        %v8152 = vadd.f32 %v8150, %v8151
        %v8153 = vrot.slane %v8152, 1
        %v8154 = vadd.f32 %v8152, %v8153
        %v8155 = vadd.f32 %v8118, %v8119
        %v8156 = vadd.f32 %v8155, %v8120
        %v8157 = vadd.f32 %v8156, %v8121
        %v8158 = vadd.f32 %v8157, %v8122
        %v8159 = vadd.f32 %v8158, %v8123
        %v8160 = vadd.f32 %v8159, %v8124
        %v8161 = vadd.f32 %v8160, %v8125
        %v8162 = vrot.slane %v8161, 4
        %v8163 = vadd.f32 %v8161, %v8162
        %v8164 = vrot.slane %v8163, 2
        %v8165 = vadd.f32 %v8163, %v8164
        %v8166 = vrot.slane %v8165, 1
        %v8167 = vadd.f32 %v8165, %v8166
        %v8168 = vadd.f32 %v8126, %v8127
        %v8169 = vadd.f32 %v8168, %v8128
        %v8170 = vadd.f32 %v8169, %v8129
        %v8171 = vadd.f32 %v8170, %v8130
        %v8172 = vadd.f32 %v8171, %v8131
        %v8173 = vadd.f32 %v8172, %v8132
        %v8174 = vadd.f32 %v8173, %v8133
        %v8175 = vrot.slane %v8174, 4
        %v8176 = vadd.f32 %v8174, %v8175
        %v8177 = vrot.slane %v8176, 2
        %v8178 = vadd.f32 %v8176, %v8177
        %v8179 = vrot.slane %v8178, 1
        %v8180 = vadd.f32 %v8178, %v8179
        %v8181 = vadd.f32 %v8134, %v8135
        %v8182 = vadd.f32 %v8181, %v8136
        %v8183 = vadd.f32 %v8182, %v8137
        %v8184 = vadd.f32 %v8183, %v8138
        %v8185 = vadd.f32 %v8184, %v8139
        %v8186 = vadd.f32 %v8185, %v8140
        %v8187 = vadd.f32 %v8186, %v8141
        %v8188 = vrot.slane %v8187, 4
        %v8189 = vadd.f32 %v8187, %v8188
        %v8190 = vrot.slane %v8189, 2
        %v8191 = vadd.f32 %v8189, %v8190
        %v8192 = vrot.slane %v8191, 1
        %v8193 = vadd.f32 %v8191, %v8192
        %v8194 = vmul.f32 %v8154, 0.015625
        %v8195 = vmul.f32 %v8167, 0.015625
        %v8196 = vmul.f32 %v8180, 0.015625
        %v8197 = vmul.f32 %v8193, 0.015625
        %v8198 = vpack.c.bf16 %v8194, %v8194
        %v8199 = vpack.c.bf16 %v8195, %v8195
        %v8200 = vpack.c.bf16 %v8196, %v8196
        %v8201 = vpack.c.bf16 %v8197, %v8197
        %v8202 = vld [vmem:[%s13 + $0x1c0] sm:$0xf]
        %v8203 = vld [vmem:[%s13 + $0x1c4] sm:$0xf]
        %v8204 = vld [vmem:[%s13 + $0x1c8] sm:$0xf]
        %v8205 = vld [vmem:[%s13 + $0x1cc] sm:$0xf]
        %v8206 = vld [vmem:[%s13 + $0x1d0] sm:$0xf]
        %v8207 = vld [vmem:[%s13 + $0x1d4] sm:$0xf]
        %v8208 = vld [vmem:[%s13 + $0x1d8] sm:$0xf]
        %v8209 = vld [vmem:[%s13 + $0x1dc] sm:$0xf]
        %v8210 = vld [vmem:[%s13 + $0x1e0] sm:$0xf]
        %v8211 = vld [vmem:[%s13 + $0x1e4] sm:$0xf]
        %v8212 = vld [vmem:[%s13 + $0x1e8] sm:$0xf]
        %v8213 = vld [vmem:[%s13 + $0x1ec] sm:$0xf]
        %v8214 = vld [vmem:[%s13 + $0x1f0] sm:$0xf]
        %v8215 = vld [vmem:[%s13 + $0x1f4] sm:$0xf]
        %v8216 = vld [vmem:[%s13 + $0x1f8] sm:$0xf]
        %v8217 = vld [vmem:[%s13 + $0x1fc] sm:$0xf]
        %v8222 = vunpack.c.l.b16 %v8198
        %v8223 = vunpack.c.l.b16 %v8199
        %v8224 = vunpack.c.l.b16 %v8200
        %v8225 = vunpack.c.l.b16 %v8201
        %v8226 = vsel %vm2936, %v8223, %v8222
        %v8227 = vsel %vm2938, %v8224, %v8226
        %v8228 = vsel %vm2940, %v8225, %v8227
        %v8229 = vpack.c.b16 %v8228, %v8228
        %v8247 = vunpack.c.l.b16 %v8202
        %v8248 = vunpack.c.l.b16 %v8203
        %v8249 = vunpack.c.l.b16 %v8204
        %v8250 = vunpack.c.l.b16 %v8205
        %v8251 = vunpack.c.l.b16 %v8206
        %v8252 = vunpack.c.l.b16 %v8207
        %v8253 = vunpack.c.l.b16 %v8208
        %v8254 = vunpack.c.l.b16 %v8209
        %v8255 = vunpack.c.l.b16 %v8210
        %v8256 = vunpack.c.l.b16 %v8211
        %v8257 = vunpack.c.l.b16 %v8212
        %v8258 = vunpack.c.l.b16 %v8213
        %v8259 = vunpack.c.l.b16 %v8214
        %v8260 = vunpack.c.l.b16 %v8215
        %v8261 = vunpack.c.l.b16 %v8216
        %v8262 = vunpack.c.l.b16 %v8217
        %v8263 = vpack.c.b16 %v8248, %v8247
        %v8264 = vpack.c.b16 %v8250, %v8249
        %v8265 = vpack.c.b16 %v8252, %v8251
        %v8266 = vpack.c.b16 %v8254, %v8253
        %v8267 = vpack.c.b16 %v8256, %v8255
        %v8268 = vpack.c.b16 %v8258, %v8257
        %v8269 = vpack.c.b16 %v8260, %v8259
        %v8270 = vpack.c.b16 %v8262, %v8261
        %8279 = vmatprep.subr.bf16.mxu0 0
        %8280 = vmatpush1.bf16.msra.mxu0 %v8263
        %8281 = vmatprep.subr.bf16.mxu0 0
        %8282 = vmatpush1.bf16.msra.mxu0 %v8264
        %8283 = vmatprep.subr.bf16.mxu0 0
        %8284 = vmatpush1.bf16.msra.mxu0 %v8265
        %8285 = vmatprep.subr.bf16.mxu0 0
        %8286 = vmatpush1.bf16.msra.mxu0 %v8266
        %8287 = vmatprep.subr.bf16.mxu0 0
        %8288 = vmatpush1.bf16.msra.mxu0 %v8267
        %8289 = vmatprep.subr.bf16.mxu0 0
        %8290 = vmatpush1.bf16.msra.mxu0 %v8268
        %8291 = vmatprep.subr.bf16.mxu0 0
        %8292 = vmatpush1.bf16.msra.mxu0 %v8269
        %8293 = vmatprep.subr.bf16.mxu0 0
        %8294 = vmatpush1.bf16.msra.mxu0 %v8270
        %8295 = vmatprep.subr.bf16.mxu0 0
        %8296 = vmatpush1.bf16.msra.mxu0 0
        %8297 = vmatprep.subr.bf16.mxu0 0
        %8298 = vmatpush1.bf16.msra.mxu0 0
        %8299 = vmatprep.subr.bf16.mxu0 0
        %8300 = vmatpush1.bf16.msra.mxu0 0
        %8301 = vmatprep.subr.bf16.mxu0 0
        %8302 = vmatpush1.bf16.msra.mxu0 0
        %8303 = vmatprep.subr.bf16.mxu0 0
        %8304 = vmatpush1.bf16.msra.mxu0 0
        %8305 = vmatprep.subr.bf16.mxu0 0
        %8306 = vmatpush1.bf16.msra.mxu0 0
        %8307 = vmatprep.subr.bf16.mxu0 0
        %8308 = vmatpush1.bf16.msra.mxu0 0
        %8309 = vmatprep.subr.bf16.mxu0 0
        %8310 = vmatpush1.bf16.msra.mxu0 0
        %8311 = vmatprep.mubr.bf16.mxu0 0
        %8312 = vmatmul.mubr.bf16.gmra.mrb[0].mxu0 %v8229
        %v8313 = vpop.f32.mrb[0].mxu0
        %v8314 = vadd.f32 0.0, %v8313
        %v8315 = vpop.f32.mrb[0].mxu0
        %v8316 = vpop.f32.mrb[0].mxu0
        %v8317 = vpop.f32.mrb[0].mxu0
        %8318 = vdwg.mxu0
        %v8319 = vadd.f32 %v7685, %v8314
        %v8320 = vld [vmem:[%s11 + $0x20] sm:$0xf]
        %v8321 = vld [vmem:[%s11 + $0x48] sm:$0xf]
        %v8322 = vld [vmem:[%s11 + $0x70] sm:$0xf]
        %v8323 = vld [vmem:[%s11 + $0x98] sm:$0xf]
        %v8324 = vld [vmem:[%s11 + $0xc0] sm:$0xf]
        %v8325 = vld [vmem:[%s11 + $0xe8] sm:$0xf]
        %v8326 = vld [vmem:[%s11 + $0x110] sm:$0xf]
        %v8327 = vld [vmem:[%s11 + $0x138] sm:$0xf]
        %v8328 = vld [vmem:[%s11 + $0x160] sm:$0xf]
        %v8329 = vld [vmem:[%s11 + $0x188] sm:$0xf]
        %v8330 = vld [vmem:[%s11 + $0x1b0] sm:$0xf]
        %v8331 = vld [vmem:[%s11 + $0x1d8] sm:$0xf]
        %v8332 = vld [vmem:[%s11 + $0x200] sm:$0xf]
        %v8333 = vld [vmem:[%s11 + $0x228] sm:$0xf]
        %v8334 = vld [vmem:[%s11 + $0x250] sm:$0xf]
        %v8335 = vld [vmem:[%s11 + $0x278] sm:$0xf]
        %v8336 = vld [vmem:[%s12 + $0x8] sm:$0x1]
        %v8338 = vlaneseq
        %v8339 = vshrl.u32 %v8338, 7
        %v8340 = vsub.s32 0, %v8339
        %v8341 = vrot.slane %v8336, %v8340
        %v8359 = vunpack.c.l.b16 %v8320
        %v8360 = vunpack.c.l.b16 %v8321
        %v8361 = vunpack.c.l.b16 %v8322
        %v8362 = vunpack.c.l.b16 %v8323
        %v8363 = vunpack.c.l.b16 %v8324
        %v8364 = vunpack.c.l.b16 %v8325
        %v8365 = vunpack.c.l.b16 %v8326
        %v8366 = vunpack.c.l.b16 %v8327
        %v8367 = vunpack.c.l.b16 %v8328
        %v8368 = vunpack.c.l.b16 %v8329
        %v8369 = vunpack.c.l.b16 %v8330
        %v8370 = vunpack.c.l.b16 %v8331
        %v8371 = vunpack.c.l.b16 %v8332
        %v8372 = vunpack.c.l.b16 %v8333
        %v8373 = vunpack.c.l.b16 %v8334
        %v8374 = vunpack.c.l.b16 %v8335
        %v8375 = vpack.c.b16 %v8360, %v8359
        %v8376 = vpack.c.b16 %v8362, %v8361
        %v8377 = vpack.c.b16 %v8364, %v8363
        %v8378 = vpack.c.b16 %v8366, %v8365
        %v8379 = vpack.c.b16 %v8368, %v8367
        %v8380 = vpack.c.b16 %v8370, %v8369
        %v8381 = vpack.c.b16 %v8372, %v8371
        %v8382 = vpack.c.b16 %v8374, %v8373
        %8391 = vmatprep.subr.bf16.mxu0 0
        %8392 = vmatpush1.bf16.msra.mxu0 %v8375
        %8393 = vmatprep.subr.bf16.mxu0 0
        %8394 = vmatpush1.bf16.msra.mxu0 %v8376
        %8395 = vmatprep.subr.bf16.mxu0 0
        %8396 = vmatpush1.bf16.msra.mxu0 %v8377
        %8397 = vmatprep.subr.bf16.mxu0 0
        %8398 = vmatpush1.bf16.msra.mxu0 %v8378
        %8399 = vmatprep.subr.bf16.mxu0 0
        %8400 = vmatpush1.bf16.msra.mxu0 %v8379
        %8401 = vmatprep.subr.bf16.mxu0 0
        %8402 = vmatpush1.bf16.msra.mxu0 %v8380
        %8403 = vmatprep.subr.bf16.mxu0 0
        %8404 = vmatpush1.bf16.msra.mxu0 %v8381
        %8405 = vmatprep.subr.bf16.mxu0 0
        %8406 = vmatpush1.bf16.msra.mxu0 %v8382
        %8407 = vmatprep.subr.bf16.mxu0 0
        %8408 = vmatpush1.bf16.msra.mxu0 0
        %8409 = vmatprep.subr.bf16.mxu0 0
        %8410 = vmatpush1.bf16.msra.mxu0 0
        %8411 = vmatprep.subr.bf16.mxu0 0
        %8412 = vmatpush1.bf16.msra.mxu0 0
        %8413 = vmatprep.subr.bf16.mxu0 0
        %8414 = vmatpush1.bf16.msra.mxu0 0
        %8415 = vmatprep.subr.bf16.mxu0 0
        %8416 = vmatpush1.bf16.msra.mxu0 0
        %8417 = vmatprep.subr.bf16.mxu0 0
        %8418 = vmatpush1.bf16.msra.mxu0 0
        %8419 = vmatprep.subr.bf16.mxu0 0
        %8420 = vmatpush1.bf16.msra.mxu0 0
        %8421 = vmatprep.subr.bf16.mxu0 0
        %8422 = vmatpush1.bf16.msra.mxu0 0
        %8423 = vmatprep.mubr.bf16.mxu0 0
        %8424 = vmatmul.mubr.bf16.gmra.mrb[0].mxu0 %v3234
        %v8425 = vpop.f32.mrb[0].mxu0
        %v8426 = vadd.f32 %v8341, %v8425
        %v8427 = vpop.f32.mrb[0].mxu0
        %v8428 = vpop.f32.mrb[0].mxu0
        %v8429 = vadd.f32 %v8341, %v8428
        %v8430 = vpop.f32.mrb[0].mxu0
        %8431 = vmatprep.mubr.bf16.mxu0 0
        %8432 = vmatmul.mubr.bf16.gmra.mrb[0].mxu0 %v3235
        %v8433 = vpop.f32.mrb[0].mxu0
        %v8434 = vadd.f32 %v8341, %v8433
        %v8435 = vpop.f32.mrb[0].mxu0
        %v8436 = vpop.f32.mrb[0].mxu0
        %v8437 = vadd.f32 %v8341, %v8436
        %v8438 = vpop.f32.mrb[0].mxu0
        %8439 = vmatprep.mubr.bf16.mxu0 0
        %8440 = vmatmul.mubr.bf16.gmra.mrb[0].mxu0 %v3236
        %v8441 = vpop.f32.mrb[0].mxu0
        %v8442 = vadd.f32 %v8341, %v8441
        %v8443 = vpop.f32.mrb[0].mxu0
        %v8444 = vpop.f32.mrb[0].mxu0
        %v8445 = vadd.f32 %v8341, %v8444
        %v8446 = vpop.f32.mrb[0].mxu0
        %8447 = vmatprep.mubr.bf16.mxu0 0
        %8448 = vmatmul.mubr.bf16.gmra.mrb[0].mxu0 %v3237
        %v8449 = vpop.f32.mrb[0].mxu0
        %v8450 = vadd.f32 %v8341, %v8449
        %v8451 = vpop.f32.mrb[0].mxu0
        %v8452 = vpop.f32.mrb[0].mxu0
        %v8453 = vadd.f32 %v8341, %v8452
        %v8454 = vpop.f32.mrb[0].mxu0
        %8455 = vmatprep.mubr.bf16.mxu0 0
        %8456 = vmatmul.mubr.bf16.gmra.mrb[0].mxu0 %v3238
        %v8457 = vpop.f32.mrb[0].mxu0
        %v8458 = vadd.f32 %v8341, %v8457
        %v8459 = vpop.f32.mrb[0].mxu0
        %v8460 = vpop.f32.mrb[0].mxu0
        %v8461 = vadd.f32 %v8341, %v8460
        %v8462 = vpop.f32.mrb[0].mxu0
        %8463 = vmatprep.mubr.bf16.mxu0 0
        %8464 = vmatmul.mubr.bf16.gmra.mrb[0].mxu0 %v3239
        %v8465 = vpop.f32.mrb[0].mxu0
        %v8466 = vadd.f32 %v8341, %v8465
        %v8467 = vpop.f32.mrb[0].mxu0
        %v8468 = vpop.f32.mrb[0].mxu0
        %v8469 = vadd.f32 %v8341, %v8468
        %v8470 = vpop.f32.mrb[0].mxu0
        %8471 = vmatprep.mubr.bf16.mxu0 0
        %8472 = vmatmul.mubr.bf16.gmra.mrb[0].mxu0 %v3240
        %v8473 = vpop.f32.mrb[0].mxu0
        %v8474 = vadd.f32 %v8341, %v8473
        %v8475 = vpop.f32.mrb[0].mxu0
        %v8476 = vpop.f32.mrb[0].mxu0
        %v8477 = vadd.f32 %v8341, %v8476
        %v8478 = vpop.f32.mrb[0].mxu0
        %8479 = vmatprep.mubr.bf16.mxu0 0
        %8480 = vmatmul.mubr.bf16.gmra.mrb[0].mxu0 %v3241
        %v8481 = vpop.f32.mrb[0].mxu0
        %v8482 = vadd.f32 %v8341, %v8481
        %v8483 = vpop.f32.mrb[0].mxu0
        %v8484 = vpop.f32.mrb[0].mxu0
        %v8485 = vadd.f32 %v8341, %v8484
        %v8486 = vpop.f32.mrb[0].mxu0
        %8487 = vmatprep.mubr.bf16.mxu0 0
        %8488 = vmatmul.mubr.bf16.gmra.mrb[0].mxu0 %v3242
        %v8489 = vpop.f32.mrb[0].mxu0
        %v8490 = vadd.f32 %v8341, %v8489
        %v8491 = vpop.f32.mrb[0].mxu0
        %v8492 = vpop.f32.mrb[0].mxu0
        %v8493 = vadd.f32 %v8341, %v8492
        %v8494 = vpop.f32.mrb[0].mxu0
        %8495 = vmatprep.mubr.bf16.mxu0 0
        %8496 = vmatmul.mubr.bf16.gmra.mrb[0].mxu0 %v3243
        %v8497 = vpop.f32.mrb[0].mxu0
        %v8498 = vadd.f32 %v8341, %v8497
        %v8499 = vpop.f32.mrb[0].mxu0
        %v8500 = vpop.f32.mrb[0].mxu0
        %v8501 = vadd.f32 %v8341, %v8500
        %v8502 = vpop.f32.mrb[0].mxu0
        %8503 = vmatprep.mubr.bf16.mxu0 0
        %8504 = vmatmul.mubr.bf16.gmra.mrb[0].mxu0 %v3244
        %v8505 = vpop.f32.mrb[0].mxu0
        %v8506 = vadd.f32 %v8341, %v8505
        %v8507 = vpop.f32.mrb[0].mxu0
        %v8508 = vpop.f32.mrb[0].mxu0
        %v8509 = vadd.f32 %v8341, %v8508
        %v8510 = vpop.f32.mrb[0].mxu0
        %8511 = vmatprep.mubr.bf16.mxu0 0
        %8512 = vmatmul.mubr.bf16.gmra.mrb[0].mxu0 %v3245
        %v8513 = vpop.f32.mrb[0].mxu0
        %v8514 = vadd.f32 %v8341, %v8513
        %v8515 = vpop.f32.mrb[0].mxu0
        %v8516 = vpop.f32.mrb[0].mxu0
        %v8517 = vadd.f32 %v8341, %v8516
        %v8518 = vpop.f32.mrb[0].mxu0
        %8519 = vmatprep.mubr.bf16.mxu0 0
        %8520 = vmatmul.mubr.bf16.gmra.mrb[0].mxu0 %v3246
        %v8521 = vpop.f32.mrb[0].mxu0
        %v8522 = vadd.f32 %v8341, %v8521
        %v8523 = vpop.f32.mrb[0].mxu0
        %v8524 = vpop.f32.mrb[0].mxu0
        %v8525 = vadd.f32 %v8341, %v8524
        %v8526 = vpop.f32.mrb[0].mxu0
        %8527 = vmatprep.mubr.bf16.mxu0 0
        %8528 = vmatmul.mubr.bf16.gmra.mrb[0].mxu0 %v3247
        %v8529 = vpop.f32.mrb[0].mxu0
        %v8530 = vadd.f32 %v8341, %v8529
        %v8531 = vpop.f32.mrb[0].mxu0
        %v8532 = vpop.f32.mrb[0].mxu0
        %v8533 = vadd.f32 %v8341, %v8532
        %v8534 = vpop.f32.mrb[0].mxu0
        %8535 = vmatprep.mubr.bf16.mxu0 0
        %8536 = vmatmul.mubr.bf16.gmra.mrb[0].mxu0 %v3248
        %v8537 = vpop.f32.mrb[0].mxu0
        %v8538 = vadd.f32 %v8341, %v8537
        %v8539 = vpop.f32.mrb[0].mxu0
        %v8540 = vpop.f32.mrb[0].mxu0
        %v8541 = vadd.f32 %v8341, %v8540
        %v8542 = vpop.f32.mrb[0].mxu0
        %8543 = vmatprep.mubr.bf16.mxu0 0
        %8544 = vmatmul.mubr.bf16.gmra.mrb[0].mxu0 %v3249
        %v8545 = vpop.f32.mrb[0].mxu0
        %v8546 = vadd.f32 %v8341, %v8545
        %v8547 = vpop.f32.mrb[0].mxu0
        %v8548 = vpop.f32.mrb[0].mxu0
        %v8549 = vadd.f32 %v8341, %v8548
        %v8550 = vpop.f32.mrb[0].mxu0
        %8551 = vdwg.mxu0
        %v8552 = vxor.u32 %v8426, 2147483648
        %v8553 = vxor.u32 %v8429, 2147483648
        %v8554 = vxor.u32 %v8434, 2147483648
        %v8555 = vxor.u32 %v8437, 2147483648
        %v8556 = vxor.u32 %v8442, 2147483648
        %v8557 = vxor.u32 %v8445, 2147483648
        %v8558 = vxor.u32 %v8450, 2147483648
        %v8559 = vxor.u32 %v8453, 2147483648
        %v8560 = vxor.u32 %v8458, 2147483648
        %v8561 = vxor.u32 %v8461, 2147483648
        %v8562 = vxor.u32 %v8466, 2147483648
        %v8563 = vxor.u32 %v8469, 2147483648
        %v8564 = vxor.u32 %v8474, 2147483648
        %v8565 = vxor.u32 %v8477, 2147483648
        %v8566 = vxor.u32 %v8482, 2147483648
        %v8567 = vxor.u32 %v8485, 2147483648
        %v8568 = vxor.u32 %v8490, 2147483648
        %v8569 = vxor.u32 %v8493, 2147483648
        %v8570 = vxor.u32 %v8498, 2147483648
        %v8571 = vxor.u32 %v8501, 2147483648
        %v8572 = vxor.u32 %v8506, 2147483648
        %v8573 = vxor.u32 %v8509, 2147483648
        %v8574 = vxor.u32 %v8514, 2147483648
        %v8575 = vxor.u32 %v8517, 2147483648
        %v8576 = vxor.u32 %v8522, 2147483648
        %v8577 = vxor.u32 %v8525, 2147483648
        %v8578 = vxor.u32 %v8530, 2147483648
        %v8579 = vxor.u32 %v8533, 2147483648
        %v8580 = vxor.u32 %v8538, 2147483648
        %v8581 = vxor.u32 %v8541, 2147483648
        %v8582 = vxor.u32 %v8546, 2147483648
        %v8583 = vxor.u32 %v8549, 2147483648
        %v8584 = vmul.f32 %v8552, 1.442695
        %v8585 = vpow.pop %v8584
        %v8586 = vmul.f32 %v8553, 1.442695
        %v8587 = vpow.pop %v8586
        %v8588 = vmul.f32 %v8554, 1.442695
        %v8589 = vpow.pop %v8588
        %v8590 = vmul.f32 %v8555, 1.442695
        %v8591 = vpow.pop %v8590
        %v8592 = vmul.f32 %v8556, 1.442695
        %v8593 = vpow.pop %v8592
        %v8594 = vmul.f32 %v8557, 1.442695
        %v8595 = vpow.pop %v8594
        %v8596 = vmul.f32 %v8558, 1.442695
        %v8597 = vpow.pop %v8596
        %v8598 = vmul.f32 %v8559, 1.442695
        %v8599 = vpow.pop %v8598
        %v8600 = vmul.f32 %v8560, 1.442695
        %v8601 = vpow.pop %v8600
        %v8602 = vmul.f32 %v8561, 1.442695
        %v8603 = vpow.pop %v8602
        %v8604 = vmul.f32 %v8562, 1.442695
        %v8605 = vpow.pop %v8604
        %v8606 = vmul.f32 %v8563, 1.442695
        %v8607 = vpow.pop %v8606
        %v8608 = vmul.f32 %v8564, 1.442695
        %v8609 = vpow.pop %v8608
        %v8610 = vmul.f32 %v8565, 1.442695
        %v8611 = vpow.pop %v8610
        %v8612 = vmul.f32 %v8566, 1.442695
        %v8613 = vpow.pop %v8612
        %v8614 = vmul.f32 %v8567, 1.442695
        %v8615 = vpow.pop %v8614
        %v8616 = vmul.f32 %v8568, 1.442695
        %v8617 = vpow.pop %v8616
        %v8618 = vmul.f32 %v8569, 1.442695
        %v8619 = vpow.pop %v8618
        %v8620 = vmul.f32 %v8570, 1.442695
        %v8621 = vpow.pop %v8620
        %v8622 = vmul.f32 %v8571, 1.442695
        %v8623 = vpow.pop %v8622
        %v8624 = vmul.f32 %v8572, 1.442695
        %v8625 = vpow.pop %v8624
        %v8626 = vmul.f32 %v8573, 1.442695
        %v8627 = vpow.pop %v8626
        %v8628 = vmul.f32 %v8574, 1.442695
        %v8629 = vpow.pop %v8628
        %v8630 = vmul.f32 %v8575, 1.442695
        %v8631 = vpow.pop %v8630
        %v8632 = vmul.f32 %v8576, 1.442695
        %v8633 = vpow.pop %v8632
        %v8634 = vmul.f32 %v8577, 1.442695
        %v8635 = vpow.pop %v8634
        %v8636 = vmul.f32 %v8578, 1.442695
        %v8637 = vpow.pop %v8636
        %v8638 = vmul.f32 %v8579, 1.442695
        %v8639 = vpow.pop %v8638
        %v8640 = vmul.f32 %v8580, 1.442695
        %v8641 = vpow.pop %v8640
        %v8642 = vmul.f32 %v8581, 1.442695
        %v8643 = vpow.pop %v8642
        %v8644 = vmul.f32 %v8582, 1.442695
        %v8645 = vpow.pop %v8644
        %v8646 = vmul.f32 %v8583, 1.442695
        %v8647 = vpow.pop %v8646
        %v8648 = vadd.f32 %v8585, 1.0
        %v8649 = vadd.f32 %v8587, 1.0
        %v8650 = vadd.f32 %v8589, 1.0
        %v8651 = vadd.f32 %v8591, 1.0
        %v8652 = vadd.f32 %v8593, 1.0
        %v8653 = vadd.f32 %v8595, 1.0
        %v8654 = vadd.f32 %v8597, 1.0
        %v8655 = vadd.f32 %v8599, 1.0
        %v8656 = vadd.f32 %v8601, 1.0
        %v8657 = vadd.f32 %v8603, 1.0
        %v8658 = vadd.f32 %v8605, 1.0
        %v8659 = vadd.f32 %v8607, 1.0
        %v8660 = vadd.f32 %v8609, 1.0
        %v8661 = vadd.f32 %v8611, 1.0
        %v8662 = vadd.f32 %v8613, 1.0
        %v8663 = vadd.f32 %v8615, 1.0
        %v8664 = vadd.f32 %v8617, 1.0
        %v8665 = vadd.f32 %v8619, 1.0
        %v8666 = vadd.f32 %v8621, 1.0
        %v8667 = vadd.f32 %v8623, 1.0
        %v8668 = vadd.f32 %v8625, 1.0
        %v8669 = vadd.f32 %v8627, 1.0
        %v8670 = vadd.f32 %v8629, 1.0
        %v8671 = vadd.f32 %v8631, 1.0
        %v8672 = vadd.f32 %v8633, 1.0
        %v8673 = vadd.f32 %v8635, 1.0
        %v8674 = vadd.f32 %v8637, 1.0
        %v8675 = vadd.f32 %v8639, 1.0
        %v8676 = vadd.f32 %v8641, 1.0
        %v8677 = vadd.f32 %v8643, 1.0
        %v8678 = vadd.f32 %v8645, 1.0
        %v8679 = vadd.f32 %v8647, 1.0
        %v8680 = vrcp.pop %v8648
        %v8681 = vmul.f32 1.0, %v8680
        %v8682 = vrcp.pop %v8649
        %v8683 = vmul.f32 1.0, %v8682
        %v8684 = vrcp.pop %v8650
        %v8685 = vmul.f32 1.0, %v8684
        %v8686 = vrcp.pop %v8651
        %v8687 = vmul.f32 1.0, %v8686
        %v8688 = vrcp.pop %v8652
        %v8689 = vmul.f32 1.0, %v8688
        %v8690 = vrcp.pop %v8653
        %v8691 = vmul.f32 1.0, %v8690
        %v8692 = vrcp.pop %v8654
        %v8693 = vmul.f32 1.0, %v8692
        %v8694 = vrcp.pop %v8655
        %v8695 = vmul.f32 1.0, %v8694
        %v8696 = vrcp.pop %v8656
        %v8697 = vmul.f32 1.0, %v8696
        %v8698 = vrcp.pop %v8657
        %v8699 = vmul.f32 1.0, %v8698
        %v8700 = vrcp.pop %v8658
        %v8701 = vmul.f32 1.0, %v8700
        %v8702 = vrcp.pop %v8659
        %v8703 = vmul.f32 1.0, %v8702
        %v8704 = vrcp.pop %v8660
        %v8705 = vmul.f32 1.0, %v8704
        %v8706 = vrcp.pop %v8661
        %v8707 = vmul.f32 1.0, %v8706
        %v8708 = vrcp.pop %v8662
        %v8709 = vmul.f32 1.0, %v8708
        %v8710 = vrcp.pop %v8663
        %v8711 = vmul.f32 1.0, %v8710
        %v8712 = vrcp.pop %v8664
        %v8713 = vmul.f32 1.0, %v8712
        %v8714 = vrcp.pop %v8665
        %v8715 = vmul.f32 1.0, %v8714
        %v8716 = vrcp.pop %v8666
        %v8717 = vmul.f32 1.0, %v8716
        %v8718 = vrcp.pop %v8667
        %v8719 = vmul.f32 1.0, %v8718
        %v8720 = vrcp.pop %v8668
        %v8721 = vmul.f32 1.0, %v8720
        %v8722 = vrcp.pop %v8669
        %v8723 = vmul.f32 1.0, %v8722
        %v8724 = vrcp.pop %v8670
        %v8725 = vmul.f32 1.0, %v8724
        %v8726 = vrcp.pop %v8671
        %v8727 = vmul.f32 1.0, %v8726
        %v8728 = vrcp.pop %v8672
        %v8729 = vmul.f32 1.0, %v8728
        %v8730 = vrcp.pop %v8673
        %v8731 = vmul.f32 1.0, %v8730
        %v8732 = vrcp.pop %v8674
        %v8733 = vmul.f32 1.0, %v8732
        %v8734 = vrcp.pop %v8675
        %v8735 = vmul.f32 1.0, %v8734
        %v8736 = vrcp.pop %v8676
        %v8737 = vmul.f32 1.0, %v8736
        %v8738 = vrcp.pop %v8677
        %v8739 = vmul.f32 1.0, %v8738
        %v8740 = vrcp.pop %v8678
        %v8741 = vmul.f32 1.0, %v8740
        %v8742 = vrcp.pop %v8679
        %v8743 = vmul.f32 1.0, %v8742
        %v8744 = vmul.f32 %v8426, %v8681
        %v8745 = vmul.f32 %v8429, %v8683
        %v8746 = vmul.f32 %v8434, %v8685
        %v8747 = vmul.f32 %v8437, %v8687
        %v8748 = vmul.f32 %v8442, %v8689
        %v8749 = vmul.f32 %v8445, %v8691
        %v8750 = vmul.f32 %v8450, %v8693
        %v8751 = vmul.f32 %v8453, %v8695
        %v8752 = vmul.f32 %v8458, %v8697
        %v8753 = vmul.f32 %v8461, %v8699
        %v8754 = vmul.f32 %v8466, %v8701
        %v8755 = vmul.f32 %v8469, %v8703
        %v8756 = vmul.f32 %v8474, %v8705
        %v8757 = vmul.f32 %v8477, %v8707
        %v8758 = vmul.f32 %v8482, %v8709
        %v8759 = vmul.f32 %v8485, %v8711
        %v8760 = vmul.f32 %v8490, %v8713
        %v8761 = vmul.f32 %v8493, %v8715
        %v8762 = vmul.f32 %v8498, %v8717
        %v8763 = vmul.f32 %v8501, %v8719
        %v8764 = vmul.f32 %v8506, %v8721
        %v8765 = vmul.f32 %v8509, %v8723
        %v8766 = vmul.f32 %v8514, %v8725
        %v8767 = vmul.f32 %v8517, %v8727
        %v8768 = vmul.f32 %v8522, %v8729
        %v8769 = vmul.f32 %v8525, %v8731
        %v8770 = vmul.f32 %v8530, %v8733
        %v8771 = vmul.f32 %v8533, %v8735
        %v8772 = vmul.f32 %v8538, %v8737
        %v8773 = vmul.f32 %v8541, %v8739
        %v8774 = vmul.f32 %v8546, %v8741
        %v8775 = vmul.f32 %v8549, %v8743
        %v8776 = vadd.f32 %v8744, %v8745
        %v8777 = vadd.f32 %v8776, %v8746
        %v8778 = vadd.f32 %v8777, %v8747
        %v8779 = vadd.f32 %v8778, %v8748
        %v8780 = vadd.f32 %v8779, %v8749
        %v8781 = vadd.f32 %v8780, %v8750
        %v8782 = vadd.f32 %v8781, %v8751
        %v8783 = vrot.slane %v8782, 4
        %v8784 = vadd.f32 %v8782, %v8783
        %v8785 = vrot.slane %v8784, 2
        %v8786 = vadd.f32 %v8784, %v8785
        %v8787 = vrot.slane %v8786, 1
        %v8788 = vadd.f32 %v8786, %v8787
        %v8789 = vadd.f32 %v8752, %v8753
        %v8790 = vadd.f32 %v8789, %v8754
        %v8791 = vadd.f32 %v8790, %v8755
        %v8792 = vadd.f32 %v8791, %v8756
        %v8793 = vadd.f32 %v8792, %v8757
        %v8794 = vadd.f32 %v8793, %v8758
        %v8795 = vadd.f32 %v8794, %v8759
        %v8796 = vrot.slane %v8795, 4
        %v8797 = vadd.f32 %v8795, %v8796
        %v8798 = vrot.slane %v8797, 2
        %v8799 = vadd.f32 %v8797, %v8798
        %v8800 = vrot.slane %v8799, 1
        %v8801 = vadd.f32 %v8799, %v8800
        %v8802 = vadd.f32 %v8760, %v8761
        %v8803 = vadd.f32 %v8802, %v8762
        %v8804 = vadd.f32 %v8803, %v8763
        %v8805 = vadd.f32 %v8804, %v8764
        %v8806 = vadd.f32 %v8805, %v8765
        %v8807 = vadd.f32 %v8806, %v8766
        %v8808 = vadd.f32 %v8807, %v8767
        %v8809 = vrot.slane %v8808, 4
        %v8810 = vadd.f32 %v8808, %v8809
        %v8811 = vrot.slane %v8810, 2
        %v8812 = vadd.f32 %v8810, %v8811
        %v8813 = vrot.slane %v8812, 1
        %v8814 = vadd.f32 %v8812, %v8813
        %v8815 = vadd.f32 %v8768, %v8769
        %v8816 = vadd.f32 %v8815, %v8770
        %v8817 = vadd.f32 %v8816, %v8771
        %v8818 = vadd.f32 %v8817, %v8772
        %v8819 = vadd.f32 %v8818, %v8773
        %v8820 = vadd.f32 %v8819, %v8774
        %v8821 = vadd.f32 %v8820, %v8775
        %v8822 = vrot.slane %v8821, 4
        %v8823 = vadd.f32 %v8821, %v8822
        %v8824 = vrot.slane %v8823, 2
        %v8825 = vadd.f32 %v8823, %v8824
        %v8826 = vrot.slane %v8825, 1
        %v8827 = vadd.f32 %v8825, %v8826
        %v8828 = vmul.f32 %v8788, 0.015625
        %v8829 = vmul.f32 %v8801, 0.015625
        %v8830 = vmul.f32 %v8814, 0.015625
        %v8831 = vmul.f32 %v8827, 0.015625
        %v8832 = vpack.c.bf16 %v8828, %v8828
        %v8833 = vpack.c.bf16 %v8829, %v8829
        %v8834 = vpack.c.bf16 %v8830, %v8830
        %v8835 = vpack.c.bf16 %v8831, %v8831
        %v8836 = vld [vmem:[%s13 + $0x200] sm:$0xf]
        %v8837 = vld [vmem:[%s13 + $0x204] sm:$0xf]
        %v8838 = vld [vmem:[%s13 + $0x208] sm:$0xf]
        %v8839 = vld [vmem:[%s13 + $0x20c] sm:$0xf]
        %v8840 = vld [vmem:[%s13 + $0x210] sm:$0xf]
        %v8841 = vld [vmem:[%s13 + $0x214] sm:$0xf]
        %v8842 = vld [vmem:[%s13 + $0x218] sm:$0xf]
        %v8843 = vld [vmem:[%s13 + $0x21c] sm:$0xf]
        %v8844 = vld [vmem:[%s13 + $0x220] sm:$0xf]
        %v8845 = vld [vmem:[%s13 + $0x224] sm:$0xf]
        %v8846 = vld [vmem:[%s13 + $0x228] sm:$0xf]
        %v8847 = vld [vmem:[%s13 + $0x22c] sm:$0xf]
        %v8848 = vld [vmem:[%s13 + $0x230] sm:$0xf]
        %v8849 = vld [vmem:[%s13 + $0x234] sm:$0xf]
        %v8850 = vld [vmem:[%s13 + $0x238] sm:$0xf]
        %v8851 = vld [vmem:[%s13 + $0x23c] sm:$0xf]
        %v8856 = vunpack.c.l.b16 %v8832
        %v8857 = vunpack.c.l.b16 %v8833
        %v8858 = vunpack.c.l.b16 %v8834
        %v8859 = vunpack.c.l.b16 %v8835
        %v8860 = vsel %vm2936, %v8857, %v8856
        %v8861 = vsel %vm2938, %v8858, %v8860
        %v8862 = vsel %vm2940, %v8859, %v8861
        %v8863 = vpack.c.b16 %v8862, %v8862
        %v8881 = vunpack.c.l.b16 %v8836
        %v8882 = vunpack.c.l.b16 %v8837
        %v8883 = vunpack.c.l.b16 %v8838
        %v8884 = vunpack.c.l.b16 %v8839
        %v8885 = vunpack.c.l.b16 %v8840
        %v8886 = vunpack.c.l.b16 %v8841
        %v8887 = vunpack.c.l.b16 %v8842
        %v8888 = vunpack.c.l.b16 %v8843
        %v8889 = vunpack.c.l.b16 %v8844
        %v8890 = vunpack.c.l.b16 %v8845
        %v8891 = vunpack.c.l.b16 %v8846
        %v8892 = vunpack.c.l.b16 %v8847
        %v8893 = vunpack.c.l.b16 %v8848
        %v8894 = vunpack.c.l.b16 %v8849
        %v8895 = vunpack.c.l.b16 %v8850
        %v8896 = vunpack.c.l.b16 %v8851
        %v8897 = vpack.c.b16 %v8882, %v8881
        %v8898 = vpack.c.b16 %v8884, %v8883
        %v8899 = vpack.c.b16 %v8886, %v8885
        %v8900 = vpack.c.b16 %v8888, %v8887
        %v8901 = vpack.c.b16 %v8890, %v8889
        %v8902 = vpack.c.b16 %v8892, %v8891
        %v8903 = vpack.c.b16 %v8894, %v8893
        %v8904 = vpack.c.b16 %v8896, %v8895
        %8913 = vmatprep.subr.bf16.mxu0 0
        %8914 = vmatpush1.bf16.msra.mxu0 %v8897
        %8915 = vmatprep.subr.bf16.mxu0 0
        %8916 = vmatpush1.bf16.msra.mxu0 %v8898
        %8917 = vmatprep.subr.bf16.mxu0 0
        %8918 = vmatpush1.bf16.msra.mxu0 %v8899
        %8919 = vmatprep.subr.bf16.mxu0 0
        %8920 = vmatpush1.bf16.msra.mxu0 %v8900
        %8921 = vmatprep.subr.bf16.mxu0 0
        %8922 = vmatpush1.bf16.msra.mxu0 %v8901
        %8923 = vmatprep.subr.bf16.mxu0 0
        %8924 = vmatpush1.bf16.msra.mxu0 %v8902
        %8925 = vmatprep.subr.bf16.mxu0 0
        %8926 = vmatpush1.bf16.msra.mxu0 %v8903
        %8927 = vmatprep.subr.bf16.mxu0 0
        %8928 = vmatpush1.bf16.msra.mxu0 %v8904
        %8929 = vmatprep.subr.bf16.mxu0 0
        %8930 = vmatpush1.bf16.msra.mxu0 0
        %8931 = vmatprep.subr.bf16.mxu0 0
        %8932 = vmatpush1.bf16.msra.mxu0 0
        %8933 = vmatprep.subr.bf16.mxu0 0
        %8934 = vmatpush1.bf16.msra.mxu0 0
        %8935 = vmatprep.subr.bf16.mxu0 0
        %8936 = vmatpush1.bf16.msra.mxu0 0
        %8937 = vmatprep.subr.bf16.mxu0 0
        %8938 = vmatpush1.bf16.msra.mxu0 0
        %8939 = vmatprep.subr.bf16.mxu0 0
        %8940 = vmatpush1.bf16.msra.mxu0 0
        %8941 = vmatprep.subr.bf16.mxu0 0
        %8942 = vmatpush1.bf16.msra.mxu0 0
        %8943 = vmatprep.subr.bf16.mxu0 0
        %8944 = vmatpush1.bf16.msra.mxu0 0
        %8945 = vmatprep.mubr.bf16.mxu0 0
        %8946 = vmatmul.mubr.bf16.gmra.mrb[0].mxu0 %v8863
        %v8947 = vpop.f32.mrb[0].mxu0
        %v8948 = vadd.f32 0.0, %v8947
        %v8949 = vpop.f32.mrb[0].mxu0
        %v8950 = vpop.f32.mrb[0].mxu0
        %v8951 = vpop.f32.mrb[0].mxu0
        %8952 = vdwg.mxu0
        %v8953 = vadd.f32 %v8319, %v8948
        %v8954 = vld [vmem:[%s11 + $0x24] sm:$0xf]
        %v8955 = vld [vmem:[%s11 + $0x4c] sm:$0xf]
        %v8956 = vld [vmem:[%s11 + $0x74] sm:$0xf]
        %v8957 = vld [vmem:[%s11 + $0x9c] sm:$0xf]
        %v8958 = vld [vmem:[%s11 + $0xc4] sm:$0xf]
        %v8959 = vld [vmem:[%s11 + $0xec] sm:$0xf]
        %v8960 = vld [vmem:[%s11 + $0x114] sm:$0xf]
        %v8961 = vld [vmem:[%s11 + $0x13c] sm:$0xf]
        %v8962 = vld [vmem:[%s11 + $0x164] sm:$0xf]
        %v8963 = vld [vmem:[%s11 + $0x18c] sm:$0xf]
        %v8964 = vld [vmem:[%s11 + $0x1b4] sm:$0xf]
        %v8965 = vld [vmem:[%s11 + $0x1dc] sm:$0xf]
        %v8966 = vld [vmem:[%s11 + $0x204] sm:$0xf]
        %v8967 = vld [vmem:[%s11 + $0x22c] sm:$0xf]
        %v8968 = vld [vmem:[%s11 + $0x254] sm:$0xf]
        %v8969 = vld [vmem:[%s11 + $0x27c] sm:$0xf]
        %v8970 = vld [vmem:[%s12 + $0x9] sm:$0x1]
        %v8972 = vlaneseq
        %v8973 = vshrl.u32 %v8972, 7
        %v8974 = vsub.s32 0, %v8973
        %v8975 = vrot.slane %v8970, %v8974
        %v8993 = vunpack.c.l.b16 %v8954
        %v8994 = vunpack.c.l.b16 %v8955
        %v8995 = vunpack.c.l.b16 %v8956
        %v8996 = vunpack.c.l.b16 %v8957
        %v8997 = vunpack.c.l.b16 %v8958
        %v8998 = vunpack.c.l.b16 %v8959
        %v8999 = vunpack.c.l.b16 %v8960
        %v9000 = vunpack.c.l.b16 %v8961
        %v9001 = vunpack.c.l.b16 %v8962
        %v9002 = vunpack.c.l.b16 %v8963
        %v9003 = vunpack.c.l.b16 %v8964
        %v9004 = vunpack.c.l.b16 %v8965
        %v9005 = vunpack.c.l.b16 %v8966
        %v9006 = vunpack.c.l.b16 %v8967
        %v9007 = vunpack.c.l.b16 %v8968
        %v9008 = vunpack.c.l.b16 %v8969
        %v9009 = vpack.c.b16 %v8994, %v8993
        %v9010 = vpack.c.b16 %v8996, %v8995
        %v9011 = vpack.c.b16 %v8998, %v8997
        %v9012 = vpack.c.b16 %v9000, %v8999
        %v9013 = vpack.c.b16 %v9002, %v9001
        %v9014 = vpack.c.b16 %v9004, %v9003
        %v9015 = vpack.c.b16 %v9006, %v9005
        %v9016 = vpack.c.b16 %v9008, %v9007
        %9025 = vmatprep.subr.bf16.mxu0 0
        %9026 = vmatpush1.bf16.msra.mxu0 %v9009
        %9027 = vmatprep.subr.bf16.mxu0 0
        %9028 = vmatpush1.bf16.msra.mxu0 %v9010
        %9029 = vmatprep.subr.bf16.mxu0 0
        %9030 = vmatpush1.bf16.msra.mxu0 %v9011
        %9031 = vmatprep.subr.bf16.mxu0 0
        %9032 = vmatpush1.bf16.msra.mxu0 %v9012
        %9033 = vmatprep.subr.bf16.mxu0 0
        %9034 = vmatpush1.bf16.msra.mxu0 %v9013
        %9035 = vmatprep.subr.bf16.mxu0 0
        %9036 = vmatpush1.bf16.msra.mxu0 %v9014
        %9037 = vmatprep.subr.bf16.mxu0 0
        %9038 = vmatpush1.bf16.msra.mxu0 %v9015
        %9039 = vmatprep.subr.bf16.mxu0 0
        %9040 = vmatpush1.bf16.msra.mxu0 %v9016
        %9041 = vmatprep.subr.bf16.mxu0 0
        %9042 = vmatpush1.bf16.msra.mxu0 0
        %9043 = vmatprep.subr.bf16.mxu0 0
        %9044 = vmatpush1.bf16.msra.mxu0 0
        %9045 = vmatprep.subr.bf16.mxu0 0
        %9046 = vmatpush1.bf16.msra.mxu0 0
        %9047 = vmatprep.subr.bf16.mxu0 0
        %9048 = vmatpush1.bf16.msra.mxu0 0
        %9049 = vmatprep.subr.bf16.mxu0 0
        %9050 = vmatpush1.bf16.msra.mxu0 0
        %9051 = vmatprep.subr.bf16.mxu0 0
        %9052 = vmatpush1.bf16.msra.mxu0 0
        %9053 = vmatprep.subr.bf16.mxu0 0
        %9054 = vmatpush1.bf16.msra.mxu0 0
        %9055 = vmatprep.subr.bf16.mxu0 0
        %9056 = vmatpush1.bf16.msra.mxu0 0
        %9057 = vmatprep.mubr.bf16.mxu0 0
        %9058 = vmatmul.mubr.bf16.gmra.mrb[0].mxu0 %v3234
        %v9059 = vpop.f32.mrb[0].mxu0
        %v9060 = vadd.f32 %v8975, %v9059
        %v9061 = vpop.f32.mrb[0].mxu0
        %v9062 = vpop.f32.mrb[0].mxu0
        %v9063 = vadd.f32 %v8975, %v9062
        %v9064 = vpop.f32.mrb[0].mxu0
        %9065 = vmatprep.mubr.bf16.mxu0 0
        %9066 = vmatmul.mubr.bf16.gmra.mrb[0].mxu0 %v3235
        %v9067 = vpop.f32.mrb[0].mxu0
        %v9068 = vadd.f32 %v8975, %v9067
        %v9069 = vpop.f32.mrb[0].mxu0
        %v9070 = vpop.f32.mrb[0].mxu0
        %v9071 = vadd.f32 %v8975, %v9070
        %v9072 = vpop.f32.mrb[0].mxu0
        %9073 = vmatprep.mubr.bf16.mxu0 0
        %9074 = vmatmul.mubr.bf16.gmra.mrb[0].mxu0 %v3236
        %v9075 = vpop.f32.mrb[0].mxu0
        %v9076 = vadd.f32 %v8975, %v9075
        %v9077 = vpop.f32.mrb[0].mxu0
        %v9078 = vpop.f32.mrb[0].mxu0
        %v9079 = vadd.f32 %v8975, %v9078
        %v9080 = vpop.f32.mrb[0].mxu0
        %9081 = vmatprep.mubr.bf16.mxu0 0
        %9082 = vmatmul.mubr.bf16.gmra.mrb[0].mxu0 %v3237
        %v9083 = vpop.f32.mrb[0].mxu0
        %v9084 = vadd.f32 %v8975, %v9083
        %v9085 = vpop.f32.mrb[0].mxu0
        %v9086 = vpop.f32.mrb[0].mxu0
        %v9087 = vadd.f32 %v8975, %v9086
        %v9088 = vpop.f32.mrb[0].mxu0
        %9089 = vmatprep.mubr.bf16.mxu0 0
        %9090 = vmatmul.mubr.bf16.gmra.mrb[0].mxu0 %v3238
        %v9091 = vpop.f32.mrb[0].mxu0
        %v9092 = vadd.f32 %v8975, %v9091
        %v9093 = vpop.f32.mrb[0].mxu0
        %v9094 = vpop.f32.mrb[0].mxu0
        %v9095 = vadd.f32 %v8975, %v9094
        %v9096 = vpop.f32.mrb[0].mxu0
        %9097 = vmatprep.mubr.bf16.mxu0 0
        %9098 = vmatmul.mubr.bf16.gmra.mrb[0].mxu0 %v3239
        %v9099 = vpop.f32.mrb[0].mxu0
        %v9100 = vadd.f32 %v8975, %v9099
        %v9101 = vpop.f32.mrb[0].mxu0
        %v9102 = vpop.f32.mrb[0].mxu0
        %v9103 = vadd.f32 %v8975, %v9102
        %v9104 = vpop.f32.mrb[0].mxu0
        %9105 = vmatprep.mubr.bf16.mxu0 0
        %9106 = vmatmul.mubr.bf16.gmra.mrb[0].mxu0 %v3240
        %v9107 = vpop.f32.mrb[0].mxu0
        %v9108 = vadd.f32 %v8975, %v9107
        %v9109 = vpop.f32.mrb[0].mxu0
        %v9110 = vpop.f32.mrb[0].mxu0
        %v9111 = vadd.f32 %v8975, %v9110
        %v9112 = vpop.f32.mrb[0].mxu0
        %9113 = vmatprep.mubr.bf16.mxu0 0
        %9114 = vmatmul.mubr.bf16.gmra.mrb[0].mxu0 %v3241
        %v9115 = vpop.f32.mrb[0].mxu0
        %v9116 = vadd.f32 %v8975, %v9115
        %v9117 = vpop.f32.mrb[0].mxu0
        %v9118 = vpop.f32.mrb[0].mxu0
        %v9119 = vadd.f32 %v8975, %v9118
        %v9120 = vpop.f32.mrb[0].mxu0
        %9121 = vmatprep.mubr.bf16.mxu0 0
        %9122 = vmatmul.mubr.bf16.gmra.mrb[0].mxu0 %v3242
        %v9123 = vpop.f32.mrb[0].mxu0
        %v9124 = vadd.f32 %v8975, %v9123
        %v9125 = vpop.f32.mrb[0].mxu0
        %v9126 = vpop.f32.mrb[0].mxu0
        %v9127 = vadd.f32 %v8975, %v9126
        %v9128 = vpop.f32.mrb[0].mxu0
        %9129 = vmatprep.mubr.bf16.mxu0 0
        %9130 = vmatmul.mubr.bf16.gmra.mrb[0].mxu0 %v3243
        %v9131 = vpop.f32.mrb[0].mxu0
        %v9132 = vadd.f32 %v8975, %v9131
        %v9133 = vpop.f32.mrb[0].mxu0
        %v9134 = vpop.f32.mrb[0].mxu0
        %v9135 = vadd.f32 %v8975, %v9134
        %v9136 = vpop.f32.mrb[0].mxu0
        %9137 = vmatprep.mubr.bf16.mxu0 0
        %9138 = vmatmul.mubr.bf16.gmra.mrb[0].mxu0 %v3244
        %v9139 = vpop.f32.mrb[0].mxu0
        %v9140 = vadd.f32 %v8975, %v9139
        %v9141 = vpop.f32.mrb[0].mxu0
        %v9142 = vpop.f32.mrb[0].mxu0
        %v9143 = vadd.f32 %v8975, %v9142
        %v9144 = vpop.f32.mrb[0].mxu0
        %9145 = vmatprep.mubr.bf16.mxu0 0
        %9146 = vmatmul.mubr.bf16.gmra.mrb[0].mxu0 %v3245
        %v9147 = vpop.f32.mrb[0].mxu0
        %v9148 = vadd.f32 %v8975, %v9147
        %v9149 = vpop.f32.mrb[0].mxu0
        %v9150 = vpop.f32.mrb[0].mxu0
        %v9151 = vadd.f32 %v8975, %v9150
        %v9152 = vpop.f32.mrb[0].mxu0
        %9153 = vmatprep.mubr.bf16.mxu0 0
        %9154 = vmatmul.mubr.bf16.gmra.mrb[0].mxu0 %v3246
        %v9155 = vpop.f32.mrb[0].mxu0
        %v9156 = vadd.f32 %v8975, %v9155
        %v9157 = vpop.f32.mrb[0].mxu0
        %v9158 = vpop.f32.mrb[0].mxu0
        %v9159 = vadd.f32 %v8975, %v9158
        %v9160 = vpop.f32.mrb[0].mxu0
        %9161 = vmatprep.mubr.bf16.mxu0 0
        %9162 = vmatmul.mubr.bf16.gmra.mrb[0].mxu0 %v3247
        %v9163 = vpop.f32.mrb[0].mxu0
        %v9164 = vadd.f32 %v8975, %v9163
        %v9165 = vpop.f32.mrb[0].mxu0
        %v9166 = vpop.f32.mrb[0].mxu0
        %v9167 = vadd.f32 %v8975, %v9166
        %v9168 = vpop.f32.mrb[0].mxu0
        %9169 = vmatprep.mubr.bf16.mxu0 0
        %9170 = vmatmul.mubr.bf16.gmra.mrb[0].mxu0 %v3248
        %v9171 = vpop.f32.mrb[0].mxu0
        %v9172 = vadd.f32 %v8975, %v9171
        %v9173 = vpop.f32.mrb[0].mxu0
        %v9174 = vpop.f32.mrb[0].mxu0
        %v9175 = vadd.f32 %v8975, %v9174
        %v9176 = vpop.f32.mrb[0].mxu0
        %9177 = vmatprep.mubr.bf16.mxu0 0
        %9178 = vmatmul.mubr.bf16.gmra.mrb[0].mxu0 %v3249
        %v9179 = vpop.f32.mrb[0].mxu0
        %v9180 = vadd.f32 %v8975, %v9179
        %v9181 = vpop.f32.mrb[0].mxu0
        %v9182 = vpop.f32.mrb[0].mxu0
        %v9183 = vadd.f32 %v8975, %v9182
        %v9184 = vpop.f32.mrb[0].mxu0
        %9185 = vdwg.mxu0
        %v9186 = vxor.u32 %v9060, 2147483648
        %v9187 = vxor.u32 %v9063, 2147483648
        %v9188 = vxor.u32 %v9068, 2147483648
        %v9189 = vxor.u32 %v9071, 2147483648
        %v9190 = vxor.u32 %v9076, 2147483648
        %v9191 = vxor.u32 %v9079, 2147483648
        %v9192 = vxor.u32 %v9084, 2147483648
        %v9193 = vxor.u32 %v9087, 2147483648
        %v9194 = vxor.u32 %v9092, 2147483648
        %v9195 = vxor.u32 %v9095, 2147483648
        %v9196 = vxor.u32 %v9100, 2147483648
        %v9197 = vxor.u32 %v9103, 2147483648
        %v9198 = vxor.u32 %v9108, 2147483648
        %v9199 = vxor.u32 %v9111, 2147483648
        %v9200 = vxor.u32 %v9116, 2147483648
        %v9201 = vxor.u32 %v9119, 2147483648
        %v9202 = vxor.u32 %v9124, 2147483648
        %v9203 = vxor.u32 %v9127, 2147483648
        %v9204 = vxor.u32 %v9132, 2147483648
        %v9205 = vxor.u32 %v9135, 2147483648
        %v9206 = vxor.u32 %v9140, 2147483648
        %v9207 = vxor.u32 %v9143, 2147483648
        %v9208 = vxor.u32 %v9148, 2147483648
        %v9209 = vxor.u32 %v9151, 2147483648
        %v9210 = vxor.u32 %v9156, 2147483648
        %v9211 = vxor.u32 %v9159, 2147483648
        %v9212 = vxor.u32 %v9164, 2147483648
        %v9213 = vxor.u32 %v9167, 2147483648
        %v9214 = vxor.u32 %v9172, 2147483648
        %v9215 = vxor.u32 %v9175, 2147483648
        %v9216 = vxor.u32 %v9180, 2147483648
        %v9217 = vxor.u32 %v9183, 2147483648
        %v9218 = vmul.f32 %v9186, 1.442695
        %v9219 = vpow.pop %v9218
        %v9220 = vmul.f32 %v9187, 1.442695
        %v9221 = vpow.pop %v9220
        %v9222 = vmul.f32 %v9188, 1.442695
        %v9223 = vpow.pop %v9222
        %v9224 = vmul.f32 %v9189, 1.442695
        %v9225 = vpow.pop %v9224
        %v9226 = vmul.f32 %v9190, 1.442695
        %v9227 = vpow.pop %v9226
        %v9228 = vmul.f32 %v9191, 1.442695
        %v9229 = vpow.pop %v9228
        %v9230 = vmul.f32 %v9192, 1.442695
        %v9231 = vpow.pop %v9230
        %v9232 = vmul.f32 %v9193, 1.442695
        %v9233 = vpow.pop %v9232
        %v9234 = vmul.f32 %v9194, 1.442695
        %v9235 = vpow.pop %v9234
        %v9236 = vmul.f32 %v9195, 1.442695
        %v9237 = vpow.pop %v9236
        %v9238 = vmul.f32 %v9196, 1.442695
        %v9239 = vpow.pop %v9238
        %v9240 = vmul.f32 %v9197, 1.442695
        %v9241 = vpow.pop %v9240
        %v9242 = vmul.f32 %v9198, 1.442695
        %v9243 = vpow.pop %v9242
        %v9244 = vmul.f32 %v9199, 1.442695
        %v9245 = vpow.pop %v9244
        %v9246 = vmul.f32 %v9200, 1.442695
        %v9247 = vpow.pop %v9246
        %v9248 = vmul.f32 %v9201, 1.442695
        %v9249 = vpow.pop %v9248
        %v9250 = vmul.f32 %v9202, 1.442695
        %v9251 = vpow.pop %v9250
        %v9252 = vmul.f32 %v9203, 1.442695
        %v9253 = vpow.pop %v9252
        %v9254 = vmul.f32 %v9204, 1.442695
        %v9255 = vpow.pop %v9254
        %v9256 = vmul.f32 %v9205, 1.442695
        %v9257 = vpow.pop %v9256
        %v9258 = vmul.f32 %v9206, 1.442695
        %v9259 = vpow.pop %v9258
        %v9260 = vmul.f32 %v9207, 1.442695
        %v9261 = vpow.pop %v9260
        %v9262 = vmul.f32 %v9208, 1.442695
        %v9263 = vpow.pop %v9262
        %v9264 = vmul.f32 %v9209, 1.442695
        %v9265 = vpow.pop %v9264
        %v9266 = vmul.f32 %v9210, 1.442695
        %v9267 = vpow.pop %v9266
        %v9268 = vmul.f32 %v9211, 1.442695
        %v9269 = vpow.pop %v9268
        %v9270 = vmul.f32 %v9212, 1.442695
        %v9271 = vpow.pop %v9270
        %v9272 = vmul.f32 %v9213, 1.442695
        %v9273 = vpow.pop %v9272
        %v9274 = vmul.f32 %v9214, 1.442695
        %v9275 = vpow.pop %v9274
        %v9276 = vmul.f32 %v9215, 1.442695
        %v9277 = vpow.pop %v9276
        %v9278 = vmul.f32 %v9216, 1.442695
        %v9279 = vpow.pop %v9278
        %v9280 = vmul.f32 %v9217, 1.442695
        %v9281 = vpow.pop %v9280
        %v9282 = vadd.f32 %v9219, 1.0
        %v9283 = vadd.f32 %v9221, 1.0
        %v9284 = vadd.f32 %v9223, 1.0
        %v9285 = vadd.f32 %v9225, 1.0
        %v9286 = vadd.f32 %v9227, 1.0
        %v9287 = vadd.f32 %v9229, 1.0
        %v9288 = vadd.f32 %v9231, 1.0
        %v9289 = vadd.f32 %v9233, 1.0
        %v9290 = vadd.f32 %v9235, 1.0
        %v9291 = vadd.f32 %v9237, 1.0
        %v9292 = vadd.f32 %v9239, 1.0
        %v9293 = vadd.f32 %v9241, 1.0
        %v9294 = vadd.f32 %v9243, 1.0
        %v9295 = vadd.f32 %v9245, 1.0
        %v9296 = vadd.f32 %v9247, 1.0
        %v9297 = vadd.f32 %v9249, 1.0
        %v9298 = vadd.f32 %v9251, 1.0
        %v9299 = vadd.f32 %v9253, 1.0
        %v9300 = vadd.f32 %v9255, 1.0
        %v9301 = vadd.f32 %v9257, 1.0
        %v9302 = vadd.f32 %v9259, 1.0
        %v9303 = vadd.f32 %v9261, 1.0
        %v9304 = vadd.f32 %v9263, 1.0
        %v9305 = vadd.f32 %v9265, 1.0
        %v9306 = vadd.f32 %v9267, 1.0
        %v9307 = vadd.f32 %v9269, 1.0
        %v9308 = vadd.f32 %v9271, 1.0
        %v9309 = vadd.f32 %v9273, 1.0
        %v9310 = vadd.f32 %v9275, 1.0
        %v9311 = vadd.f32 %v9277, 1.0
        %v9312 = vadd.f32 %v9279, 1.0
        %v9313 = vadd.f32 %v9281, 1.0
        %v9314 = vrcp.pop %v9282
        %v9315 = vmul.f32 1.0, %v9314
        %v9316 = vrcp.pop %v9283
        %v9317 = vmul.f32 1.0, %v9316
        %v9318 = vrcp.pop %v9284
        %v9319 = vmul.f32 1.0, %v9318
        %v9320 = vrcp.pop %v9285
        %v9321 = vmul.f32 1.0, %v9320
        %v9322 = vrcp.pop %v9286
        %v9323 = vmul.f32 1.0, %v9322
        %v9324 = vrcp.pop %v9287
        %v9325 = vmul.f32 1.0, %v9324
        %v9326 = vrcp.pop %v9288
        %v9327 = vmul.f32 1.0, %v9326
        %v9328 = vrcp.pop %v9289
        %v9329 = vmul.f32 1.0, %v9328
        %v9330 = vrcp.pop %v9290
        %v9331 = vmul.f32 1.0, %v9330
        %v9332 = vrcp.pop %v9291
        %v9333 = vmul.f32 1.0, %v9332
        %v9334 = vrcp.pop %v9292
        %v9335 = vmul.f32 1.0, %v9334
        %v9336 = vrcp.pop %v9293
        %v9337 = vmul.f32 1.0, %v9336
        %v9338 = vrcp.pop %v9294
        %v9339 = vmul.f32 1.0, %v9338
        %v9340 = vrcp.pop %v9295
        %v9341 = vmul.f32 1.0, %v9340
        %v9342 = vrcp.pop %v9296
        %v9343 = vmul.f32 1.0, %v9342
        %v9344 = vrcp.pop %v9297
        %v9345 = vmul.f32 1.0, %v9344
        %v9346 = vrcp.pop %v9298
        %v9347 = vmul.f32 1.0, %v9346
        %v9348 = vrcp.pop %v9299
        %v9349 = vmul.f32 1.0, %v9348
        %v9350 = vrcp.pop %v9300
        %v9351 = vmul.f32 1.0, %v9350
        %v9352 = vrcp.pop %v9301
        %v9353 = vmul.f32 1.0, %v9352
        %v9354 = vrcp.pop %v9302
        %v9355 = vmul.f32 1.0, %v9354
        %v9356 = vrcp.pop %v9303
        %v9357 = vmul.f32 1.0, %v9356
        %v9358 = vrcp.pop %v9304
        %v9359 = vmul.f32 1.0, %v9358
        %v9360 = vrcp.pop %v9305
        %v9361 = vmul.f32 1.0, %v9360
        %v9362 = vrcp.pop %v9306
        %v9363 = vmul.f32 1.0, %v9362
        %v9364 = vrcp.pop %v9307
        %v9365 = vmul.f32 1.0, %v9364
        %v9366 = vrcp.pop %v9308
        %v9367 = vmul.f32 1.0, %v9366
        %v9368 = vrcp.pop %v9309
        %v9369 = vmul.f32 1.0, %v9368
        %v9370 = vrcp.pop %v9310
        %v9371 = vmul.f32 1.0, %v9370
        %v9372 = vrcp.pop %v9311
        %v9373 = vmul.f32 1.0, %v9372
        %v9374 = vrcp.pop %v9312
        %v9375 = vmul.f32 1.0, %v9374
        %v9376 = vrcp.pop %v9313
        %v9377 = vmul.f32 1.0, %v9376
        %v9378 = vmul.f32 %v9060, %v9315
        %v9379 = vmul.f32 %v9063, %v9317
        %v9380 = vmul.f32 %v9068, %v9319
        %v9381 = vmul.f32 %v9071, %v9321
        %v9382 = vmul.f32 %v9076, %v9323
        %v9383 = vmul.f32 %v9079, %v9325
        %v9384 = vmul.f32 %v9084, %v9327
        %v9385 = vmul.f32 %v9087, %v9329
        %v9386 = vmul.f32 %v9092, %v9331
        %v9387 = vmul.f32 %v9095, %v9333
        %v9388 = vmul.f32 %v9100, %v9335
        %v9389 = vmul.f32 %v9103, %v9337
        %v9390 = vmul.f32 %v9108, %v9339
        %v9391 = vmul.f32 %v9111, %v9341
        %v9392 = vmul.f32 %v9116, %v9343
        %v9393 = vmul.f32 %v9119, %v9345
        %v9394 = vmul.f32 %v9124, %v9347
        %v9395 = vmul.f32 %v9127, %v9349
        %v9396 = vmul.f32 %v9132, %v9351
        %v9397 = vmul.f32 %v9135, %v9353
        %v9398 = vmul.f32 %v9140, %v9355
        %v9399 = vmul.f32 %v9143, %v9357
        %v9400 = vmul.f32 %v9148, %v9359
        %v9401 = vmul.f32 %v9151, %v9361
        %v9402 = vmul.f32 %v9156, %v9363
        %v9403 = vmul.f32 %v9159, %v9365
        %v9404 = vmul.f32 %v9164, %v9367
        %v9405 = vmul.f32 %v9167, %v9369
        %v9406 = vmul.f32 %v9172, %v9371
        %v9407 = vmul.f32 %v9175, %v9373
        %v9408 = vmul.f32 %v9180, %v9375
        %v9409 = vmul.f32 %v9183, %v9377
        %v9410 = vadd.f32 %v9378, %v9379
        %v9411 = vadd.f32 %v9410, %v9380
        %v9412 = vadd.f32 %v9411, %v9381
        %v9413 = vadd.f32 %v9412, %v9382
        %v9414 = vadd.f32 %v9413, %v9383
        %v9415 = vadd.f32 %v9414, %v9384
        %v9416 = vadd.f32 %v9415, %v9385
        %v9417 = vrot.slane %v9416, 4
        %v9418 = vadd.f32 %v9416, %v9417
        %v9419 = vrot.slane %v9418, 2
        %v9420 = vadd.f32 %v9418, %v9419
        %v9421 = vrot.slane %v9420, 1
        %v9422 = vadd.f32 %v9420, %v9421
        %v9423 = vadd.f32 %v9386, %v9387
        %v9424 = vadd.f32 %v9423, %v9388
        %v9425 = vadd.f32 %v9424, %v9389
        %v9426 = vadd.f32 %v9425, %v9390
        %v9427 = vadd.f32 %v9426, %v9391
        %v9428 = vadd.f32 %v9427, %v9392
        %v9429 = vadd.f32 %v9428, %v9393
        %v9430 = vrot.slane %v9429, 4
        %v9431 = vadd.f32 %v9429, %v9430
        %v9432 = vrot.slane %v9431, 2
        %v9433 = vadd.f32 %v9431, %v9432
        %v9434 = vrot.slane %v9433, 1
        %v9435 = vadd.f32 %v9433, %v9434
        %v9436 = vadd.f32 %v9394, %v9395
        %v9437 = vadd.f32 %v9436, %v9396
        %v9438 = vadd.f32 %v9437, %v9397
        %v9439 = vadd.f32 %v9438, %v9398
        %v9440 = vadd.f32 %v9439, %v9399
        %v9441 = vadd.f32 %v9440, %v9400
        %v9442 = vadd.f32 %v9441, %v9401
        %v9443 = vrot.slane %v9442, 4
        %v9444 = vadd.f32 %v9442, %v9443
        %v9445 = vrot.slane %v9444, 2
        %v9446 = vadd.f32 %v9444, %v9445
        %v9447 = vrot.slane %v9446, 1
        %v9448 = vadd.f32 %v9446, %v9447
        %v9449 = vadd.f32 %v9402, %v9403
        %v9450 = vadd.f32 %v9449, %v9404
        %v9451 = vadd.f32 %v9450, %v9405
        %v9452 = vadd.f32 %v9451, %v9406
        %v9453 = vadd.f32 %v9452, %v9407
        %v9454 = vadd.f32 %v9453, %v9408
        %v9455 = vadd.f32 %v9454, %v9409
        %v9456 = vrot.slane %v9455, 4
        %v9457 = vadd.f32 %v9455, %v9456
        %v9458 = vrot.slane %v9457, 2
        %v9459 = vadd.f32 %v9457, %v9458
        %v9460 = vrot.slane %v9459, 1
        %v9461 = vadd.f32 %v9459, %v9460
        %v9462 = vmul.f32 %v9422, 0.015625
        %v9463 = vmul.f32 %v9435, 0.015625
        %v9464 = vmul.f32 %v9448, 0.015625
        %v9465 = vmul.f32 %v9461, 0.015625
        %v9466 = vpack.c.bf16 %v9462, %v9462
        %v9467 = vpack.c.bf16 %v9463, %v9463
        %v9468 = vpack.c.bf16 %v9464, %v9464
        %v9469 = vpack.c.bf16 %v9465, %v9465
        %v9470 = vld [vmem:[%s13 + $0x240] sm:$0xf]
        %v9471 = vld [vmem:[%s13 + $0x244] sm:$0xf]
        %v9472 = vld [vmem:[%s13 + $0x248] sm:$0xf]
        %v9473 = vld [vmem:[%s13 + $0x24c] sm:$0xf]
        %v9474 = vld [vmem:[%s13 + $0x250] sm:$0xf]
        %v9475 = vld [vmem:[%s13 + $0x254] sm:$0xf]
        %v9476 = vld [vmem:[%s13 + $0x258] sm:$0xf]
        %v9477 = vld [vmem:[%s13 + $0x25c] sm:$0xf]
        %v9478 = vld [vmem:[%s13 + $0x260] sm:$0xf]
        %v9479 = vld [vmem:[%s13 + $0x264] sm:$0xf]
        %v9480 = vld [vmem:[%s13 + $0x268] sm:$0xf]
        %v9481 = vld [vmem:[%s13 + $0x26c] sm:$0xf]
        %v9482 = vld [vmem:[%s13 + $0x270] sm:$0xf]
        %v9483 = vld [vmem:[%s13 + $0x274] sm:$0xf]
        %v9484 = vld [vmem:[%s13 + $0x278] sm:$0xf]
        %v9485 = vld [vmem:[%s13 + $0x27c] sm:$0xf]
        %v9490 = vunpack.c.l.b16 %v9466
        %v9491 = vunpack.c.l.b16 %v9467
        %v9492 = vunpack.c.l.b16 %v9468
        %v9493 = vunpack.c.l.b16 %v9469
        %v9494 = vsel %vm2936, %v9491, %v9490
        %v9495 = vsel %vm2938, %v9492, %v9494
        %v9496 = vsel %vm2940, %v9493, %v9495
        %v9497 = vpack.c.b16 %v9496, %v9496
        %v9515 = vunpack.c.l.b16 %v9470
        %v9516 = vunpack.c.l.b16 %v9471
        %v9517 = vunpack.c.l.b16 %v9472
        %v9518 = vunpack.c.l.b16 %v9473
        %v9519 = vunpack.c.l.b16 %v9474
        %v9520 = vunpack.c.l.b16 %v9475
        %v9521 = vunpack.c.l.b16 %v9476
        %v9522 = vunpack.c.l.b16 %v9477
        %v9523 = vunpack.c.l.b16 %v9478
        %v9524 = vunpack.c.l.b16 %v9479
        %v9525 = vunpack.c.l.b16 %v9480
        %v9526 = vunpack.c.l.b16 %v9481
        %v9527 = vunpack.c.l.b16 %v9482
        %v9528 = vunpack.c.l.b16 %v9483
        %v9529 = vunpack.c.l.b16 %v9484
        %v9530 = vunpack.c.l.b16 %v9485
        %v9531 = vpack.c.b16 %v9516, %v9515
        %v9532 = vpack.c.b16 %v9518, %v9517
        %v9533 = vpack.c.b16 %v9520, %v9519
        %v9534 = vpack.c.b16 %v9522, %v9521
        %v9535 = vpack.c.b16 %v9524, %v9523
        %v9536 = vpack.c.b16 %v9526, %v9525
        %v9537 = vpack.c.b16 %v9528, %v9527
        %v9538 = vpack.c.b16 %v9530, %v9529
        %9547 = vmatprep.subr.bf16.mxu0 0
        %9548 = vmatpush1.bf16.msra.mxu0 %v9531
        %9549 = vmatprep.subr.bf16.mxu0 0
        %9550 = vmatpush1.bf16.msra.mxu0 %v9532
        %9551 = vmatprep.subr.bf16.mxu0 0
        %9552 = vmatpush1.bf16.msra.mxu0 %v9533
        %9553 = vmatprep.subr.bf16.mxu0 0
        %9554 = vmatpush1.bf16.msra.mxu0 %v9534
        %9555 = vmatprep.subr.bf16.mxu0 0
        %9556 = vmatpush1.bf16.msra.mxu0 %v9535
        %9557 = vmatprep.subr.bf16.mxu0 0
        %9558 = vmatpush1.bf16.msra.mxu0 %v9536
        %9559 = vmatprep.subr.bf16.mxu0 0
        %9560 = vmatpush1.bf16.msra.mxu0 %v9537
        %9561 = vmatprep.subr.bf16.mxu0 0
        %9562 = vmatpush1.bf16.msra.mxu0 %v9538
        %9563 = vmatprep.subr.bf16.mxu0 0
        %9564 = vmatpush1.bf16.msra.mxu0 0
        %9565 = vmatprep.subr.bf16.mxu0 0
        %9566 = vmatpush1.bf16.msra.mxu0 0
        %9567 = vmatprep.subr.bf16.mxu0 0
        %9568 = vmatpush1.bf16.msra.mxu0 0
        %9569 = vmatprep.subr.bf16.mxu0 0
        %9570 = vmatpush1.bf16.msra.mxu0 0
        %9571 = vmatprep.subr.bf16.mxu0 0
        %9572 = vmatpush1.bf16.msra.mxu0 0
        %9573 = vmatprep.subr.bf16.mxu0 0
        %9574 = vmatpush1.bf16.msra.mxu0 0
        %9575 = vmatprep.subr.bf16.mxu0 0
        %9576 = vmatpush1.bf16.msra.mxu0 0
        %9577 = vmatprep.subr.bf16.mxu0 0
        %9578 = vmatpush1.bf16.msra.mxu0 0
        %9579 = vmatprep.mubr.bf16.mxu0 0
        %9580 = vmatmul.mubr.bf16.gmra.mrb[0].mxu0 %v9497
        %v9581 = vpop.f32.mrb[0].mxu0
        %v9582 = vadd.f32 0.0, %v9581
        %v9583 = vpop.f32.mrb[0].mxu0
        %v9584 = vpop.f32.mrb[0].mxu0
        %v9585 = vpop.f32.mrb[0].mxu0
        %9586 = vdwg.mxu0
        %v9587 = vadd.f32 %v8953, %v9582
        %v9588 = vld [vmem:[%s14] sm:$0x1]
        %v9590 = vlaneseq
        %v9591 = vshrl.u32 %v9590, 7
        %v9592 = vsub.s32 0, %v9591
        %v9593 = vrot.slane %v9588, %v9592
        %v9595 = vadd.f32 %v9587, %v9593
        %9596 = vst [vmem:[%s490] sm:$0xf] %v9595
        %s9597 = sand.u32 %s357, 1
        %s9598 = scalar_lea.sflag [#allocation4], %s9597
        %s9599 = sand.u32 %s357, 1
        %s9600 = smul.addr %s9599, 4
        %s9601 = scalar_lea.vmem [#allocation3], %s9600
        // Predicated region
        $region81: #{efficientnet_forward.1} parent=79 // pred_check
          %p9602 = pneg %p367
        $region82: #{efficientnet_forward.1} parent=79 // pred_check_branch
          %9604 = sbr.rel (%p9602) target = $region84
        $region83: #{efficientnet_forward.1} parent=79 // pred_region
          %s9606 = ssub.s32 64, 64
          %9607 = vsyncadd %s9598, %s9606
          %s9608 = smul.addr %s29, 64
          %s9609 = scalar_lea.hbm %s15, %s9608
          %s9611 = sshll.u32 %s9601, 4
          %s9612 = int_to_ptr.vmem [resolvable:$true] %s9611
          %9614 = dma.vmem_to_hbm [thread:$0]  %s9612, 64, %s9609, %s9598
        $region84: #{efficientnet_forward.1} parent=79 // pred_fallthru
          _
      $region80: #{efficientnet_forward.1} parent=5 // pred_fallthru
        _
      %p9615 = scmp.le.s32.totalorder 2, %s24
      // Predicated region
      $region85: #{efficientnet_forward.1} parent=5 // pred_check
        %p9616 = pneg %p9615
      $region86: #{efficientnet_forward.1} parent=5 // pred_check_branch
        %9618 = sbr.rel (%p9616) target = $region88
      $region87: #{efficientnet_forward.1} parent=5 // pred_region
        %s9619 = ssub.s32 %s24, 2
        // Predicated region
        $region89: #{efficientnet_forward.1} parent=87 // pred_check
          %p9620 = pneg %p373
        $region90: #{efficientnet_forward.1} parent=87 // pred_check_branch
          %9622 = sbr.rel (%p9620) target = $region92
        $region91: #{efficientnet_forward.1} parent=87 // pred_region
          %s9623 = sand.u32 %s358, 1
          %s9624 = scalar_lea.sflag [#allocation4], %s9623
          %s9625 = sand.u32 %s358, 1
          %s9626 = smul.addr %s9625, 4
          %s9627 = scalar_lea.vmem [#allocation3], %s9626
          %9628 = dma.done %s9624, 64
        $region92: #{efficientnet_forward.1} parent=87 // pred_fallthru
          _
      $region88: #{efficientnet_forward.1} parent=5 // pred_fallthru
        _
    $region6: #{efficientnet_forward.1} parent=1 // loop_footer
      %s28 = sadd.s32 1, %s24
    $region7: #{efficientnet_forward.1} parent=1 // loop_footer_branch
      %23 = sbr.rel target = $region3
    $region8: #{efficientnet_forward.1} parent=1 // loop_exit
      _
    %9629 = vsyncpa [#allocation4], 1
    %s9630 = scalar_lea.sflag [#allocation4], 1
    %9631 = vsyncpa %s9630, 1

</llo_original>
